<compile_context>
chip_gen: v6e
topology: v6e:2x2x1
jax: 0.10.0
libtpu: 0.0.40
codegen_flags: <defaults>
</compile_context>

<pallas_src>
import functools

import jax
import jax.numpy as jnp
from jax.experimental import pallas as pl
from jax.experimental.pallas import tpu as pltpu

# ----------------------- model config (small, deterministic) -----------------------
VOCAB = 64
TYPE_VOCAB = 2
MAX_POS = 16
HIDDEN = 32
N_HEADS = 4
HEAD_DIM = HIDDEN // N_HEADS
INTERMEDIATE = 64
N_LAYERS = 2
NUM_CLASSES = 3
CLS_H1, CLS_H2, CLS_H3 = 128, 64, 16     # classifier hidden sizes
LANE = 128                               # TPU lane width (packed-vector / output padding)
LN_EPS = 1e-12
BN_EPS = 1e-5


def _gelu(x):
    # exact (erf-based) GELU, matching torch.nn.GELU()
    return 0.5 * x * (1.0 + jax.lax.erf(x * 0.7071067811865476))


def _ln(y, g, b, eps):
    mu = jnp.mean(y, axis=-1, keepdims=True)
    d = y - mu
    var = jnp.mean(d * d, axis=-1, keepdims=True)
    return d * jax.lax.rsqrt(var + eps) * g + b


# ------------------------------ single fused kernel ---------------------------------
def _bert_kernel(emb_ref, mbias_ref,
                 wqkv_ref, bqkv_ref, wo_ref, wfi_ref, wfo_ref, lvec_ref,
                 wp_ref, w1_ref, w2_ref, w3_ref, w4_ref, gvec_ref,
                 o_ref,
                 *, seq, n_layers, n_heads, head_dim, inter):
    hidden = n_heads * head_dim
    scale = 1.0 / float(head_dim) ** 0.5

    gvec = gvec_ref[...]                               # (8, LANE) packed global vectors
    eg = gvec[0:1, :hidden]
    eb = gvec[1:2, :hidden]

    # embeddings LayerNorm; this grid program handles one sequence of the batch
    x = _ln(emb_ref[0], eg, eb, LN_EPS)                # (S, H)

    # additive attention-mask bias, broadcast exactly once (hoisted out of all loops)
    mbias = jnp.broadcast_to(mbias_ref[0], (seq, seq))  # (1,S) -> (S,S)

    for l in range(n_layers):
        vec = lvec_ref[l]                              # (8, LANE) per-layer vectors
        bo = vec[0:1, :hidden]
        ln1g = vec[1:2, :hidden]
        ln1b = vec[2:3, :hidden]
        bfi = vec[3:4, :inter]
        bfo = vec[4:5, :hidden]
        ln2g = vec[5:6, :hidden]
        ln2b = vec[6:7, :hidden]

        # ---- self-attention: heads split at pack time, so no activation lane slicing.
        # Every op is a 2-D matmul / elementwise op; per-head matmuls land on idle MXU
        # slots instead of masked XLU lane extracts.
        base = l * 3 * n_heads
        attn = None
        for h in range(n_heads):
            qh = jnp.dot(x, wqkv_ref[base + h],
                         preferred_element_type=jnp.float32) + bqkv_ref[base + h]
            kh = jnp.dot(x, wqkv_ref[base + n_heads + h],
                         preferred_element_type=jnp.float32) + bqkv_ref[base + n_heads + h]
            vh = jnp.dot(x, wqkv_ref[base + 2 * n_heads + h],
                         preferred_element_type=jnp.float32) + bqkv_ref[base + 2 * n_heads + h]
            s = jnp.einsum("qd,kd->qk", qh, kh,
                           preferred_element_type=jnp.float32) * scale + mbias
            m = jnp.max(s, axis=-1, keepdims=True)
            p = jnp.exp(s - m)
            p = p * pl.reciprocal(jnp.sum(p, axis=-1, keepdims=True), approx=True)
            ctx = jnp.dot(p, vh, preferred_element_type=jnp.float32)          # (S, d)
            part = jnp.dot(ctx, wo_ref[l * n_heads + h],
                           preferred_element_type=jnp.float32)                # (S, H)
            attn = part if attn is None else attn + part
        x = _ln(attn + bo + x, ln1g, ln1b, LN_EPS)

        # ---- feed-forward
        hmid = _gelu(jnp.dot(x, wfi_ref[l], preferred_element_type=jnp.float32) + bfi)
        ffn = jnp.dot(hmid, wfo_ref[l], preferred_element_type=jnp.float32) + bfo
        x = _ln(ffn + x, ln2g, ln2b, LN_EPS)

    # pooler (dense + tanh) and BN-folded classifier head, applied row-wise to all
    # token rows (identical per-row math); [CLS] rows are selected in the wrapper.
    pooled = jnp.tanh(jnp.dot(x, wp_ref[...], preferred_element_type=jnp.float32)
                      + gvec[2:3, :hidden])
    h1 = _gelu(jnp.dot(pooled, w1_ref[...], preferred_element_type=jnp.float32)
               + gvec[3:4, :CLS_H1])
    h2 = _gelu(jnp.dot(h1, w2_ref[...], preferred_element_type=jnp.float32)
               + gvec[4:5, :CLS_H2])
    h3 = _gelu(jnp.dot(h2, w3_ref[...], preferred_element_type=jnp.float32)
               + gvec[5:6, :CLS_H3])
    logits = jnp.dot(h3, w4_ref[...], preferred_element_type=jnp.float32) + gvec[6:7, :]
    o_ref[0] = logits.astype(o_ref.dtype)              # lane-dense (S, 128) store


# --------------------------------- parameters ---------------------------------------
def init_params(key):
    ks = iter(jax.random.split(key, 256))

    def dense(fan_in, fan_out):
        w = jax.random.normal(next(ks), (fan_in, fan_out), jnp.float32) * 0.02
        b = jnp.zeros((fan_out,), jnp.float32)
        return w, b

    def ln(n):
        return jnp.ones((n,), jnp.float32), jnp.zeros((n,), jnp.float32)

    def bn(n):
        gamma = 1.0 + 0.1 * jax.random.normal(next(ks), (n,), jnp.float32)
        beta = 0.1 * jax.random.normal(next(ks), (n,), jnp.float32)
        rmean = 0.1 * jax.random.normal(next(ks), (n,), jnp.float32)
        rvar = 1.0 + 0.1 * jnp.abs(jax.random.normal(next(ks), (n,), jnp.float32))
        return gamma, beta, rmean, rvar

    p = {
        "word_emb": jax.random.normal(next(ks), (VOCAB, HIDDEN), jnp.float32) * 0.02,
        "pos_emb": jax.random.normal(next(ks), (MAX_POS, HIDDEN), jnp.float32) * 0.02,
        "type_emb": jax.random.normal(next(ks), (TYPE_VOCAB, HIDDEN), jnp.float32) * 0.02,
        "emb_ln": ln(HIDDEN),
    }

    layers = []
    for _ in range(N_LAYERS):
        layers.append({
            "q": dense(HIDDEN, HIDDEN),
            "k": dense(HIDDEN, HIDDEN),
            "v": dense(HIDDEN, HIDDEN),
            "o": dense(HIDDEN, HIDDEN),
            "ln1": ln(HIDDEN),
            "ffn_in": dense(HIDDEN, INTERMEDIATE),
            "ffn_out": dense(INTERMEDIATE, HIDDEN),
            "ln2": ln(HIDDEN),
        })
    p["layers"] = layers
    p["pooler"] = dense(HIDDEN, HIDDEN)

    # classifier: 32->128 BN GELU | 128->64 BN GELU | 64->16 BN GELU | 16->3
    p["cls"] = {
        "l1": dense(HIDDEN, CLS_H1), "bn1": bn(CLS_H1),
        "l2": dense(CLS_H1, CLS_H2), "bn2": bn(CLS_H2),
        "l3": dense(CLS_H2, CLS_H3), "bn3": bn(CLS_H3),
        "l4": dense(CLS_H3, NUM_CLASSES),
    }
    return p


def _fold_bn(w, b, bn_params, eps=BN_EPS):
    # eval-mode BatchNorm is a pure affine map; fold into the preceding Linear
    gamma, beta, rmean, rvar = bn_params
    s = gamma * jax.lax.rsqrt(rvar + eps)
    return w * s[None, :], (b - rmean) * s + beta


def _row(v, width=LANE):
    out = jnp.zeros((width,), jnp.float32)
    return out.at[: v.shape[0]].set(v)


def _pack_params(params):
    layers = params["layers"]

    def head_split_w(w):     # (H, H) -> (nH, H, d): split output columns per head
        return w.reshape(HIDDEN, N_HEADS, HEAD_DIM).transpose(1, 0, 2)

    def head_split_b(b):     # (H,) -> (nH, 1, d)
        return b.reshape(N_HEADS, 1, HEAD_DIM)

    # per-head Q/K/V weights:  (L*3*nH, H, d); index = (l*3 + {q,k,v})*nH + h
    wqkv = jnp.stack([
        jnp.stack([head_split_w(L["q"][0]),
                   head_split_w(L["k"][0]),
                   head_split_w(L["v"][0])]) for L in layers
    ]).reshape(N_LAYERS * 3 * N_HEADS, HIDDEN, HEAD_DIM)
    bqkv = jnp.stack([
        jnp.stack([head_split_b(L["q"][1]),
                   head_split_b(L["k"][1]),
                   head_split_b(L["v"][1])]) for L in layers
    ]).reshape(N_LAYERS * 3 * N_HEADS, 1, HEAD_DIM)
    # per-head O-projection rows: (L*nH, d, H); index = l*nH + h
    wo = jnp.stack([L["o"][0].reshape(N_HEADS, HEAD_DIM, HIDDEN) for L in layers]
                   ).reshape(N_LAYERS * N_HEADS, HEAD_DIM, HIDDEN)
    wfi = jnp.stack([L["ffn_in"][0] for L in layers])      # (L, H, I)
    wfo = jnp.stack([L["ffn_out"][0] for L in layers])     # (L, I, H)

    # one (L, 8, 128) slab for all remaining per-layer vectors (single DMA)
    lvec = jnp.stack([
        jnp.stack([_row(L["o"][1]),
                   _row(L["ln1"][0]), _row(L["ln1"][1]),
                   _row(L["ffn_in"][1]), _row(L["ffn_out"][1]),
                   _row(L["ln2"][0]), _row(L["ln2"][1]),
                   jnp.zeros((LANE,), jnp.float32)]) for L in layers])

    wp, bp = params["pooler"]
    c = params["cls"]
    w1, b1 = _fold_bn(*c["l1"], c["bn1"])
    w2, b2 = _fold_bn(*c["l2"], c["bn2"])
    w3, b3 = _fold_bn(*c["l3"], c["bn3"])
    w4, b4 = c["l4"]
    # zero-pad the last Linear to 128 output columns -> lane-dense logits store
    w4p = jnp.zeros((CLS_H3, LANE), jnp.float32).at[:, :NUM_CLASSES].set(w4)

    eg, eb = params["emb_ln"]
    # one (8, 128) slab for emb-LN / pooler / classifier bias vectors
    gvec = jnp.stack([_row(eg), _row(eb), _row(bp),
                      _row(b1), _row(b2), _row(b3), _row(b4),
                      jnp.zeros((LANE,), jnp.float32)])

    return (wqkv, bqkv, wo, wfi, wfo, lvec, wp, w1, w2, w3, w4p, gvec)


# ----------------------------------- forward ----------------------------------------
def forward(params, input_ids, attn_masks, token_type_ids):
    B, S = input_ids.shape

    # embedding-table gathers stay in plain JAX
    emb = (params["word_emb"][input_ids]
           + params["pos_emb"][jnp.arange(S)][None, :, :]
           + params["type_emb"][token_type_ids]).astype(jnp.float32)      # (B, S, H)

    # additive attention-mask bias, shape (B, 1, S)
    mask_bias = ((1.0 - attn_masks.astype(jnp.float32)) * (-1e9)).reshape(B, 1, S)

    packed = _pack_params(params)
    inputs = (emb, mask_bias) + packed

    def resident(shape):
        nd = len(shape)
        return pl.BlockSpec(shape, lambda b, _nd=nd: (0,) * _nd)

    in_specs = [
        pl.BlockSpec((1, S, HIDDEN), lambda b: (b, 0, 0)),   # per-batch activations
        pl.BlockSpec((1, 1, S), lambda b: (b, 0, 0)),        # per-batch mask bias
    ] + [resident(a.shape) for a in packed]                  # weights resident in VMEM

    kernel = functools.partial(
        _bert_kernel, seq=S, n_layers=N_LAYERS,
        n_heads=N_HEADS, head_dim=HEAD_DIM, inter=INTERMEDIATE)

    out = pl.pallas_call(
        kernel,
        grid=(B,),                                            # parallel over batch (v7x: 2 TCs)
        in_specs=in_specs,
        out_specs=pl.BlockSpec((1, S, LANE), lambda b: (b, 0, 0)),
        out_shape=jax.ShapeDtypeStruct((B, S, LANE), jnp.float32),
        compiler_params=pltpu.CompilerParams(dimension_semantics=("parallel",)),
    )(*inputs)

    # select the [CLS] rows and the real (unpadded) class columns
    return out[:, 0, :NUM_CLASSES]


# ------------------------------------- main ------------------------------------------
if __name__ == "__main__":
    key = jax.random.PRNGKey(0)
    kp, ki, km = jax.random.split(key, 3)

    B, S = 2, 8
    params = init_params(kp)

    input_ids = jax.random.randint(ki, (B, S), 0, VOCAB, dtype=jnp.int32)
    attn_masks = jnp.array(
        [[1, 1, 1, 1, 1, 1, 1, 1],
         [1, 1, 1, 1, 1, 0, 0, 0]], dtype=jnp.int32
    )
    token_type_ids = jnp.array(
        [[0, 0, 0, 0, 1, 1, 1, 1],
         [0, 0, 0, 0, 0, 0, 0, 0]], dtype=jnp.int32
    )

    # TODO(synk): pretrained bert-base-uncased weights (AutoModel.from_pretrained)
    # cannot be loaded in-script; a deterministic scaled-down encoder is used instead.
    logits = jax.jit(forward)(params, input_ids, attn_masks, token_type_ids)
    logits = jax.block_until_ready(logits)
    assert logits.shape == (B, NUM_CLASSES) and logits.dtype == jnp.float32
    print("KERNEL_OK")
</pallas_src>

<mosaic_0001>
module attributes {stable_mosaic.version = 11 : i64} {
  func.func @_bert_kernel(%arg0: i32, %arg1: memref<1x8x32xf32, #tpu.memory_space<vmem>>, %arg2: memref<1x1x8xf32, #tpu.memory_space<vmem>>, %arg3: memref<24x32x8xf32, #tpu.memory_space<vmem>>, %arg4: memref<24x1x8xf32, #tpu.memory_space<vmem>>, %arg5: memref<8x8x32xf32, #tpu.memory_space<vmem>>, %arg6: memref<2x32x64xf32, #tpu.memory_space<vmem>>, %arg7: memref<2x64x32xf32, #tpu.memory_space<vmem>>, %arg8: memref<2x8x128xf32, #tpu.memory_space<vmem>>, %arg9: memref<32x32xf32, #tpu.memory_space<vmem>>, %arg10: memref<32x128xf32, #tpu.memory_space<vmem>>, %arg11: memref<128x64xf32, #tpu.memory_space<vmem>>, %arg12: memref<64x16xf32, #tpu.memory_space<vmem>>, %arg13: memref<16x128xf32, #tpu.memory_space<vmem>>, %arg14: memref<8x128xf32, #tpu.memory_space<vmem>>, %arg15: memref<1x8x128xf32, #tpu.memory_space<vmem>>) attributes {dimension_semantics = [#tpu.dimension_semantics<parallel>], iteration_bounds = array<i64: 2>, scalar_prefetch = 0 : i64, scratch_operands = 0 : i64, tpu.core_type = #tpu.core_type<tc>, window_params = [{transform_indices = @transform_0, window_bounds = array<i64: 1, 8, 32>}, {transform_indices = @transform_1, window_bounds = array<i64: 1, 1, 8>}, {pipeline_mode = #tpu.pipeline_mode<synchronous>, transform_indices = @transform_2, window_bounds = array<i64: 24, 32, 8>}, {pipeline_mode = #tpu.pipeline_mode<synchronous>, transform_indices = @transform_3, window_bounds = array<i64: 24, 1, 8>}, {pipeline_mode = #tpu.pipeline_mode<synchronous>, transform_indices = @transform_4, window_bounds = array<i64: 8, 8, 32>}, {pipeline_mode = #tpu.pipeline_mode<synchronous>, transform_indices = @transform_5, window_bounds = array<i64: 2, 32, 64>}, {pipeline_mode = #tpu.pipeline_mode<synchronous>, transform_indices = @transform_6, window_bounds = array<i64: 2, 64, 32>}, {pipeline_mode = #tpu.pipeline_mode<synchronous>, transform_indices = @transform_7, window_bounds = array<i64: 2, 8, 128>}, {pipeline_mode = #tpu.pipeline_mode<synchronous>, transform_indices = @transform_8, window_bounds = array<i64: 32, 32>}, {pipeline_mode = #tpu.pipeline_mode<synchronous>, transform_indices = @transform_9, window_bounds = array<i64: 32, 128>}, {pipeline_mode = #tpu.pipeline_mode<synchronous>, transform_indices = @transform_10, window_bounds = array<i64: 128, 64>}, {pipeline_mode = #tpu.pipeline_mode<synchronous>, transform_indices = @transform_11, window_bounds = array<i64: 64, 16>}, {pipeline_mode = #tpu.pipeline_mode<synchronous>, transform_indices = @transform_12, window_bounds = array<i64: 16, 128>}, {pipeline_mode = #tpu.pipeline_mode<synchronous>, transform_indices = @transform_13, window_bounds = array<i64: 8, 128>}, {transform_indices = @transform_14, window_bounds = array<i64: 1, 8, 128>}]} {
    %c0 = arith.constant 0 : index
    %c0_0 = arith.constant 0 : index
    %0 = vector.load %arg14[%c0, %c0_0] : memref<8x128xf32, #tpu.memory_space<vmem>>, vector<8x128xf32>
    %1 = vector.extract_strided_slice %0 {offsets = [0, 0], sizes = [1, 32], strides = [1, 1]} : vector<8x128xf32> to vector<1x32xf32>
    %2 = vector.extract_strided_slice %0 {offsets = [1, 0], sizes = [1, 32], strides = [1, 1]} : vector<8x128xf32> to vector<1x32xf32>
    %c0_1 = arith.constant 0 : index
    %c0_2 = arith.constant 0 : index
    %c0_3 = arith.constant 0 : index
    %3 = vector.load %arg1[%c0_1, %c0_2, %c0_3] : memref<1x8x32xf32, #tpu.memory_space<vmem>>, vector<1x8x32xf32>
    %4 = vector.shape_cast %3 : vector<1x8x32xf32> to vector<8x32xf32>
    %cst = arith.constant dense<0.000000e+00> : vector<8xf32>
    %5 = vector.multi_reduction <add>, %4, %cst [1] : vector<8x32xf32> to vector<8xf32>
    %6 = vector.shape_cast %5 : vector<8xf32> to vector<8x1xf32>
    %cst_4 = arith.constant 3.200000e+01 : f32
    %7 = vector.broadcast %cst_4 : f32 to vector<8x1xf32>
    %8 = arith.divf %6, %7 : vector<8x1xf32>
    %9 = vector.broadcast %8 : vector<8x1xf32> to vector<8x32xf32>
    %10 = arith.subf %4, %9 : vector<8x32xf32>
    %11 = arith.mulf %10, %10 : vector<8x32xf32>
    %cst_5 = arith.constant dense<0.000000e+00> : vector<8xf32>
    %12 = vector.multi_reduction <add>, %11, %cst_5 [1] : vector<8x32xf32> to vector<8xf32>
    %13 = vector.shape_cast %12 : vector<8xf32> to vector<8x1xf32>
    %cst_6 = arith.constant 3.200000e+01 : f32
    %14 = vector.broadcast %cst_6 : f32 to vector<8x1xf32>
    %15 = arith.divf %13, %14 : vector<8x1xf32>
    %cst_7 = arith.constant 9.99999996E-13 : f32
    %16 = vector.broadcast %cst_7 : f32 to vector<8x1xf32>
    %17 = arith.addf %15, %16 : vector<8x1xf32>
    %18 = math.rsqrt %17 : vector<8x1xf32>
    %19 = vector.broadcast %18 : vector<8x1xf32> to vector<8x32xf32>
    %20 = arith.mulf %10, %19 : vector<8x32xf32>
    %21 = vector.broadcast %1 : vector<1x32xf32> to vector<8x32xf32>
    %22 = arith.mulf %20, %21 : vector<8x32xf32>
    %23 = vector.broadcast %2 : vector<1x32xf32> to vector<8x32xf32>
    %24 = arith.addf %22, %23 : vector<8x32xf32>
    %c0_8 = arith.constant 0 : index
    %c0_9 = arith.constant 0 : index
    %c0_10 = arith.constant 0 : index
    %25 = vector.load %arg2[%c0_8, %c0_9, %c0_10] : memref<1x1x8xf32, #tpu.memory_space<vmem>>, vector<1x1x8xf32>
    %26 = vector.shape_cast %25 : vector<1x1x8xf32> to vector<1x8xf32>
    %27 = vector.shape_cast %26 : vector<1x8xf32> to vector<1x8xf32>
    %28 = vector.broadcast %27 : vector<1x8xf32> to vector<8x8xf32>
    %c0_11 = arith.constant 0 : index
    %c0_12 = arith.constant 0 : index
    %c0_13 = arith.constant 0 : index
    %29 = vector.load %arg8[%c0_11, %c0_12, %c0_13] : memref<2x8x128xf32, #tpu.memory_space<vmem>>, vector<1x8x128xf32>
    %30 = vector.shape_cast %29 : vector<1x8x128xf32> to vector<8x128xf32>
    %31 = vector.extract_strided_slice %30 {offsets = [0, 0], sizes = [1, 32], strides = [1, 1]} : vector<8x128xf32> to vector<1x32xf32>
    %32 = vector.extract_strided_slice %30 {offsets = [1, 0], sizes = [1, 32], strides = [1, 1]} : vector<8x128xf32> to vector<1x32xf32>
    %33 = vector.extract_strided_slice %30 {offsets = [2, 0], sizes = [1, 32], strides = [1, 1]} : vector<8x128xf32> to vector<1x32xf32>
    %34 = vector.extract_strided_slice %30 {offsets = [3, 0], sizes = [1, 64], strides = [1, 1]} : vector<8x128xf32> to vector<1x64xf32>
    %35 = vector.extract_strided_slice %30 {offsets = [4, 0], sizes = [1, 32], strides = [1, 1]} : vector<8x128xf32> to vector<1x32xf32>
    %36 = vector.extract_strided_slice %30 {offsets = [5, 0], sizes = [1, 32], strides = [1, 1]} : vector<8x128xf32> to vector<1x32xf32>
    %37 = vector.extract_strided_slice %30 {offsets = [6, 0], sizes = [1, 32], strides = [1, 1]} : vector<8x128xf32> to vector<1x32xf32>
    %c0_14 = arith.constant 0 : index
    %c0_15 = arith.constant 0 : index
    %c0_16 = arith.constant 0 : index
    %38 = vector.load %arg3[%c0_14, %c0_15, %c0_16] : memref<24x32x8xf32, #tpu.memory_space<vmem>>, vector<1x32x8xf32>
    %39 = vector.shape_cast %38 : vector<1x32x8xf32> to vector<32x8xf32>
    %cst_17 = arith.constant dense<0.000000e+00> : vector<8x8xf32>
    %40 = tpu.matmul %24, %39, %cst_17 {dimension_numbers = #tpu.dot_dimension_numbers<[1], [0], [0], [1], [0, 0, 1, 1], [], []>} : vector<8x32xf32>, vector<32x8xf32>, vector<8x8xf32> -> vector<8x8xf32>
    %c0_18 = arith.constant 0 : index
    %c0_19 = arith.constant 0 : index
    %c0_20 = arith.constant 0 : index
    %41 = vector.load %arg4[%c0_18, %c0_19, %c0_20] : memref<24x1x8xf32, #tpu.memory_space<vmem>>, vector<1x1x8xf32>
    %42 = vector.shape_cast %41 : vector<1x1x8xf32> to vector<1x8xf32>
    %43 = vector.broadcast %42 : vector<1x8xf32> to vector<8x8xf32>
    %44 = arith.addf %40, %43 : vector<8x8xf32>
    %c4 = arith.constant 4 : index
    %c0_21 = arith.constant 0 : index
    %c0_22 = arith.constant 0 : index
    %45 = vector.load %arg3[%c4, %c0_21, %c0_22] : memref<24x32x8xf32, #tpu.memory_space<vmem>>, vector<1x32x8xf32>
    %46 = vector.shape_cast %45 : vector<1x32x8xf32> to vector<32x8xf32>
    %cst_23 = arith.constant dense<0.000000e+00> : vector<8x8xf32>
    %47 = tpu.matmul %24, %46, %cst_23 {dimension_numbers = #tpu.dot_dimension_numbers<[1], [0], [0], [1], [0, 0, 1, 1], [], []>} : vector<8x32xf32>, vector<32x8xf32>, vector<8x8xf32> -> vector<8x8xf32>
    %c4_24 = arith.constant 4 : index
    %c0_25 = arith.constant 0 : index
    %c0_26 = arith.constant 0 : index
    %48 = vector.load %arg4[%c4_24, %c0_25, %c0_26] : memref<24x1x8xf32, #tpu.memory_space<vmem>>, vector<1x1x8xf32>
    %49 = vector.shape_cast %48 : vector<1x1x8xf32> to vector<1x8xf32>
    %50 = vector.broadcast %49 : vector<1x8xf32> to vector<8x8xf32>
    %51 = arith.addf %47, %50 : vector<8x8xf32>
    %c8 = arith.constant 8 : index
    %c0_27 = arith.constant 0 : index
    %c0_28 = arith.constant 0 : index
    %52 = vector.load %arg3[%c8, %c0_27, %c0_28] : memref<24x32x8xf32, #tpu.memory_space<vmem>>, vector<1x32x8xf32>
    %53 = vector.shape_cast %52 : vector<1x32x8xf32> to vector<32x8xf32>
    %cst_29 = arith.constant dense<0.000000e+00> : vector<8x8xf32>
    %54 = tpu.matmul %24, %53, %cst_29 {dimension_numbers = #tpu.dot_dimension_numbers<[1], [0], [0], [1], [0, 0, 1, 1], [], []>} : vector<8x32xf32>, vector<32x8xf32>, vector<8x8xf32> -> vector<8x8xf32>
    %c8_30 = arith.constant 8 : index
    %c0_31 = arith.constant 0 : index
    %c0_32 = arith.constant 0 : index
    %55 = vector.load %arg4[%c8_30, %c0_31, %c0_32] : memref<24x1x8xf32, #tpu.memory_space<vmem>>, vector<1x1x8xf32>
    %56 = vector.shape_cast %55 : vector<1x1x8xf32> to vector<1x8xf32>
    %57 = vector.broadcast %56 : vector<1x8xf32> to vector<8x8xf32>
    %58 = arith.addf %54, %57 : vector<8x8xf32>
    "tpu.trace_start"() <{level = 10 : i32, message = "qd,kd->qk"}> : () -> ()
    %cst_33 = arith.constant dense<0.000000e+00> : vector<8x8xf32>
    %59 = tpu.matmul %44, %51, %cst_33 {dimension_numbers = #tpu.dot_dimension_numbers<[1], [1], [0], [0], [0, 0, 1, 0], [], []>} : vector<8x8xf32>, vector<8x8xf32>, vector<8x8xf32> -> vector<8x8xf32>
    "tpu.trace_stop"() : () -> ()
    %cst_34 = arith.constant 0.353553385 : f32
    %60 = vector.broadcast %cst_34 : f32 to vector<8x8xf32>
    %61 = arith.mulf %59, %60 : vector<8x8xf32>
    %62 = arith.addf %61, %28 : vector<8x8xf32>
    %cst_35 = arith.constant dense<0xFF800000> : vector<8xf32>
    %63 = vector.multi_reduction <maximumf>, %62, %cst_35 [1] : vector<8x8xf32> to vector<8xf32>
    %64 = vector.shape_cast %63 : vector<8xf32> to vector<8x1xf32>
    %65 = vector.broadcast %64 : vector<8x1xf32> to vector<8x8xf32>
    %66 = arith.subf %62, %65 : vector<8x8xf32>
    %67 = math.exp %66 : vector<8x8xf32>
    %cst_36 = arith.constant dense<0.000000e+00> : vector<8xf32>
    %68 = vector.multi_reduction <add>, %67, %cst_36 [1] : vector<8x8xf32> to vector<8xf32>
    %69 = vector.shape_cast %68 : vector<8xf32> to vector<8x1xf32>
    %70 = tpu.reciprocal %69 {approx = true} : vector<8x1xf32> -> vector<8x1xf32>
    %71 = vector.broadcast %70 : vector<8x1xf32> to vector<8x8xf32>
    %72 = arith.mulf %67, %71 : vector<8x8xf32>
    %cst_37 = arith.constant dense<0.000000e+00> : vector<8x8xf32>
    %73 = tpu.matmul %72, %58, %cst_37 {dimension_numbers = #tpu.dot_dimension_numbers<[1], [0], [0], [1], [0, 0, 1, 1], [], []>} : vector<8x8xf32>, vector<8x8xf32>, vector<8x8xf32> -> vector<8x8xf32>
    %c0_38 = arith.constant 0 : index
    %c0_39 = arith.constant 0 : index
    %c0_40 = arith.constant 0 : index
    %74 = vector.load %arg5[%c0_38, %c0_39, %c0_40] : memref<8x8x32xf32, #tpu.memory_space<vmem>>, vector<1x8x32xf32>
    %75 = vector.shape_cast %74 : vector<1x8x32xf32> to vector<8x32xf32>
    %cst_41 = arith.constant dense<0.000000e+00> : vector<8x32xf32>
    %76 = tpu.matmul %73, %75, %cst_41 {dimension_numbers = #tpu.dot_dimension_numbers<[1], [0], [0], [1], [0, 0, 1, 1], [], []>} : vector<8x8xf32>, vector<8x32xf32>, vector<8x32xf32> -> vector<8x32xf32>
    %c1 = arith.constant 1 : index
    %c0_42 = arith.constant 0 : index
    %c0_43 = arith.constant 0 : index
    %77 = vector.load %arg3[%c1, %c0_42, %c0_43] : memref<24x32x8xf32, #tpu.memory_space<vmem>>, vector<1x32x8xf32>
    %78 = vector.shape_cast %77 : vector<1x32x8xf32> to vector<32x8xf32>
    %cst_44 = arith.constant dense<0.000000e+00> : vector<8x8xf32>
    %79 = tpu.matmul %24, %78, %cst_44 {dimension_numbers = #tpu.dot_dimension_numbers<[1], [0], [0], [1], [0, 0, 1, 1], [], []>} : vector<8x32xf32>, vector<32x8xf32>, vector<8x8xf32> -> vector<8x8xf32>
    %c1_45 = arith.constant 1 : index
    %c0_46 = arith.constant 0 : index
    %c0_47 = arith.constant 0 : index
    %80 = vector.load %arg4[%c1_45, %c0_46, %c0_47] : memref<24x1x8xf32, #tpu.memory_space<vmem>>, vector<1x1x8xf32>
    %81 = vector.shape_cast %80 : vector<1x1x8xf32> to vector<1x8xf32>
    %82 = vector.broadcast %81 : vector<1x8xf32> to vector<8x8xf32>
    %83 = arith.addf %79, %82 : vector<8x8xf32>
    %c5 = arith.constant 5 : index
    %c0_48 = arith.constant 0 : index
    %c0_49 = arith.constant 0 : index
    %84 = vector.load %arg3[%c5, %c0_48, %c0_49] : memref<24x32x8xf32, #tpu.memory_space<vmem>>, vector<1x32x8xf32>
    %85 = vector.shape_cast %84 : vector<1x32x8xf32> to vector<32x8xf32>
    %cst_50 = arith.constant dense<0.000000e+00> : vector<8x8xf32>
    %86 = tpu.matmul %24, %85, %cst_50 {dimension_numbers = #tpu.dot_dimension_numbers<[1], [0], [0], [1], [0, 0, 1, 1], [], []>} : vector<8x32xf32>, vector<32x8xf32>, vector<8x8xf32> -> vector<8x8xf32>
    %c5_51 = arith.constant 5 : index
    %c0_52 = arith.constant 0 : index
    %c0_53 = arith.constant 0 : index
    %87 = vector.load %arg4[%c5_51, %c0_52, %c0_53] : memref<24x1x8xf32, #tpu.memory_space<vmem>>, vector<1x1x8xf32>
    %88 = vector.shape_cast %87 : vector<1x1x8xf32> to vector<1x8xf32>
    %89 = vector.broadcast %88 : vector<1x8xf32> to vector<8x8xf32>
    %90 = arith.addf %86, %89 : vector<8x8xf32>
    %c9 = arith.constant 9 : index
    %c0_54 = arith.constant 0 : index
    %c0_55 = arith.constant 0 : index
    %91 = vector.load %arg3[%c9, %c0_54, %c0_55] : memref<24x32x8xf32, #tpu.memory_space<vmem>>, vector<1x32x8xf32>
    %92 = vector.shape_cast %91 : vector<1x32x8xf32> to vector<32x8xf32>
    %cst_56 = arith.constant dense<0.000000e+00> : vector<8x8xf32>
    %93 = tpu.matmul %24, %92, %cst_56 {dimension_numbers = #tpu.dot_dimension_numbers<[1], [0], [0], [1], [0, 0, 1, 1], [], []>} : vector<8x32xf32>, vector<32x8xf32>, vector<8x8xf32> -> vector<8x8xf32>
    %c9_57 = arith.constant 9 : index
    %c0_58 = arith.constant 0 : index
    %c0_59 = arith.constant 0 : index
    %94 = vector.load %arg4[%c9_57, %c0_58, %c0_59] : memref<24x1x8xf32, #tpu.memory_space<vmem>>, vector<1x1x8xf32>
    %95 = vector.shape_cast %94 : vector<1x1x8xf32> to vector<1x8xf32>
    %96 = vector.broadcast %95 : vector<1x8xf32> to vector<8x8xf32>
    %97 = arith.addf %93, %96 : vector<8x8xf32>
    "tpu.trace_start"() <{level = 10 : i32, message = "qd,kd->qk"}> : () -> ()
    %cst_60 = arith.constant dense<0.000000e+00> : vector<8x8xf32>
    %98 = tpu.matmul %83, %90, %cst_60 {dimension_numbers = #tpu.dot_dimension_numbers<[1], [1], [0], [0], [0, 0, 1, 0], [], []>} : vector<8x8xf32>, vector<8x8xf32>, vector<8x8xf32> -> vector<8x8xf32>
    "tpu.trace_stop"() : () -> ()
    %cst_61 = arith.constant 0.353553385 : f32
    %99 = vector.broadcast %cst_61 : f32 to vector<8x8xf32>
    %100 = arith.mulf %98, %99 : vector<8x8xf32>
    %101 = arith.addf %100, %28 : vector<8x8xf32>
    %cst_62 = arith.constant dense<0xFF800000> : vector<8xf32>
    %102 = vector.multi_reduction <maximumf>, %101, %cst_62 [1] : vector<8x8xf32> to vector<8xf32>
    %103 = vector.shape_cast %102 : vector<8xf32> to vector<8x1xf32>
    %104 = vector.broadcast %103 : vector<8x1xf32> to vector<8x8xf32>
    %105 = arith.subf %101, %104 : vector<8x8xf32>
    %106 = math.exp %105 : vector<8x8xf32>
    %cst_63 = arith.constant dense<0.000000e+00> : vector<8xf32>
    %107 = vector.multi_reduction <add>, %106, %cst_63 [1] : vector<8x8xf32> to vector<8xf32>
    %108 = vector.shape_cast %107 : vector<8xf32> to vector<8x1xf32>
    %109 = tpu.reciprocal %108 {approx = true} : vector<8x1xf32> -> vector<8x1xf32>
    %110 = vector.broadcast %109 : vector<8x1xf32> to vector<8x8xf32>
    %111 = arith.mulf %106, %110 : vector<8x8xf32>
    %cst_64 = arith.constant dense<0.000000e+00> : vector<8x8xf32>
    %112 = tpu.matmul %111, %97, %cst_64 {dimension_numbers = #tpu.dot_dimension_numbers<[1], [0], [0], [1], [0, 0, 1, 1], [], []>} : vector<8x8xf32>, vector<8x8xf32>, vector<8x8xf32> -> vector<8x8xf32>
    %c1_65 = arith.constant 1 : index
    %c0_66 = arith.constant 0 : index
    %c0_67 = arith.constant 0 : index
    %113 = vector.load %arg5[%c1_65, %c0_66, %c0_67] : memref<8x8x32xf32, #tpu.memory_space<vmem>>, vector<1x8x32xf32>
    %114 = vector.shape_cast %113 : vector<1x8x32xf32> to vector<8x32xf32>
    %cst_68 = arith.constant dense<0.000000e+00> : vector<8x32xf32>
    %115 = tpu.matmul %112, %114, %cst_68 {dimension_numbers = #tpu.dot_dimension_numbers<[1], [0], [0], [1], [0, 0, 1, 1], [], []>} : vector<8x8xf32>, vector<8x32xf32>, vector<8x32xf32> -> vector<8x32xf32>
    %116 = arith.addf %76, %115 : vector<8x32xf32>
    %c2 = arith.constant 2 : index
    %c0_69 = arith.constant 0 : index
    %c0_70 = arith.constant 0 : index
    %117 = vector.load %arg3[%c2, %c0_69, %c0_70] : memref<24x32x8xf32, #tpu.memory_space<vmem>>, vector<1x32x8xf32>
    %118 = vector.shape_cast %117 : vector<1x32x8xf32> to vector<32x8xf32>
    %cst_71 = arith.constant dense<0.000000e+00> : vector<8x8xf32>
    %119 = tpu.matmul %24, %118, %cst_71 {dimension_numbers = #tpu.dot_dimension_numbers<[1], [0], [0], [1], [0, 0, 1, 1], [], []>} : vector<8x32xf32>, vector<32x8xf32>, vector<8x8xf32> -> vector<8x8xf32>
    %c2_72 = arith.constant 2 : index
    %c0_73 = arith.constant 0 : index
    %c0_74 = arith.constant 0 : index
    %120 = vector.load %arg4[%c2_72, %c0_73, %c0_74] : memref<24x1x8xf32, #tpu.memory_space<vmem>>, vector<1x1x8xf32>
    %121 = vector.shape_cast %120 : vector<1x1x8xf32> to vector<1x8xf32>
    %122 = vector.broadcast %121 : vector<1x8xf32> to vector<8x8xf32>
    %123 = arith.addf %119, %122 : vector<8x8xf32>
    %c6 = arith.constant 6 : index
    %c0_75 = arith.constant 0 : index
    %c0_76 = arith.constant 0 : index
    %124 = vector.load %arg3[%c6, %c0_75, %c0_76] : memref<24x32x8xf32, #tpu.memory_space<vmem>>, vector<1x32x8xf32>
    %125 = vector.shape_cast %124 : vector<1x32x8xf32> to vector<32x8xf32>
    %cst_77 = arith.constant dense<0.000000e+00> : vector<8x8xf32>
    %126 = tpu.matmul %24, %125, %cst_77 {dimension_numbers = #tpu.dot_dimension_numbers<[1], [0], [0], [1], [0, 0, 1, 1], [], []>} : vector<8x32xf32>, vector<32x8xf32>, vector<8x8xf32> -> vector<8x8xf32>
    %c6_78 = arith.constant 6 : index
    %c0_79 = arith.constant 0 : index
    %c0_80 = arith.constant 0 : index
    %127 = vector.load %arg4[%c6_78, %c0_79, %c0_80] : memref<24x1x8xf32, #tpu.memory_space<vmem>>, vector<1x1x8xf32>
    %128 = vector.shape_cast %127 : vector<1x1x8xf32> to vector<1x8xf32>
    %129 = vector.broadcast %128 : vector<1x8xf32> to vector<8x8xf32>
    %130 = arith.addf %126, %129 : vector<8x8xf32>
    %c10 = arith.constant 10 : index
    %c0_81 = arith.constant 0 : index
    %c0_82 = arith.constant 0 : index
    %131 = vector.load %arg3[%c10, %c0_81, %c0_82] : memref<24x32x8xf32, #tpu.memory_space<vmem>>, vector<1x32x8xf32>
    %132 = vector.shape_cast %131 : vector<1x32x8xf32> to vector<32x8xf32>
    %cst_83 = arith.constant dense<0.000000e+00> : vector<8x8xf32>
    %133 = tpu.matmul %24, %132, %cst_83 {dimension_numbers = #tpu.dot_dimension_numbers<[1], [0], [0], [1], [0, 0, 1, 1], [], []>} : vector<8x32xf32>, vector<32x8xf32>, vector<8x8xf32> -> vector<8x8xf32>
    %c10_84 = arith.constant 10 : index
    %c0_85 = arith.constant 0 : index
    %c0_86 = arith.constant 0 : index
    %134 = vector.load %arg4[%c10_84, %c0_85, %c0_86] : memref<24x1x8xf32, #tpu.memory_space<vmem>>, vector<1x1x8xf32>
    %135 = vector.shape_cast %134 : vector<1x1x8xf32> to vector<1x8xf32>
    %136 = vector.broadcast %135 : vector<1x8xf32> to vector<8x8xf32>
    %137 = arith.addf %133, %136 : vector<8x8xf32>
    "tpu.trace_start"() <{level = 10 : i32, message = "qd,kd->qk"}> : () -> ()
    %cst_87 = arith.constant dense<0.000000e+00> : vector<8x8xf32>
    %138 = tpu.matmul %123, %130, %cst_87 {dimension_numbers = #tpu.dot_dimension_numbers<[1], [1], [0], [0], [0, 0, 1, 0], [], []>} : vector<8x8xf32>, vector<8x8xf32>, vector<8x8xf32> -> vector<8x8xf32>
    "tpu.trace_stop"() : () -> ()
    %cst_88 = arith.constant 0.353553385 : f32
    %139 = vector.broadcast %cst_88 : f32 to vector<8x8xf32>
    %140 = arith.mulf %138, %139 : vector<8x8xf32>
    %141 = arith.addf %140, %28 : vector<8x8xf32>
    %cst_89 = arith.constant dense<0xFF800000> : vector<8xf32>
    %142 = vector.multi_reduction <maximumf>, %141, %cst_89 [1] : vector<8x8xf32> to vector<8xf32>
    %143 = vector.shape_cast %142 : vector<8xf32> to vector<8x1xf32>
    %144 = vector.broadcast %143 : vector<8x1xf32> to vector<8x8xf32>
    %145 = arith.subf %141, %144 : vector<8x8xf32>
    %146 = math.exp %145 : vector<8x8xf32>
    %cst_90 = arith.constant dense<0.000000e+00> : vector<8xf32>
    %147 = vector.multi_reduction <add>, %146, %cst_90 [1] : vector<8x8xf32> to vector<8xf32>
    %148 = vector.shape_cast %147 : vector<8xf32> to vector<8x1xf32>
    %149 = tpu.reciprocal %148 {approx = true} : vector<8x1xf32> -> vector<8x1xf32>
    %150 = vector.broadcast %149 : vector<8x1xf32> to vector<8x8xf32>
    %151 = arith.mulf %146, %150 : vector<8x8xf32>
    %cst_91 = arith.constant dense<0.000000e+00> : vector<8x8xf32>
    %152 = tpu.matmul %151, %137, %cst_91 {dimension_numbers = #tpu.dot_dimension_numbers<[1], [0], [0], [1], [0, 0, 1, 1], [], []>} : vector<8x8xf32>, vector<8x8xf32>, vector<8x8xf32> -> vector<8x8xf32>
    %c2_92 = arith.constant 2 : index
    %c0_93 = arith.constant 0 : index
    %c0_94 = arith.constant 0 : index
    %153 = vector.load %arg5[%c2_92, %c0_93, %c0_94] : memref<8x8x32xf32, #tpu.memory_space<vmem>>, vector<1x8x32xf32>
    %154 = vector.shape_cast %153 : vector<1x8x32xf32> to vector<8x32xf32>
    %cst_95 = arith.constant dense<0.000000e+00> : vector<8x32xf32>
    %155 = tpu.matmul %152, %154, %cst_95 {dimension_numbers = #tpu.dot_dimension_numbers<[1], [0], [0], [1], [0, 0, 1, 1], [], []>} : vector<8x8xf32>, vector<8x32xf32>, vector<8x32xf32> -> vector<8x32xf32>
    %156 = arith.addf %116, %155 : vector<8x32xf32>
    %c3 = arith.constant 3 : index
    %c0_96 = arith.constant 0 : index
    %c0_97 = arith.constant 0 : index
    %157 = vector.load %arg3[%c3, %c0_96, %c0_97] : memref<24x32x8xf32, #tpu.memory_space<vmem>>, vector<1x32x8xf32>
    %158 = vector.shape_cast %157 : vector<1x32x8xf32> to vector<32x8xf32>
    %cst_98 = arith.constant dense<0.000000e+00> : vector<8x8xf32>
    %159 = tpu.matmul %24, %158, %cst_98 {dimension_numbers = #tpu.dot_dimension_numbers<[1], [0], [0], [1], [0, 0, 1, 1], [], []>} : vector<8x32xf32>, vector<32x8xf32>, vector<8x8xf32> -> vector<8x8xf32>
    %c3_99 = arith.constant 3 : index
    %c0_100 = arith.constant 0 : index
    %c0_101 = arith.constant 0 : index
    %160 = vector.load %arg4[%c3_99, %c0_100, %c0_101] : memref<24x1x8xf32, #tpu.memory_space<vmem>>, vector<1x1x8xf32>
    %161 = vector.shape_cast %160 : vector<1x1x8xf32> to vector<1x8xf32>
    %162 = vector.broadcast %161 : vector<1x8xf32> to vector<8x8xf32>
    %163 = arith.addf %159, %162 : vector<8x8xf32>
    %c7 = arith.constant 7 : index
    %c0_102 = arith.constant 0 : index
    %c0_103 = arith.constant 0 : index
    %164 = vector.load %arg3[%c7, %c0_102, %c0_103] : memref<24x32x8xf32, #tpu.memory_space<vmem>>, vector<1x32x8xf32>
    %165 = vector.shape_cast %164 : vector<1x32x8xf32> to vector<32x8xf32>
    %cst_104 = arith.constant dense<0.000000e+00> : vector<8x8xf32>
    %166 = tpu.matmul %24, %165, %cst_104 {dimension_numbers = #tpu.dot_dimension_numbers<[1], [0], [0], [1], [0, 0, 1, 1], [], []>} : vector<8x32xf32>, vector<32x8xf32>, vector<8x8xf32> -> vector<8x8xf32>
    %c7_105 = arith.constant 7 : index
    %c0_106 = arith.constant 0 : index
    %c0_107 = arith.constant 0 : index
    %167 = vector.load %arg4[%c7_105, %c0_106, %c0_107] : memref<24x1x8xf32, #tpu.memory_space<vmem>>, vector<1x1x8xf32>
    %168 = vector.shape_cast %167 : vector<1x1x8xf32> to vector<1x8xf32>
    %169 = vector.broadcast %168 : vector<1x8xf32> to vector<8x8xf32>
    %170 = arith.addf %166, %169 : vector<8x8xf32>
    %c11 = arith.constant 11 : index
    %c0_108 = arith.constant 0 : index
    %c0_109 = arith.constant 0 : index
    %171 = vector.load %arg3[%c11, %c0_108, %c0_109] : memref<24x32x8xf32, #tpu.memory_space<vmem>>, vector<1x32x8xf32>
    %172 = vector.shape_cast %171 : vector<1x32x8xf32> to vector<32x8xf32>
    %cst_110 = arith.constant dense<0.000000e+00> : vector<8x8xf32>
    %173 = tpu.matmul %24, %172, %cst_110 {dimension_numbers = #tpu.dot_dimension_numbers<[1], [0], [0], [1], [0, 0, 1, 1], [], []>} : vector<8x32xf32>, vector<32x8xf32>, vector<8x8xf32> -> vector<8x8xf32>
    %c11_111 = arith.constant 11 : index
    %c0_112 = arith.constant 0 : index
    %c0_113 = arith.constant 0 : index
    %174 = vector.load %arg4[%c11_111, %c0_112, %c0_113] : memref<24x1x8xf32, #tpu.memory_space<vmem>>, vector<1x1x8xf32>
    %175 = vector.shape_cast %174 : vector<1x1x8xf32> to vector<1x8xf32>
    %176 = vector.broadcast %175 : vector<1x8xf32> to vector<8x8xf32>
    %177 = arith.addf %173, %176 : vector<8x8xf32>
    "tpu.trace_start"() <{level = 10 : i32, message = "qd,kd->qk"}> : () -> ()
    %cst_114 = arith.constant dense<0.000000e+00> : vector<8x8xf32>
    %178 = tpu.matmul %163, %170, %cst_114 {dimension_numbers = #tpu.dot_dimension_numbers<[1], [1], [0], [0], [0, 0, 1, 0], [], []>} : vector<8x8xf32>, vector<8x8xf32>, vector<8x8xf32> -> vector<8x8xf32>
    "tpu.trace_stop"() : () -> ()
    %cst_115 = arith.constant 0.353553385 : f32
    %179 = vector.broadcast %cst_115 : f32 to vector<8x8xf32>
    %180 = arith.mulf %178, %179 : vector<8x8xf32>
    %181 = arith.addf %180, %28 : vector<8x8xf32>
    %cst_116 = arith.constant dense<0xFF800000> : vector<8xf32>
    %182 = vector.multi_reduction <maximumf>, %181, %cst_116 [1] : vector<8x8xf32> to vector<8xf32>
    %183 = vector.shape_cast %182 : vector<8xf32> to vector<8x1xf32>
    %184 = vector.broadcast %183 : vector<8x1xf32> to vector<8x8xf32>
    %185 = arith.subf %181, %184 : vector<8x8xf32>
    %186 = math.exp %185 : vector<8x8xf32>
    %cst_117 = arith.constant dense<0.000000e+00> : vector<8xf32>
    %187 = vector.multi_reduction <add>, %186, %cst_117 [1] : vector<8x8xf32> to vector<8xf32>
    %188 = vector.shape_cast %187 : vector<8xf32> to vector<8x1xf32>
    %189 = tpu.reciprocal %188 {approx = true} : vector<8x1xf32> -> vector<8x1xf32>
    %190 = vector.broadcast %189 : vector<8x1xf32> to vector<8x8xf32>
    %191 = arith.mulf %186, %190 : vector<8x8xf32>
    %cst_118 = arith.constant dense<0.000000e+00> : vector<8x8xf32>
    %192 = tpu.matmul %191, %177, %cst_118 {dimension_numbers = #tpu.dot_dimension_numbers<[1], [0], [0], [1], [0, 0, 1, 1], [], []>} : vector<8x8xf32>, vector<8x8xf32>, vector<8x8xf32> -> vector<8x8xf32>
    %c3_119 = arith.constant 3 : index
    %c0_120 = arith.constant 0 : index
    %c0_121 = arith.constant 0 : index
    %193 = vector.load %arg5[%c3_119, %c0_120, %c0_121] : memref<8x8x32xf32, #tpu.memory_space<vmem>>, vector<1x8x32xf32>
    %194 = vector.shape_cast %193 : vector<1x8x32xf32> to vector<8x32xf32>
    %cst_122 = arith.constant dense<0.000000e+00> : vector<8x32xf32>
    %195 = tpu.matmul %192, %194, %cst_122 {dimension_numbers = #tpu.dot_dimension_numbers<[1], [0], [0], [1], [0, 0, 1, 1], [], []>} : vector<8x8xf32>, vector<8x32xf32>, vector<8x32xf32> -> vector<8x32xf32>
    %196 = arith.addf %156, %195 : vector<8x32xf32>
    %197 = vector.broadcast %31 : vector<1x32xf32> to vector<8x32xf32>
    %198 = arith.addf %196, %197 : vector<8x32xf32>
    %199 = arith.addf %198, %24 : vector<8x32xf32>
    %cst_123 = arith.constant dense<0.000000e+00> : vector<8xf32>
    %200 = vector.multi_reduction <add>, %199, %cst_123 [1] : vector<8x32xf32> to vector<8xf32>
    %201 = vector.shape_cast %200 : vector<8xf32> to vector<8x1xf32>
    %cst_124 = arith.constant 3.200000e+01 : f32
    %202 = vector.broadcast %cst_124 : f32 to vector<8x1xf32>
    %203 = arith.divf %201, %202 : vector<8x1xf32>
    %204 = vector.broadcast %203 : vector<8x1xf32> to vector<8x32xf32>
    %205 = arith.subf %199, %204 : vector<8x32xf32>
    %206 = arith.mulf %205, %205 : vector<8x32xf32>
    %cst_125 = arith.constant dense<0.000000e+00> : vector<8xf32>
    %207 = vector.multi_reduction <add>, %206, %cst_125 [1] : vector<8x32xf32> to vector<8xf32>
    %208 = vector.shape_cast %207 : vector<8xf32> to vector<8x1xf32>
    %cst_126 = arith.constant 3.200000e+01 : f32
    %209 = vector.broadcast %cst_126 : f32 to vector<8x1xf32>
    %210 = arith.divf %208, %209 : vector<8x1xf32>
    %cst_127 = arith.constant 9.99999996E-13 : f32
    %211 = vector.broadcast %cst_127 : f32 to vector<8x1xf32>
    %212 = arith.addf %210, %211 : vector<8x1xf32>
    %213 = math.rsqrt %212 : vector<8x1xf32>
    %214 = vector.broadcast %213 : vector<8x1xf32> to vector<8x32xf32>
    %215 = arith.mulf %205, %214 : vector<8x32xf32>
    %216 = vector.broadcast %32 : vector<1x32xf32> to vector<8x32xf32>
    %217 = arith.mulf %215, %216 : vector<8x32xf32>
    %218 = vector.broadcast %33 : vector<1x32xf32> to vector<8x32xf32>
    %219 = arith.addf %217, %218 : vector<8x32xf32>
    %c0_128 = arith.constant 0 : index
    %c0_129 = arith.constant 0 : index
    %c0_130 = arith.constant 0 : index
    %220 = vector.load %arg6[%c0_128, %c0_129, %c0_130] : memref<2x32x64xf32, #tpu.memory_space<vmem>>, vector<1x32x64xf32>
    %221 = vector.shape_cast %220 : vector<1x32x64xf32> to vector<32x64xf32>
    %cst_131 = arith.constant dense<0.000000e+00> : vector<8x64xf32>
    %222 = tpu.matmul %219, %221, %cst_131 {dimension_numbers = #tpu.dot_dimension_numbers<[1], [0], [0], [1], [0, 0, 1, 1], [], []>} : vector<8x32xf32>, vector<32x64xf32>, vector<8x64xf32> -> vector<8x64xf32>
    %223 = vector.broadcast %34 : vector<1x64xf32> to vector<8x64xf32>
    %224 = arith.addf %222, %223 : vector<8x64xf32>
    %cst_132 = arith.constant 5.000000e-01 : f32
    %225 = vector.broadcast %cst_132 : f32 to vector<8x64xf32>
    %226 = arith.mulf %225, %224 : vector<8x64xf32>
    %cst_133 = arith.constant 0.707106769 : f32
    %227 = vector.broadcast %cst_133 : f32 to vector<8x64xf32>
    %228 = arith.mulf %224, %227 : vector<8x64xf32>
    %229 = math.erf %228 : vector<8x64xf32>
    %cst_134 = arith.constant 1.000000e+00 : f32
    %230 = vector.broadcast %cst_134 : f32 to vector<8x64xf32>
    %231 = arith.addf %230, %229 : vector<8x64xf32>
    %232 = arith.mulf %226, %231 : vector<8x64xf32>
    %c0_135 = arith.constant 0 : index
    %c0_136 = arith.constant 0 : index
    %c0_137 = arith.constant 0 : index
    %233 = vector.load %arg7[%c0_135, %c0_136, %c0_137] : memref<2x64x32xf32, #tpu.memory_space<vmem>>, vector<1x64x32xf32>
    %234 = vector.shape_cast %233 : vector<1x64x32xf32> to vector<64x32xf32>
    %cst_138 = arith.constant dense<0.000000e+00> : vector<8x32xf32>
    %235 = tpu.matmul %232, %234, %cst_138 {dimension_numbers = #tpu.dot_dimension_numbers<[1], [0], [0], [1], [0, 0, 1, 1], [], []>} : vector<8x64xf32>, vector<64x32xf32>, vector<8x32xf32> -> vector<8x32xf32>
    %236 = vector.broadcast %35 : vector<1x32xf32> to vector<8x32xf32>
    %237 = arith.addf %235, %236 : vector<8x32xf32>
    %238 = arith.addf %237, %219 : vector<8x32xf32>
    %cst_139 = arith.constant dense<0.000000e+00> : vector<8xf32>
    %239 = vector.multi_reduction <add>, %238, %cst_139 [1] : vector<8x32xf32> to vector<8xf32>
    %240 = vector.shape_cast %239 : vector<8xf32> to vector<8x1xf32>
    %cst_140 = arith.constant 3.200000e+01 : f32
    %241 = vector.broadcast %cst_140 : f32 to vector<8x1xf32>
    %242 = arith.divf %240, %241 : vector<8x1xf32>
    %243 = vector.broadcast %242 : vector<8x1xf32> to vector<8x32xf32>
    %244 = arith.subf %238, %243 : vector<8x32xf32>
    %245 = arith.mulf %244, %244 : vector<8x32xf32>
    %cst_141 = arith.constant dense<0.000000e+00> : vector<8xf32>
    %246 = vector.multi_reduction <add>, %245, %cst_141 [1] : vector<8x32xf32> to vector<8xf32>
    %247 = vector.shape_cast %246 : vector<8xf32> to vector<8x1xf32>
    %cst_142 = arith.constant 3.200000e+01 : f32
    %248 = vector.broadcast %cst_142 : f32 to vector<8x1xf32>
    %249 = arith.divf %247, %248 : vector<8x1xf32>
    %cst_143 = arith.constant 9.99999996E-13 : f32
    %250 = vector.broadcast %cst_143 : f32 to vector<8x1xf32>
    %251 = arith.addf %249, %250 : vector<8x1xf32>
    %252 = math.rsqrt %251 : vector<8x1xf32>
    %253 = vector.broadcast %252 : vector<8x1xf32> to vector<8x32xf32>
    %254 = arith.mulf %244, %253 : vector<8x32xf32>
    %255 = vector.broadcast %36 : vector<1x32xf32> to vector<8x32xf32>
    %256 = arith.mulf %254, %255 : vector<8x32xf32>
    %257 = vector.broadcast %37 : vector<1x32xf32> to vector<8x32xf32>
    %258 = arith.addf %256, %257 : vector<8x32xf32>
    %c1_144 = arith.constant 1 : index
    %c0_145 = arith.constant 0 : index
    %c0_146 = arith.constant 0 : index
    %259 = vector.load %arg8[%c1_144, %c0_145, %c0_146] : memref<2x8x128xf32, #tpu.memory_space<vmem>>, vector<1x8x128xf32>
    %260 = vector.shape_cast %259 : vector<1x8x128xf32> to vector<8x128xf32>
    %261 = vector.extract_strided_slice %260 {offsets = [0, 0], sizes = [1, 32], strides = [1, 1]} : vector<8x128xf32> to vector<1x32xf32>
    %262 = vector.extract_strided_slice %260 {offsets = [1, 0], sizes = [1, 32], strides = [1, 1]} : vector<8x128xf32> to vector<1x32xf32>
    %263 = vector.extract_strided_slice %260 {offsets = [2, 0], sizes = [1, 32], strides = [1, 1]} : vector<8x128xf32> to vector<1x32xf32>
    %264 = vector.extract_strided_slice %260 {offsets = [3, 0], sizes = [1, 64], strides = [1, 1]} : vector<8x128xf32> to vector<1x64xf32>
    %265 = vector.extract_strided_slice %260 {offsets = [4, 0], sizes = [1, 32], strides = [1, 1]} : vector<8x128xf32> to vector<1x32xf32>
    %266 = vector.extract_strided_slice %260 {offsets = [5, 0], sizes = [1, 32], strides = [1, 1]} : vector<8x128xf32> to vector<1x32xf32>
    %267 = vector.extract_strided_slice %260 {offsets = [6, 0], sizes = [1, 32], strides = [1, 1]} : vector<8x128xf32> to vector<1x32xf32>
    %c12 = arith.constant 12 : index
    %c0_147 = arith.constant 0 : index
    %c0_148 = arith.constant 0 : index
    %268 = vector.load %arg3[%c12, %c0_147, %c0_148] : memref<24x32x8xf32, #tpu.memory_space<vmem>>, vector<1x32x8xf32>
    %269 = vector.shape_cast %268 : vector<1x32x8xf32> to vector<32x8xf32>
    %cst_149 = arith.constant dense<0.000000e+00> : vector<8x8xf32>
    %270 = tpu.matmul %258, %269, %cst_149 {dimension_numbers = #tpu.dot_dimension_numbers<[1], [0], [0], [1], [0, 0, 1, 1], [], []>} : vector<8x32xf32>, vector<32x8xf32>, vector<8x8xf32> -> vector<8x8xf32>
    %c12_150 = arith.constant 12 : index
    %c0_151 = arith.constant 0 : index
    %c0_152 = arith.constant 0 : index
    %271 = vector.load %arg4[%c12_150, %c0_151, %c0_152] : memref<24x1x8xf32, #tpu.memory_space<vmem>>, vector<1x1x8xf32>
    %272 = vector.shape_cast %271 : vector<1x1x8xf32> to vector<1x8xf32>
    %273 = vector.broadcast %272 : vector<1x8xf32> to vector<8x8xf32>
    %274 = arith.addf %270, %273 : vector<8x8xf32>
    %c16 = arith.constant 16 : index
    %c0_153 = arith.constant 0 : index
    %c0_154 = arith.constant 0 : index
    %275 = vector.load %arg3[%c16, %c0_153, %c0_154] : memref<24x32x8xf32, #tpu.memory_space<vmem>>, vector<1x32x8xf32>
    %276 = vector.shape_cast %275 : vector<1x32x8xf32> to vector<32x8xf32>
    %cst_155 = arith.constant dense<0.000000e+00> : vector<8x8xf32>
    %277 = tpu.matmul %258, %276, %cst_155 {dimension_numbers = #tpu.dot_dimension_numbers<[1], [0], [0], [1], [0, 0, 1, 1], [], []>} : vector<8x32xf32>, vector<32x8xf32>, vector<8x8xf32> -> vector<8x8xf32>
    %c16_156 = arith.constant 16 : index
    %c0_157 = arith.constant 0 : index
    %c0_158 = arith.constant 0 : index
    %278 = vector.load %arg4[%c16_156, %c0_157, %c0_158] : memref<24x1x8xf32, #tpu.memory_space<vmem>>, vector<1x1x8xf32>
    %279 = vector.shape_cast %278 : vector<1x1x8xf32> to vector<1x8xf32>
    %280 = vector.broadcast %279 : vector<1x8xf32> to vector<8x8xf32>
    %281 = arith.addf %277, %280 : vector<8x8xf32>
    %c20 = arith.constant 20 : index
    %c0_159 = arith.constant 0 : index
    %c0_160 = arith.constant 0 : index
    %282 = vector.load %arg3[%c20, %c0_159, %c0_160] : memref<24x32x8xf32, #tpu.memory_space<vmem>>, vector<1x32x8xf32>
    %283 = vector.shape_cast %282 : vector<1x32x8xf32> to vector<32x8xf32>
    %cst_161 = arith.constant dense<0.000000e+00> : vector<8x8xf32>
    %284 = tpu.matmul %258, %283, %cst_161 {dimension_numbers = #tpu.dot_dimension_numbers<[1], [0], [0], [1], [0, 0, 1, 1], [], []>} : vector<8x32xf32>, vector<32x8xf32>, vector<8x8xf32> -> vector<8x8xf32>
    %c20_162 = arith.constant 20 : index
    %c0_163 = arith.constant 0 : index
    %c0_164 = arith.constant 0 : index
    %285 = vector.load %arg4[%c20_162, %c0_163, %c0_164] : memref<24x1x8xf32, #tpu.memory_space<vmem>>, vector<1x1x8xf32>
    %286 = vector.shape_cast %285 : vector<1x1x8xf32> to vector<1x8xf32>
    %287 = vector.broadcast %286 : vector<1x8xf32> to vector<8x8xf32>
    %288 = arith.addf %284, %287 : vector<8x8xf32>
    "tpu.trace_start"() <{level = 10 : i32, message = "qd,kd->qk"}> : () -> ()
    %cst_165 = arith.constant dense<0.000000e+00> : vector<8x8xf32>
    %289 = tpu.matmul %274, %281, %cst_165 {dimension_numbers = #tpu.dot_dimension_numbers<[1], [1], [0], [0], [0, 0, 1, 0], [], []>} : vector<8x8xf32>, vector<8x8xf32>, vector<8x8xf32> -> vector<8x8xf32>
    "tpu.trace_stop"() : () -> ()
    %cst_166 = arith.constant 0.353553385 : f32
    %290 = vector.broadcast %cst_166 : f32 to vector<8x8xf32>
    %291 = arith.mulf %289, %290 : vector<8x8xf32>
    %292 = arith.addf %291, %28 : vector<8x8xf32>
    %cst_167 = arith.constant dense<0xFF800000> : vector<8xf32>
    %293 = vector.multi_reduction <maximumf>, %292, %cst_167 [1] : vector<8x8xf32> to vector<8xf32>
    %294 = vector.shape_cast %293 : vector<8xf32> to vector<8x1xf32>
    %295 = vector.broadcast %294 : vector<8x1xf32> to vector<8x8xf32>
    %296 = arith.subf %292, %295 : vector<8x8xf32>
    %297 = math.exp %296 : vector<8x8xf32>
    %cst_168 = arith.constant dense<0.000000e+00> : vector<8xf32>
    %298 = vector.multi_reduction <add>, %297, %cst_168 [1] : vector<8x8xf32> to vector<8xf32>
    %299 = vector.shape_cast %298 : vector<8xf32> to vector<8x1xf32>
    %300 = tpu.reciprocal %299 {approx = true} : vector<8x1xf32> -> vector<8x1xf32>
    %301 = vector.broadcast %300 : vector<8x1xf32> to vector<8x8xf32>
    %302 = arith.mulf %297, %301 : vector<8x8xf32>
    %cst_169 = arith.constant dense<0.000000e+00> : vector<8x8xf32>
    %303 = tpu.matmul %302, %288, %cst_169 {dimension_numbers = #tpu.dot_dimension_numbers<[1], [0], [0], [1], [0, 0, 1, 1], [], []>} : vector<8x8xf32>, vector<8x8xf32>, vector<8x8xf32> -> vector<8x8xf32>
    %c4_170 = arith.constant 4 : index
    %c0_171 = arith.constant 0 : index
    %c0_172 = arith.constant 0 : index
    %304 = vector.load %arg5[%c4_170, %c0_171, %c0_172] : memref<8x8x32xf32, #tpu.memory_space<vmem>>, vector<1x8x32xf32>
    %305 = vector.shape_cast %304 : vector<1x8x32xf32> to vector<8x32xf32>
    %cst_173 = arith.constant dense<0.000000e+00> : vector<8x32xf32>
    %306 = tpu.matmul %303, %305, %cst_173 {dimension_numbers = #tpu.dot_dimension_numbers<[1], [0], [0], [1], [0, 0, 1, 1], [], []>} : vector<8x8xf32>, vector<8x32xf32>, vector<8x32xf32> -> vector<8x32xf32>
    %c13 = arith.constant 13 : index
    %c0_174 = arith.constant 0 : index
    %c0_175 = arith.constant 0 : index
    %307 = vector.load %arg3[%c13, %c0_174, %c0_175] : memref<24x32x8xf32, #tpu.memory_space<vmem>>, vector<1x32x8xf32>
    %308 = vector.shape_cast %307 : vector<1x32x8xf32> to vector<32x8xf32>
    %cst_176 = arith.constant dense<0.000000e+00> : vector<8x8xf32>
    %309 = tpu.matmul %258, %308, %cst_176 {dimension_numbers = #tpu.dot_dimension_numbers<[1], [0], [0], [1], [0, 0, 1, 1], [], []>} : vector<8x32xf32>, vector<32x8xf32>, vector<8x8xf32> -> vector<8x8xf32>
    %c13_177 = arith.constant 13 : index
    %c0_178 = arith.constant 0 : index
    %c0_179 = arith.constant 0 : index
    %310 = vector.load %arg4[%c13_177, %c0_178, %c0_179] : memref<24x1x8xf32, #tpu.memory_space<vmem>>, vector<1x1x8xf32>
    %311 = vector.shape_cast %310 : vector<1x1x8xf32> to vector<1x8xf32>
    %312 = vector.broadcast %311 : vector<1x8xf32> to vector<8x8xf32>
    %313 = arith.addf %309, %312 : vector<8x8xf32>
    %c17 = arith.constant 17 : index
    %c0_180 = arith.constant 0 : index
    %c0_181 = arith.constant 0 : index
    %314 = vector.load %arg3[%c17, %c0_180, %c0_181] : memref<24x32x8xf32, #tpu.memory_space<vmem>>, vector<1x32x8xf32>
    %315 = vector.shape_cast %314 : vector<1x32x8xf32> to vector<32x8xf32>
    %cst_182 = arith.constant dense<0.000000e+00> : vector<8x8xf32>
    %316 = tpu.matmul %258, %315, %cst_182 {dimension_numbers = #tpu.dot_dimension_numbers<[1], [0], [0], [1], [0, 0, 1, 1], [], []>} : vector<8x32xf32>, vector<32x8xf32>, vector<8x8xf32> -> vector<8x8xf32>
    %c17_183 = arith.constant 17 : index
    %c0_184 = arith.constant 0 : index
    %c0_185 = arith.constant 0 : index
    %317 = vector.load %arg4[%c17_183, %c0_184, %c0_185] : memref<24x1x8xf32, #tpu.memory_space<vmem>>, vector<1x1x8xf32>
    %318 = vector.shape_cast %317 : vector<1x1x8xf32> to vector<1x8xf32>
    %319 = vector.broadcast %318 : vector<1x8xf32> to vector<8x8xf32>
    %320 = arith.addf %316, %319 : vector<8x8xf32>
    %c21 = arith.constant 21 : index
    %c0_186 = arith.constant 0 : index
    %c0_187 = arith.constant 0 : index
    %321 = vector.load %arg3[%c21, %c0_186, %c0_187] : memref<24x32x8xf32, #tpu.memory_space<vmem>>, vector<1x32x8xf32>
    %322 = vector.shape_cast %321 : vector<1x32x8xf32> to vector<32x8xf32>
    %cst_188 = arith.constant dense<0.000000e+00> : vector<8x8xf32>
    %323 = tpu.matmul %258, %322, %cst_188 {dimension_numbers = #tpu.dot_dimension_numbers<[1], [0], [0], [1], [0, 0, 1, 1], [], []>} : vector<8x32xf32>, vector<32x8xf32>, vector<8x8xf32> -> vector<8x8xf32>
    %c21_189 = arith.constant 21 : index
    %c0_190 = arith.constant 0 : index
    %c0_191 = arith.constant 0 : index
    %324 = vector.load %arg4[%c21_189, %c0_190, %c0_191] : memref<24x1x8xf32, #tpu.memory_space<vmem>>, vector<1x1x8xf32>
    %325 = vector.shape_cast %324 : vector<1x1x8xf32> to vector<1x8xf32>
    %326 = vector.broadcast %325 : vector<1x8xf32> to vector<8x8xf32>
    %327 = arith.addf %323, %326 : vector<8x8xf32>
    "tpu.trace_start"() <{level = 10 : i32, message = "qd,kd->qk"}> : () -> ()
    %cst_192 = arith.constant dense<0.000000e+00> : vector<8x8xf32>
    %328 = tpu.matmul %313, %320, %cst_192 {dimension_numbers = #tpu.dot_dimension_numbers<[1], [1], [0], [0], [0, 0, 1, 0], [], []>} : vector<8x8xf32>, vector<8x8xf32>, vector<8x8xf32> -> vector<8x8xf32>
    "tpu.trace_stop"() : () -> ()
    %cst_193 = arith.constant 0.353553385 : f32
    %329 = vector.broadcast %cst_193 : f32 to vector<8x8xf32>
    %330 = arith.mulf %328, %329 : vector<8x8xf32>
    %331 = arith.addf %330, %28 : vector<8x8xf32>
    %cst_194 = arith.constant dense<0xFF800000> : vector<8xf32>
    %332 = vector.multi_reduction <maximumf>, %331, %cst_194 [1] : vector<8x8xf32> to vector<8xf32>
    %333 = vector.shape_cast %332 : vector<8xf32> to vector<8x1xf32>
    %334 = vector.broadcast %333 : vector<8x1xf32> to vector<8x8xf32>
    %335 = arith.subf %331, %334 : vector<8x8xf32>
    %336 = math.exp %335 : vector<8x8xf32>
    %cst_195 = arith.constant dense<0.000000e+00> : vector<8xf32>
    %337 = vector.multi_reduction <add>, %336, %cst_195 [1] : vector<8x8xf32> to vector<8xf32>
    %338 = vector.shape_cast %337 : vector<8xf32> to vector<8x1xf32>
    %339 = tpu.reciprocal %338 {approx = true} : vector<8x1xf32> -> vector<8x1xf32>
    %340 = vector.broadcast %339 : vector<8x1xf32> to vector<8x8xf32>
    %341 = arith.mulf %336, %340 : vector<8x8xf32>
    %cst_196 = arith.constant dense<0.000000e+00> : vector<8x8xf32>
    %342 = tpu.matmul %341, %327, %cst_196 {dimension_numbers = #tpu.dot_dimension_numbers<[1], [0], [0], [1], [0, 0, 1, 1], [], []>} : vector<8x8xf32>, vector<8x8xf32>, vector<8x8xf32> -> vector<8x8xf32>
    %c5_197 = arith.constant 5 : index
    %c0_198 = arith.constant 0 : index
    %c0_199 = arith.constant 0 : index
    %343 = vector.load %arg5[%c5_197, %c0_198, %c0_199] : memref<8x8x32xf32, #tpu.memory_space<vmem>>, vector<1x8x32xf32>
    %344 = vector.shape_cast %343 : vector<1x8x32xf32> to vector<8x32xf32>
    %cst_200 = arith.constant dense<0.000000e+00> : vector<8x32xf32>
    %345 = tpu.matmul %342, %344, %cst_200 {dimension_numbers = #tpu.dot_dimension_numbers<[1], [0], [0], [1], [0, 0, 1, 1], [], []>} : vector<8x8xf32>, vector<8x32xf32>, vector<8x32xf32> -> vector<8x32xf32>
    %346 = arith.addf %306, %345 : vector<8x32xf32>
    %c14 = arith.constant 14 : index
    %c0_201 = arith.constant 0 : index
    %c0_202 = arith.constant 0 : index
    %347 = vector.load %arg3[%c14, %c0_201, %c0_202] : memref<24x32x8xf32, #tpu.memory_space<vmem>>, vector<1x32x8xf32>
    %348 = vector.shape_cast %347 : vector<1x32x8xf32> to vector<32x8xf32>
    %cst_203 = arith.constant dense<0.000000e+00> : vector<8x8xf32>
    %349 = tpu.matmul %258, %348, %cst_203 {dimension_numbers = #tpu.dot_dimension_numbers<[1], [0], [0], [1], [0, 0, 1, 1], [], []>} : vector<8x32xf32>, vector<32x8xf32>, vector<8x8xf32> -> vector<8x8xf32>
    %c14_204 = arith.constant 14 : index
    %c0_205 = arith.constant 0 : index
    %c0_206 = arith.constant 0 : index
    %350 = vector.load %arg4[%c14_204, %c0_205, %c0_206] : memref<24x1x8xf32, #tpu.memory_space<vmem>>, vector<1x1x8xf32>
    %351 = vector.shape_cast %350 : vector<1x1x8xf32> to vector<1x8xf32>
    %352 = vector.broadcast %351 : vector<1x8xf32> to vector<8x8xf32>
    %353 = arith.addf %349, %352 : vector<8x8xf32>
    %c18 = arith.constant 18 : index
    %c0_207 = arith.constant 0 : index
    %c0_208 = arith.constant 0 : index
    %354 = vector.load %arg3[%c18, %c0_207, %c0_208] : memref<24x32x8xf32, #tpu.memory_space<vmem>>, vector<1x32x8xf32>
    %355 = vector.shape_cast %354 : vector<1x32x8xf32> to vector<32x8xf32>
    %cst_209 = arith.constant dense<0.000000e+00> : vector<8x8xf32>
    %356 = tpu.matmul %258, %355, %cst_209 {dimension_numbers = #tpu.dot_dimension_numbers<[1], [0], [0], [1], [0, 0, 1, 1], [], []>} : vector<8x32xf32>, vector<32x8xf32>, vector<8x8xf32> -> vector<8x8xf32>
    %c18_210 = arith.constant 18 : index
    %c0_211 = arith.constant 0 : index
    %c0_212 = arith.constant 0 : index
    %357 = vector.load %arg4[%c18_210, %c0_211, %c0_212] : memref<24x1x8xf32, #tpu.memory_space<vmem>>, vector<1x1x8xf32>
    %358 = vector.shape_cast %357 : vector<1x1x8xf32> to vector<1x8xf32>
    %359 = vector.broadcast %358 : vector<1x8xf32> to vector<8x8xf32>
    %360 = arith.addf %356, %359 : vector<8x8xf32>
    %c22 = arith.constant 22 : index
    %c0_213 = arith.constant 0 : index
    %c0_214 = arith.constant 0 : index
    %361 = vector.load %arg3[%c22, %c0_213, %c0_214] : memref<24x32x8xf32, #tpu.memory_space<vmem>>, vector<1x32x8xf32>
    %362 = vector.shape_cast %361 : vector<1x32x8xf32> to vector<32x8xf32>
    %cst_215 = arith.constant dense<0.000000e+00> : vector<8x8xf32>
    %363 = tpu.matmul %258, %362, %cst_215 {dimension_numbers = #tpu.dot_dimension_numbers<[1], [0], [0], [1], [0, 0, 1, 1], [], []>} : vector<8x32xf32>, vector<32x8xf32>, vector<8x8xf32> -> vector<8x8xf32>
    %c22_216 = arith.constant 22 : index
    %c0_217 = arith.constant 0 : index
    %c0_218 = arith.constant 0 : index
    %364 = vector.load %arg4[%c22_216, %c0_217, %c0_218] : memref<24x1x8xf32, #tpu.memory_space<vmem>>, vector<1x1x8xf32>
    %365 = vector.shape_cast %364 : vector<1x1x8xf32> to vector<1x8xf32>
    %366 = vector.broadcast %365 : vector<1x8xf32> to vector<8x8xf32>
    %367 = arith.addf %363, %366 : vector<8x8xf32>
    "tpu.trace_start"() <{level = 10 : i32, message = "qd,kd->qk"}> : () -> ()
    %cst_219 = arith.constant dense<0.000000e+00> : vector<8x8xf32>
    %368 = tpu.matmul %353, %360, %cst_219 {dimension_numbers = #tpu.dot_dimension_numbers<[1], [1], [0], [0], [0, 0, 1, 0], [], []>} : vector<8x8xf32>, vector<8x8xf32>, vector<8x8xf32> -> vector<8x8xf32>
    "tpu.trace_stop"() : () -> ()
    %cst_220 = arith.constant 0.353553385 : f32
    %369 = vector.broadcast %cst_220 : f32 to vector<8x8xf32>
    %370 = arith.mulf %368, %369 : vector<8x8xf32>
    %371 = arith.addf %370, %28 : vector<8x8xf32>
    %cst_221 = arith.constant dense<0xFF800000> : vector<8xf32>
    %372 = vector.multi_reduction <maximumf>, %371, %cst_221 [1] : vector<8x8xf32> to vector<8xf32>
    %373 = vector.shape_cast %372 : vector<8xf32> to vector<8x1xf32>
    %374 = vector.broadcast %373 : vector<8x1xf32> to vector<8x8xf32>
    %375 = arith.subf %371, %374 : vector<8x8xf32>
    %376 = math.exp %375 : vector<8x8xf32>
    %cst_222 = arith.constant dense<0.000000e+00> : vector<8xf32>
    %377 = vector.multi_reduction <add>, %376, %cst_222 [1] : vector<8x8xf32> to vector<8xf32>
    %378 = vector.shape_cast %377 : vector<8xf32> to vector<8x1xf32>
    %379 = tpu.reciprocal %378 {approx = true} : vector<8x1xf32> -> vector<8x1xf32>
    %380 = vector.broadcast %379 : vector<8x1xf32> to vector<8x8xf32>
    %381 = arith.mulf %376, %380 : vector<8x8xf32>
    %cst_223 = arith.constant dense<0.000000e+00> : vector<8x8xf32>
    %382 = tpu.matmul %381, %367, %cst_223 {dimension_numbers = #tpu.dot_dimension_numbers<[1], [0], [0], [1], [0, 0, 1, 1], [], []>} : vector<8x8xf32>, vector<8x8xf32>, vector<8x8xf32> -> vector<8x8xf32>
    %c6_224 = arith.constant 6 : index
    %c0_225 = arith.constant 0 : index
    %c0_226 = arith.constant 0 : index
    %383 = vector.load %arg5[%c6_224, %c0_225, %c0_226] : memref<8x8x32xf32, #tpu.memory_space<vmem>>, vector<1x8x32xf32>
    %384 = vector.shape_cast %383 : vector<1x8x32xf32> to vector<8x32xf32>
    %cst_227 = arith.constant dense<0.000000e+00> : vector<8x32xf32>
    %385 = tpu.matmul %382, %384, %cst_227 {dimension_numbers = #tpu.dot_dimension_numbers<[1], [0], [0], [1], [0, 0, 1, 1], [], []>} : vector<8x8xf32>, vector<8x32xf32>, vector<8x32xf32> -> vector<8x32xf32>
    %386 = arith.addf %346, %385 : vector<8x32xf32>
    %c15 = arith.constant 15 : index
    %c0_228 = arith.constant 0 : index
    %c0_229 = arith.constant 0 : index
    %387 = vector.load %arg3[%c15, %c0_228, %c0_229] : memref<24x32x8xf32, #tpu.memory_space<vmem>>, vector<1x32x8xf32>
    %388 = vector.shape_cast %387 : vector<1x32x8xf32> to vector<32x8xf32>
    %cst_230 = arith.constant dense<0.000000e+00> : vector<8x8xf32>
    %389 = tpu.matmul %258, %388, %cst_230 {dimension_numbers = #tpu.dot_dimension_numbers<[1], [0], [0], [1], [0, 0, 1, 1], [], []>} : vector<8x32xf32>, vector<32x8xf32>, vector<8x8xf32> -> vector<8x8xf32>
    %c15_231 = arith.constant 15 : index
    %c0_232 = arith.constant 0 : index
    %c0_233 = arith.constant 0 : index
    %390 = vector.load %arg4[%c15_231, %c0_232, %c0_233] : memref<24x1x8xf32, #tpu.memory_space<vmem>>, vector<1x1x8xf32>
    %391 = vector.shape_cast %390 : vector<1x1x8xf32> to vector<1x8xf32>
    %392 = vector.broadcast %391 : vector<1x8xf32> to vector<8x8xf32>
    %393 = arith.addf %389, %392 : vector<8x8xf32>
    %c19 = arith.constant 19 : index
    %c0_234 = arith.constant 0 : index
    %c0_235 = arith.constant 0 : index
    %394 = vector.load %arg3[%c19, %c0_234, %c0_235] : memref<24x32x8xf32, #tpu.memory_space<vmem>>, vector<1x32x8xf32>
    %395 = vector.shape_cast %394 : vector<1x32x8xf32> to vector<32x8xf32>
    %cst_236 = arith.constant dense<0.000000e+00> : vector<8x8xf32>
    %396 = tpu.matmul %258, %395, %cst_236 {dimension_numbers = #tpu.dot_dimension_numbers<[1], [0], [0], [1], [0, 0, 1, 1], [], []>} : vector<8x32xf32>, vector<32x8xf32>, vector<8x8xf32> -> vector<8x8xf32>
    %c19_237 = arith.constant 19 : index
    %c0_238 = arith.constant 0 : index
    %c0_239 = arith.constant 0 : index
    %397 = vector.load %arg4[%c19_237, %c0_238, %c0_239] : memref<24x1x8xf32, #tpu.memory_space<vmem>>, vector<1x1x8xf32>
    %398 = vector.shape_cast %397 : vector<1x1x8xf32> to vector<1x8xf32>
    %399 = vector.broadcast %398 : vector<1x8xf32> to vector<8x8xf32>
    %400 = arith.addf %396, %399 : vector<8x8xf32>
    %c23 = arith.constant 23 : index
    %c0_240 = arith.constant 0 : index
    %c0_241 = arith.constant 0 : index
    %401 = vector.load %arg3[%c23, %c0_240, %c0_241] : memref<24x32x8xf32, #tpu.memory_space<vmem>>, vector<1x32x8xf32>
    %402 = vector.shape_cast %401 : vector<1x32x8xf32> to vector<32x8xf32>
    %cst_242 = arith.constant dense<0.000000e+00> : vector<8x8xf32>
    %403 = tpu.matmul %258, %402, %cst_242 {dimension_numbers = #tpu.dot_dimension_numbers<[1], [0], [0], [1], [0, 0, 1, 1], [], []>} : vector<8x32xf32>, vector<32x8xf32>, vector<8x8xf32> -> vector<8x8xf32>
    %c23_243 = arith.constant 23 : index
    %c0_244 = arith.constant 0 : index
    %c0_245 = arith.constant 0 : index
    %404 = vector.load %arg4[%c23_243, %c0_244, %c0_245] : memref<24x1x8xf32, #tpu.memory_space<vmem>>, vector<1x1x8xf32>
    %405 = vector.shape_cast %404 : vector<1x1x8xf32> to vector<1x8xf32>
    %406 = vector.broadcast %405 : vector<1x8xf32> to vector<8x8xf32>
    %407 = arith.addf %403, %406 : vector<8x8xf32>
    "tpu.trace_start"() <{level = 10 : i32, message = "qd,kd->qk"}> : () -> ()
    %cst_246 = arith.constant dense<0.000000e+00> : vector<8x8xf32>
    %408 = tpu.matmul %393, %400, %cst_246 {dimension_numbers = #tpu.dot_dimension_numbers<[1], [1], [0], [0], [0, 0, 1, 0], [], []>} : vector<8x8xf32>, vector<8x8xf32>, vector<8x8xf32> -> vector<8x8xf32>
    "tpu.trace_stop"() : () -> ()
    %cst_247 = arith.constant 0.353553385 : f32
    %409 = vector.broadcast %cst_247 : f32 to vector<8x8xf32>
    %410 = arith.mulf %408, %409 : vector<8x8xf32>
    %411 = arith.addf %410, %28 : vector<8x8xf32>
    %cst_248 = arith.constant dense<0xFF800000> : vector<8xf32>
    %412 = vector.multi_reduction <maximumf>, %411, %cst_248 [1] : vector<8x8xf32> to vector<8xf32>
    %413 = vector.shape_cast %412 : vector<8xf32> to vector<8x1xf32>
    %414 = vector.broadcast %413 : vector<8x1xf32> to vector<8x8xf32>
    %415 = arith.subf %411, %414 : vector<8x8xf32>
    %416 = math.exp %415 : vector<8x8xf32>
    %cst_249 = arith.constant dense<0.000000e+00> : vector<8xf32>
    %417 = vector.multi_reduction <add>, %416, %cst_249 [1] : vector<8x8xf32> to vector<8xf32>
    %418 = vector.shape_cast %417 : vector<8xf32> to vector<8x1xf32>
    %419 = tpu.reciprocal %418 {approx = true} : vector<8x1xf32> -> vector<8x1xf32>
    %420 = vector.broadcast %419 : vector<8x1xf32> to vector<8x8xf32>
    %421 = arith.mulf %416, %420 : vector<8x8xf32>
    %cst_250 = arith.constant dense<0.000000e+00> : vector<8x8xf32>
    %422 = tpu.matmul %421, %407, %cst_250 {dimension_numbers = #tpu.dot_dimension_numbers<[1], [0], [0], [1], [0, 0, 1, 1], [], []>} : vector<8x8xf32>, vector<8x8xf32>, vector<8x8xf32> -> vector<8x8xf32>
    %c7_251 = arith.constant 7 : index
    %c0_252 = arith.constant 0 : index
    %c0_253 = arith.constant 0 : index
    %423 = vector.load %arg5[%c7_251, %c0_252, %c0_253] : memref<8x8x32xf32, #tpu.memory_space<vmem>>, vector<1x8x32xf32>
    %424 = vector.shape_cast %423 : vector<1x8x32xf32> to vector<8x32xf32>
    %cst_254 = arith.constant dense<0.000000e+00> : vector<8x32xf32>
    %425 = tpu.matmul %422, %424, %cst_254 {dimension_numbers = #tpu.dot_dimension_numbers<[1], [0], [0], [1], [0, 0, 1, 1], [], []>} : vector<8x8xf32>, vector<8x32xf32>, vector<8x32xf32> -> vector<8x32xf32>
    %426 = arith.addf %386, %425 : vector<8x32xf32>
    %427 = vector.broadcast %261 : vector<1x32xf32> to vector<8x32xf32>
    %428 = arith.addf %426, %427 : vector<8x32xf32>
    %429 = arith.addf %428, %258 : vector<8x32xf32>
    %cst_255 = arith.constant dense<0.000000e+00> : vector<8xf32>
    %430 = vector.multi_reduction <add>, %429, %cst_255 [1] : vector<8x32xf32> to vector<8xf32>
    %431 = vector.shape_cast %430 : vector<8xf32> to vector<8x1xf32>
    %cst_256 = arith.constant 3.200000e+01 : f32
    %432 = vector.broadcast %cst_256 : f32 to vector<8x1xf32>
    %433 = arith.divf %431, %432 : vector<8x1xf32>
    %434 = vector.broadcast %433 : vector<8x1xf32> to vector<8x32xf32>
    %435 = arith.subf %429, %434 : vector<8x32xf32>
    %436 = arith.mulf %435, %435 : vector<8x32xf32>
    %cst_257 = arith.constant dense<0.000000e+00> : vector<8xf32>
    %437 = vector.multi_reduction <add>, %436, %cst_257 [1] : vector<8x32xf32> to vector<8xf32>
    %438 = vector.shape_cast %437 : vector<8xf32> to vector<8x1xf32>
    %cst_258 = arith.constant 3.200000e+01 : f32
    %439 = vector.broadcast %cst_258 : f32 to vector<8x1xf32>
    %440 = arith.divf %438, %439 : vector<8x1xf32>
    %cst_259 = arith.constant 9.99999996E-13 : f32
    %441 = vector.broadcast %cst_259 : f32 to vector<8x1xf32>
    %442 = arith.addf %440, %441 : vector<8x1xf32>
    %443 = math.rsqrt %442 : vector<8x1xf32>
    %444 = vector.broadcast %443 : vector<8x1xf32> to vector<8x32xf32>
    %445 = arith.mulf %435, %444 : vector<8x32xf32>
    %446 = vector.broadcast %262 : vector<1x32xf32> to vector<8x32xf32>
    %447 = arith.mulf %445, %446 : vector<8x32xf32>
    %448 = vector.broadcast %263 : vector<1x32xf32> to vector<8x32xf32>
    %449 = arith.addf %447, %448 : vector<8x32xf32>
    %c1_260 = arith.constant 1 : index
    %c0_261 = arith.constant 0 : index
    %c0_262 = arith.constant 0 : index
    %450 = vector.load %arg6[%c1_260, %c0_261, %c0_262] : memref<2x32x64xf32, #tpu.memory_space<vmem>>, vector<1x32x64xf32>
    %451 = vector.shape_cast %450 : vector<1x32x64xf32> to vector<32x64xf32>
    %cst_263 = arith.constant dense<0.000000e+00> : vector<8x64xf32>
    %452 = tpu.matmul %449, %451, %cst_263 {dimension_numbers = #tpu.dot_dimension_numbers<[1], [0], [0], [1], [0, 0, 1, 1], [], []>} : vector<8x32xf32>, vector<32x64xf32>, vector<8x64xf32> -> vector<8x64xf32>
    %453 = vector.broadcast %264 : vector<1x64xf32> to vector<8x64xf32>
    %454 = arith.addf %452, %453 : vector<8x64xf32>
    %cst_264 = arith.constant 5.000000e-01 : f32
    %455 = vector.broadcast %cst_264 : f32 to vector<8x64xf32>
    %456 = arith.mulf %455, %454 : vector<8x64xf32>
    %cst_265 = arith.constant 0.707106769 : f32
    %457 = vector.broadcast %cst_265 : f32 to vector<8x64xf32>
    %458 = arith.mulf %454, %457 : vector<8x64xf32>
    %459 = math.erf %458 : vector<8x64xf32>
    %cst_266 = arith.constant 1.000000e+00 : f32
    %460 = vector.broadcast %cst_266 : f32 to vector<8x64xf32>
    %461 = arith.addf %460, %459 : vector<8x64xf32>
    %462 = arith.mulf %456, %461 : vector<8x64xf32>
    %c1_267 = arith.constant 1 : index
    %c0_268 = arith.constant 0 : index
    %c0_269 = arith.constant 0 : index
    %463 = vector.load %arg7[%c1_267, %c0_268, %c0_269] : memref<2x64x32xf32, #tpu.memory_space<vmem>>, vector<1x64x32xf32>
    %464 = vector.shape_cast %463 : vector<1x64x32xf32> to vector<64x32xf32>
    %cst_270 = arith.constant dense<0.000000e+00> : vector<8x32xf32>
    %465 = tpu.matmul %462, %464, %cst_270 {dimension_numbers = #tpu.dot_dimension_numbers<[1], [0], [0], [1], [0, 0, 1, 1], [], []>} : vector<8x64xf32>, vector<64x32xf32>, vector<8x32xf32> -> vector<8x32xf32>
    %466 = vector.broadcast %265 : vector<1x32xf32> to vector<8x32xf32>
    %467 = arith.addf %465, %466 : vector<8x32xf32>
    %468 = arith.addf %467, %449 : vector<8x32xf32>
    %cst_271 = arith.constant dense<0.000000e+00> : vector<8xf32>
    %469 = vector.multi_reduction <add>, %468, %cst_271 [1] : vector<8x32xf32> to vector<8xf32>
    %470 = vector.shape_cast %469 : vector<8xf32> to vector<8x1xf32>
    %cst_272 = arith.constant 3.200000e+01 : f32
    %471 = vector.broadcast %cst_272 : f32 to vector<8x1xf32>
    %472 = arith.divf %470, %471 : vector<8x1xf32>
    %473 = vector.broadcast %472 : vector<8x1xf32> to vector<8x32xf32>
    %474 = arith.subf %468, %473 : vector<8x32xf32>
    %475 = arith.mulf %474, %474 : vector<8x32xf32>
    %cst_273 = arith.constant dense<0.000000e+00> : vector<8xf32>
    %476 = vector.multi_reduction <add>, %475, %cst_273 [1] : vector<8x32xf32> to vector<8xf32>
    %477 = vector.shape_cast %476 : vector<8xf32> to vector<8x1xf32>
    %cst_274 = arith.constant 3.200000e+01 : f32
    %478 = vector.broadcast %cst_274 : f32 to vector<8x1xf32>
    %479 = arith.divf %477, %478 : vector<8x1xf32>
    %cst_275 = arith.constant 9.99999996E-13 : f32
    %480 = vector.broadcast %cst_275 : f32 to vector<8x1xf32>
    %481 = arith.addf %479, %480 : vector<8x1xf32>
    %482 = math.rsqrt %481 : vector<8x1xf32>
    %483 = vector.broadcast %482 : vector<8x1xf32> to vector<8x32xf32>
    %484 = arith.mulf %474, %483 : vector<8x32xf32>
    %485 = vector.broadcast %266 : vector<1x32xf32> to vector<8x32xf32>
    %486 = arith.mulf %484, %485 : vector<8x32xf32>
    %487 = vector.broadcast %267 : vector<1x32xf32> to vector<8x32xf32>
    %488 = arith.addf %486, %487 : vector<8x32xf32>
    %c0_276 = arith.constant 0 : index
    %c0_277 = arith.constant 0 : index
    %489 = vector.load %arg9[%c0_276, %c0_277] : memref<32x32xf32, #tpu.memory_space<vmem>>, vector<32x32xf32>
    %cst_278 = arith.constant dense<0.000000e+00> : vector<8x32xf32>
    %490 = tpu.matmul %488, %489, %cst_278 {dimension_numbers = #tpu.dot_dimension_numbers<[1], [0], [0], [1], [0, 0, 1, 1], [], []>} : vector<8x32xf32>, vector<32x32xf32>, vector<8x32xf32> -> vector<8x32xf32>
    %491 = vector.extract_strided_slice %0 {offsets = [2, 0], sizes = [1, 32], strides = [1, 1]} : vector<8x128xf32> to vector<1x32xf32>
    %492 = vector.broadcast %491 : vector<1x32xf32> to vector<8x32xf32>
    %493 = arith.addf %490, %492 : vector<8x32xf32>
    %494 = math.tanh %493 : vector<8x32xf32>
    %c0_279 = arith.constant 0 : index
    %c0_280 = arith.constant 0 : index
    %495 = vector.load %arg10[%c0_279, %c0_280] : memref<32x128xf32, #tpu.memory_space<vmem>>, vector<32x128xf32>
    %cst_281 = arith.constant dense<0.000000e+00> : vector<8x128xf32>
    %496 = tpu.matmul %494, %495, %cst_281 {dimension_numbers = #tpu.dot_dimension_numbers<[1], [0], [0], [1], [0, 0, 1, 1], [], []>} : vector<8x32xf32>, vector<32x128xf32>, vector<8x128xf32> -> vector<8x128xf32>
    %497 = vector.extract_strided_slice %0 {offsets = [3, 0], sizes = [1, 128], strides = [1, 1]} : vector<8x128xf32> to vector<1x128xf32>
    %498 = vector.broadcast %497 : vector<1x128xf32> to vector<8x128xf32>
    %499 = arith.addf %496, %498 : vector<8x128xf32>
    %cst_282 = arith.constant 5.000000e-01 : f32
    %500 = vector.broadcast %cst_282 : f32 to vector<8x128xf32>
    %501 = arith.mulf %500, %499 : vector<8x128xf32>
    %cst_283 = arith.constant 0.707106769 : f32
    %502 = vector.broadcast %cst_283 : f32 to vector<8x128xf32>
    %503 = arith.mulf %499, %502 : vector<8x128xf32>
    %504 = math.erf %503 : vector<8x128xf32>
    %cst_284 = arith.constant 1.000000e+00 : f32
    %505 = vector.broadcast %cst_284 : f32 to vector<8x128xf32>
    %506 = arith.addf %505, %504 : vector<8x128xf32>
    %507 = arith.mulf %501, %506 : vector<8x128xf32>
    %c0_285 = arith.constant 0 : index
    %c0_286 = arith.constant 0 : index
    %508 = vector.load %arg11[%c0_285, %c0_286] : memref<128x64xf32, #tpu.memory_space<vmem>>, vector<128x64xf32>
    %cst_287 = arith.constant dense<0.000000e+00> : vector<8x64xf32>
    %509 = tpu.matmul %507, %508, %cst_287 {dimension_numbers = #tpu.dot_dimension_numbers<[1], [0], [0], [1], [0, 0, 1, 1], [], []>} : vector<8x128xf32>, vector<128x64xf32>, vector<8x64xf32> -> vector<8x64xf32>
    %510 = vector.extract_strided_slice %0 {offsets = [4, 0], sizes = [1, 64], strides = [1, 1]} : vector<8x128xf32> to vector<1x64xf32>
    %511 = vector.broadcast %510 : vector<1x64xf32> to vector<8x64xf32>
    %512 = arith.addf %509, %511 : vector<8x64xf32>
    %cst_288 = arith.constant 5.000000e-01 : f32
    %513 = vector.broadcast %cst_288 : f32 to vector<8x64xf32>
    %514 = arith.mulf %513, %512 : vector<8x64xf32>
    %cst_289 = arith.constant 0.707106769 : f32
    %515 = vector.broadcast %cst_289 : f32 to vector<8x64xf32>
    %516 = arith.mulf %512, %515 : vector<8x64xf32>
    %517 = math.erf %516 : vector<8x64xf32>
    %cst_290 = arith.constant 1.000000e+00 : f32
    %518 = vector.broadcast %cst_290 : f32 to vector<8x64xf32>
    %519 = arith.addf %518, %517 : vector<8x64xf32>
    %520 = arith.mulf %514, %519 : vector<8x64xf32>
    %c0_291 = arith.constant 0 : index
    %c0_292 = arith.constant 0 : index
    %521 = vector.load %arg12[%c0_291, %c0_292] : memref<64x16xf32, #tpu.memory_space<vmem>>, vector<64x16xf32>
    %cst_293 = arith.constant dense<0.000000e+00> : vector<8x16xf32>
    %522 = tpu.matmul %520, %521, %cst_293 {dimension_numbers = #tpu.dot_dimension_numbers<[1], [0], [0], [1], [0, 0, 1, 1], [], []>} : vector<8x64xf32>, vector<64x16xf32>, vector<8x16xf32> -> vector<8x16xf32>
    %523 = vector.extract_strided_slice %0 {offsets = [5, 0], sizes = [1, 16], strides = [1, 1]} : vector<8x128xf32> to vector<1x16xf32>
    %524 = vector.broadcast %523 : vector<1x16xf32> to vector<8x16xf32>
    %525 = arith.addf %522, %524 : vector<8x16xf32>
    %cst_294 = arith.constant 5.000000e-01 : f32
    %526 = vector.broadcast %cst_294 : f32 to vector<8x16xf32>
    %527 = arith.mulf %526, %525 : vector<8x16xf32>
    %cst_295 = arith.constant 0.707106769 : f32
    %528 = vector.broadcast %cst_295 : f32 to vector<8x16xf32>
    %529 = arith.mulf %525, %528 : vector<8x16xf32>
    %530 = math.erf %529 : vector<8x16xf32>
    %cst_296 = arith.constant 1.000000e+00 : f32
    %531 = vector.broadcast %cst_296 : f32 to vector<8x16xf32>
    %532 = arith.addf %531, %530 : vector<8x16xf32>
    %533 = arith.mulf %527, %532 : vector<8x16xf32>
    %c0_297 = arith.constant 0 : index
    %c0_298 = arith.constant 0 : index
    %534 = vector.load %arg13[%c0_297, %c0_298] : memref<16x128xf32, #tpu.memory_space<vmem>>, vector<16x128xf32>
    %cst_299 = arith.constant dense<0.000000e+00> : vector<8x128xf32>
    %535 = tpu.matmul %533, %534, %cst_299 {dimension_numbers = #tpu.dot_dimension_numbers<[1], [0], [0], [1], [0, 0, 1, 1], [], []>} : vector<8x16xf32>, vector<16x128xf32>, vector<8x128xf32> -> vector<8x128xf32>
    %536 = vector.extract_strided_slice %0 {offsets = [6, 0], sizes = [1, 128], strides = [1, 1]} : vector<8x128xf32> to vector<1x128xf32>
    %537 = vector.broadcast %536 : vector<1x128xf32> to vector<8x128xf32>
    %538 = arith.addf %535, %537 : vector<8x128xf32>
    %c0_300 = arith.constant 0 : index
    %c0_301 = arith.constant 0 : index
    %c0_302 = arith.constant 0 : index
    %539 = vector.load %arg15[%c0_300, %c0_301, %c0_302] : memref<1x8x128xf32, #tpu.memory_space<vmem>>, vector<1x8x128xf32>
    %540 = vector.shape_cast %539 : vector<1x8x128xf32> to vector<8x128xf32>
    %541 = vector.shape_cast %538 : vector<8x128xf32> to vector<1x8x128xf32>
    tpu.vector_store %arg15[%c0_300, %c0_301, %c0_302], %541 {strides = array<i32>} : memref<1x8x128xf32, #tpu.memory_space<vmem>>, vector<1x8x128xf32>,
    return
  }
  func.func @transform_0(%arg0: i32) -> (i32, i32, i32) {
    %c0_i32 = arith.constant 0 : i32
    %c0_i32_0 = arith.constant 0 : i32
    %c0_i32_1 = arith.constant 0 : i32
    return %arg0, %c0_i32, %c0_i32_0 : i32, i32, i32
  }
  func.func @transform_1(%arg0: i32) -> (i32, i32, i32) {
    %c0_i32 = arith.constant 0 : i32
    %c0_i32_0 = arith.constant 0 : i32
    %c0_i32_1 = arith.constant 0 : i32
    return %arg0, %c0_i32, %c0_i32_0 : i32, i32, i32
  }
  func.func @transform_2(%arg0: i32) -> (i32, i32, i32) {
    %c0_i32 = arith.constant 0 : i32
    %c0_i32_0 = arith.constant 0 : i32
    %c0_i32_1 = arith.constant 0 : i32
    %c0_i32_2 = arith.constant 0 : i32
    return %c0_i32, %c0_i32_0, %c0_i32_1 : i32, i32, i32
  }
  func.func @transform_3(%arg0: i32) -> (i32, i32, i32) {
    %c0_i32 = arith.constant 0 : i32
    %c0_i32_0 = arith.constant 0 : i32
    %c0_i32_1 = arith.constant 0 : i32
    %c0_i32_2 = arith.constant 0 : i32
    return %c0_i32, %c0_i32_0, %c0_i32_1 : i32, i32, i32
  }
  func.func @transform_4(%arg0: i32) -> (i32, i32, i32) {
    %c0_i32 = arith.constant 0 : i32
    %c0_i32_0 = arith.constant 0 : i32
    %c0_i32_1 = arith.constant 0 : i32
    %c0_i32_2 = arith.constant 0 : i32
    return %c0_i32, %c0_i32_0, %c0_i32_1 : i32, i32, i32
  }
  func.func @transform_5(%arg0: i32) -> (i32, i32, i32) {
    %c0_i32 = arith.constant 0 : i32
    %c0_i32_0 = arith.constant 0 : i32
    %c0_i32_1 = arith.constant 0 : i32
    %c0_i32_2 = arith.constant 0 : i32
    return %c0_i32, %c0_i32_0, %c0_i32_1 : i32, i32, i32
  }
  func.func @transform_6(%arg0: i32) -> (i32, i32, i32) {
    %c0_i32 = arith.constant 0 : i32
    %c0_i32_0 = arith.constant 0 : i32
    %c0_i32_1 = arith.constant 0 : i32
    %c0_i32_2 = arith.constant 0 : i32
    return %c0_i32, %c0_i32_0, %c0_i32_1 : i32, i32, i32
  }
  func.func @transform_7(%arg0: i32) -> (i32, i32, i32) {
    %c0_i32 = arith.constant 0 : i32
    %c0_i32_0 = arith.constant 0 : i32
    %c0_i32_1 = arith.constant 0 : i32
    %c0_i32_2 = arith.constant 0 : i32
    return %c0_i32, %c0_i32_0, %c0_i32_1 : i32, i32, i32
  }
  func.func @transform_8(%arg0: i32) -> (i32, i32) {
    %c0_i32 = arith.constant 0 : i32
    %c0_i32_0 = arith.constant 0 : i32
    %c0_i32_1 = arith.constant 0 : i32
    return %c0_i32, %c0_i32_0 : i32, i32
  }
  func.func @transform_9(%arg0: i32) -> (i32, i32) {
    %c0_i32 = arith.constant 0 : i32
    %c0_i32_0 = arith.constant 0 : i32
    %c0_i32_1 = arith.constant 0 : i32
    return %c0_i32, %c0_i32_0 : i32, i32
  }
  func.func @transform_10(%arg0: i32) -> (i32, i32) {
    %c0_i32 = arith.constant 0 : i32
    %c0_i32_0 = arith.constant 0 : i32
    %c0_i32_1 = arith.constant 0 : i32
    return %c0_i32, %c0_i32_0 : i32, i32
  }
  func.func @transform_11(%arg0: i32) -> (i32, i32) {
    %c0_i32 = arith.constant 0 : i32
    %c0_i32_0 = arith.constant 0 : i32
    %c0_i32_1 = arith.constant 0 : i32
    return %c0_i32, %c0_i32_0 : i32, i32
  }
  func.func @transform_12(%arg0: i32) -> (i32, i32) {
    %c0_i32 = arith.constant 0 : i32
    %c0_i32_0 = arith.constant 0 : i32
    %c0_i32_1 = arith.constant 0 : i32
    return %c0_i32, %c0_i32_0 : i32, i32
  }
  func.func @transform_13(%arg0: i32) -> (i32, i32) {
    %c0_i32 = arith.constant 0 : i32
    %c0_i32_0 = arith.constant 0 : i32
    %c0_i32_1 = arith.constant 0 : i32
    return %c0_i32, %c0_i32_0 : i32, i32
  }
  func.func @transform_14(%arg0: i32) -> (i32, i32, i32) {
    %c0_i32 = arith.constant 0 : i32
    %c0_i32_0 = arith.constant 0 : i32
    %c0_i32_1 = arith.constant 0 : i32
    return %arg0, %c0_i32, %c0_i32_0 : i32, i32, i32
  }
}

</mosaic_0001>

<llo_original>
// kernel: forward.1
$region0: #{forward.1}
  #allocation0 [shape = 'u32[]', space=smem, size = 0x4, offset = 0x4, fixed_abs, tag = 'smem constant byte address 0x4 - core index']
  #allocation1 [shape = 'u32[144,128]{1,0:T(1,128)}', space=vmem, size = 0x12000, scoped, tag = 'internal scratch']
  %s0 = inlined_call_operand.vmem [shape: f32[2,8,32], index: 0, kind: input, shape index: {}]
  %s1 = inlined_call_operand.vmem [shape: f32[2,1,8], index: 1, kind: input, shape index: {}]
  %s2 = inlined_call_operand.vmem [shape: f32[24,32,8], index: 2, kind: input, shape index: {}]
  %s3 = inlined_call_operand.vmem [shape: f32[24,1,8], index: 3, kind: input, shape index: {}]
  %s4 = inlined_call_operand.vmem [shape: f32[8,8,32], index: 4, kind: input, shape index: {}]
  %s5 = inlined_call_operand.vmem [shape: f32[2,32,64], index: 5, kind: input, shape index: {}]
  %s6 = inlined_call_operand.vmem [shape: f32[2,64,32], index: 6, kind: input, shape index: {}]
  %s7 = inlined_call_operand.vmem [shape: f32[2,8,128], index: 7, kind: input, shape index: {}]
  %s8 = inlined_call_operand.vmem [shape: f32[32,32], index: 8, kind: input, shape index: {}]
  %s9 = inlined_call_operand.vmem [shape: f32[32,128], index: 9, kind: input, shape index: {}]
  %s10 = inlined_call_operand.vmem [shape: f32[128,64], index: 10, kind: input, shape index: {}]
  %s11 = inlined_call_operand.vmem [shape: f32[64,16], index: 11, kind: input, shape index: {}]
  %s12 = inlined_call_operand.vmem [shape: f32[16,128], index: 12, kind: input, shape index: {}]
  %s13 = inlined_call_operand.vmem [shape: f32[8,128], index: 13, kind: input, shape index: {}]
  %s14 = inlined_call_operand.vmem [shape: f32[2,8,128], index: 14, kind: output, shape index: {}]
  %s15 = sld [smem:[#allocation0]]
  $region89: #{forward.1} parent=0
    _
  %s17 = ssub.s32 1, %s15
  %s18 = scalar_select 0, %s17, %s15
  loop: start=0, step=1, limit=4
  $region2: #{forward.1} parent=0 // loop_pre_header
    _
  $region3: #{forward.1} parent=0 // loop_header
    %s20 = sphi 0, %s24
    %p21 = scmp.ge.s32.totalorder %s20, 4
    %s30 = sphi 0, %s32
    %s33 = sphi 0, %s30
    %s34 = sphi 0, %s33
    %s50 = sphi 0, %s34
    %s56 = sphi 0, %s58
    %s59 = sphi 0, %s56
    %s60 = sphi 0, %s59
    %s76 = sphi 0, %s60
    %s80 = sphi 0, %s80
    %s82 = sphi 0, %s80
    %s83 = sphi 0, %s82
    %s97 = sphi 0, %s83
    %s101 = sphi 0, %s101
    %s103 = sphi 0, %s101
    %s104 = sphi 0, %s103
    %s118 = sphi 0, %s104
    %s122 = sphi 0, %s122
    %s124 = sphi 0, %s122
    %s125 = sphi 0, %s124
    %s139 = sphi 0, %s125
    %s143 = sphi 0, %s143
    %s145 = sphi 0, %s143
    %s146 = sphi 0, %s145
    %s160 = sphi 0, %s146
    %s164 = sphi 0, %s164
    %s166 = sphi 0, %s164
    %s167 = sphi 0, %s166
    %s181 = sphi 0, %s167
    %s185 = sphi 0, %s185
    %s187 = sphi 0, %s185
    %s188 = sphi 0, %s187
    %s202 = sphi 0, %s188
    %s206 = sphi 0, %s206
    %s208 = sphi 0, %s206
    %s209 = sphi 0, %s208
    %s223 = sphi 0, %s209
    %s227 = sphi 0, %s227
    %s229 = sphi 0, %s227
    %s230 = sphi 0, %s229
    %s244 = sphi 0, %s230
    %s248 = sphi 0, %s248
    %s250 = sphi 0, %s248
    %s251 = sphi 0, %s250
    %s265 = sphi 0, %s251
    %s269 = sphi 0, %s269
    %s271 = sphi 0, %s269
    %s272 = sphi 0, %s271
    %s286 = sphi 0, %s272
    %s290 = sphi 0, %s290
    %s292 = sphi 0, %s290
    %s293 = sphi 0, %s292
    %s307 = sphi 0, %s293
    %s311 = sphi 0, %s311
    %s313 = sphi 0, %s311
    %s314 = sphi 0, %s313
    %s328 = sphi 0, %s314
    %s334 = sphi 0, %s336
    %s337 = sphi 0, %s334
    %s338 = sphi 0, %s337
    %s354 = sphi 0, %s338
  $region4: #{forward.1} parent=0 // loop_header_branch
    %23 = sbr.rel (%p21) target = $region8
  $region5: #{forward.1} parent=0 // loop_body
    %s25 = ssub.s32 %s20, 1
    %s26 = ssub.s32 %s20, 2
    %s27 = sadd.s32 %s20, 1
    %s28 = ssub.s32 %s20, %s27
    %p29 = scmp.eq.s32.totalorder %s28, 0
    %s31 = sadd.s32 %s30, 1
    %s32 = scalar_select %p29, %s30, %s31
    %p35 = pneg %p29
    %p36 = scmp.eq.s32.totalorder %s20, 1
    %p37 = por %p35, %p36
    %p38 = scmp.ne.s32.totalorder %s30, %s33
    %p39 = scmp.eq.s32.totalorder %s20, 0
    %p40 = por %p38, %p39
    %p41 = scmp.ne.s32.totalorder %s30, %s33
    %p42 = scmp.eq.s32.totalorder %s25, 1
    %p43 = por %p41, %p42
    %p44 = scmp.ne.s32.totalorder %s33, %s34
    %p45 = scmp.eq.s32.totalorder %s25, 0
    %p46 = por %p44, %p45
    %p47 = scmp.ne.s32.totalorder %s33, %s34
    %p48 = scmp.eq.s32.totalorder %s26, 1
    %p49 = por %p47, %p48
    %p51 = scmp.ne.s32.totalorder %s34, %s50
    %p52 = scmp.eq.s32.totalorder %s26, 0
    %p53 = por %p51, %p52
    %s54 = ssub.s32 %s20, %s27
    %p55 = scmp.eq.s32.totalorder %s54, 0
    %s57 = sadd.s32 %s56, 1
    %s58 = scalar_select %p55, %s56, %s57
    %p61 = pneg %p55
    %p62 = scmp.eq.s32.totalorder %s20, 1
    %p63 = por %p61, %p62
    %p64 = scmp.ne.s32.totalorder %s56, %s59
    %p65 = scmp.eq.s32.totalorder %s20, 0
    %p66 = por %p64, %p65
    %p67 = scmp.ne.s32.totalorder %s56, %s59
    %p68 = scmp.eq.s32.totalorder %s25, 1
    %p69 = por %p67, %p68
    %p70 = scmp.ne.s32.totalorder %s59, %s60
    %p71 = scmp.eq.s32.totalorder %s25, 0
    %p72 = por %p70, %p71
    %p73 = scmp.ne.s32.totalorder %s59, %s60
    %p74 = scmp.eq.s32.totalorder %s26, 1
    %p75 = por %p73, %p74
    %p77 = scmp.ne.s32.totalorder %s60, %s76
    %p78 = scmp.eq.s32.totalorder %s26, 0
    %p79 = por %p77, %p78
    %s81 = sadd.s32 %s80, 1
    %p84 = scmp.eq.s32.totalorder %s20, 1
    %p85 = scmp.ne.s32.totalorder %s80, %s82
    %p86 = scmp.eq.s32.totalorder %s20, 0
    %p87 = por %p85, %p86
    %p88 = scmp.ne.s32.totalorder %s80, %s82
    %p89 = scmp.eq.s32.totalorder %s25, 1
    %p90 = por %p88, %p89
    %p91 = scmp.ne.s32.totalorder %s82, %s83
    %p92 = scmp.eq.s32.totalorder %s25, 0
    %p93 = por %p91, %p92
    %p94 = scmp.ne.s32.totalorder %s82, %s83
    %p95 = scmp.eq.s32.totalorder %s26, 1
    %p96 = por %p94, %p95
    %p98 = scmp.ne.s32.totalorder %s83, %s97
    %p99 = scmp.eq.s32.totalorder %s26, 0
    %p100 = por %p98, %p99
    %s102 = sadd.s32 %s101, 1
    %p105 = scmp.eq.s32.totalorder %s20, 1
    %p106 = scmp.ne.s32.totalorder %s101, %s103
    %p107 = scmp.eq.s32.totalorder %s20, 0
    %p108 = por %p106, %p107
    %p109 = scmp.ne.s32.totalorder %s101, %s103
    %p110 = scmp.eq.s32.totalorder %s25, 1
    %p111 = por %p109, %p110
    %p112 = scmp.ne.s32.totalorder %s103, %s104
    %p113 = scmp.eq.s32.totalorder %s25, 0
    %p114 = por %p112, %p113
    %p115 = scmp.ne.s32.totalorder %s103, %s104
    %p116 = scmp.eq.s32.totalorder %s26, 1
    %p117 = por %p115, %p116
    %p119 = scmp.ne.s32.totalorder %s104, %s118
    %p120 = scmp.eq.s32.totalorder %s26, 0
    %p121 = por %p119, %p120
    %s123 = sadd.s32 %s122, 1
    %p126 = scmp.eq.s32.totalorder %s20, 1
    %p127 = scmp.ne.s32.totalorder %s122, %s124
    %p128 = scmp.eq.s32.totalorder %s20, 0
    %p129 = por %p127, %p128
    %p130 = scmp.ne.s32.totalorder %s122, %s124
    %p131 = scmp.eq.s32.totalorder %s25, 1
    %p132 = por %p130, %p131
    %p133 = scmp.ne.s32.totalorder %s124, %s125
    %p134 = scmp.eq.s32.totalorder %s25, 0
    %p135 = por %p133, %p134
    %p136 = scmp.ne.s32.totalorder %s124, %s125
    %p137 = scmp.eq.s32.totalorder %s26, 1
    %p138 = por %p136, %p137
    %p140 = scmp.ne.s32.totalorder %s125, %s139
    %p141 = scmp.eq.s32.totalorder %s26, 0
    %p142 = por %p140, %p141
    %s144 = sadd.s32 %s143, 1
    %p147 = scmp.eq.s32.totalorder %s20, 1
    %p148 = scmp.ne.s32.totalorder %s143, %s145
    %p149 = scmp.eq.s32.totalorder %s20, 0
    %p150 = por %p148, %p149
    %p151 = scmp.ne.s32.totalorder %s143, %s145
    %p152 = scmp.eq.s32.totalorder %s25, 1
    %p153 = por %p151, %p152
    %p154 = scmp.ne.s32.totalorder %s145, %s146
    %p155 = scmp.eq.s32.totalorder %s25, 0
    %p156 = por %p154, %p155
    %p157 = scmp.ne.s32.totalorder %s145, %s146
    %p158 = scmp.eq.s32.totalorder %s26, 1
    %p159 = por %p157, %p158
    %p161 = scmp.ne.s32.totalorder %s146, %s160
    %p162 = scmp.eq.s32.totalorder %s26, 0
    %p163 = por %p161, %p162
    %s165 = sadd.s32 %s164, 1
    %p168 = scmp.eq.s32.totalorder %s20, 1
    %p169 = scmp.ne.s32.totalorder %s164, %s166
    %p170 = scmp.eq.s32.totalorder %s20, 0
    %p171 = por %p169, %p170
    %p172 = scmp.ne.s32.totalorder %s164, %s166
    %p173 = scmp.eq.s32.totalorder %s25, 1
    %p174 = por %p172, %p173
    %p175 = scmp.ne.s32.totalorder %s166, %s167
    %p176 = scmp.eq.s32.totalorder %s25, 0
    %p177 = por %p175, %p176
    %p178 = scmp.ne.s32.totalorder %s166, %s167
    %p179 = scmp.eq.s32.totalorder %s26, 1
    %p180 = por %p178, %p179
    %p182 = scmp.ne.s32.totalorder %s167, %s181
    %p183 = scmp.eq.s32.totalorder %s26, 0
    %p184 = por %p182, %p183
    %s186 = sadd.s32 %s185, 1
    %p189 = scmp.eq.s32.totalorder %s20, 1
    %p190 = scmp.ne.s32.totalorder %s185, %s187
    %p191 = scmp.eq.s32.totalorder %s20, 0
    %p192 = por %p190, %p191
    %p193 = scmp.ne.s32.totalorder %s185, %s187
    %p194 = scmp.eq.s32.totalorder %s25, 1
    %p195 = por %p193, %p194
    %p196 = scmp.ne.s32.totalorder %s187, %s188
    %p197 = scmp.eq.s32.totalorder %s25, 0
    %p198 = por %p196, %p197
    %p199 = scmp.ne.s32.totalorder %s187, %s188
    %p200 = scmp.eq.s32.totalorder %s26, 1
    %p201 = por %p199, %p200
    %p203 = scmp.ne.s32.totalorder %s188, %s202
    %p204 = scmp.eq.s32.totalorder %s26, 0
    %p205 = por %p203, %p204
    %s207 = sadd.s32 %s206, 1
    %p210 = scmp.eq.s32.totalorder %s20, 1
    %p211 = scmp.ne.s32.totalorder %s206, %s208
    %p212 = scmp.eq.s32.totalorder %s20, 0
    %p213 = por %p211, %p212
    %p214 = scmp.ne.s32.totalorder %s206, %s208
    %p215 = scmp.eq.s32.totalorder %s25, 1
    %p216 = por %p214, %p215
    %p217 = scmp.ne.s32.totalorder %s208, %s209
    %p218 = scmp.eq.s32.totalorder %s25, 0
    %p219 = por %p217, %p218
    %p220 = scmp.ne.s32.totalorder %s208, %s209
    %p221 = scmp.eq.s32.totalorder %s26, 1
    %p222 = por %p220, %p221
    %p224 = scmp.ne.s32.totalorder %s209, %s223
    %p225 = scmp.eq.s32.totalorder %s26, 0
    %p226 = por %p224, %p225
    %s228 = sadd.s32 %s227, 1
    %p231 = scmp.eq.s32.totalorder %s20, 1
    %p232 = scmp.ne.s32.totalorder %s227, %s229
    %p233 = scmp.eq.s32.totalorder %s20, 0
    %p234 = por %p232, %p233
    %p235 = scmp.ne.s32.totalorder %s227, %s229
    %p236 = scmp.eq.s32.totalorder %s25, 1
    %p237 = por %p235, %p236
    %p238 = scmp.ne.s32.totalorder %s229, %s230
    %p239 = scmp.eq.s32.totalorder %s25, 0
    %p240 = por %p238, %p239
    %p241 = scmp.ne.s32.totalorder %s229, %s230
    %p242 = scmp.eq.s32.totalorder %s26, 1
    %p243 = por %p241, %p242
    %p245 = scmp.ne.s32.totalorder %s230, %s244
    %p246 = scmp.eq.s32.totalorder %s26, 0
    %p247 = por %p245, %p246
    %s249 = sadd.s32 %s248, 1
    %p252 = scmp.eq.s32.totalorder %s20, 1
    %p253 = scmp.ne.s32.totalorder %s248, %s250
    %p254 = scmp.eq.s32.totalorder %s20, 0
    %p255 = por %p253, %p254
    %p256 = scmp.ne.s32.totalorder %s248, %s250
    %p257 = scmp.eq.s32.totalorder %s25, 1
    %p258 = por %p256, %p257
    %p259 = scmp.ne.s32.totalorder %s250, %s251
    %p260 = scmp.eq.s32.totalorder %s25, 0
    %p261 = por %p259, %p260
    %p262 = scmp.ne.s32.totalorder %s250, %s251
    %p263 = scmp.eq.s32.totalorder %s26, 1
    %p264 = por %p262, %p263
    %p266 = scmp.ne.s32.totalorder %s251, %s265
    %p267 = scmp.eq.s32.totalorder %s26, 0
    %p268 = por %p266, %p267
    %s270 = sadd.s32 %s269, 1
    %p273 = scmp.eq.s32.totalorder %s20, 1
    %p274 = scmp.ne.s32.totalorder %s269, %s271
    %p275 = scmp.eq.s32.totalorder %s20, 0
    %p276 = por %p274, %p275
    %p277 = scmp.ne.s32.totalorder %s269, %s271
    %p278 = scmp.eq.s32.totalorder %s25, 1
    %p279 = por %p277, %p278
    %p280 = scmp.ne.s32.totalorder %s271, %s272
    %p281 = scmp.eq.s32.totalorder %s25, 0
    %p282 = por %p280, %p281
    %p283 = scmp.ne.s32.totalorder %s271, %s272
    %p284 = scmp.eq.s32.totalorder %s26, 1
    %p285 = por %p283, %p284
    %p287 = scmp.ne.s32.totalorder %s272, %s286
    %p288 = scmp.eq.s32.totalorder %s26, 0
    %p289 = por %p287, %p288
    %s291 = sadd.s32 %s290, 1
    %p294 = scmp.eq.s32.totalorder %s20, 1
    %p295 = scmp.ne.s32.totalorder %s290, %s292
    %p296 = scmp.eq.s32.totalorder %s20, 0
    %p297 = por %p295, %p296
    %p298 = scmp.ne.s32.totalorder %s290, %s292
    %p299 = scmp.eq.s32.totalorder %s25, 1
    %p300 = por %p298, %p299
    %p301 = scmp.ne.s32.totalorder %s292, %s293
    %p302 = scmp.eq.s32.totalorder %s25, 0
    %p303 = por %p301, %p302
    %p304 = scmp.ne.s32.totalorder %s292, %s293
    %p305 = scmp.eq.s32.totalorder %s26, 1
    %p306 = por %p304, %p305
    %p308 = scmp.ne.s32.totalorder %s293, %s307
    %p309 = scmp.eq.s32.totalorder %s26, 0
    %p310 = por %p308, %p309
    %s312 = sadd.s32 %s311, 1
    %p315 = scmp.eq.s32.totalorder %s20, 1
    %p316 = scmp.ne.s32.totalorder %s311, %s313
    %p317 = scmp.eq.s32.totalorder %s20, 0
    %p318 = por %p316, %p317
    %p319 = scmp.ne.s32.totalorder %s311, %s313
    %p320 = scmp.eq.s32.totalorder %s25, 1
    %p321 = por %p319, %p320
    %p322 = scmp.ne.s32.totalorder %s313, %s314
    %p323 = scmp.eq.s32.totalorder %s25, 0
    %p324 = por %p322, %p323
    %p325 = scmp.ne.s32.totalorder %s313, %s314
    %p326 = scmp.eq.s32.totalorder %s26, 1
    %p327 = por %p325, %p326
    %p329 = scmp.ne.s32.totalorder %s314, %s328
    %p330 = scmp.eq.s32.totalorder %s26, 0
    %p331 = por %p329, %p330
    %s332 = ssub.s32 %s20, %s27
    %p333 = scmp.eq.s32.totalorder %s332, 0
    %s335 = sadd.s32 %s334, 1
    %s336 = scalar_select %p333, %s334, %s335
    %p339 = pneg %p333
    %p340 = scmp.eq.s32.totalorder %s20, 1
    %p341 = por %p339, %p340
    %p342 = scmp.ne.s32.totalorder %s334, %s337
    %p343 = scmp.eq.s32.totalorder %s20, 0
    %p344 = por %p342, %p343
    %p345 = scmp.ne.s32.totalorder %s334, %s337
    %p346 = scmp.eq.s32.totalorder %s25, 1
    %p347 = por %p345, %p346
    %p348 = scmp.ne.s32.totalorder %s337, %s338
    %p349 = scmp.eq.s32.totalorder %s25, 0
    %p350 = por %p348, %p349
    %p351 = scmp.ne.s32.totalorder %s337, %s338
    %p352 = scmp.eq.s32.totalorder %s26, 1
    %p353 = por %p351, %p352
    %p355 = scmp.ne.s32.totalorder %s338, %s354
    %p356 = scmp.eq.s32.totalorder %s26, 0
    %p357 = por %p355, %p356
    %p358 = scmp.le.s32.totalorder 1, %s20
    %p359 = scmp.lt.s32.totalorder %s20, 3
    %p360 = pnand %p358, %p359
    %p361 = pneg %p360
    // Predicated region
    $region9: #{forward.1} parent=5 // pred_check
      _
    $region10: #{forward.1} parent=5 // pred_check_branch
      %363 = sbr.rel (%p360) target = $region12
    $region11: #{forward.1} parent=5 // pred_region
      %s364 = ssub.s32 %s20, 1
      // Predicated region
      $region13: #{forward.1} parent=11 // pred_check
        %p365 = pneg %p93
      $region14: #{forward.1} parent=11 // pred_check_branch
        %367 = sbr.rel (%p365) target = $region16
      $region15: #{forward.1} parent=11 // pred_region
        _
      $region16: #{forward.1} parent=11 // pred_fallthru
        _
      // Predicated region
      $region17: #{forward.1} parent=11 // pred_check
        %p368 = pneg %p114
      $region18: #{forward.1} parent=11 // pred_check_branch
        %370 = sbr.rel (%p368) target = $region20
      $region19: #{forward.1} parent=11 // pred_region
        _
      $region20: #{forward.1} parent=11 // pred_fallthru
        _
      // Predicated region
      $region21: #{forward.1} parent=11 // pred_check
        %p371 = pneg %p135
      $region22: #{forward.1} parent=11 // pred_check_branch
        %373 = sbr.rel (%p371) target = $region24
      $region23: #{forward.1} parent=11 // pred_region
        _
      $region24: #{forward.1} parent=11 // pred_fallthru
        _
      // Predicated region
      $region25: #{forward.1} parent=11 // pred_check
        %p374 = pneg %p156
      $region26: #{forward.1} parent=11 // pred_check_branch
        %376 = sbr.rel (%p374) target = $region28
      $region27: #{forward.1} parent=11 // pred_region
        _
      $region28: #{forward.1} parent=11 // pred_fallthru
        _
      // Predicated region
      $region29: #{forward.1} parent=11 // pred_check
        %p377 = pneg %p177
      $region30: #{forward.1} parent=11 // pred_check_branch
        %379 = sbr.rel (%p377) target = $region32
      $region31: #{forward.1} parent=11 // pred_region
        _
      $region32: #{forward.1} parent=11 // pred_fallthru
        _
      // Predicated region
      $region33: #{forward.1} parent=11 // pred_check
        %p380 = pneg %p198
      $region34: #{forward.1} parent=11 // pred_check_branch
        %382 = sbr.rel (%p380) target = $region36
      $region35: #{forward.1} parent=11 // pred_region
        _
      $region36: #{forward.1} parent=11 // pred_fallthru
        _
      // Predicated region
      $region37: #{forward.1} parent=11 // pred_check
        %p383 = pneg %p219
      $region38: #{forward.1} parent=11 // pred_check_branch
        %385 = sbr.rel (%p383) target = $region40
      $region39: #{forward.1} parent=11 // pred_region
        _
      $region40: #{forward.1} parent=11 // pred_fallthru
        _
      // Predicated region
      $region41: #{forward.1} parent=11 // pred_check
        %p386 = pneg %p240
      $region42: #{forward.1} parent=11 // pred_check_branch
        %388 = sbr.rel (%p386) target = $region44
      $region43: #{forward.1} parent=11 // pred_region
        _
      $region44: #{forward.1} parent=11 // pred_fallthru
        _
      // Predicated region
      $region45: #{forward.1} parent=11 // pred_check
        %p389 = pneg %p261
      $region46: #{forward.1} parent=11 // pred_check_branch
        %391 = sbr.rel (%p389) target = $region48
      $region47: #{forward.1} parent=11 // pred_region
        _
      $region48: #{forward.1} parent=11 // pred_fallthru
        _
      // Predicated region
      $region49: #{forward.1} parent=11 // pred_check
        %p392 = pneg %p282
      $region50: #{forward.1} parent=11 // pred_check_branch
        %394 = sbr.rel (%p392) target = $region52
      $region51: #{forward.1} parent=11 // pred_region
        _
      $region52: #{forward.1} parent=11 // pred_fallthru
        _
      // Predicated region
      $region53: #{forward.1} parent=11 // pred_check
        %p395 = pneg %p303
      $region54: #{forward.1} parent=11 // pred_check_branch
        %397 = sbr.rel (%p395) target = $region56
      $region55: #{forward.1} parent=11 // pred_region
        _
      $region56: #{forward.1} parent=11 // pred_fallthru
        _
      // Predicated region
      $region57: #{forward.1} parent=11 // pred_check
        %p398 = pneg %p324
      $region58: #{forward.1} parent=11 // pred_check_branch
        %400 = sbr.rel (%p398) target = $region60
      $region59: #{forward.1} parent=11 // pred_region
        _
      $region60: #{forward.1} parent=11 // pred_fallthru
        _
    $region12: #{forward.1} parent=5 // pred_fallthru
      _
    %p401 = scmp.lt.s32.totalorder %s20, 2
    // Predicated region
    $region61: #{forward.1} parent=5 // pred_check
      %p402 = pneg %p401
    $region62: #{forward.1} parent=5 // pred_check_branch
      %404 = sbr.rel (%p402) target = $region64
    $region63: #{forward.1} parent=5 // pred_region
      // Predicated region
      $region65: #{forward.1} parent=63 // pred_check
        %p405 = pneg %p40
      $region66: #{forward.1} parent=63 // pred_check_branch
        %407 = sbr.rel (%p405) target = $region68
      $region67: #{forward.1} parent=63 // pred_region
        %p408 = scmp.lt.s32.totalorder %s20, 1
        %s409 = scalar_select %p408, %s20, 1
        %s410 = smul.addr %s409, 8
        %s411 = scalar_lea.vmem %s0, %s410
      $region68: #{forward.1} parent=63 // pred_fallthru
        _
      // Predicated region
      $region69: #{forward.1} parent=63 // pred_check
        %p412 = pneg %p66
      $region70: #{forward.1} parent=63 // pred_check_branch
        %414 = sbr.rel (%p412) target = $region72
      $region71: #{forward.1} parent=63 // pred_region
        %p415 = scmp.lt.s32.totalorder %s20, 1
        %s416 = scalar_select %p415, %s20, 1
        %s417 = scalar_lea.vmem %s1, %s416
      $region72: #{forward.1} parent=63 // pred_fallthru
        _
    $region64: #{forward.1} parent=5 // pred_fallthru
      _
    %p418 = scmp.le.s32.totalorder 1, %s20
    %p419 = scmp.lt.s32.totalorder %s20, 3
    %p420 = pnand %p418, %p419
    %p421 = pneg %p420
    // Predicated region
    $region73: #{forward.1} parent=5 // pred_check
      _
    $region74: #{forward.1} parent=5 // pred_check_branch
      %423 = sbr.rel (%p420) target = $region76
    $region75: #{forward.1} parent=5 // pred_region
      %s424 = ssub.s32 %s20, 1
      %p425 = scmp.lt.s32.totalorder %s25, 1
      %s426 = scalar_select %p425, %s25, 1
      %s427 = smul.addr %s426, 8
      %s428 = scalar_lea.vmem %s0, %s427
      %p429 = pneg %p46
      %p430 = pneg %p43
      %p431 = scmp.lt.s32.totalorder %s25, 1
      %s432 = scalar_select %p431, %s25, 1
      %s433 = scalar_lea.vmem %s1, %s432
      %p434 = pneg %p72
      %p435 = pneg %p69
      %p436 = pneg %p93
      %p437 = pneg %p90
      %p438 = pneg %p114
      %p439 = pneg %p111
      %p440 = pneg %p135
      %p441 = pneg %p132
      %p442 = pneg %p156
      %p443 = pneg %p153
      %p444 = pneg %p177
      %p445 = pneg %p174
      %p446 = pneg %p198
      %p447 = pneg %p195
      %p448 = pneg %p219
      %p449 = pneg %p216
      %p450 = pneg %p240
      %p451 = pneg %p237
      %p452 = pneg %p261
      %p453 = pneg %p258
      %p454 = pneg %p282
      %p455 = pneg %p279
      %p456 = pneg %p303
      %p457 = pneg %p300
      %p458 = pneg %p324
      %p459 = pneg %p321
      %p460 = pneg %p350
      %p461 = pneg %p347
      %p462 = scmp.lt.s32.totalorder %s25, 1
      %s463 = scalar_select %p462, %s25, 1
      %s464 = smul.addr %s463, 8
      %s465 = scalar_lea.vmem %s14, %s464
      %p466 = scmp.lt.s32.totalorder %s25, 1
      %s467 = scalar_select %p466, %s25, 1
      %s468 = smul.addr %s467, 8
      %s469 = scalar_lea.vmem %s0, %s468
      %p470 = scmp.lt.s32.totalorder %s25, 1
      %s471 = scalar_select %p470, %s25, 1
      %s472 = scalar_lea.vmem %s1, %s471
      %p473 = scmp.lt.s32.totalorder %s25, 1
      %s474 = scalar_select %p473, %s25, 1
      %s475 = smul.addr %s474, 8
      %s476 = scalar_lea.vmem %s14, %s475
      %v477 = vld [vmem:[%s13] sm:$0xff]
      %v478 = vld [vmem:[%s469] sm:$0xff]
      %vm479 = vcmask 261120
      %v480 = vsel %vm479, %v478, 0.0
      %481 = vadd.xlane.f32.xlu0 %v480
      %v482 = vpop.xlane.xlu0 %481
      %v483 = vrcp.pop 32.0
      %v484 = vmul.f32 %v482, %v483
      %v485 = vsub.f32 %v478, %v484
      %v486 = vmul.f32 %v485, %v485
      %v487 = vsel %vm479, %v486, 0.0
      %488 = vadd.xlane.f32.xlu0 %v487
      %v489 = vpop.xlane.xlu0 %488
      %v490 = vmul.f32 %v489, %v483
      %v491 = vadd.f32 %v490, 1e-12
      %v492 = vrsqrt.pop %v491
      %v493 = vmul.f32 %v485, %v492
      %v494 = vlaneseq
      %v495 = vshrl.u32 %v494, 7
      %v496 = vsub.s32 0, %v495
      %v497 = vrot.slane %v477, %v496
      %v498 = vmul.f32 %v493, %v497
      %v499 = vlaneseq
      %v500 = vshrl.u32 %v499, 7
      %v501 = vsub.s32 1, %v500
      %v502 = vrot.slane %v477, %v501
      %v503 = vadd.f32 %v498, %v502
      %v504 = vld [vmem:[%s472] sm:$0x1]
      %v506 = vlaneseq
      %v507 = vshrl.u32 %v506, 7
      %v508 = vsub.s32 0, %v507
      %v509 = vrot.slane %v504, %v508
      %v511 = vld [vmem:[%s7] sm:$0xff]
      %v512 = vld [vmem:[%s2] sm:$0xff]
      %v513 = vld [vmem:[%s2 + $0x8] sm:$0xff]
      %v514 = vld [vmem:[%s2 + $0x10] sm:$0xff]
      %v515 = vld [vmem:[%s2 + $0x18] sm:$0xff]
      %v516 = vld [vmem:[%s3] sm:$0x1]
      %v518 = vlaneseq
      %v519 = vshrl.u32 %v518, 7
      %v520 = vsub.s32 0, %v519
      %v521 = vrot.slane %v516, %v520
      %v524 = vsel %vm479, %v503, 0
      %526 = vmatprep.subr.mxu0 0.0
      %527 = vmatpush1.msra.mxu0 0.0
      %528 = vmatprep.subr.mxu0 0.0
      %529 = vmatpush1.msra.mxu0 0.0
      %530 = vmatprep.subr.mxu0 0.0
      %531 = vmatpush1.msra.mxu0 0.0
      %532 = vmatprep.subr.mxu0 0.0
      %533 = vmatpush1.msra.mxu0 0.0
      %534 = vmatprep.subr.mxu0 0.0
      %535 = vmatpush1.msra.mxu0 0.0
      %536 = vmatprep.subr.mxu0 0.0
      %537 = vmatpush1.msra.mxu0 0.0
      %538 = vmatprep.subr.mxu0 0.0
      %539 = vmatpush1.msra.mxu0 0.0
      %540 = vmatprep.subr.mxu0 0.0
      %541 = vmatpush1.msra.mxu0 0.0
      %542 = vmatprep.subr.mxu0 0.0
      %543 = vmatpush1.msra.mxu0 0.0
      %544 = vmatprep.subr.mxu0 0.0
      %545 = vmatpush1.msra.mxu0 0.0
      %546 = vmatprep.subr.mxu0 0.0
      %547 = vmatpush1.msra.mxu0 0.0
      %548 = vmatprep.subr.mxu0 0.0
      %549 = vmatpush1.msra.mxu0 0.0
      %550 = vmatprep.subr.mxu0 0.0
      %551 = vmatpush1.msra.mxu0 %v515
      %552 = vmatprep.subr.mxu0 0.0
      %553 = vmatpush1.msra.mxu0 %v514
      %554 = vmatprep.subr.mxu0 0.0
      %555 = vmatpush1.msra.mxu0 %v513
      %556 = vmatprep.subr.mxu0 0.0
      %557 = vmatpush1.msra.mxu0 %v512
      %558 = vmatprep.subr.mxu0 0.0
      %559 = vmatpush2.msra.mxu0 0.0
      %560 = vmatprep.subr.mxu0 0.0
      %561 = vmatpush2.msra.mxu0 0.0
      %562 = vmatprep.subr.mxu0 0.0
      %563 = vmatpush2.msra.mxu0 0.0
      %564 = vmatprep.subr.mxu0 0.0
      %565 = vmatpush2.msra.mxu0 0.0
      %566 = vmatprep.subr.mxu0 0.0
      %567 = vmatpush2.msra.mxu0 0.0
      %568 = vmatprep.subr.mxu0 0.0
      %569 = vmatpush2.msra.mxu0 0.0
      %570 = vmatprep.subr.mxu0 0.0
      %571 = vmatpush2.msra.mxu0 0.0
      %572 = vmatprep.subr.mxu0 0.0
      %573 = vmatpush2.msra.mxu0 0.0
      %574 = vmatprep.subr.mxu0 0.0
      %575 = vmatpush2.msra.mxu0 0.0
      %576 = vmatprep.subr.mxu0 0.0
      %577 = vmatpush2.msra.mxu0 0.0
      %578 = vmatprep.subr.mxu0 0.0
      %579 = vmatpush2.msra.mxu0 0.0
      %580 = vmatprep.subr.mxu0 0.0
      %581 = vmatpush2.msra.mxu0 0.0
      %582 = vmatprep.subr.mxu0 0.0
      %583 = vmatpush2.msra.mxu0 0.0
      %584 = vmatprep.subr.mxu0 0.0
      %585 = vmatpush2.msra.mxu0 0.0
      %586 = vmatprep.subr.mxu0 0.0
      %587 = vmatpush2.msra.mxu0 0.0
      %588 = vmatprep.subr.mxu0 0.0
      %589 = vmatpush2.msra.mxu0 0.0
      %590 = vmatprep.mubr.f32.mxu0 0.0
      %591 = vmatmul.mubr.f32.gmra.mxu0 %v524
      %v592 = vpop.f32.mrf.mxu0
      %v593 = vadd.f32 %v521, %v592
      %v594 = vpop.f32.mrf.mxu0
      %595 = vdwg.mxu0
      %s596 = scalar_lea.vmem %s2, 128
      %v597 = vld [vmem:[%s596] sm:$0xff]
      %v598 = vld [vmem:[%s596 + $0x8] sm:$0xff]
      %v599 = vld [vmem:[%s596 + $0x10] sm:$0xff]
      %v600 = vld [vmem:[%s596 + $0x18] sm:$0xff]
      %s601 = scalar_lea.vmem %s3, 4
      %v602 = vld [vmem:[%s601] sm:$0x1]
      %v604 = vlaneseq
      %v605 = vshrl.u32 %v604, 7
      %v606 = vsub.s32 0, %v605
      %v607 = vrot.slane %v602, %v606
      %609 = vmatprep.subr.mxu0 0.0
      %610 = vmatpush1.msra.mxu0 0.0
      %611 = vmatprep.subr.mxu0 0.0
      %612 = vmatpush1.msra.mxu0 0.0
      %613 = vmatprep.subr.mxu0 0.0
      %614 = vmatpush1.msra.mxu0 0.0
      %615 = vmatprep.subr.mxu0 0.0
      %616 = vmatpush1.msra.mxu0 0.0
      %617 = vmatprep.subr.mxu0 0.0
      %618 = vmatpush1.msra.mxu0 0.0
      %619 = vmatprep.subr.mxu0 0.0
      %620 = vmatpush1.msra.mxu0 0.0
      %621 = vmatprep.subr.mxu0 0.0
      %622 = vmatpush1.msra.mxu0 0.0
      %623 = vmatprep.subr.mxu0 0.0
      %624 = vmatpush1.msra.mxu0 0.0
      %625 = vmatprep.subr.mxu0 0.0
      %626 = vmatpush1.msra.mxu0 0.0
      %627 = vmatprep.subr.mxu0 0.0
      %628 = vmatpush1.msra.mxu0 0.0
      %629 = vmatprep.subr.mxu0 0.0
      %630 = vmatpush1.msra.mxu0 0.0
      %631 = vmatprep.subr.mxu0 0.0
      %632 = vmatpush1.msra.mxu0 0.0
      %633 = vmatprep.subr.mxu0 0.0
      %634 = vmatpush1.msra.mxu0 %v600
      %635 = vmatprep.subr.mxu0 0.0
      %636 = vmatpush1.msra.mxu0 %v599
      %637 = vmatprep.subr.mxu0 0.0
      %638 = vmatpush1.msra.mxu0 %v598
      %639 = vmatprep.subr.mxu0 0.0
      %640 = vmatpush1.msra.mxu0 %v597
      %641 = vmatprep.subr.mxu0 0.0
      %642 = vmatpush2.msra.mxu0 0.0
      %643 = vmatprep.subr.mxu0 0.0
      %644 = vmatpush2.msra.mxu0 0.0
      %645 = vmatprep.subr.mxu0 0.0
      %646 = vmatpush2.msra.mxu0 0.0
      %647 = vmatprep.subr.mxu0 0.0
      %648 = vmatpush2.msra.mxu0 0.0
      %649 = vmatprep.subr.mxu0 0.0
      %650 = vmatpush2.msra.mxu0 0.0
      %651 = vmatprep.subr.mxu0 0.0
      %652 = vmatpush2.msra.mxu0 0.0
      %653 = vmatprep.subr.mxu0 0.0
      %654 = vmatpush2.msra.mxu0 0.0
      %655 = vmatprep.subr.mxu0 0.0
      %656 = vmatpush2.msra.mxu0 0.0
      %657 = vmatprep.subr.mxu0 0.0
      %658 = vmatpush2.msra.mxu0 0.0
      %659 = vmatprep.subr.mxu0 0.0
      %660 = vmatpush2.msra.mxu0 0.0
      %661 = vmatprep.subr.mxu0 0.0
      %662 = vmatpush2.msra.mxu0 0.0
      %663 = vmatprep.subr.mxu0 0.0
      %664 = vmatpush2.msra.mxu0 0.0
      %665 = vmatprep.subr.mxu0 0.0
      %666 = vmatpush2.msra.mxu0 0.0
      %667 = vmatprep.subr.mxu0 0.0
      %668 = vmatpush2.msra.mxu0 0.0
      %669 = vmatprep.subr.mxu0 0.0
      %670 = vmatpush2.msra.mxu0 0.0
      %671 = vmatprep.subr.mxu0 0.0
      %672 = vmatpush2.msra.mxu0 0.0
      %673 = vmatprep.mubr.f32.mxu0 0.0
      %674 = vmatmul.mubr.f32.gmra.mxu0 %v524
      %v675 = vpop.f32.mrf.mxu0
      %v676 = vadd.f32 %v607, %v675
      %v677 = vpop.f32.mrf.mxu0
      %678 = vdwg.mxu0
      %s679 = scalar_lea.vmem %s2, 256
      %v680 = vld [vmem:[%s679] sm:$0xff]
      %v681 = vld [vmem:[%s679 + $0x8] sm:$0xff]
      %v682 = vld [vmem:[%s679 + $0x10] sm:$0xff]
      %v683 = vld [vmem:[%s679 + $0x18] sm:$0xff]
      %s684 = scalar_lea.vmem %s3, 8
      %v685 = vld [vmem:[%s684] sm:$0x1]
      %v687 = vlaneseq
      %v688 = vshrl.u32 %v687, 7
      %v689 = vsub.s32 0, %v688
      %v690 = vrot.slane %v685, %v689
      %692 = vmatprep.subr.mxu0 0.0
      %693 = vmatpush1.msra.mxu0 0.0
      %694 = vmatprep.subr.mxu0 0.0
      %695 = vmatpush1.msra.mxu0 0.0
      %696 = vmatprep.subr.mxu0 0.0
      %697 = vmatpush1.msra.mxu0 0.0
      %698 = vmatprep.subr.mxu0 0.0
      %699 = vmatpush1.msra.mxu0 0.0
      %700 = vmatprep.subr.mxu0 0.0
      %701 = vmatpush1.msra.mxu0 0.0
      %702 = vmatprep.subr.mxu0 0.0
      %703 = vmatpush1.msra.mxu0 0.0
      %704 = vmatprep.subr.mxu0 0.0
      %705 = vmatpush1.msra.mxu0 0.0
      %706 = vmatprep.subr.mxu0 0.0
      %707 = vmatpush1.msra.mxu0 0.0
      %708 = vmatprep.subr.mxu0 0.0
      %709 = vmatpush1.msra.mxu0 0.0
      %710 = vmatprep.subr.mxu0 0.0
      %711 = vmatpush1.msra.mxu0 0.0
      %712 = vmatprep.subr.mxu0 0.0
      %713 = vmatpush1.msra.mxu0 0.0
      %714 = vmatprep.subr.mxu0 0.0
      %715 = vmatpush1.msra.mxu0 0.0
      %716 = vmatprep.subr.mxu0 0.0
      %717 = vmatpush1.msra.mxu0 %v683
      %718 = vmatprep.subr.mxu0 0.0
      %719 = vmatpush1.msra.mxu0 %v682
      %720 = vmatprep.subr.mxu0 0.0
      %721 = vmatpush1.msra.mxu0 %v681
      %722 = vmatprep.subr.mxu0 0.0
      %723 = vmatpush1.msra.mxu0 %v680
      %724 = vmatprep.subr.mxu0 0.0
      %725 = vmatpush2.msra.mxu0 0.0
      %726 = vmatprep.subr.mxu0 0.0
      %727 = vmatpush2.msra.mxu0 0.0
      %728 = vmatprep.subr.mxu0 0.0
      %729 = vmatpush2.msra.mxu0 0.0
      %730 = vmatprep.subr.mxu0 0.0
      %731 = vmatpush2.msra.mxu0 0.0
      %732 = vmatprep.subr.mxu0 0.0
      %733 = vmatpush2.msra.mxu0 0.0
      %734 = vmatprep.subr.mxu0 0.0
      %735 = vmatpush2.msra.mxu0 0.0
      %736 = vmatprep.subr.mxu0 0.0
      %737 = vmatpush2.msra.mxu0 0.0
      %738 = vmatprep.subr.mxu0 0.0
      %739 = vmatpush2.msra.mxu0 0.0
      %740 = vmatprep.subr.mxu0 0.0
      %741 = vmatpush2.msra.mxu0 0.0
      %742 = vmatprep.subr.mxu0 0.0
      %743 = vmatpush2.msra.mxu0 0.0
      %744 = vmatprep.subr.mxu0 0.0
      %745 = vmatpush2.msra.mxu0 0.0
      %746 = vmatprep.subr.mxu0 0.0
      %747 = vmatpush2.msra.mxu0 0.0
      %748 = vmatprep.subr.mxu0 0.0
      %749 = vmatpush2.msra.mxu0 0.0
      %750 = vmatprep.subr.mxu0 0.0
      %751 = vmatpush2.msra.mxu0 0.0
      %752 = vmatprep.subr.mxu0 0.0
      %753 = vmatpush2.msra.mxu0 0.0
      %754 = vmatprep.subr.mxu0 0.0
      %755 = vmatpush2.msra.mxu0 0.0
      %756 = vmatprep.mubr.f32.mxu0 0.0
      %757 = vmatmul.mubr.f32.gmra.mxu0 %v524
      %v758 = vpop.f32.mrf.mxu0
      %v759 = vadd.f32 %v690, %v758
      %v760 = vpop.f32.mrf.mxu0
      %761 = vdwg.mxu0
      %vm762 = vcmask 64512
      %v764 = vsel %vm762, %v593, 0
      %v767 = vsel %vm762, %v676, 0
      %769 = vmatprep.subr.mxu0 0.0
      %770 = vmatpush1.xpose.msra.mxu0 0.0
      %771 = vmatprep.subr.mxu0 0.0
      %772 = vmatpush1.xpose.msra.mxu0 0.0
      %773 = vmatprep.subr.mxu0 0.0
      %774 = vmatpush1.xpose.msra.mxu0 0.0
      %775 = vmatprep.subr.mxu0 0.0
      %776 = vmatpush1.xpose.msra.mxu0 0.0
      %777 = vmatprep.subr.mxu0 0.0
      %778 = vmatpush1.xpose.msra.mxu0 0.0
      %779 = vmatprep.subr.mxu0 0.0
      %780 = vmatpush1.xpose.msra.mxu0 0.0
      %781 = vmatprep.subr.mxu0 0.0
      %782 = vmatpush1.xpose.msra.mxu0 0.0
      %783 = vmatprep.subr.mxu0 0.0
      %784 = vmatpush1.xpose.msra.mxu0 0.0
      %785 = vmatprep.subr.mxu0 0.0
      %786 = vmatpush1.xpose.msra.mxu0 0.0
      %787 = vmatprep.subr.mxu0 0.0
      %788 = vmatpush1.xpose.msra.mxu0 0.0
      %789 = vmatprep.subr.mxu0 0.0
      %790 = vmatpush1.xpose.msra.mxu0 0.0
      %791 = vmatprep.subr.mxu0 0.0
      %792 = vmatpush1.xpose.msra.mxu0 0.0
      %793 = vmatprep.subr.mxu0 0.0
      %794 = vmatpush1.xpose.msra.mxu0 0.0
      %795 = vmatprep.subr.mxu0 0.0
      %796 = vmatpush1.xpose.msra.mxu0 0.0
      %797 = vmatprep.subr.mxu0 0.0
      %798 = vmatpush1.xpose.msra.mxu0 0.0
      %799 = vmatprep.subr.mxu0 0.0
      %800 = vmatpush1.xpose.msra.mxu0 %v767
      %801 = vmatprep.subr.mxu0 0.0
      %802 = vmatpush2.xpose.msra.mxu0 0.0
      %803 = vmatprep.subr.mxu0 0.0
      %804 = vmatpush2.xpose.msra.mxu0 0.0
      %805 = vmatprep.subr.mxu0 0.0
      %806 = vmatpush2.xpose.msra.mxu0 0.0
      %807 = vmatprep.subr.mxu0 0.0
      %808 = vmatpush2.xpose.msra.mxu0 0.0
      %809 = vmatprep.subr.mxu0 0.0
      %810 = vmatpush2.xpose.msra.mxu0 0.0
      %811 = vmatprep.subr.mxu0 0.0
      %812 = vmatpush2.xpose.msra.mxu0 0.0
      %813 = vmatprep.subr.mxu0 0.0
      %814 = vmatpush2.xpose.msra.mxu0 0.0
      %815 = vmatprep.subr.mxu0 0.0
      %816 = vmatpush2.xpose.msra.mxu0 0.0
      %817 = vmatprep.subr.mxu0 0.0
      %818 = vmatpush2.xpose.msra.mxu0 0.0
      %819 = vmatprep.subr.mxu0 0.0
      %820 = vmatpush2.xpose.msra.mxu0 0.0
      %821 = vmatprep.subr.mxu0 0.0
      %822 = vmatpush2.xpose.msra.mxu0 0.0
      %823 = vmatprep.subr.mxu0 0.0
      %824 = vmatpush2.xpose.msra.mxu0 0.0
      %825 = vmatprep.subr.mxu0 0.0
      %826 = vmatpush2.xpose.msra.mxu0 0.0
      %827 = vmatprep.subr.mxu0 0.0
      %828 = vmatpush2.xpose.msra.mxu0 0.0
      %829 = vmatprep.subr.mxu0 0.0
      %830 = vmatpush2.xpose.msra.mxu0 0.0
      %831 = vmatprep.subr.mxu0 0.0
      %832 = vmatpush2.xpose.msra.mxu0 0.0
      %833 = vmatprep.mubr.f32.mxu0 0.0
      %834 = vmatmul.mubr.f32.gmra.mxu0 %v764
      %v835 = vpop.f32.mrf.mxu0
      %v836 = vadd.f32 0.0, %v835
      %v837 = vpop.f32.mrf.mxu0
      %838 = vdwg.mxu0
      %v839 = vmul.f32 %v836, 0.35355338
      %v840 = vadd.f32 %v839, %v509
      %v841 = vsel %vm762, %v840, -inf
      %842 = vmax.xlane.f32.xlu0 %v841
      %v843 = vpop.xlane.xlu0 %842
      %v844 = vsub.f32 %v840, %v843
      %v845 = vmul.f32 %v844, 1.442695
      %v846 = vpow.pop %v845
      %v847 = vsel %vm762, %v846, 0.0
      %848 = vadd.xlane.f32.xlu0 %v847
      %v849 = vpop.xlane.xlu0 %848
      %v850 = vrcp.pop %v849
      %v851 = vmul.f32 %v846, %v850
      %v853 = vsel %vm762, %v851, 0
      %855 = vmatprep.subr.mxu0 0.0
      %856 = vmatpush1.msra.mxu0 0.0
      %857 = vmatprep.subr.mxu0 0.0
      %858 = vmatpush1.msra.mxu0 0.0
      %859 = vmatprep.subr.mxu0 0.0
      %860 = vmatpush1.msra.mxu0 0.0
      %861 = vmatprep.subr.mxu0 0.0
      %862 = vmatpush1.msra.mxu0 0.0
      %863 = vmatprep.subr.mxu0 0.0
      %864 = vmatpush1.msra.mxu0 0.0
      %865 = vmatprep.subr.mxu0 0.0
      %866 = vmatpush1.msra.mxu0 0.0
      %867 = vmatprep.subr.mxu0 0.0
      %868 = vmatpush1.msra.mxu0 0.0
      %869 = vmatprep.subr.mxu0 0.0
      %870 = vmatpush1.msra.mxu0 0.0
      %871 = vmatprep.subr.mxu0 0.0
      %872 = vmatpush1.msra.mxu0 0.0
      %873 = vmatprep.subr.mxu0 0.0
      %874 = vmatpush1.msra.mxu0 0.0
      %875 = vmatprep.subr.mxu0 0.0
      %876 = vmatpush1.msra.mxu0 0.0
      %877 = vmatprep.subr.mxu0 0.0
      %878 = vmatpush1.msra.mxu0 0.0
      %879 = vmatprep.subr.mxu0 0.0
      %880 = vmatpush1.msra.mxu0 0.0
      %881 = vmatprep.subr.mxu0 0.0
      %882 = vmatpush1.msra.mxu0 0.0
      %883 = vmatprep.subr.mxu0 0.0
      %884 = vmatpush1.msra.mxu0 0.0
      %885 = vmatprep.subr.mxu0 0.0
      %886 = vmatpush1.msra.mxu0 %v759
      %887 = vmatprep.subr.mxu0 0.0
      %888 = vmatpush2.msra.mxu0 0.0
      %889 = vmatprep.subr.mxu0 0.0
      %890 = vmatpush2.msra.mxu0 0.0
      %891 = vmatprep.subr.mxu0 0.0
      %892 = vmatpush2.msra.mxu0 0.0
      %893 = vmatprep.subr.mxu0 0.0
      %894 = vmatpush2.msra.mxu0 0.0
      %895 = vmatprep.subr.mxu0 0.0
      %896 = vmatpush2.msra.mxu0 0.0
      %897 = vmatprep.subr.mxu0 0.0
      %898 = vmatpush2.msra.mxu0 0.0
      %899 = vmatprep.subr.mxu0 0.0
      %900 = vmatpush2.msra.mxu0 0.0
      %901 = vmatprep.subr.mxu0 0.0
      %902 = vmatpush2.msra.mxu0 0.0
      %903 = vmatprep.subr.mxu0 0.0
      %904 = vmatpush2.msra.mxu0 0.0
      %905 = vmatprep.subr.mxu0 0.0
      %906 = vmatpush2.msra.mxu0 0.0
      %907 = vmatprep.subr.mxu0 0.0
      %908 = vmatpush2.msra.mxu0 0.0
      %909 = vmatprep.subr.mxu0 0.0
      %910 = vmatpush2.msra.mxu0 0.0
      %911 = vmatprep.subr.mxu0 0.0
      %912 = vmatpush2.msra.mxu0 0.0
      %913 = vmatprep.subr.mxu0 0.0
      %914 = vmatpush2.msra.mxu0 0.0
      %915 = vmatprep.subr.mxu0 0.0
      %916 = vmatpush2.msra.mxu0 0.0
      %917 = vmatprep.subr.mxu0 0.0
      %918 = vmatpush2.msra.mxu0 0.0
      %919 = vmatprep.mubr.f32.mxu0 0.0
      %920 = vmatmul.mubr.f32.gmra.mxu0 %v853
      %v921 = vpop.f32.mrf.mxu0
      %v922 = vadd.f32 0.0, %v921
      %v923 = vpop.f32.mrf.mxu0
      %924 = vdwg.mxu0
      %v925 = vld [vmem:[%s4] sm:$0xff]
      %s926 = scalar_lea.vmem %s2, 32
      %v927 = vld [vmem:[%s926] sm:$0xff]
      %v928 = vld [vmem:[%s926 + $0x8] sm:$0xff]
      %v929 = vld [vmem:[%s926 + $0x10] sm:$0xff]
      %v930 = vld [vmem:[%s926 + $0x18] sm:$0xff]
      %s931 = scalar_lea.vmem %s3, 1
      %v932 = vld [vmem:[%s931] sm:$0x1]
      %v934 = vlaneseq
      %v935 = vshrl.u32 %v934, 7
      %v936 = vsub.s32 0, %v935
      %v937 = vrot.slane %v932, %v936
      %939 = vmatprep.subr.mxu0 0.0
      %940 = vmatpush1.msra.mxu0 0.0
      %941 = vmatprep.subr.mxu0 0.0
      %942 = vmatpush1.msra.mxu0 0.0
      %943 = vmatprep.subr.mxu0 0.0
      %944 = vmatpush1.msra.mxu0 0.0
      %945 = vmatprep.subr.mxu0 0.0
      %946 = vmatpush1.msra.mxu0 0.0
      %947 = vmatprep.subr.mxu0 0.0
      %948 = vmatpush1.msra.mxu0 0.0
      %949 = vmatprep.subr.mxu0 0.0
      %950 = vmatpush1.msra.mxu0 0.0
      %951 = vmatprep.subr.mxu0 0.0
      %952 = vmatpush1.msra.mxu0 0.0
      %953 = vmatprep.subr.mxu0 0.0
      %954 = vmatpush1.msra.mxu0 0.0
      %955 = vmatprep.subr.mxu0 0.0
      %956 = vmatpush1.msra.mxu0 0.0
      %957 = vmatprep.subr.mxu0 0.0
      %958 = vmatpush1.msra.mxu0 0.0
      %959 = vmatprep.subr.mxu0 0.0
      %960 = vmatpush1.msra.mxu0 0.0
      %961 = vmatprep.subr.mxu0 0.0
      %962 = vmatpush1.msra.mxu0 0.0
      %963 = vmatprep.subr.mxu0 0.0
      %964 = vmatpush1.msra.mxu0 %v930
      %965 = vmatprep.subr.mxu0 0.0
      %966 = vmatpush1.msra.mxu0 %v929
      %967 = vmatprep.subr.mxu0 0.0
      %968 = vmatpush1.msra.mxu0 %v928
      %969 = vmatprep.subr.mxu0 0.0
      %970 = vmatpush1.msra.mxu0 %v927
      %971 = vmatprep.subr.mxu0 0.0
      %972 = vmatpush2.msra.mxu0 0.0
      %973 = vmatprep.subr.mxu0 0.0
      %974 = vmatpush2.msra.mxu0 0.0
      %975 = vmatprep.subr.mxu0 0.0
      %976 = vmatpush2.msra.mxu0 0.0
      %977 = vmatprep.subr.mxu0 0.0
      %978 = vmatpush2.msra.mxu0 0.0
      %979 = vmatprep.subr.mxu0 0.0
      %980 = vmatpush2.msra.mxu0 0.0
      %981 = vmatprep.subr.mxu0 0.0
      %982 = vmatpush2.msra.mxu0 0.0
      %983 = vmatprep.subr.mxu0 0.0
      %984 = vmatpush2.msra.mxu0 0.0
      %985 = vmatprep.subr.mxu0 0.0
      %986 = vmatpush2.msra.mxu0 0.0
      %987 = vmatprep.subr.mxu0 0.0
      %988 = vmatpush2.msra.mxu0 0.0
      %989 = vmatprep.subr.mxu0 0.0
      %990 = vmatpush2.msra.mxu0 0.0
      %991 = vmatprep.subr.mxu0 0.0
      %992 = vmatpush2.msra.mxu0 0.0
      %993 = vmatprep.subr.mxu0 0.0
      %994 = vmatpush2.msra.mxu0 0.0
      %995 = vmatprep.subr.mxu0 0.0
      %996 = vmatpush2.msra.mxu0 0.0
      %997 = vmatprep.subr.mxu0 0.0
      %998 = vmatpush2.msra.mxu0 0.0
      %999 = vmatprep.subr.mxu0 0.0
      %1000 = vmatpush2.msra.mxu0 0.0
      %1001 = vmatprep.subr.mxu0 0.0
      %1002 = vmatpush2.msra.mxu0 0.0
      %1003 = vmatprep.mubr.f32.mxu0 0.0
      %1004 = vmatmul.mubr.f32.gmra.mxu0 %v524
      %v1005 = vpop.f32.mrf.mxu0
      %v1006 = vadd.f32 %v937, %v1005
      %v1007 = vpop.f32.mrf.mxu0
      %1008 = vdwg.mxu0
      %s1009 = scalar_lea.vmem %s2, 160
      %v1010 = vld [vmem:[%s1009] sm:$0xff]
      %v1011 = vld [vmem:[%s1009 + $0x8] sm:$0xff]
      %v1012 = vld [vmem:[%s1009 + $0x10] sm:$0xff]
      %v1013 = vld [vmem:[%s1009 + $0x18] sm:$0xff]
      %s1014 = scalar_lea.vmem %s3, 5
      %v1015 = vld [vmem:[%s1014] sm:$0x1]
      %v1017 = vlaneseq
      %v1018 = vshrl.u32 %v1017, 7
      %v1019 = vsub.s32 0, %v1018
      %v1020 = vrot.slane %v1015, %v1019
      %1022 = vmatprep.subr.mxu0 0.0
      %1023 = vmatpush1.msra.mxu0 0.0
      %1024 = vmatprep.subr.mxu0 0.0
      %1025 = vmatpush1.msra.mxu0 0.0
      %1026 = vmatprep.subr.mxu0 0.0
      %1027 = vmatpush1.msra.mxu0 0.0
      %1028 = vmatprep.subr.mxu0 0.0
      %1029 = vmatpush1.msra.mxu0 0.0
      %1030 = vmatprep.subr.mxu0 0.0
      %1031 = vmatpush1.msra.mxu0 0.0
      %1032 = vmatprep.subr.mxu0 0.0
      %1033 = vmatpush1.msra.mxu0 0.0
      %1034 = vmatprep.subr.mxu0 0.0
      %1035 = vmatpush1.msra.mxu0 0.0
      %1036 = vmatprep.subr.mxu0 0.0
      %1037 = vmatpush1.msra.mxu0 0.0
      %1038 = vmatprep.subr.mxu0 0.0
      %1039 = vmatpush1.msra.mxu0 0.0
      %1040 = vmatprep.subr.mxu0 0.0
      %1041 = vmatpush1.msra.mxu0 0.0
      %1042 = vmatprep.subr.mxu0 0.0
      %1043 = vmatpush1.msra.mxu0 0.0
      %1044 = vmatprep.subr.mxu0 0.0
      %1045 = vmatpush1.msra.mxu0 0.0
      %1046 = vmatprep.subr.mxu0 0.0
      %1047 = vmatpush1.msra.mxu0 %v1013
      %1048 = vmatprep.subr.mxu0 0.0
      %1049 = vmatpush1.msra.mxu0 %v1012
      %1050 = vmatprep.subr.mxu0 0.0
      %1051 = vmatpush1.msra.mxu0 %v1011
      %1052 = vmatprep.subr.mxu0 0.0
      %1053 = vmatpush1.msra.mxu0 %v1010
      %1054 = vmatprep.subr.mxu0 0.0
      %1055 = vmatpush2.msra.mxu0 0.0
      %1056 = vmatprep.subr.mxu0 0.0
      %1057 = vmatpush2.msra.mxu0 0.0
      %1058 = vmatprep.subr.mxu0 0.0
      %1059 = vmatpush2.msra.mxu0 0.0
      %1060 = vmatprep.subr.mxu0 0.0
      %1061 = vmatpush2.msra.mxu0 0.0
      %1062 = vmatprep.subr.mxu0 0.0
      %1063 = vmatpush2.msra.mxu0 0.0
      %1064 = vmatprep.subr.mxu0 0.0
      %1065 = vmatpush2.msra.mxu0 0.0
      %1066 = vmatprep.subr.mxu0 0.0
      %1067 = vmatpush2.msra.mxu0 0.0
      %1068 = vmatprep.subr.mxu0 0.0
      %1069 = vmatpush2.msra.mxu0 0.0
      %1070 = vmatprep.subr.mxu0 0.0
      %1071 = vmatpush2.msra.mxu0 0.0
      %1072 = vmatprep.subr.mxu0 0.0
      %1073 = vmatpush2.msra.mxu0 0.0
      %1074 = vmatprep.subr.mxu0 0.0
      %1075 = vmatpush2.msra.mxu0 0.0
      %1076 = vmatprep.subr.mxu0 0.0
      %1077 = vmatpush2.msra.mxu0 0.0
      %1078 = vmatprep.subr.mxu0 0.0
      %1079 = vmatpush2.msra.mxu0 0.0
      %1080 = vmatprep.subr.mxu0 0.0
      %1081 = vmatpush2.msra.mxu0 0.0
      %1082 = vmatprep.subr.mxu0 0.0
      %1083 = vmatpush2.msra.mxu0 0.0
      %1084 = vmatprep.subr.mxu0 0.0
      %1085 = vmatpush2.msra.mxu0 0.0
      %1086 = vmatprep.mubr.f32.mxu0 0.0
      %1087 = vmatmul.mubr.f32.gmra.mxu0 %v524
      %v1088 = vpop.f32.mrf.mxu0
      %v1089 = vadd.f32 %v1020, %v1088
      %v1090 = vpop.f32.mrf.mxu0
      %1091 = vdwg.mxu0
      %s1092 = scalar_lea.vmem %s2, 288
      %v1093 = vld [vmem:[%s1092] sm:$0xff]
      %v1094 = vld [vmem:[%s1092 + $0x8] sm:$0xff]
      %v1095 = vld [vmem:[%s1092 + $0x10] sm:$0xff]
      %v1096 = vld [vmem:[%s1092 + $0x18] sm:$0xff]
      %s1097 = scalar_lea.vmem %s3, 9
      %v1098 = vld [vmem:[%s1097] sm:$0x1]
      %v1100 = vlaneseq
      %v1101 = vshrl.u32 %v1100, 7
      %v1102 = vsub.s32 0, %v1101
      %v1103 = vrot.slane %v1098, %v1102
      %1105 = vmatprep.subr.mxu0 0.0
      %1106 = vmatpush1.msra.mxu0 0.0
      %1107 = vmatprep.subr.mxu0 0.0
      %1108 = vmatpush1.msra.mxu0 0.0
      %1109 = vmatprep.subr.mxu0 0.0
      %1110 = vmatpush1.msra.mxu0 0.0
      %1111 = vmatprep.subr.mxu0 0.0
      %1112 = vmatpush1.msra.mxu0 0.0
      %1113 = vmatprep.subr.mxu0 0.0
      %1114 = vmatpush1.msra.mxu0 0.0
      %1115 = vmatprep.subr.mxu0 0.0
      %1116 = vmatpush1.msra.mxu0 0.0
      %1117 = vmatprep.subr.mxu0 0.0
      %1118 = vmatpush1.msra.mxu0 0.0
      %1119 = vmatprep.subr.mxu0 0.0
      %1120 = vmatpush1.msra.mxu0 0.0
      %1121 = vmatprep.subr.mxu0 0.0
      %1122 = vmatpush1.msra.mxu0 0.0
      %1123 = vmatprep.subr.mxu0 0.0
      %1124 = vmatpush1.msra.mxu0 0.0
      %1125 = vmatprep.subr.mxu0 0.0
      %1126 = vmatpush1.msra.mxu0 0.0
      %1127 = vmatprep.subr.mxu0 0.0
      %1128 = vmatpush1.msra.mxu0 0.0
      %1129 = vmatprep.subr.mxu0 0.0
      %1130 = vmatpush1.msra.mxu0 %v1096
      %1131 = vmatprep.subr.mxu0 0.0
      %1132 = vmatpush1.msra.mxu0 %v1095
      %1133 = vmatprep.subr.mxu0 0.0
      %1134 = vmatpush1.msra.mxu0 %v1094
      %1135 = vmatprep.subr.mxu0 0.0
      %1136 = vmatpush1.msra.mxu0 %v1093
      %1137 = vmatprep.subr.mxu0 0.0
      %1138 = vmatpush2.msra.mxu0 0.0
      %1139 = vmatprep.subr.mxu0 0.0
      %1140 = vmatpush2.msra.mxu0 0.0
      %1141 = vmatprep.subr.mxu0 0.0
      %1142 = vmatpush2.msra.mxu0 0.0
      %1143 = vmatprep.subr.mxu0 0.0
      %1144 = vmatpush2.msra.mxu0 0.0
      %1145 = vmatprep.subr.mxu0 0.0
      %1146 = vmatpush2.msra.mxu0 0.0
      %1147 = vmatprep.subr.mxu0 0.0
      %1148 = vmatpush2.msra.mxu0 0.0
      %1149 = vmatprep.subr.mxu0 0.0
      %1150 = vmatpush2.msra.mxu0 0.0
      %1151 = vmatprep.subr.mxu0 0.0
      %1152 = vmatpush2.msra.mxu0 0.0
      %1153 = vmatprep.subr.mxu0 0.0
      %1154 = vmatpush2.msra.mxu0 0.0
      %1155 = vmatprep.subr.mxu0 0.0
      %1156 = vmatpush2.msra.mxu0 0.0
      %1157 = vmatprep.subr.mxu0 0.0
      %1158 = vmatpush2.msra.mxu0 0.0
      %1159 = vmatprep.subr.mxu0 0.0
      %1160 = vmatpush2.msra.mxu0 0.0
      %1161 = vmatprep.subr.mxu0 0.0
      %1162 = vmatpush2.msra.mxu0 0.0
      %1163 = vmatprep.subr.mxu0 0.0
      %1164 = vmatpush2.msra.mxu0 0.0
      %1165 = vmatprep.subr.mxu0 0.0
      %1166 = vmatpush2.msra.mxu0 0.0
      %1167 = vmatprep.subr.mxu0 0.0
      %1168 = vmatpush2.msra.mxu0 0.0
      %1169 = vmatprep.mubr.f32.mxu0 0.0
      %1170 = vmatmul.mubr.f32.gmra.mxu0 %v524
      %v1171 = vpop.f32.mrf.mxu0
      %v1172 = vadd.f32 %v1103, %v1171
      %v1173 = vpop.f32.mrf.mxu0
      %1174 = vdwg.mxu0
      %v1176 = vsel %vm762, %v1006, 0
      %v1179 = vsel %vm762, %v1089, 0
      %1181 = vmatprep.subr.mxu0 0.0
      %1182 = vmatpush1.xpose.msra.mxu0 0.0
      %1183 = vmatprep.subr.mxu0 0.0
      %1184 = vmatpush1.xpose.msra.mxu0 0.0
      %1185 = vmatprep.subr.mxu0 0.0
      %1186 = vmatpush1.xpose.msra.mxu0 0.0
      %1187 = vmatprep.subr.mxu0 0.0
      %1188 = vmatpush1.xpose.msra.mxu0 0.0
      %1189 = vmatprep.subr.mxu0 0.0
      %1190 = vmatpush1.xpose.msra.mxu0 0.0
      %1191 = vmatprep.subr.mxu0 0.0
      %1192 = vmatpush1.xpose.msra.mxu0 0.0
      %1193 = vmatprep.subr.mxu0 0.0
      %1194 = vmatpush1.xpose.msra.mxu0 0.0
      %1195 = vmatprep.subr.mxu0 0.0
      %1196 = vmatpush1.xpose.msra.mxu0 0.0
      %1197 = vmatprep.subr.mxu0 0.0
      %1198 = vmatpush1.xpose.msra.mxu0 0.0
      %1199 = vmatprep.subr.mxu0 0.0
      %1200 = vmatpush1.xpose.msra.mxu0 0.0
      %1201 = vmatprep.subr.mxu0 0.0
      %1202 = vmatpush1.xpose.msra.mxu0 0.0
      %1203 = vmatprep.subr.mxu0 0.0
      %1204 = vmatpush1.xpose.msra.mxu0 0.0
      %1205 = vmatprep.subr.mxu0 0.0
      %1206 = vmatpush1.xpose.msra.mxu0 0.0
      %1207 = vmatprep.subr.mxu0 0.0
      %1208 = vmatpush1.xpose.msra.mxu0 0.0
      %1209 = vmatprep.subr.mxu0 0.0
      %1210 = vmatpush1.xpose.msra.mxu0 0.0
      %1211 = vmatprep.subr.mxu0 0.0
      %1212 = vmatpush1.xpose.msra.mxu0 %v1179
      %1213 = vmatprep.subr.mxu0 0.0
      %1214 = vmatpush2.xpose.msra.mxu0 0.0
      %1215 = vmatprep.subr.mxu0 0.0
      %1216 = vmatpush2.xpose.msra.mxu0 0.0
      %1217 = vmatprep.subr.mxu0 0.0
      %1218 = vmatpush2.xpose.msra.mxu0 0.0
      %1219 = vmatprep.subr.mxu0 0.0
      %1220 = vmatpush2.xpose.msra.mxu0 0.0
      %1221 = vmatprep.subr.mxu0 0.0
      %1222 = vmatpush2.xpose.msra.mxu0 0.0
      %1223 = vmatprep.subr.mxu0 0.0
      %1224 = vmatpush2.xpose.msra.mxu0 0.0
      %1225 = vmatprep.subr.mxu0 0.0
      %1226 = vmatpush2.xpose.msra.mxu0 0.0
      %1227 = vmatprep.subr.mxu0 0.0
      %1228 = vmatpush2.xpose.msra.mxu0 0.0
      %1229 = vmatprep.subr.mxu0 0.0
      %1230 = vmatpush2.xpose.msra.mxu0 0.0
      %1231 = vmatprep.subr.mxu0 0.0
      %1232 = vmatpush2.xpose.msra.mxu0 0.0
      %1233 = vmatprep.subr.mxu0 0.0
      %1234 = vmatpush2.xpose.msra.mxu0 0.0
      %1235 = vmatprep.subr.mxu0 0.0
      %1236 = vmatpush2.xpose.msra.mxu0 0.0
      %1237 = vmatprep.subr.mxu0 0.0
      %1238 = vmatpush2.xpose.msra.mxu0 0.0
      %1239 = vmatprep.subr.mxu0 0.0
      %1240 = vmatpush2.xpose.msra.mxu0 0.0
      %1241 = vmatprep.subr.mxu0 0.0
      %1242 = vmatpush2.xpose.msra.mxu0 0.0
      %1243 = vmatprep.subr.mxu0 0.0
      %1244 = vmatpush2.xpose.msra.mxu0 0.0
      %1245 = vmatprep.mubr.f32.mxu0 0.0
      %1246 = vmatmul.mubr.f32.gmra.mxu0 %v1176
      %v1247 = vpop.f32.mrf.mxu0
      %v1248 = vadd.f32 0.0, %v1247
      %v1249 = vpop.f32.mrf.mxu0
      %1250 = vdwg.mxu0
      %v1251 = vmul.f32 %v1248, 0.35355338
      %v1252 = vadd.f32 %v1251, %v509
      %v1253 = vsel %vm762, %v1252, -inf
      %1254 = vmax.xlane.f32.xlu0 %v1253
      %v1255 = vpop.xlane.xlu0 %1254
      %v1256 = vsub.f32 %v1252, %v1255
      %v1257 = vmul.f32 %v1256, 1.442695
      %v1258 = vpow.pop %v1257
      %v1259 = vsel %vm762, %v1258, 0.0
      %1260 = vadd.xlane.f32.xlu0 %v1259
      %v1261 = vpop.xlane.xlu0 %1260
      %v1262 = vrcp.pop %v1261
      %v1263 = vmul.f32 %v1258, %v1262
      %v1265 = vsel %vm762, %v1263, 0
      %1267 = vmatprep.subr.mxu0 0.0
      %1268 = vmatpush1.msra.mxu0 0.0
      %1269 = vmatprep.subr.mxu0 0.0
      %1270 = vmatpush1.msra.mxu0 0.0
      %1271 = vmatprep.subr.mxu0 0.0
      %1272 = vmatpush1.msra.mxu0 0.0
      %1273 = vmatprep.subr.mxu0 0.0
      %1274 = vmatpush1.msra.mxu0 0.0
      %1275 = vmatprep.subr.mxu0 0.0
      %1276 = vmatpush1.msra.mxu0 0.0
      %1277 = vmatprep.subr.mxu0 0.0
      %1278 = vmatpush1.msra.mxu0 0.0
      %1279 = vmatprep.subr.mxu0 0.0
      %1280 = vmatpush1.msra.mxu0 0.0
      %1281 = vmatprep.subr.mxu0 0.0
      %1282 = vmatpush1.msra.mxu0 0.0
      %1283 = vmatprep.subr.mxu0 0.0
      %1284 = vmatpush1.msra.mxu0 0.0
      %1285 = vmatprep.subr.mxu0 0.0
      %1286 = vmatpush1.msra.mxu0 0.0
      %1287 = vmatprep.subr.mxu0 0.0
      %1288 = vmatpush1.msra.mxu0 0.0
      %1289 = vmatprep.subr.mxu0 0.0
      %1290 = vmatpush1.msra.mxu0 0.0
      %1291 = vmatprep.subr.mxu0 0.0
      %1292 = vmatpush1.msra.mxu0 0.0
      %1293 = vmatprep.subr.mxu0 0.0
      %1294 = vmatpush1.msra.mxu0 0.0
      %1295 = vmatprep.subr.mxu0 0.0
      %1296 = vmatpush1.msra.mxu0 0.0
      %1297 = vmatprep.subr.mxu0 0.0
      %1298 = vmatpush1.msra.mxu0 %v1172
      %1299 = vmatprep.subr.mxu0 0.0
      %1300 = vmatpush2.msra.mxu0 0.0
      %1301 = vmatprep.subr.mxu0 0.0
      %1302 = vmatpush2.msra.mxu0 0.0
      %1303 = vmatprep.subr.mxu0 0.0
      %1304 = vmatpush2.msra.mxu0 0.0
      %1305 = vmatprep.subr.mxu0 0.0
      %1306 = vmatpush2.msra.mxu0 0.0
      %1307 = vmatprep.subr.mxu0 0.0
      %1308 = vmatpush2.msra.mxu0 0.0
      %1309 = vmatprep.subr.mxu0 0.0
      %1310 = vmatpush2.msra.mxu0 0.0
      %1311 = vmatprep.subr.mxu0 0.0
      %1312 = vmatpush2.msra.mxu0 0.0
      %1313 = vmatprep.subr.mxu0 0.0
      %1314 = vmatpush2.msra.mxu0 0.0
      %1315 = vmatprep.subr.mxu0 0.0
      %1316 = vmatpush2.msra.mxu0 0.0
      %1317 = vmatprep.subr.mxu0 0.0
      %1318 = vmatpush2.msra.mxu0 0.0
      %1319 = vmatprep.subr.mxu0 0.0
      %1320 = vmatpush2.msra.mxu0 0.0
      %1321 = vmatprep.subr.mxu0 0.0
      %1322 = vmatpush2.msra.mxu0 0.0
      %1323 = vmatprep.subr.mxu0 0.0
      %1324 = vmatpush2.msra.mxu0 0.0
      %1325 = vmatprep.subr.mxu0 0.0
      %1326 = vmatpush2.msra.mxu0 0.0
      %1327 = vmatprep.subr.mxu0 0.0
      %1328 = vmatpush2.msra.mxu0 0.0
      %1329 = vmatprep.subr.mxu0 0.0
      %1330 = vmatpush2.msra.mxu0 0.0
      %1331 = vmatprep.mubr.f32.mxu0 0.0
      %1332 = vmatmul.mubr.f32.gmra.mxu0 %v1265
      %v1333 = vpop.f32.mrf.mxu0
      %v1334 = vadd.f32 0.0, %v1333
      %v1335 = vpop.f32.mrf.mxu0
      %1336 = vdwg.mxu0
      %s1337 = scalar_lea.vmem %s4, 8
      %v1338 = vld [vmem:[%s1337] sm:$0xff]
      %v1340 = vsel %vm762, %v1334, 0
      %1342 = vmatprep.subr.mxu0 0.0
      %1343 = vmatpush1.msra.mxu0 0.0
      %1344 = vmatprep.subr.mxu0 0.0
      %1345 = vmatpush1.msra.mxu0 0.0
      %1346 = vmatprep.subr.mxu0 0.0
      %1347 = vmatpush1.msra.mxu0 0.0
      %1348 = vmatprep.subr.mxu0 0.0
      %1349 = vmatpush1.msra.mxu0 0.0
      %1350 = vmatprep.subr.mxu0 0.0
      %1351 = vmatpush1.msra.mxu0 0.0
      %1352 = vmatprep.subr.mxu0 0.0
      %1353 = vmatpush1.msra.mxu0 0.0
      %1354 = vmatprep.subr.mxu0 0.0
      %1355 = vmatpush1.msra.mxu0 0.0
      %1356 = vmatprep.subr.mxu0 0.0
      %1357 = vmatpush1.msra.mxu0 0.0
      %1358 = vmatprep.subr.mxu0 0.0
      %1359 = vmatpush1.msra.mxu0 0.0
      %1360 = vmatprep.subr.mxu0 0.0
      %1361 = vmatpush1.msra.mxu0 0.0
      %1362 = vmatprep.subr.mxu0 0.0
      %1363 = vmatpush1.msra.mxu0 0.0
      %1364 = vmatprep.subr.mxu0 0.0
      %1365 = vmatpush1.msra.mxu0 0.0
      %1366 = vmatprep.subr.mxu0 0.0
      %1367 = vmatpush1.msra.mxu0 0.0
      %1368 = vmatprep.subr.mxu0 0.0
      %1369 = vmatpush1.msra.mxu0 0.0
      %1370 = vmatprep.subr.mxu0 0.0
      %1371 = vmatpush1.msra.mxu0 0.0
      %1372 = vmatprep.subr.mxu0 0.0
      %1373 = vmatpush1.msra.mxu0 %v1338
      %1374 = vmatprep.subr.mxu0 0.0
      %1375 = vmatpush2.msra.mxu0 0.0
      %1376 = vmatprep.subr.mxu0 0.0
      %1377 = vmatpush2.msra.mxu0 0.0
      %1378 = vmatprep.subr.mxu0 0.0
      %1379 = vmatpush2.msra.mxu0 0.0
      %1380 = vmatprep.subr.mxu0 0.0
      %1381 = vmatpush2.msra.mxu0 0.0
      %1382 = vmatprep.subr.mxu0 0.0
      %1383 = vmatpush2.msra.mxu0 0.0
      %1384 = vmatprep.subr.mxu0 0.0
      %1385 = vmatpush2.msra.mxu0 0.0
      %1386 = vmatprep.subr.mxu0 0.0
      %1387 = vmatpush2.msra.mxu0 0.0
      %1388 = vmatprep.subr.mxu0 0.0
      %1389 = vmatpush2.msra.mxu0 0.0
      %1390 = vmatprep.subr.mxu0 0.0
      %1391 = vmatpush2.msra.mxu0 0.0
      %1392 = vmatprep.subr.mxu0 0.0
      %1393 = vmatpush2.msra.mxu0 0.0
      %1394 = vmatprep.subr.mxu0 0.0
      %1395 = vmatpush2.msra.mxu0 0.0
      %1396 = vmatprep.subr.mxu0 0.0
      %1397 = vmatpush2.msra.mxu0 0.0
      %1398 = vmatprep.subr.mxu0 0.0
      %1399 = vmatpush2.msra.mxu0 0.0
      %1400 = vmatprep.subr.mxu0 0.0
      %1401 = vmatpush2.msra.mxu0 0.0
      %1402 = vmatprep.subr.mxu0 0.0
      %1403 = vmatpush2.msra.mxu0 0.0
      %1404 = vmatprep.subr.mxu0 0.0
      %1405 = vmatpush2.msra.mxu0 0.0
      %1406 = vmatprep.mubr.f32.mxu0 0.0
      %1407 = vmatmul.mubr.f32.gmra.mxu0 %v1340
      %v1408 = vpop.f32.mrf.mxu0
      %v1409 = vadd.f32 0.0, %v1408
      %v1410 = vpop.f32.mrf.mxu0
      %1411 = vdwg.mxu0
      %v1413 = vsel %vm762, %v922, 0
      %1415 = vmatprep.subr.mxu0 0.0
      %1416 = vmatpush1.msra.mxu0 0.0
      %1417 = vmatprep.subr.mxu0 0.0
      %1418 = vmatpush1.msra.mxu0 0.0
      %1419 = vmatprep.subr.mxu0 0.0
      %1420 = vmatpush1.msra.mxu0 0.0
      %1421 = vmatprep.subr.mxu0 0.0
      %1422 = vmatpush1.msra.mxu0 0.0
      %1423 = vmatprep.subr.mxu0 0.0
      %1424 = vmatpush1.msra.mxu0 0.0
      %1425 = vmatprep.subr.mxu0 0.0
      %1426 = vmatpush1.msra.mxu0 0.0
      %1427 = vmatprep.subr.mxu0 0.0
      %1428 = vmatpush1.msra.mxu0 0.0
      %1429 = vmatprep.subr.mxu0 0.0
      %1430 = vmatpush1.msra.mxu0 0.0
      %1431 = vmatprep.subr.mxu0 0.0
      %1432 = vmatpush1.msra.mxu0 0.0
      %1433 = vmatprep.subr.mxu0 0.0
      %1434 = vmatpush1.msra.mxu0 0.0
      %1435 = vmatprep.subr.mxu0 0.0
      %1436 = vmatpush1.msra.mxu0 0.0
      %1437 = vmatprep.subr.mxu0 0.0
      %1438 = vmatpush1.msra.mxu0 0.0
      %1439 = vmatprep.subr.mxu0 0.0
      %1440 = vmatpush1.msra.mxu0 0.0
      %1441 = vmatprep.subr.mxu0 0.0
      %1442 = vmatpush1.msra.mxu0 0.0
      %1443 = vmatprep.subr.mxu0 0.0
      %1444 = vmatpush1.msra.mxu0 0.0
      %1445 = vmatprep.subr.mxu0 0.0
      %1446 = vmatpush1.msra.mxu0 %v925
      %1447 = vmatprep.subr.mxu0 0.0
      %1448 = vmatpush2.msra.mxu0 0.0
      %1449 = vmatprep.subr.mxu0 0.0
      %1450 = vmatpush2.msra.mxu0 0.0
      %1451 = vmatprep.subr.mxu0 0.0
      %1452 = vmatpush2.msra.mxu0 0.0
      %1453 = vmatprep.subr.mxu0 0.0
      %1454 = vmatpush2.msra.mxu0 0.0
      %1455 = vmatprep.subr.mxu0 0.0
      %1456 = vmatpush2.msra.mxu0 0.0
      %1457 = vmatprep.subr.mxu0 0.0
      %1458 = vmatpush2.msra.mxu0 0.0
      %1459 = vmatprep.subr.mxu0 0.0
      %1460 = vmatpush2.msra.mxu0 0.0
      %1461 = vmatprep.subr.mxu0 0.0
      %1462 = vmatpush2.msra.mxu0 0.0
      %1463 = vmatprep.subr.mxu0 0.0
      %1464 = vmatpush2.msra.mxu0 0.0
      %1465 = vmatprep.subr.mxu0 0.0
      %1466 = vmatpush2.msra.mxu0 0.0
      %1467 = vmatprep.subr.mxu0 0.0
      %1468 = vmatpush2.msra.mxu0 0.0
      %1469 = vmatprep.subr.mxu0 0.0
      %1470 = vmatpush2.msra.mxu0 0.0
      %1471 = vmatprep.subr.mxu0 0.0
      %1472 = vmatpush2.msra.mxu0 0.0
      %1473 = vmatprep.subr.mxu0 0.0
      %1474 = vmatpush2.msra.mxu0 0.0
      %1475 = vmatprep.subr.mxu0 0.0
      %1476 = vmatpush2.msra.mxu0 0.0
      %1477 = vmatprep.subr.mxu0 0.0
      %1478 = vmatpush2.msra.mxu0 0.0
      %1479 = vmatprep.mubr.f32.mxu0 0.0
      %1480 = vmatmul.mubr.f32.gmra.mxu0 %v1413
      %v1481 = vpop.f32.mrf.mxu0
      %v1482 = vadd.f32 %v1409, %v1481
      %v1483 = vpop.f32.mrf.mxu0
      %1484 = vdwg.mxu0
      %s1485 = scalar_lea.vmem %s2, 64
      %v1486 = vld [vmem:[%s1485] sm:$0xff]
      %v1487 = vld [vmem:[%s1485 + $0x8] sm:$0xff]
      %v1488 = vld [vmem:[%s1485 + $0x10] sm:$0xff]
      %v1489 = vld [vmem:[%s1485 + $0x18] sm:$0xff]
      %s1490 = scalar_lea.vmem %s3, 2
      %v1491 = vld [vmem:[%s1490] sm:$0x1]
      %v1493 = vlaneseq
      %v1494 = vshrl.u32 %v1493, 7
      %v1495 = vsub.s32 0, %v1494
      %v1496 = vrot.slane %v1491, %v1495
      %1498 = vmatprep.subr.mxu0 0.0
      %1499 = vmatpush1.msra.mxu0 0.0
      %1500 = vmatprep.subr.mxu0 0.0
      %1501 = vmatpush1.msra.mxu0 0.0
      %1502 = vmatprep.subr.mxu0 0.0
      %1503 = vmatpush1.msra.mxu0 0.0
      %1504 = vmatprep.subr.mxu0 0.0
      %1505 = vmatpush1.msra.mxu0 0.0
      %1506 = vmatprep.subr.mxu0 0.0
      %1507 = vmatpush1.msra.mxu0 0.0
      %1508 = vmatprep.subr.mxu0 0.0
      %1509 = vmatpush1.msra.mxu0 0.0
      %1510 = vmatprep.subr.mxu0 0.0
      %1511 = vmatpush1.msra.mxu0 0.0
      %1512 = vmatprep.subr.mxu0 0.0
      %1513 = vmatpush1.msra.mxu0 0.0
      %1514 = vmatprep.subr.mxu0 0.0
      %1515 = vmatpush1.msra.mxu0 0.0
      %1516 = vmatprep.subr.mxu0 0.0
      %1517 = vmatpush1.msra.mxu0 0.0
      %1518 = vmatprep.subr.mxu0 0.0
      %1519 = vmatpush1.msra.mxu0 0.0
      %1520 = vmatprep.subr.mxu0 0.0
      %1521 = vmatpush1.msra.mxu0 0.0
      %1522 = vmatprep.subr.mxu0 0.0
      %1523 = vmatpush1.msra.mxu0 %v1489
      %1524 = vmatprep.subr.mxu0 0.0
      %1525 = vmatpush1.msra.mxu0 %v1488
      %1526 = vmatprep.subr.mxu0 0.0
      %1527 = vmatpush1.msra.mxu0 %v1487
      %1528 = vmatprep.subr.mxu0 0.0
      %1529 = vmatpush1.msra.mxu0 %v1486
      %1530 = vmatprep.subr.mxu0 0.0
      %1531 = vmatpush2.msra.mxu0 0.0
      %1532 = vmatprep.subr.mxu0 0.0
      %1533 = vmatpush2.msra.mxu0 0.0
      %1534 = vmatprep.subr.mxu0 0.0
      %1535 = vmatpush2.msra.mxu0 0.0
      %1536 = vmatprep.subr.mxu0 0.0
      %1537 = vmatpush2.msra.mxu0 0.0
      %1538 = vmatprep.subr.mxu0 0.0
      %1539 = vmatpush2.msra.mxu0 0.0
      %1540 = vmatprep.subr.mxu0 0.0
      %1541 = vmatpush2.msra.mxu0 0.0
      %1542 = vmatprep.subr.mxu0 0.0
      %1543 = vmatpush2.msra.mxu0 0.0
      %1544 = vmatprep.subr.mxu0 0.0
      %1545 = vmatpush2.msra.mxu0 0.0
      %1546 = vmatprep.subr.mxu0 0.0
      %1547 = vmatpush2.msra.mxu0 0.0
      %1548 = vmatprep.subr.mxu0 0.0
      %1549 = vmatpush2.msra.mxu0 0.0
      %1550 = vmatprep.subr.mxu0 0.0
      %1551 = vmatpush2.msra.mxu0 0.0
      %1552 = vmatprep.subr.mxu0 0.0
      %1553 = vmatpush2.msra.mxu0 0.0
      %1554 = vmatprep.subr.mxu0 0.0
      %1555 = vmatpush2.msra.mxu0 0.0
      %1556 = vmatprep.subr.mxu0 0.0
      %1557 = vmatpush2.msra.mxu0 0.0
      %1558 = vmatprep.subr.mxu0 0.0
      %1559 = vmatpush2.msra.mxu0 0.0
      %1560 = vmatprep.subr.mxu0 0.0
      %1561 = vmatpush2.msra.mxu0 0.0
      %1562 = vmatprep.mubr.f32.mxu0 0.0
      %1563 = vmatmul.mubr.f32.gmra.mxu0 %v524
      %v1564 = vpop.f32.mrf.mxu0
      %v1565 = vadd.f32 %v1496, %v1564
      %v1566 = vpop.f32.mrf.mxu0
      %1567 = vdwg.mxu0
      %s1568 = scalar_lea.vmem %s2, 192
      %v1569 = vld [vmem:[%s1568] sm:$0xff]
      %v1570 = vld [vmem:[%s1568 + $0x8] sm:$0xff]
      %v1571 = vld [vmem:[%s1568 + $0x10] sm:$0xff]
      %v1572 = vld [vmem:[%s1568 + $0x18] sm:$0xff]
      %s1573 = scalar_lea.vmem %s3, 6
      %v1574 = vld [vmem:[%s1573] sm:$0x1]
      %v1576 = vlaneseq
      %v1577 = vshrl.u32 %v1576, 7
      %v1578 = vsub.s32 0, %v1577
      %v1579 = vrot.slane %v1574, %v1578
      %1581 = vmatprep.subr.mxu0 0.0
      %1582 = vmatpush1.msra.mxu0 0.0
      %1583 = vmatprep.subr.mxu0 0.0
      %1584 = vmatpush1.msra.mxu0 0.0
      %1585 = vmatprep.subr.mxu0 0.0
      %1586 = vmatpush1.msra.mxu0 0.0
      %1587 = vmatprep.subr.mxu0 0.0
      %1588 = vmatpush1.msra.mxu0 0.0
      %1589 = vmatprep.subr.mxu0 0.0
      %1590 = vmatpush1.msra.mxu0 0.0
      %1591 = vmatprep.subr.mxu0 0.0
      %1592 = vmatpush1.msra.mxu0 0.0
      %1593 = vmatprep.subr.mxu0 0.0
      %1594 = vmatpush1.msra.mxu0 0.0
      %1595 = vmatprep.subr.mxu0 0.0
      %1596 = vmatpush1.msra.mxu0 0.0
      %1597 = vmatprep.subr.mxu0 0.0
      %1598 = vmatpush1.msra.mxu0 0.0
      %1599 = vmatprep.subr.mxu0 0.0
      %1600 = vmatpush1.msra.mxu0 0.0
      %1601 = vmatprep.subr.mxu0 0.0
      %1602 = vmatpush1.msra.mxu0 0.0
      %1603 = vmatprep.subr.mxu0 0.0
      %1604 = vmatpush1.msra.mxu0 0.0
      %1605 = vmatprep.subr.mxu0 0.0
      %1606 = vmatpush1.msra.mxu0 %v1572
      %1607 = vmatprep.subr.mxu0 0.0
      %1608 = vmatpush1.msra.mxu0 %v1571
      %1609 = vmatprep.subr.mxu0 0.0
      %1610 = vmatpush1.msra.mxu0 %v1570
      %1611 = vmatprep.subr.mxu0 0.0
      %1612 = vmatpush1.msra.mxu0 %v1569
      %1613 = vmatprep.subr.mxu0 0.0
      %1614 = vmatpush2.msra.mxu0 0.0
      %1615 = vmatprep.subr.mxu0 0.0
      %1616 = vmatpush2.msra.mxu0 0.0
      %1617 = vmatprep.subr.mxu0 0.0
      %1618 = vmatpush2.msra.mxu0 0.0
      %1619 = vmatprep.subr.mxu0 0.0
      %1620 = vmatpush2.msra.mxu0 0.0
      %1621 = vmatprep.subr.mxu0 0.0
      %1622 = vmatpush2.msra.mxu0 0.0
      %1623 = vmatprep.subr.mxu0 0.0
      %1624 = vmatpush2.msra.mxu0 0.0
      %1625 = vmatprep.subr.mxu0 0.0
      %1626 = vmatpush2.msra.mxu0 0.0
      %1627 = vmatprep.subr.mxu0 0.0
      %1628 = vmatpush2.msra.mxu0 0.0
      %1629 = vmatprep.subr.mxu0 0.0
      %1630 = vmatpush2.msra.mxu0 0.0
      %1631 = vmatprep.subr.mxu0 0.0
      %1632 = vmatpush2.msra.mxu0 0.0
      %1633 = vmatprep.subr.mxu0 0.0
      %1634 = vmatpush2.msra.mxu0 0.0
      %1635 = vmatprep.subr.mxu0 0.0
      %1636 = vmatpush2.msra.mxu0 0.0
      %1637 = vmatprep.subr.mxu0 0.0
      %1638 = vmatpush2.msra.mxu0 0.0
      %1639 = vmatprep.subr.mxu0 0.0
      %1640 = vmatpush2.msra.mxu0 0.0
      %1641 = vmatprep.subr.mxu0 0.0
      %1642 = vmatpush2.msra.mxu0 0.0
      %1643 = vmatprep.subr.mxu0 0.0
      %1644 = vmatpush2.msra.mxu0 0.0
      %1645 = vmatprep.mubr.f32.mxu0 0.0
      %1646 = vmatmul.mubr.f32.gmra.mxu0 %v524
      %v1647 = vpop.f32.mrf.mxu0
      %v1648 = vadd.f32 %v1579, %v1647
      %v1649 = vpop.f32.mrf.mxu0
      %1650 = vdwg.mxu0
      %s1651 = scalar_lea.vmem %s2, 320
      %v1652 = vld [vmem:[%s1651] sm:$0xff]
      %v1653 = vld [vmem:[%s1651 + $0x8] sm:$0xff]
      %v1654 = vld [vmem:[%s1651 + $0x10] sm:$0xff]
      %v1655 = vld [vmem:[%s1651 + $0x18] sm:$0xff]
      %s1656 = scalar_lea.vmem %s3, 10
      %v1657 = vld [vmem:[%s1656] sm:$0x1]
      %v1659 = vlaneseq
      %v1660 = vshrl.u32 %v1659, 7
      %v1661 = vsub.s32 0, %v1660
      %v1662 = vrot.slane %v1657, %v1661
      %1664 = vmatprep.subr.mxu0 0.0
      %1665 = vmatpush1.msra.mxu0 0.0
      %1666 = vmatprep.subr.mxu0 0.0
      %1667 = vmatpush1.msra.mxu0 0.0
      %1668 = vmatprep.subr.mxu0 0.0
      %1669 = vmatpush1.msra.mxu0 0.0
      %1670 = vmatprep.subr.mxu0 0.0
      %1671 = vmatpush1.msra.mxu0 0.0
      %1672 = vmatprep.subr.mxu0 0.0
      %1673 = vmatpush1.msra.mxu0 0.0
      %1674 = vmatprep.subr.mxu0 0.0
      %1675 = vmatpush1.msra.mxu0 0.0
      %1676 = vmatprep.subr.mxu0 0.0
      %1677 = vmatpush1.msra.mxu0 0.0
      %1678 = vmatprep.subr.mxu0 0.0
      %1679 = vmatpush1.msra.mxu0 0.0
      %1680 = vmatprep.subr.mxu0 0.0
      %1681 = vmatpush1.msra.mxu0 0.0
      %1682 = vmatprep.subr.mxu0 0.0
      %1683 = vmatpush1.msra.mxu0 0.0
      %1684 = vmatprep.subr.mxu0 0.0
      %1685 = vmatpush1.msra.mxu0 0.0
      %1686 = vmatprep.subr.mxu0 0.0
      %1687 = vmatpush1.msra.mxu0 0.0
      %1688 = vmatprep.subr.mxu0 0.0
      %1689 = vmatpush1.msra.mxu0 %v1655
      %1690 = vmatprep.subr.mxu0 0.0
      %1691 = vmatpush1.msra.mxu0 %v1654
      %1692 = vmatprep.subr.mxu0 0.0
      %1693 = vmatpush1.msra.mxu0 %v1653
      %1694 = vmatprep.subr.mxu0 0.0
      %1695 = vmatpush1.msra.mxu0 %v1652
      %1696 = vmatprep.subr.mxu0 0.0
      %1697 = vmatpush2.msra.mxu0 0.0
      %1698 = vmatprep.subr.mxu0 0.0
      %1699 = vmatpush2.msra.mxu0 0.0
      %1700 = vmatprep.subr.mxu0 0.0
      %1701 = vmatpush2.msra.mxu0 0.0
      %1702 = vmatprep.subr.mxu0 0.0
      %1703 = vmatpush2.msra.mxu0 0.0
      %1704 = vmatprep.subr.mxu0 0.0
      %1705 = vmatpush2.msra.mxu0 0.0
      %1706 = vmatprep.subr.mxu0 0.0
      %1707 = vmatpush2.msra.mxu0 0.0
      %1708 = vmatprep.subr.mxu0 0.0
      %1709 = vmatpush2.msra.mxu0 0.0
      %1710 = vmatprep.subr.mxu0 0.0
      %1711 = vmatpush2.msra.mxu0 0.0
      %1712 = vmatprep.subr.mxu0 0.0
      %1713 = vmatpush2.msra.mxu0 0.0
      %1714 = vmatprep.subr.mxu0 0.0
      %1715 = vmatpush2.msra.mxu0 0.0
      %1716 = vmatprep.subr.mxu0 0.0
      %1717 = vmatpush2.msra.mxu0 0.0
      %1718 = vmatprep.subr.mxu0 0.0
      %1719 = vmatpush2.msra.mxu0 0.0
      %1720 = vmatprep.subr.mxu0 0.0
      %1721 = vmatpush2.msra.mxu0 0.0
      %1722 = vmatprep.subr.mxu0 0.0
      %1723 = vmatpush2.msra.mxu0 0.0
      %1724 = vmatprep.subr.mxu0 0.0
      %1725 = vmatpush2.msra.mxu0 0.0
      %1726 = vmatprep.subr.mxu0 0.0
      %1727 = vmatpush2.msra.mxu0 0.0
      %1728 = vmatprep.mubr.f32.mxu0 0.0
      %1729 = vmatmul.mubr.f32.gmra.mxu0 %v524
      %v1730 = vpop.f32.mrf.mxu0
      %v1731 = vadd.f32 %v1662, %v1730
      %v1732 = vpop.f32.mrf.mxu0
      %1733 = vdwg.mxu0
      %v1735 = vsel %vm762, %v1565, 0
      %v1738 = vsel %vm762, %v1648, 0
      %1740 = vmatprep.subr.mxu0 0.0
      %1741 = vmatpush1.xpose.msra.mxu0 0.0
      %1742 = vmatprep.subr.mxu0 0.0
      %1743 = vmatpush1.xpose.msra.mxu0 0.0
      %1744 = vmatprep.subr.mxu0 0.0
      %1745 = vmatpush1.xpose.msra.mxu0 0.0
      %1746 = vmatprep.subr.mxu0 0.0
      %1747 = vmatpush1.xpose.msra.mxu0 0.0
      %1748 = vmatprep.subr.mxu0 0.0
      %1749 = vmatpush1.xpose.msra.mxu0 0.0
      %1750 = vmatprep.subr.mxu0 0.0
      %1751 = vmatpush1.xpose.msra.mxu0 0.0
      %1752 = vmatprep.subr.mxu0 0.0
      %1753 = vmatpush1.xpose.msra.mxu0 0.0
      %1754 = vmatprep.subr.mxu0 0.0
      %1755 = vmatpush1.xpose.msra.mxu0 0.0
      %1756 = vmatprep.subr.mxu0 0.0
      %1757 = vmatpush1.xpose.msra.mxu0 0.0
      %1758 = vmatprep.subr.mxu0 0.0
      %1759 = vmatpush1.xpose.msra.mxu0 0.0
      %1760 = vmatprep.subr.mxu0 0.0
      %1761 = vmatpush1.xpose.msra.mxu0 0.0
      %1762 = vmatprep.subr.mxu0 0.0
      %1763 = vmatpush1.xpose.msra.mxu0 0.0
      %1764 = vmatprep.subr.mxu0 0.0
      %1765 = vmatpush1.xpose.msra.mxu0 0.0
      %1766 = vmatprep.subr.mxu0 0.0
      %1767 = vmatpush1.xpose.msra.mxu0 0.0
      %1768 = vmatprep.subr.mxu0 0.0
      %1769 = vmatpush1.xpose.msra.mxu0 0.0
      %1770 = vmatprep.subr.mxu0 0.0
      %1771 = vmatpush1.xpose.msra.mxu0 %v1738
      %1772 = vmatprep.subr.mxu0 0.0
      %1773 = vmatpush2.xpose.msra.mxu0 0.0
      %1774 = vmatprep.subr.mxu0 0.0
      %1775 = vmatpush2.xpose.msra.mxu0 0.0
      %1776 = vmatprep.subr.mxu0 0.0
      %1777 = vmatpush2.xpose.msra.mxu0 0.0
      %1778 = vmatprep.subr.mxu0 0.0
      %1779 = vmatpush2.xpose.msra.mxu0 0.0
      %1780 = vmatprep.subr.mxu0 0.0
      %1781 = vmatpush2.xpose.msra.mxu0 0.0
      %1782 = vmatprep.subr.mxu0 0.0
      %1783 = vmatpush2.xpose.msra.mxu0 0.0
      %1784 = vmatprep.subr.mxu0 0.0
      %1785 = vmatpush2.xpose.msra.mxu0 0.0
      %1786 = vmatprep.subr.mxu0 0.0
      %1787 = vmatpush2.xpose.msra.mxu0 0.0
      %1788 = vmatprep.subr.mxu0 0.0
      %1789 = vmatpush2.xpose.msra.mxu0 0.0
      %1790 = vmatprep.subr.mxu0 0.0
      %1791 = vmatpush2.xpose.msra.mxu0 0.0
      %1792 = vmatprep.subr.mxu0 0.0
      %1793 = vmatpush2.xpose.msra.mxu0 0.0
      %1794 = vmatprep.subr.mxu0 0.0
      %1795 = vmatpush2.xpose.msra.mxu0 0.0
      %1796 = vmatprep.subr.mxu0 0.0
      %1797 = vmatpush2.xpose.msra.mxu0 0.0
      %1798 = vmatprep.subr.mxu0 0.0
      %1799 = vmatpush2.xpose.msra.mxu0 0.0
      %1800 = vmatprep.subr.mxu0 0.0
      %1801 = vmatpush2.xpose.msra.mxu0 0.0
      %1802 = vmatprep.subr.mxu0 0.0
      %1803 = vmatpush2.xpose.msra.mxu0 0.0
      %1804 = vmatprep.mubr.f32.mxu0 0.0
      %1805 = vmatmul.mubr.f32.gmra.mxu0 %v1735
      %v1806 = vpop.f32.mrf.mxu0
      %v1807 = vadd.f32 0.0, %v1806
      %v1808 = vpop.f32.mrf.mxu0
      %1809 = vdwg.mxu0
      %v1810 = vmul.f32 %v1807, 0.35355338
      %v1811 = vadd.f32 %v1810, %v509
      %v1812 = vsel %vm762, %v1811, -inf
      %1813 = vmax.xlane.f32.xlu0 %v1812
      %v1814 = vpop.xlane.xlu0 %1813
      %v1815 = vsub.f32 %v1811, %v1814
      %v1816 = vmul.f32 %v1815, 1.442695
      %v1817 = vpow.pop %v1816
      %v1818 = vsel %vm762, %v1817, 0.0
      %1819 = vadd.xlane.f32.xlu0 %v1818
      %v1820 = vpop.xlane.xlu0 %1819
      %v1821 = vrcp.pop %v1820
      %v1822 = vmul.f32 %v1817, %v1821
      %v1824 = vsel %vm762, %v1822, 0
      %1826 = vmatprep.subr.mxu0 0.0
      %1827 = vmatpush1.msra.mxu0 0.0
      %1828 = vmatprep.subr.mxu0 0.0
      %1829 = vmatpush1.msra.mxu0 0.0
      %1830 = vmatprep.subr.mxu0 0.0
      %1831 = vmatpush1.msra.mxu0 0.0
      %1832 = vmatprep.subr.mxu0 0.0
      %1833 = vmatpush1.msra.mxu0 0.0
      %1834 = vmatprep.subr.mxu0 0.0
      %1835 = vmatpush1.msra.mxu0 0.0
      %1836 = vmatprep.subr.mxu0 0.0
      %1837 = vmatpush1.msra.mxu0 0.0
      %1838 = vmatprep.subr.mxu0 0.0
      %1839 = vmatpush1.msra.mxu0 0.0
      %1840 = vmatprep.subr.mxu0 0.0
      %1841 = vmatpush1.msra.mxu0 0.0
      %1842 = vmatprep.subr.mxu0 0.0
      %1843 = vmatpush1.msra.mxu0 0.0
      %1844 = vmatprep.subr.mxu0 0.0
      %1845 = vmatpush1.msra.mxu0 0.0
      %1846 = vmatprep.subr.mxu0 0.0
      %1847 = vmatpush1.msra.mxu0 0.0
      %1848 = vmatprep.subr.mxu0 0.0
      %1849 = vmatpush1.msra.mxu0 0.0
      %1850 = vmatprep.subr.mxu0 0.0
      %1851 = vmatpush1.msra.mxu0 0.0
      %1852 = vmatprep.subr.mxu0 0.0
      %1853 = vmatpush1.msra.mxu0 0.0
      %1854 = vmatprep.subr.mxu0 0.0
      %1855 = vmatpush1.msra.mxu0 0.0
      %1856 = vmatprep.subr.mxu0 0.0
      %1857 = vmatpush1.msra.mxu0 %v1731
      %1858 = vmatprep.subr.mxu0 0.0
      %1859 = vmatpush2.msra.mxu0 0.0
      %1860 = vmatprep.subr.mxu0 0.0
      %1861 = vmatpush2.msra.mxu0 0.0
      %1862 = vmatprep.subr.mxu0 0.0
      %1863 = vmatpush2.msra.mxu0 0.0
      %1864 = vmatprep.subr.mxu0 0.0
      %1865 = vmatpush2.msra.mxu0 0.0
      %1866 = vmatprep.subr.mxu0 0.0
      %1867 = vmatpush2.msra.mxu0 0.0
      %1868 = vmatprep.subr.mxu0 0.0
      %1869 = vmatpush2.msra.mxu0 0.0
      %1870 = vmatprep.subr.mxu0 0.0
      %1871 = vmatpush2.msra.mxu0 0.0
      %1872 = vmatprep.subr.mxu0 0.0
      %1873 = vmatpush2.msra.mxu0 0.0
      %1874 = vmatprep.subr.mxu0 0.0
      %1875 = vmatpush2.msra.mxu0 0.0
      %1876 = vmatprep.subr.mxu0 0.0
      %1877 = vmatpush2.msra.mxu0 0.0
      %1878 = vmatprep.subr.mxu0 0.0
      %1879 = vmatpush2.msra.mxu0 0.0
      %1880 = vmatprep.subr.mxu0 0.0
      %1881 = vmatpush2.msra.mxu0 0.0
      %1882 = vmatprep.subr.mxu0 0.0
      %1883 = vmatpush2.msra.mxu0 0.0
      %1884 = vmatprep.subr.mxu0 0.0
      %1885 = vmatpush2.msra.mxu0 0.0
      %1886 = vmatprep.subr.mxu0 0.0
      %1887 = vmatpush2.msra.mxu0 0.0
      %1888 = vmatprep.subr.mxu0 0.0
      %1889 = vmatpush2.msra.mxu0 0.0
      %1890 = vmatprep.mubr.f32.mxu0 0.0
      %1891 = vmatmul.mubr.f32.gmra.mxu0 %v1824
      %v1892 = vpop.f32.mrf.mxu0
      %v1893 = vadd.f32 0.0, %v1892
      %v1894 = vpop.f32.mrf.mxu0
      %1895 = vdwg.mxu0
      %s1896 = scalar_lea.vmem %s4, 16
      %v1897 = vld [vmem:[%s1896] sm:$0xff]
      %v1899 = vsel %vm762, %v1893, 0
      %1901 = vmatprep.subr.mxu0 0.0
      %1902 = vmatpush1.msra.mxu0 0.0
      %1903 = vmatprep.subr.mxu0 0.0
      %1904 = vmatpush1.msra.mxu0 0.0
      %1905 = vmatprep.subr.mxu0 0.0
      %1906 = vmatpush1.msra.mxu0 0.0
      %1907 = vmatprep.subr.mxu0 0.0
      %1908 = vmatpush1.msra.mxu0 0.0
      %1909 = vmatprep.subr.mxu0 0.0
      %1910 = vmatpush1.msra.mxu0 0.0
      %1911 = vmatprep.subr.mxu0 0.0
      %1912 = vmatpush1.msra.mxu0 0.0
      %1913 = vmatprep.subr.mxu0 0.0
      %1914 = vmatpush1.msra.mxu0 0.0
      %1915 = vmatprep.subr.mxu0 0.0
      %1916 = vmatpush1.msra.mxu0 0.0
      %1917 = vmatprep.subr.mxu0 0.0
      %1918 = vmatpush1.msra.mxu0 0.0
      %1919 = vmatprep.subr.mxu0 0.0
      %1920 = vmatpush1.msra.mxu0 0.0
      %1921 = vmatprep.subr.mxu0 0.0
      %1922 = vmatpush1.msra.mxu0 0.0
      %1923 = vmatprep.subr.mxu0 0.0
      %1924 = vmatpush1.msra.mxu0 0.0
      %1925 = vmatprep.subr.mxu0 0.0
      %1926 = vmatpush1.msra.mxu0 0.0
      %1927 = vmatprep.subr.mxu0 0.0
      %1928 = vmatpush1.msra.mxu0 0.0
      %1929 = vmatprep.subr.mxu0 0.0
      %1930 = vmatpush1.msra.mxu0 0.0
      %1931 = vmatprep.subr.mxu0 0.0
      %1932 = vmatpush1.msra.mxu0 %v1897
      %1933 = vmatprep.subr.mxu0 0.0
      %1934 = vmatpush2.msra.mxu0 0.0
      %1935 = vmatprep.subr.mxu0 0.0
      %1936 = vmatpush2.msra.mxu0 0.0
      %1937 = vmatprep.subr.mxu0 0.0
      %1938 = vmatpush2.msra.mxu0 0.0
      %1939 = vmatprep.subr.mxu0 0.0
      %1940 = vmatpush2.msra.mxu0 0.0
      %1941 = vmatprep.subr.mxu0 0.0
      %1942 = vmatpush2.msra.mxu0 0.0
      %1943 = vmatprep.subr.mxu0 0.0
      %1944 = vmatpush2.msra.mxu0 0.0
      %1945 = vmatprep.subr.mxu0 0.0
      %1946 = vmatpush2.msra.mxu0 0.0
      %1947 = vmatprep.subr.mxu0 0.0
      %1948 = vmatpush2.msra.mxu0 0.0
      %1949 = vmatprep.subr.mxu0 0.0
      %1950 = vmatpush2.msra.mxu0 0.0
      %1951 = vmatprep.subr.mxu0 0.0
      %1952 = vmatpush2.msra.mxu0 0.0
      %1953 = vmatprep.subr.mxu0 0.0
      %1954 = vmatpush2.msra.mxu0 0.0
      %1955 = vmatprep.subr.mxu0 0.0
      %1956 = vmatpush2.msra.mxu0 0.0
      %1957 = vmatprep.subr.mxu0 0.0
      %1958 = vmatpush2.msra.mxu0 0.0
      %1959 = vmatprep.subr.mxu0 0.0
      %1960 = vmatpush2.msra.mxu0 0.0
      %1961 = vmatprep.subr.mxu0 0.0
      %1962 = vmatpush2.msra.mxu0 0.0
      %1963 = vmatprep.subr.mxu0 0.0
      %1964 = vmatpush2.msra.mxu0 0.0
      %1965 = vmatprep.mubr.f32.mxu0 0.0
      %1966 = vmatmul.mubr.f32.gmra.mxu0 %v1899
      %v1967 = vpop.f32.mrf.mxu0
      %v1968 = vadd.f32 0.0, %v1967
      %v1969 = vpop.f32.mrf.mxu0
      %1970 = vdwg.mxu0
      %v1971 = vadd.f32 %v1482, %v1968
      %s1972 = scalar_lea.vmem %s2, 96
      %v1973 = vld [vmem:[%s1972] sm:$0xff]
      %v1974 = vld [vmem:[%s1972 + $0x8] sm:$0xff]
      %v1975 = vld [vmem:[%s1972 + $0x10] sm:$0xff]
      %v1976 = vld [vmem:[%s1972 + $0x18] sm:$0xff]
      %s1977 = scalar_lea.vmem %s3, 3
      %v1978 = vld [vmem:[%s1977] sm:$0x1]
      %v1980 = vlaneseq
      %v1981 = vshrl.u32 %v1980, 7
      %v1982 = vsub.s32 0, %v1981
      %v1983 = vrot.slane %v1978, %v1982
      %1985 = vmatprep.subr.mxu0 0.0
      %1986 = vmatpush1.msra.mxu0 0.0
      %1987 = vmatprep.subr.mxu0 0.0
      %1988 = vmatpush1.msra.mxu0 0.0
      %1989 = vmatprep.subr.mxu0 0.0
      %1990 = vmatpush1.msra.mxu0 0.0
      %1991 = vmatprep.subr.mxu0 0.0
      %1992 = vmatpush1.msra.mxu0 0.0
      %1993 = vmatprep.subr.mxu0 0.0
      %1994 = vmatpush1.msra.mxu0 0.0
      %1995 = vmatprep.subr.mxu0 0.0
      %1996 = vmatpush1.msra.mxu0 0.0
      %1997 = vmatprep.subr.mxu0 0.0
      %1998 = vmatpush1.msra.mxu0 0.0
      %1999 = vmatprep.subr.mxu0 0.0
      %2000 = vmatpush1.msra.mxu0 0.0
      %2001 = vmatprep.subr.mxu0 0.0
      %2002 = vmatpush1.msra.mxu0 0.0
      %2003 = vmatprep.subr.mxu0 0.0
      %2004 = vmatpush1.msra.mxu0 0.0
      %2005 = vmatprep.subr.mxu0 0.0
      %2006 = vmatpush1.msra.mxu0 0.0
      %2007 = vmatprep.subr.mxu0 0.0
      %2008 = vmatpush1.msra.mxu0 0.0
      %2009 = vmatprep.subr.mxu0 0.0
      %2010 = vmatpush1.msra.mxu0 %v1976
      %2011 = vmatprep.subr.mxu0 0.0
      %2012 = vmatpush1.msra.mxu0 %v1975
      %2013 = vmatprep.subr.mxu0 0.0
      %2014 = vmatpush1.msra.mxu0 %v1974
      %2015 = vmatprep.subr.mxu0 0.0
      %2016 = vmatpush1.msra.mxu0 %v1973
      %2017 = vmatprep.subr.mxu0 0.0
      %2018 = vmatpush2.msra.mxu0 0.0
      %2019 = vmatprep.subr.mxu0 0.0
      %2020 = vmatpush2.msra.mxu0 0.0
      %2021 = vmatprep.subr.mxu0 0.0
      %2022 = vmatpush2.msra.mxu0 0.0
      %2023 = vmatprep.subr.mxu0 0.0
      %2024 = vmatpush2.msra.mxu0 0.0
      %2025 = vmatprep.subr.mxu0 0.0
      %2026 = vmatpush2.msra.mxu0 0.0
      %2027 = vmatprep.subr.mxu0 0.0
      %2028 = vmatpush2.msra.mxu0 0.0
      %2029 = vmatprep.subr.mxu0 0.0
      %2030 = vmatpush2.msra.mxu0 0.0
      %2031 = vmatprep.subr.mxu0 0.0
      %2032 = vmatpush2.msra.mxu0 0.0
      %2033 = vmatprep.subr.mxu0 0.0
      %2034 = vmatpush2.msra.mxu0 0.0
      %2035 = vmatprep.subr.mxu0 0.0
      %2036 = vmatpush2.msra.mxu0 0.0
      %2037 = vmatprep.subr.mxu0 0.0
      %2038 = vmatpush2.msra.mxu0 0.0
      %2039 = vmatprep.subr.mxu0 0.0
      %2040 = vmatpush2.msra.mxu0 0.0
      %2041 = vmatprep.subr.mxu0 0.0
      %2042 = vmatpush2.msra.mxu0 0.0
      %2043 = vmatprep.subr.mxu0 0.0
      %2044 = vmatpush2.msra.mxu0 0.0
      %2045 = vmatprep.subr.mxu0 0.0
      %2046 = vmatpush2.msra.mxu0 0.0
      %2047 = vmatprep.subr.mxu0 0.0
      %2048 = vmatpush2.msra.mxu0 0.0
      %2049 = vmatprep.mubr.f32.mxu0 0.0
      %2050 = vmatmul.mubr.f32.gmra.mxu0 %v524
      %v2051 = vpop.f32.mrf.mxu0
      %v2052 = vadd.f32 %v1983, %v2051
      %v2053 = vpop.f32.mrf.mxu0
      %2054 = vdwg.mxu0
      %s2055 = scalar_lea.vmem %s2, 224
      %v2056 = vld [vmem:[%s2055] sm:$0xff]
      %v2057 = vld [vmem:[%s2055 + $0x8] sm:$0xff]
      %v2058 = vld [vmem:[%s2055 + $0x10] sm:$0xff]
      %v2059 = vld [vmem:[%s2055 + $0x18] sm:$0xff]
      %s2060 = scalar_lea.vmem %s3, 7
      %v2061 = vld [vmem:[%s2060] sm:$0x1]
      %v2063 = vlaneseq
      %v2064 = vshrl.u32 %v2063, 7
      %v2065 = vsub.s32 0, %v2064
      %v2066 = vrot.slane %v2061, %v2065
      %2068 = vmatprep.subr.mxu0 0.0
      %2069 = vmatpush1.msra.mxu0 0.0
      %2070 = vmatprep.subr.mxu0 0.0
      %2071 = vmatpush1.msra.mxu0 0.0
      %2072 = vmatprep.subr.mxu0 0.0
      %2073 = vmatpush1.msra.mxu0 0.0
      %2074 = vmatprep.subr.mxu0 0.0
      %2075 = vmatpush1.msra.mxu0 0.0
      %2076 = vmatprep.subr.mxu0 0.0
      %2077 = vmatpush1.msra.mxu0 0.0
      %2078 = vmatprep.subr.mxu0 0.0
      %2079 = vmatpush1.msra.mxu0 0.0
      %2080 = vmatprep.subr.mxu0 0.0
      %2081 = vmatpush1.msra.mxu0 0.0
      %2082 = vmatprep.subr.mxu0 0.0
      %2083 = vmatpush1.msra.mxu0 0.0
      %2084 = vmatprep.subr.mxu0 0.0
      %2085 = vmatpush1.msra.mxu0 0.0
      %2086 = vmatprep.subr.mxu0 0.0
      %2087 = vmatpush1.msra.mxu0 0.0
      %2088 = vmatprep.subr.mxu0 0.0
      %2089 = vmatpush1.msra.mxu0 0.0
      %2090 = vmatprep.subr.mxu0 0.0
      %2091 = vmatpush1.msra.mxu0 0.0
      %2092 = vmatprep.subr.mxu0 0.0
      %2093 = vmatpush1.msra.mxu0 %v2059
      %2094 = vmatprep.subr.mxu0 0.0
      %2095 = vmatpush1.msra.mxu0 %v2058
      %2096 = vmatprep.subr.mxu0 0.0
      %2097 = vmatpush1.msra.mxu0 %v2057
      %2098 = vmatprep.subr.mxu0 0.0
      %2099 = vmatpush1.msra.mxu0 %v2056
      %2100 = vmatprep.subr.mxu0 0.0
      %2101 = vmatpush2.msra.mxu0 0.0
      %2102 = vmatprep.subr.mxu0 0.0
      %2103 = vmatpush2.msra.mxu0 0.0
      %2104 = vmatprep.subr.mxu0 0.0
      %2105 = vmatpush2.msra.mxu0 0.0
      %2106 = vmatprep.subr.mxu0 0.0
      %2107 = vmatpush2.msra.mxu0 0.0
      %2108 = vmatprep.subr.mxu0 0.0
      %2109 = vmatpush2.msra.mxu0 0.0
      %2110 = vmatprep.subr.mxu0 0.0
      %2111 = vmatpush2.msra.mxu0 0.0
      %2112 = vmatprep.subr.mxu0 0.0
      %2113 = vmatpush2.msra.mxu0 0.0
      %2114 = vmatprep.subr.mxu0 0.0
      %2115 = vmatpush2.msra.mxu0 0.0
      %2116 = vmatprep.subr.mxu0 0.0
      %2117 = vmatpush2.msra.mxu0 0.0
      %2118 = vmatprep.subr.mxu0 0.0
      %2119 = vmatpush2.msra.mxu0 0.0
      %2120 = vmatprep.subr.mxu0 0.0
      %2121 = vmatpush2.msra.mxu0 0.0
      %2122 = vmatprep.subr.mxu0 0.0
      %2123 = vmatpush2.msra.mxu0 0.0
      %2124 = vmatprep.subr.mxu0 0.0
      %2125 = vmatpush2.msra.mxu0 0.0
      %2126 = vmatprep.subr.mxu0 0.0
      %2127 = vmatpush2.msra.mxu0 0.0
      %2128 = vmatprep.subr.mxu0 0.0
      %2129 = vmatpush2.msra.mxu0 0.0
      %2130 = vmatprep.subr.mxu0 0.0
      %2131 = vmatpush2.msra.mxu0 0.0
      %2132 = vmatprep.mubr.f32.mxu0 0.0
      %2133 = vmatmul.mubr.f32.gmra.mxu0 %v524
      %v2134 = vpop.f32.mrf.mxu0
      %v2135 = vadd.f32 %v2066, %v2134
      %v2136 = vpop.f32.mrf.mxu0
      %2137 = vdwg.mxu0
      %s2138 = scalar_lea.vmem %s2, 352
      %v2139 = vld [vmem:[%s2138] sm:$0xff]
      %v2140 = vld [vmem:[%s2138 + $0x8] sm:$0xff]
      %v2141 = vld [vmem:[%s2138 + $0x10] sm:$0xff]
      %v2142 = vld [vmem:[%s2138 + $0x18] sm:$0xff]
      %s2143 = scalar_lea.vmem %s3, 11
      %v2144 = vld [vmem:[%s2143] sm:$0x1]
      %v2146 = vlaneseq
      %v2147 = vshrl.u32 %v2146, 7
      %v2148 = vsub.s32 0, %v2147
      %v2149 = vrot.slane %v2144, %v2148
      %2151 = vmatprep.subr.mxu0 0.0
      %2152 = vmatpush1.msra.mxu0 0.0
      %2153 = vmatprep.subr.mxu0 0.0
      %2154 = vmatpush1.msra.mxu0 0.0
      %2155 = vmatprep.subr.mxu0 0.0
      %2156 = vmatpush1.msra.mxu0 0.0
      %2157 = vmatprep.subr.mxu0 0.0
      %2158 = vmatpush1.msra.mxu0 0.0
      %2159 = vmatprep.subr.mxu0 0.0
      %2160 = vmatpush1.msra.mxu0 0.0
      %2161 = vmatprep.subr.mxu0 0.0
      %2162 = vmatpush1.msra.mxu0 0.0
      %2163 = vmatprep.subr.mxu0 0.0
      %2164 = vmatpush1.msra.mxu0 0.0
      %2165 = vmatprep.subr.mxu0 0.0
      %2166 = vmatpush1.msra.mxu0 0.0
      %2167 = vmatprep.subr.mxu0 0.0
      %2168 = vmatpush1.msra.mxu0 0.0
      %2169 = vmatprep.subr.mxu0 0.0
      %2170 = vmatpush1.msra.mxu0 0.0
      %2171 = vmatprep.subr.mxu0 0.0
      %2172 = vmatpush1.msra.mxu0 0.0
      %2173 = vmatprep.subr.mxu0 0.0
      %2174 = vmatpush1.msra.mxu0 0.0
      %2175 = vmatprep.subr.mxu0 0.0
      %2176 = vmatpush1.msra.mxu0 %v2142
      %2177 = vmatprep.subr.mxu0 0.0
      %2178 = vmatpush1.msra.mxu0 %v2141
      %2179 = vmatprep.subr.mxu0 0.0
      %2180 = vmatpush1.msra.mxu0 %v2140
      %2181 = vmatprep.subr.mxu0 0.0
      %2182 = vmatpush1.msra.mxu0 %v2139
      %2183 = vmatprep.subr.mxu0 0.0
      %2184 = vmatpush2.msra.mxu0 0.0
      %2185 = vmatprep.subr.mxu0 0.0
      %2186 = vmatpush2.msra.mxu0 0.0
      %2187 = vmatprep.subr.mxu0 0.0
      %2188 = vmatpush2.msra.mxu0 0.0
      %2189 = vmatprep.subr.mxu0 0.0
      %2190 = vmatpush2.msra.mxu0 0.0
      %2191 = vmatprep.subr.mxu0 0.0
      %2192 = vmatpush2.msra.mxu0 0.0
      %2193 = vmatprep.subr.mxu0 0.0
      %2194 = vmatpush2.msra.mxu0 0.0
      %2195 = vmatprep.subr.mxu0 0.0
      %2196 = vmatpush2.msra.mxu0 0.0
      %2197 = vmatprep.subr.mxu0 0.0
      %2198 = vmatpush2.msra.mxu0 0.0
      %2199 = vmatprep.subr.mxu0 0.0
      %2200 = vmatpush2.msra.mxu0 0.0
      %2201 = vmatprep.subr.mxu0 0.0
      %2202 = vmatpush2.msra.mxu0 0.0
      %2203 = vmatprep.subr.mxu0 0.0
      %2204 = vmatpush2.msra.mxu0 0.0
      %2205 = vmatprep.subr.mxu0 0.0
      %2206 = vmatpush2.msra.mxu0 0.0
      %2207 = vmatprep.subr.mxu0 0.0
      %2208 = vmatpush2.msra.mxu0 0.0
      %2209 = vmatprep.subr.mxu0 0.0
      %2210 = vmatpush2.msra.mxu0 0.0
      %2211 = vmatprep.subr.mxu0 0.0
      %2212 = vmatpush2.msra.mxu0 0.0
      %2213 = vmatprep.subr.mxu0 0.0
      %2214 = vmatpush2.msra.mxu0 0.0
      %2215 = vmatprep.mubr.f32.mxu0 0.0
      %2216 = vmatmul.mubr.f32.gmra.mxu0 %v524
      %v2217 = vpop.f32.mrf.mxu0
      %v2218 = vadd.f32 %v2149, %v2217
      %v2219 = vpop.f32.mrf.mxu0
      %2220 = vdwg.mxu0
      %v2222 = vsel %vm762, %v2052, 0
      %v2225 = vsel %vm762, %v2135, 0
      %2227 = vmatprep.subr.mxu0 0.0
      %2228 = vmatpush1.xpose.msra.mxu0 0.0
      %2229 = vmatprep.subr.mxu0 0.0
      %2230 = vmatpush1.xpose.msra.mxu0 0.0
      %2231 = vmatprep.subr.mxu0 0.0
      %2232 = vmatpush1.xpose.msra.mxu0 0.0
      %2233 = vmatprep.subr.mxu0 0.0
      %2234 = vmatpush1.xpose.msra.mxu0 0.0
      %2235 = vmatprep.subr.mxu0 0.0
      %2236 = vmatpush1.xpose.msra.mxu0 0.0
      %2237 = vmatprep.subr.mxu0 0.0
      %2238 = vmatpush1.xpose.msra.mxu0 0.0
      %2239 = vmatprep.subr.mxu0 0.0
      %2240 = vmatpush1.xpose.msra.mxu0 0.0
      %2241 = vmatprep.subr.mxu0 0.0
      %2242 = vmatpush1.xpose.msra.mxu0 0.0
      %2243 = vmatprep.subr.mxu0 0.0
      %2244 = vmatpush1.xpose.msra.mxu0 0.0
      %2245 = vmatprep.subr.mxu0 0.0
      %2246 = vmatpush1.xpose.msra.mxu0 0.0
      %2247 = vmatprep.subr.mxu0 0.0
      %2248 = vmatpush1.xpose.msra.mxu0 0.0
      %2249 = vmatprep.subr.mxu0 0.0
      %2250 = vmatpush1.xpose.msra.mxu0 0.0
      %2251 = vmatprep.subr.mxu0 0.0
      %2252 = vmatpush1.xpose.msra.mxu0 0.0
      %2253 = vmatprep.subr.mxu0 0.0
      %2254 = vmatpush1.xpose.msra.mxu0 0.0
      %2255 = vmatprep.subr.mxu0 0.0
      %2256 = vmatpush1.xpose.msra.mxu0 0.0
      %2257 = vmatprep.subr.mxu0 0.0
      %2258 = vmatpush1.xpose.msra.mxu0 %v2225
      %2259 = vmatprep.subr.mxu0 0.0
      %2260 = vmatpush2.xpose.msra.mxu0 0.0
      %2261 = vmatprep.subr.mxu0 0.0
      %2262 = vmatpush2.xpose.msra.mxu0 0.0
      %2263 = vmatprep.subr.mxu0 0.0
      %2264 = vmatpush2.xpose.msra.mxu0 0.0
      %2265 = vmatprep.subr.mxu0 0.0
      %2266 = vmatpush2.xpose.msra.mxu0 0.0
      %2267 = vmatprep.subr.mxu0 0.0
      %2268 = vmatpush2.xpose.msra.mxu0 0.0
      %2269 = vmatprep.subr.mxu0 0.0
      %2270 = vmatpush2.xpose.msra.mxu0 0.0
      %2271 = vmatprep.subr.mxu0 0.0
      %2272 = vmatpush2.xpose.msra.mxu0 0.0
      %2273 = vmatprep.subr.mxu0 0.0
      %2274 = vmatpush2.xpose.msra.mxu0 0.0
      %2275 = vmatprep.subr.mxu0 0.0
      %2276 = vmatpush2.xpose.msra.mxu0 0.0
      %2277 = vmatprep.subr.mxu0 0.0
      %2278 = vmatpush2.xpose.msra.mxu0 0.0
      %2279 = vmatprep.subr.mxu0 0.0
      %2280 = vmatpush2.xpose.msra.mxu0 0.0
      %2281 = vmatprep.subr.mxu0 0.0
      %2282 = vmatpush2.xpose.msra.mxu0 0.0
      %2283 = vmatprep.subr.mxu0 0.0
      %2284 = vmatpush2.xpose.msra.mxu0 0.0
      %2285 = vmatprep.subr.mxu0 0.0
      %2286 = vmatpush2.xpose.msra.mxu0 0.0
      %2287 = vmatprep.subr.mxu0 0.0
      %2288 = vmatpush2.xpose.msra.mxu0 0.0
      %2289 = vmatprep.subr.mxu0 0.0
      %2290 = vmatpush2.xpose.msra.mxu0 0.0
      %2291 = vmatprep.mubr.f32.mxu0 0.0
      %2292 = vmatmul.mubr.f32.gmra.mxu0 %v2222
      %v2293 = vpop.f32.mrf.mxu0
      %v2294 = vadd.f32 0.0, %v2293
      %v2295 = vpop.f32.mrf.mxu0
      %2296 = vdwg.mxu0
      %v2297 = vmul.f32 %v2294, 0.35355338
      %v2298 = vadd.f32 %v2297, %v509
      %v2299 = vsel %vm762, %v2298, -inf
      %2300 = vmax.xlane.f32.xlu0 %v2299
      %v2301 = vpop.xlane.xlu0 %2300
      %v2302 = vsub.f32 %v2298, %v2301
      %v2303 = vmul.f32 %v2302, 1.442695
      %v2304 = vpow.pop %v2303
      %v2305 = vsel %vm762, %v2304, 0.0
      %2306 = vadd.xlane.f32.xlu0 %v2305
      %v2307 = vpop.xlane.xlu0 %2306
      %v2308 = vrcp.pop %v2307
      %v2309 = vmul.f32 %v2304, %v2308
      %v2311 = vsel %vm762, %v2309, 0
      %2313 = vmatprep.subr.mxu0 0.0
      %2314 = vmatpush1.msra.mxu0 0.0
      %2315 = vmatprep.subr.mxu0 0.0
      %2316 = vmatpush1.msra.mxu0 0.0
      %2317 = vmatprep.subr.mxu0 0.0
      %2318 = vmatpush1.msra.mxu0 0.0
      %2319 = vmatprep.subr.mxu0 0.0
      %2320 = vmatpush1.msra.mxu0 0.0
      %2321 = vmatprep.subr.mxu0 0.0
      %2322 = vmatpush1.msra.mxu0 0.0
      %2323 = vmatprep.subr.mxu0 0.0
      %2324 = vmatpush1.msra.mxu0 0.0
      %2325 = vmatprep.subr.mxu0 0.0
      %2326 = vmatpush1.msra.mxu0 0.0
      %2327 = vmatprep.subr.mxu0 0.0
      %2328 = vmatpush1.msra.mxu0 0.0
      %2329 = vmatprep.subr.mxu0 0.0
      %2330 = vmatpush1.msra.mxu0 0.0
      %2331 = vmatprep.subr.mxu0 0.0
      %2332 = vmatpush1.msra.mxu0 0.0
      %2333 = vmatprep.subr.mxu0 0.0
      %2334 = vmatpush1.msra.mxu0 0.0
      %2335 = vmatprep.subr.mxu0 0.0
      %2336 = vmatpush1.msra.mxu0 0.0
      %2337 = vmatprep.subr.mxu0 0.0
      %2338 = vmatpush1.msra.mxu0 0.0
      %2339 = vmatprep.subr.mxu0 0.0
      %2340 = vmatpush1.msra.mxu0 0.0
      %2341 = vmatprep.subr.mxu0 0.0
      %2342 = vmatpush1.msra.mxu0 0.0
      %2343 = vmatprep.subr.mxu0 0.0
      %2344 = vmatpush1.msra.mxu0 %v2218
      %2345 = vmatprep.subr.mxu0 0.0
      %2346 = vmatpush2.msra.mxu0 0.0
      %2347 = vmatprep.subr.mxu0 0.0
      %2348 = vmatpush2.msra.mxu0 0.0
      %2349 = vmatprep.subr.mxu0 0.0
      %2350 = vmatpush2.msra.mxu0 0.0
      %2351 = vmatprep.subr.mxu0 0.0
      %2352 = vmatpush2.msra.mxu0 0.0
      %2353 = vmatprep.subr.mxu0 0.0
      %2354 = vmatpush2.msra.mxu0 0.0
      %2355 = vmatprep.subr.mxu0 0.0
      %2356 = vmatpush2.msra.mxu0 0.0
      %2357 = vmatprep.subr.mxu0 0.0
      %2358 = vmatpush2.msra.mxu0 0.0
      %2359 = vmatprep.subr.mxu0 0.0
      %2360 = vmatpush2.msra.mxu0 0.0
      %2361 = vmatprep.subr.mxu0 0.0
      %2362 = vmatpush2.msra.mxu0 0.0
      %2363 = vmatprep.subr.mxu0 0.0
      %2364 = vmatpush2.msra.mxu0 0.0
      %2365 = vmatprep.subr.mxu0 0.0
      %2366 = vmatpush2.msra.mxu0 0.0
      %2367 = vmatprep.subr.mxu0 0.0
      %2368 = vmatpush2.msra.mxu0 0.0
      %2369 = vmatprep.subr.mxu0 0.0
      %2370 = vmatpush2.msra.mxu0 0.0
      %2371 = vmatprep.subr.mxu0 0.0
      %2372 = vmatpush2.msra.mxu0 0.0
      %2373 = vmatprep.subr.mxu0 0.0
      %2374 = vmatpush2.msra.mxu0 0.0
      %2375 = vmatprep.subr.mxu0 0.0
      %2376 = vmatpush2.msra.mxu0 0.0
      %2377 = vmatprep.mubr.f32.mxu0 0.0
      %2378 = vmatmul.mubr.f32.gmra.mxu0 %v2311
      %v2379 = vpop.f32.mrf.mxu0
      %v2380 = vadd.f32 0.0, %v2379
      %v2381 = vpop.f32.mrf.mxu0
      %2382 = vdwg.mxu0
      %s2383 = scalar_lea.vmem %s4, 24
      %v2384 = vld [vmem:[%s2383] sm:$0xff]
      %v2386 = vsel %vm762, %v2380, 0
      %2388 = vmatprep.subr.mxu0 0.0
      %2389 = vmatpush1.msra.mxu0 0.0
      %2390 = vmatprep.subr.mxu0 0.0
      %2391 = vmatpush1.msra.mxu0 0.0
      %2392 = vmatprep.subr.mxu0 0.0
      %2393 = vmatpush1.msra.mxu0 0.0
      %2394 = vmatprep.subr.mxu0 0.0
      %2395 = vmatpush1.msra.mxu0 0.0
      %2396 = vmatprep.subr.mxu0 0.0
      %2397 = vmatpush1.msra.mxu0 0.0
      %2398 = vmatprep.subr.mxu0 0.0
      %2399 = vmatpush1.msra.mxu0 0.0
      %2400 = vmatprep.subr.mxu0 0.0
      %2401 = vmatpush1.msra.mxu0 0.0
      %2402 = vmatprep.subr.mxu0 0.0
      %2403 = vmatpush1.msra.mxu0 0.0
      %2404 = vmatprep.subr.mxu0 0.0
      %2405 = vmatpush1.msra.mxu0 0.0
      %2406 = vmatprep.subr.mxu0 0.0
      %2407 = vmatpush1.msra.mxu0 0.0
      %2408 = vmatprep.subr.mxu0 0.0
      %2409 = vmatpush1.msra.mxu0 0.0
      %2410 = vmatprep.subr.mxu0 0.0
      %2411 = vmatpush1.msra.mxu0 0.0
      %2412 = vmatprep.subr.mxu0 0.0
      %2413 = vmatpush1.msra.mxu0 0.0
      %2414 = vmatprep.subr.mxu0 0.0
      %2415 = vmatpush1.msra.mxu0 0.0
      %2416 = vmatprep.subr.mxu0 0.0
      %2417 = vmatpush1.msra.mxu0 0.0
      %2418 = vmatprep.subr.mxu0 0.0
      %2419 = vmatpush1.msra.mxu0 %v2384
      %2420 = vmatprep.subr.mxu0 0.0
      %2421 = vmatpush2.msra.mxu0 0.0
      %2422 = vmatprep.subr.mxu0 0.0
      %2423 = vmatpush2.msra.mxu0 0.0
      %2424 = vmatprep.subr.mxu0 0.0
      %2425 = vmatpush2.msra.mxu0 0.0
      %2426 = vmatprep.subr.mxu0 0.0
      %2427 = vmatpush2.msra.mxu0 0.0
      %2428 = vmatprep.subr.mxu0 0.0
      %2429 = vmatpush2.msra.mxu0 0.0
      %2430 = vmatprep.subr.mxu0 0.0
      %2431 = vmatpush2.msra.mxu0 0.0
      %2432 = vmatprep.subr.mxu0 0.0
      %2433 = vmatpush2.msra.mxu0 0.0
      %2434 = vmatprep.subr.mxu0 0.0
      %2435 = vmatpush2.msra.mxu0 0.0
      %2436 = vmatprep.subr.mxu0 0.0
      %2437 = vmatpush2.msra.mxu0 0.0
      %2438 = vmatprep.subr.mxu0 0.0
      %2439 = vmatpush2.msra.mxu0 0.0
      %2440 = vmatprep.subr.mxu0 0.0
      %2441 = vmatpush2.msra.mxu0 0.0
      %2442 = vmatprep.subr.mxu0 0.0
      %2443 = vmatpush2.msra.mxu0 0.0
      %2444 = vmatprep.subr.mxu0 0.0
      %2445 = vmatpush2.msra.mxu0 0.0
      %2446 = vmatprep.subr.mxu0 0.0
      %2447 = vmatpush2.msra.mxu0 0.0
      %2448 = vmatprep.subr.mxu0 0.0
      %2449 = vmatpush2.msra.mxu0 0.0
      %2450 = vmatprep.subr.mxu0 0.0
      %2451 = vmatpush2.msra.mxu0 0.0
      %2452 = vmatprep.mubr.f32.mxu0 0.0
      %2453 = vmatmul.mubr.f32.gmra.mxu0 %v2386
      %v2454 = vpop.f32.mrf.mxu0
      %v2455 = vadd.f32 0.0, %v2454
      %v2456 = vpop.f32.mrf.mxu0
      %2457 = vdwg.mxu0
      %v2458 = vadd.f32 %v1971, %v2455
      %v2459 = vlaneseq
      %v2460 = vshrl.u32 %v2459, 7
      %v2461 = vsub.s32 0, %v2460
      %v2462 = vrot.slane %v511, %v2461
      %v2463 = vadd.f32 %v2458, %v2462
      %v2464 = vadd.f32 %v2463, %v503
      %v2465 = vsel %vm479, %v2464, 0.0
      %2466 = vadd.xlane.f32.xlu0 %v2465
      %v2467 = vpop.xlane.xlu0 %2466
      %v2468 = vmul.f32 %v2467, %v483
      %v2469 = vsub.f32 %v2464, %v2468
      %v2470 = vmul.f32 %v2469, %v2469
      %v2471 = vsel %vm479, %v2470, 0.0
      %2472 = vadd.xlane.f32.xlu0 %v2471
      %v2473 = vpop.xlane.xlu0 %2472
      %v2474 = vmul.f32 %v2473, %v483
      %v2475 = vadd.f32 %v2474, 1e-12
      %v2476 = vrsqrt.pop %v2475
      %v2477 = vmul.f32 %v2469, %v2476
      %v2478 = vlaneseq
      %v2479 = vshrl.u32 %v2478, 7
      %v2480 = vsub.s32 1, %v2479
      %v2481 = vrot.slane %v511, %v2480
      %v2482 = vmul.f32 %v2477, %v2481
      %v2483 = vlaneseq
      %v2484 = vshrl.u32 %v2483, 7
      %v2485 = vsub.s32 2, %v2484
      %v2486 = vrot.slane %v511, %v2485
      %v2487 = vadd.f32 %v2482, %v2486
      %v2488 = vld [vmem:[%s5] sm:$0xff]
      %v2489 = vld [vmem:[%s5 + $0x8] sm:$0xff]
      %v2490 = vld [vmem:[%s5 + $0x10] sm:$0xff]
      %v2491 = vld [vmem:[%s5 + $0x18] sm:$0xff]
      %v2492 = vlaneseq
      %v2493 = vshrl.u32 %v2492, 7
      %v2494 = vsub.s32 3, %v2493
      %v2495 = vrot.slane %v511, %v2494
      %v2497 = vsel %vm479, %v2487, 0
      %2499 = vmatprep.subr.mxu0 0.0
      %2500 = vmatpush1.msra.mxu0 0.0
      %2501 = vmatprep.subr.mxu0 0.0
      %2502 = vmatpush1.msra.mxu0 0.0
      %2503 = vmatprep.subr.mxu0 0.0
      %2504 = vmatpush1.msra.mxu0 0.0
      %2505 = vmatprep.subr.mxu0 0.0
      %2506 = vmatpush1.msra.mxu0 0.0
      %2507 = vmatprep.subr.mxu0 0.0
      %2508 = vmatpush1.msra.mxu0 0.0
      %2509 = vmatprep.subr.mxu0 0.0
      %2510 = vmatpush1.msra.mxu0 0.0
      %2511 = vmatprep.subr.mxu0 0.0
      %2512 = vmatpush1.msra.mxu0 0.0
      %2513 = vmatprep.subr.mxu0 0.0
      %2514 = vmatpush1.msra.mxu0 0.0
      %2515 = vmatprep.subr.mxu0 0.0
      %2516 = vmatpush1.msra.mxu0 0.0
      %2517 = vmatprep.subr.mxu0 0.0
      %2518 = vmatpush1.msra.mxu0 0.0
      %2519 = vmatprep.subr.mxu0 0.0
      %2520 = vmatpush1.msra.mxu0 0.0
      %2521 = vmatprep.subr.mxu0 0.0
      %2522 = vmatpush1.msra.mxu0 0.0
      %2523 = vmatprep.subr.mxu0 0.0
      %2524 = vmatpush1.msra.mxu0 %v2491
      %2525 = vmatprep.subr.mxu0 0.0
      %2526 = vmatpush1.msra.mxu0 %v2490
      %2527 = vmatprep.subr.mxu0 0.0
      %2528 = vmatpush1.msra.mxu0 %v2489
      %2529 = vmatprep.subr.mxu0 0.0
      %2530 = vmatpush1.msra.mxu0 %v2488
      %2531 = vmatprep.subr.mxu0 0.0
      %2532 = vmatpush2.msra.mxu0 0.0
      %2533 = vmatprep.subr.mxu0 0.0
      %2534 = vmatpush2.msra.mxu0 0.0
      %2535 = vmatprep.subr.mxu0 0.0
      %2536 = vmatpush2.msra.mxu0 0.0
      %2537 = vmatprep.subr.mxu0 0.0
      %2538 = vmatpush2.msra.mxu0 0.0
      %2539 = vmatprep.subr.mxu0 0.0
      %2540 = vmatpush2.msra.mxu0 0.0
      %2541 = vmatprep.subr.mxu0 0.0
      %2542 = vmatpush2.msra.mxu0 0.0
      %2543 = vmatprep.subr.mxu0 0.0
      %2544 = vmatpush2.msra.mxu0 0.0
      %2545 = vmatprep.subr.mxu0 0.0
      %2546 = vmatpush2.msra.mxu0 0.0
      %2547 = vmatprep.subr.mxu0 0.0
      %2548 = vmatpush2.msra.mxu0 0.0
      %2549 = vmatprep.subr.mxu0 0.0
      %2550 = vmatpush2.msra.mxu0 0.0
      %2551 = vmatprep.subr.mxu0 0.0
      %2552 = vmatpush2.msra.mxu0 0.0
      %2553 = vmatprep.subr.mxu0 0.0
      %2554 = vmatpush2.msra.mxu0 0.0
      %2555 = vmatprep.subr.mxu0 0.0
      %2556 = vmatpush2.msra.mxu0 0.0
      %2557 = vmatprep.subr.mxu0 0.0
      %2558 = vmatpush2.msra.mxu0 0.0
      %2559 = vmatprep.subr.mxu0 0.0
      %2560 = vmatpush2.msra.mxu0 0.0
      %2561 = vmatprep.subr.mxu0 0.0
      %2562 = vmatpush2.msra.mxu0 0.0
      %2563 = vmatprep.mubr.f32.mxu0 0.0
      %2564 = vmatmul.mubr.f32.gmra.mxu0 %v2497
      %v2565 = vpop.f32.mrf.mxu0
      %v2566 = vadd.f32 %v2495, %v2565
      %v2567 = vpop.f32.mrf.mxu0
      %2568 = vdwg.mxu0
      %v2569 = vmul.f32 %v2566, 0.5
      %v2570 = vmul.f32 %v2566, 0.70710677
      %v2571 = verf.f32.pop %v2570
      %v2572 = vadd.f32 %v2571, 1.0
      %v2573 = vmul.f32 %v2569, %v2572
      %v2574 = vld [vmem:[%s6] sm:$0xff]
      %v2575 = vld [vmem:[%s6 + $0x8] sm:$0xff]
      %v2576 = vld [vmem:[%s6 + $0x10] sm:$0xff]
      %v2577 = vld [vmem:[%s6 + $0x18] sm:$0xff]
      %v2578 = vld [vmem:[%s6 + $0x20] sm:$0xff]
      %v2579 = vld [vmem:[%s6 + $0x28] sm:$0xff]
      %v2580 = vld [vmem:[%s6 + $0x30] sm:$0xff]
      %v2581 = vld [vmem:[%s6 + $0x38] sm:$0xff]
      %v2582 = vlaneseq
      %v2583 = vshrl.u32 %v2582, 7
      %v2584 = vsub.s32 4, %v2583
      %v2585 = vrot.slane %v511, %v2584
      %vm2586 = vcmask 523264
      %v2588 = vsel %vm2586, %v2573, 0
      %2590 = vmatprep.subr.mxu0 0.0
      %2591 = vmatpush1.msra.mxu0 0.0
      %2592 = vmatprep.subr.mxu0 0.0
      %2593 = vmatpush1.msra.mxu0 0.0
      %2594 = vmatprep.subr.mxu0 0.0
      %2595 = vmatpush1.msra.mxu0 0.0
      %2596 = vmatprep.subr.mxu0 0.0
      %2597 = vmatpush1.msra.mxu0 0.0
      %2598 = vmatprep.subr.mxu0 0.0
      %2599 = vmatpush1.msra.mxu0 0.0
      %2600 = vmatprep.subr.mxu0 0.0
      %2601 = vmatpush1.msra.mxu0 0.0
      %2602 = vmatprep.subr.mxu0 0.0
      %2603 = vmatpush1.msra.mxu0 0.0
      %2604 = vmatprep.subr.mxu0 0.0
      %2605 = vmatpush1.msra.mxu0 0.0
      %2606 = vmatprep.subr.mxu0 0.0
      %2607 = vmatpush1.msra.mxu0 %v2581
      %2608 = vmatprep.subr.mxu0 0.0
      %2609 = vmatpush1.msra.mxu0 %v2580
      %2610 = vmatprep.subr.mxu0 0.0
      %2611 = vmatpush1.msra.mxu0 %v2579
      %2612 = vmatprep.subr.mxu0 0.0
      %2613 = vmatpush1.msra.mxu0 %v2578
      %2614 = vmatprep.subr.mxu0 0.0
      %2615 = vmatpush1.msra.mxu0 %v2577
      %2616 = vmatprep.subr.mxu0 0.0
      %2617 = vmatpush1.msra.mxu0 %v2576
      %2618 = vmatprep.subr.mxu0 0.0
      %2619 = vmatpush1.msra.mxu0 %v2575
      %2620 = vmatprep.subr.mxu0 0.0
      %2621 = vmatpush1.msra.mxu0 %v2574
      %2622 = vmatprep.subr.mxu0 0.0
      %2623 = vmatpush2.msra.mxu0 0.0
      %2624 = vmatprep.subr.mxu0 0.0
      %2625 = vmatpush2.msra.mxu0 0.0
      %2626 = vmatprep.subr.mxu0 0.0
      %2627 = vmatpush2.msra.mxu0 0.0
      %2628 = vmatprep.subr.mxu0 0.0
      %2629 = vmatpush2.msra.mxu0 0.0
      %2630 = vmatprep.subr.mxu0 0.0
      %2631 = vmatpush2.msra.mxu0 0.0
      %2632 = vmatprep.subr.mxu0 0.0
      %2633 = vmatpush2.msra.mxu0 0.0
      %2634 = vmatprep.subr.mxu0 0.0
      %2635 = vmatpush2.msra.mxu0 0.0
      %2636 = vmatprep.subr.mxu0 0.0
      %2637 = vmatpush2.msra.mxu0 0.0
      %2638 = vmatprep.subr.mxu0 0.0
      %2639 = vmatpush2.msra.mxu0 0.0
      %2640 = vmatprep.subr.mxu0 0.0
      %2641 = vmatpush2.msra.mxu0 0.0
      %2642 = vmatprep.subr.mxu0 0.0
      %2643 = vmatpush2.msra.mxu0 0.0
      %2644 = vmatprep.subr.mxu0 0.0
      %2645 = vmatpush2.msra.mxu0 0.0
      %2646 = vmatprep.subr.mxu0 0.0
      %2647 = vmatpush2.msra.mxu0 0.0
      %2648 = vmatprep.subr.mxu0 0.0
      %2649 = vmatpush2.msra.mxu0 0.0
      %2650 = vmatprep.subr.mxu0 0.0
      %2651 = vmatpush2.msra.mxu0 0.0
      %2652 = vmatprep.subr.mxu0 0.0
      %2653 = vmatpush2.msra.mxu0 0.0
      %2654 = vmatprep.mubr.f32.mxu0 0.0
      %2655 = vmatmul.mubr.f32.gmra.mxu0 %v2588
      %v2656 = vpop.f32.mrf.mxu0
      %v2657 = vadd.f32 %v2585, %v2656
      %v2658 = vpop.f32.mrf.mxu0
      %2659 = vdwg.mxu0
      %v2660 = vadd.f32 %v2657, %v2487
      %v2661 = vsel %vm479, %v2660, 0.0
      %2662 = vadd.xlane.f32.xlu0 %v2661
      %v2663 = vpop.xlane.xlu0 %2662
      %v2664 = vmul.f32 %v2663, %v483
      %v2665 = vsub.f32 %v2660, %v2664
      %v2666 = vmul.f32 %v2665, %v2665
      %v2667 = vsel %vm479, %v2666, 0.0
      %2668 = vadd.xlane.f32.xlu0 %v2667
      %v2669 = vpop.xlane.xlu0 %2668
      %v2670 = vmul.f32 %v2669, %v483
      %v2671 = vadd.f32 %v2670, 1e-12
      %v2672 = vrsqrt.pop %v2671
      %v2673 = vmul.f32 %v2665, %v2672
      %v2674 = vlaneseq
      %v2675 = vshrl.u32 %v2674, 7
      %v2676 = vsub.s32 5, %v2675
      %v2677 = vrot.slane %v511, %v2676
      %v2678 = vmul.f32 %v2673, %v2677
      %v2679 = vlaneseq
      %v2680 = vshrl.u32 %v2679, 7
      %v2681 = vsub.s32 6, %v2680
      %v2682 = vrot.slane %v511, %v2681
      %v2683 = vadd.f32 %v2678, %v2682
      %s2684 = scalar_lea.vmem %s7, 8
      %v2685 = vld [vmem:[%s2684] sm:$0xff]
      %s2686 = scalar_lea.vmem %s2, 384
      %v2687 = vld [vmem:[%s2686] sm:$0xff]
      %v2688 = vld [vmem:[%s2686 + $0x8] sm:$0xff]
      %v2689 = vld [vmem:[%s2686 + $0x10] sm:$0xff]
      %v2690 = vld [vmem:[%s2686 + $0x18] sm:$0xff]
      %s2691 = scalar_lea.vmem %s3, 12
      %v2692 = vld [vmem:[%s2691] sm:$0x1]
      %v2694 = vlaneseq
      %v2695 = vshrl.u32 %v2694, 7
      %v2696 = vsub.s32 0, %v2695
      %v2697 = vrot.slane %v2692, %v2696
      %v2700 = vsel %vm479, %v2683, 0
      %2702 = vmatprep.subr.mxu0 0.0
      %2703 = vmatpush1.msra.mxu0 0.0
      %2704 = vmatprep.subr.mxu0 0.0
      %2705 = vmatpush1.msra.mxu0 0.0
      %2706 = vmatprep.subr.mxu0 0.0
      %2707 = vmatpush1.msra.mxu0 0.0
      %2708 = vmatprep.subr.mxu0 0.0
      %2709 = vmatpush1.msra.mxu0 0.0
      %2710 = vmatprep.subr.mxu0 0.0
      %2711 = vmatpush1.msra.mxu0 0.0
      %2712 = vmatprep.subr.mxu0 0.0
      %2713 = vmatpush1.msra.mxu0 0.0
      %2714 = vmatprep.subr.mxu0 0.0
      %2715 = vmatpush1.msra.mxu0 0.0
      %2716 = vmatprep.subr.mxu0 0.0
      %2717 = vmatpush1.msra.mxu0 0.0
      %2718 = vmatprep.subr.mxu0 0.0
      %2719 = vmatpush1.msra.mxu0 0.0
      %2720 = vmatprep.subr.mxu0 0.0
      %2721 = vmatpush1.msra.mxu0 0.0
      %2722 = vmatprep.subr.mxu0 0.0
      %2723 = vmatpush1.msra.mxu0 0.0
      %2724 = vmatprep.subr.mxu0 0.0
      %2725 = vmatpush1.msra.mxu0 0.0
      %2726 = vmatprep.subr.mxu0 0.0
      %2727 = vmatpush1.msra.mxu0 %v2690
      %2728 = vmatprep.subr.mxu0 0.0
      %2729 = vmatpush1.msra.mxu0 %v2689
      %2730 = vmatprep.subr.mxu0 0.0
      %2731 = vmatpush1.msra.mxu0 %v2688
      %2732 = vmatprep.subr.mxu0 0.0
      %2733 = vmatpush1.msra.mxu0 %v2687
      %2734 = vmatprep.subr.mxu0 0.0
      %2735 = vmatpush2.msra.mxu0 0.0
      %2736 = vmatprep.subr.mxu0 0.0
      %2737 = vmatpush2.msra.mxu0 0.0
      %2738 = vmatprep.subr.mxu0 0.0
      %2739 = vmatpush2.msra.mxu0 0.0
      %2740 = vmatprep.subr.mxu0 0.0
      %2741 = vmatpush2.msra.mxu0 0.0
      %2742 = vmatprep.subr.mxu0 0.0
      %2743 = vmatpush2.msra.mxu0 0.0
      %2744 = vmatprep.subr.mxu0 0.0
      %2745 = vmatpush2.msra.mxu0 0.0
      %2746 = vmatprep.subr.mxu0 0.0
      %2747 = vmatpush2.msra.mxu0 0.0
      %2748 = vmatprep.subr.mxu0 0.0
      %2749 = vmatpush2.msra.mxu0 0.0
      %2750 = vmatprep.subr.mxu0 0.0
      %2751 = vmatpush2.msra.mxu0 0.0
      %2752 = vmatprep.subr.mxu0 0.0
      %2753 = vmatpush2.msra.mxu0 0.0
      %2754 = vmatprep.subr.mxu0 0.0
      %2755 = vmatpush2.msra.mxu0 0.0
      %2756 = vmatprep.subr.mxu0 0.0
      %2757 = vmatpush2.msra.mxu0 0.0
      %2758 = vmatprep.subr.mxu0 0.0
      %2759 = vmatpush2.msra.mxu0 0.0
      %2760 = vmatprep.subr.mxu0 0.0
      %2761 = vmatpush2.msra.mxu0 0.0
      %2762 = vmatprep.subr.mxu0 0.0
      %2763 = vmatpush2.msra.mxu0 0.0
      %2764 = vmatprep.subr.mxu0 0.0
      %2765 = vmatpush2.msra.mxu0 0.0
      %2766 = vmatprep.mubr.f32.mxu0 0.0
      %2767 = vmatmul.mubr.f32.gmra.mxu0 %v2700
      %v2768 = vpop.f32.mrf.mxu0
      %v2769 = vadd.f32 %v2697, %v2768
      %v2770 = vpop.f32.mrf.mxu0
      %2771 = vdwg.mxu0
      %s2772 = scalar_lea.vmem %s2, 512
      %v2773 = vld [vmem:[%s2772] sm:$0xff]
      %v2774 = vld [vmem:[%s2772 + $0x8] sm:$0xff]
      %v2775 = vld [vmem:[%s2772 + $0x10] sm:$0xff]
      %v2776 = vld [vmem:[%s2772 + $0x18] sm:$0xff]
      %s2777 = scalar_lea.vmem %s3, 16
      %v2778 = vld [vmem:[%s2777] sm:$0x1]
      %v2780 = vlaneseq
      %v2781 = vshrl.u32 %v2780, 7
      %v2782 = vsub.s32 0, %v2781
      %v2783 = vrot.slane %v2778, %v2782
      %2785 = vmatprep.subr.mxu0 0.0
      %2786 = vmatpush1.msra.mxu0 0.0
      %2787 = vmatprep.subr.mxu0 0.0
      %2788 = vmatpush1.msra.mxu0 0.0
      %2789 = vmatprep.subr.mxu0 0.0
      %2790 = vmatpush1.msra.mxu0 0.0
      %2791 = vmatprep.subr.mxu0 0.0
      %2792 = vmatpush1.msra.mxu0 0.0
      %2793 = vmatprep.subr.mxu0 0.0
      %2794 = vmatpush1.msra.mxu0 0.0
      %2795 = vmatprep.subr.mxu0 0.0
      %2796 = vmatpush1.msra.mxu0 0.0
      %2797 = vmatprep.subr.mxu0 0.0
      %2798 = vmatpush1.msra.mxu0 0.0
      %2799 = vmatprep.subr.mxu0 0.0
      %2800 = vmatpush1.msra.mxu0 0.0
      %2801 = vmatprep.subr.mxu0 0.0
      %2802 = vmatpush1.msra.mxu0 0.0
      %2803 = vmatprep.subr.mxu0 0.0
      %2804 = vmatpush1.msra.mxu0 0.0
      %2805 = vmatprep.subr.mxu0 0.0
      %2806 = vmatpush1.msra.mxu0 0.0
      %2807 = vmatprep.subr.mxu0 0.0
      %2808 = vmatpush1.msra.mxu0 0.0
      %2809 = vmatprep.subr.mxu0 0.0
      %2810 = vmatpush1.msra.mxu0 %v2776
      %2811 = vmatprep.subr.mxu0 0.0
      %2812 = vmatpush1.msra.mxu0 %v2775
      %2813 = vmatprep.subr.mxu0 0.0
      %2814 = vmatpush1.msra.mxu0 %v2774
      %2815 = vmatprep.subr.mxu0 0.0
      %2816 = vmatpush1.msra.mxu0 %v2773
      %2817 = vmatprep.subr.mxu0 0.0
      %2818 = vmatpush2.msra.mxu0 0.0
      %2819 = vmatprep.subr.mxu0 0.0
      %2820 = vmatpush2.msra.mxu0 0.0
      %2821 = vmatprep.subr.mxu0 0.0
      %2822 = vmatpush2.msra.mxu0 0.0
      %2823 = vmatprep.subr.mxu0 0.0
      %2824 = vmatpush2.msra.mxu0 0.0
      %2825 = vmatprep.subr.mxu0 0.0
      %2826 = vmatpush2.msra.mxu0 0.0
      %2827 = vmatprep.subr.mxu0 0.0
      %2828 = vmatpush2.msra.mxu0 0.0
      %2829 = vmatprep.subr.mxu0 0.0
      %2830 = vmatpush2.msra.mxu0 0.0
      %2831 = vmatprep.subr.mxu0 0.0
      %2832 = vmatpush2.msra.mxu0 0.0
      %2833 = vmatprep.subr.mxu0 0.0
      %2834 = vmatpush2.msra.mxu0 0.0
      %2835 = vmatprep.subr.mxu0 0.0
      %2836 = vmatpush2.msra.mxu0 0.0
      %2837 = vmatprep.subr.mxu0 0.0
      %2838 = vmatpush2.msra.mxu0 0.0
      %2839 = vmatprep.subr.mxu0 0.0
      %2840 = vmatpush2.msra.mxu0 0.0
      %2841 = vmatprep.subr.mxu0 0.0
      %2842 = vmatpush2.msra.mxu0 0.0
      %2843 = vmatprep.subr.mxu0 0.0
      %2844 = vmatpush2.msra.mxu0 0.0
      %2845 = vmatprep.subr.mxu0 0.0
      %2846 = vmatpush2.msra.mxu0 0.0
      %2847 = vmatprep.subr.mxu0 0.0
      %2848 = vmatpush2.msra.mxu0 0.0
      %2849 = vmatprep.mubr.f32.mxu0 0.0
      %2850 = vmatmul.mubr.f32.gmra.mxu0 %v2700
      %v2851 = vpop.f32.mrf.mxu0
      %v2852 = vadd.f32 %v2783, %v2851
      %v2853 = vpop.f32.mrf.mxu0
      %2854 = vdwg.mxu0
      %s2855 = scalar_lea.vmem %s2, 640
      %v2856 = vld [vmem:[%s2855] sm:$0xff]
      %v2857 = vld [vmem:[%s2855 + $0x8] sm:$0xff]
      %v2858 = vld [vmem:[%s2855 + $0x10] sm:$0xff]
      %v2859 = vld [vmem:[%s2855 + $0x18] sm:$0xff]
      %s2860 = scalar_lea.vmem %s3, 20
      %v2861 = vld [vmem:[%s2860] sm:$0x1]
      %v2863 = vlaneseq
      %v2864 = vshrl.u32 %v2863, 7
      %v2865 = vsub.s32 0, %v2864
      %v2866 = vrot.slane %v2861, %v2865
      %2868 = vmatprep.subr.mxu0 0.0
      %2869 = vmatpush1.msra.mxu0 0.0
      %2870 = vmatprep.subr.mxu0 0.0
      %2871 = vmatpush1.msra.mxu0 0.0
      %2872 = vmatprep.subr.mxu0 0.0
      %2873 = vmatpush1.msra.mxu0 0.0
      %2874 = vmatprep.subr.mxu0 0.0
      %2875 = vmatpush1.msra.mxu0 0.0
      %2876 = vmatprep.subr.mxu0 0.0
      %2877 = vmatpush1.msra.mxu0 0.0
      %2878 = vmatprep.subr.mxu0 0.0
      %2879 = vmatpush1.msra.mxu0 0.0
      %2880 = vmatprep.subr.mxu0 0.0
      %2881 = vmatpush1.msra.mxu0 0.0
      %2882 = vmatprep.subr.mxu0 0.0
      %2883 = vmatpush1.msra.mxu0 0.0
      %2884 = vmatprep.subr.mxu0 0.0
      %2885 = vmatpush1.msra.mxu0 0.0
      %2886 = vmatprep.subr.mxu0 0.0
      %2887 = vmatpush1.msra.mxu0 0.0
      %2888 = vmatprep.subr.mxu0 0.0
      %2889 = vmatpush1.msra.mxu0 0.0
      %2890 = vmatprep.subr.mxu0 0.0
      %2891 = vmatpush1.msra.mxu0 0.0
      %2892 = vmatprep.subr.mxu0 0.0
      %2893 = vmatpush1.msra.mxu0 %v2859
      %2894 = vmatprep.subr.mxu0 0.0
      %2895 = vmatpush1.msra.mxu0 %v2858
      %2896 = vmatprep.subr.mxu0 0.0
      %2897 = vmatpush1.msra.mxu0 %v2857
      %2898 = vmatprep.subr.mxu0 0.0
      %2899 = vmatpush1.msra.mxu0 %v2856
      %2900 = vmatprep.subr.mxu0 0.0
      %2901 = vmatpush2.msra.mxu0 0.0
      %2902 = vmatprep.subr.mxu0 0.0
      %2903 = vmatpush2.msra.mxu0 0.0
      %2904 = vmatprep.subr.mxu0 0.0
      %2905 = vmatpush2.msra.mxu0 0.0
      %2906 = vmatprep.subr.mxu0 0.0
      %2907 = vmatpush2.msra.mxu0 0.0
      %2908 = vmatprep.subr.mxu0 0.0
      %2909 = vmatpush2.msra.mxu0 0.0
      %2910 = vmatprep.subr.mxu0 0.0
      %2911 = vmatpush2.msra.mxu0 0.0
      %2912 = vmatprep.subr.mxu0 0.0
      %2913 = vmatpush2.msra.mxu0 0.0
      %2914 = vmatprep.subr.mxu0 0.0
      %2915 = vmatpush2.msra.mxu0 0.0
      %2916 = vmatprep.subr.mxu0 0.0
      %2917 = vmatpush2.msra.mxu0 0.0
      %2918 = vmatprep.subr.mxu0 0.0
      %2919 = vmatpush2.msra.mxu0 0.0
      %2920 = vmatprep.subr.mxu0 0.0
      %2921 = vmatpush2.msra.mxu0 0.0
      %2922 = vmatprep.subr.mxu0 0.0
      %2923 = vmatpush2.msra.mxu0 0.0
      %2924 = vmatprep.subr.mxu0 0.0
      %2925 = vmatpush2.msra.mxu0 0.0
      %2926 = vmatprep.subr.mxu0 0.0
      %2927 = vmatpush2.msra.mxu0 0.0
      %2928 = vmatprep.subr.mxu0 0.0
      %2929 = vmatpush2.msra.mxu0 0.0
      %2930 = vmatprep.subr.mxu0 0.0
      %2931 = vmatpush2.msra.mxu0 0.0
      %2932 = vmatprep.mubr.f32.mxu0 0.0
      %2933 = vmatmul.mubr.f32.gmra.mxu0 %v2700
      %v2934 = vpop.f32.mrf.mxu0
      %v2935 = vadd.f32 %v2866, %v2934
      %v2936 = vpop.f32.mrf.mxu0
      %2937 = vdwg.mxu0
      %v2939 = vsel %vm762, %v2769, 0
      %v2942 = vsel %vm762, %v2852, 0
      %2944 = vmatprep.subr.mxu0 0.0
      %2945 = vmatpush1.xpose.msra.mxu0 0.0
      %2946 = vmatprep.subr.mxu0 0.0
      %2947 = vmatpush1.xpose.msra.mxu0 0.0
      %2948 = vmatprep.subr.mxu0 0.0
      %2949 = vmatpush1.xpose.msra.mxu0 0.0
      %2950 = vmatprep.subr.mxu0 0.0
      %2951 = vmatpush1.xpose.msra.mxu0 0.0
      %2952 = vmatprep.subr.mxu0 0.0
      %2953 = vmatpush1.xpose.msra.mxu0 0.0
      %2954 = vmatprep.subr.mxu0 0.0
      %2955 = vmatpush1.xpose.msra.mxu0 0.0
      %2956 = vmatprep.subr.mxu0 0.0
      %2957 = vmatpush1.xpose.msra.mxu0 0.0
      %2958 = vmatprep.subr.mxu0 0.0
      %2959 = vmatpush1.xpose.msra.mxu0 0.0
      %2960 = vmatprep.subr.mxu0 0.0
      %2961 = vmatpush1.xpose.msra.mxu0 0.0
      %2962 = vmatprep.subr.mxu0 0.0
      %2963 = vmatpush1.xpose.msra.mxu0 0.0
      %2964 = vmatprep.subr.mxu0 0.0
      %2965 = vmatpush1.xpose.msra.mxu0 0.0
      %2966 = vmatprep.subr.mxu0 0.0
      %2967 = vmatpush1.xpose.msra.mxu0 0.0
      %2968 = vmatprep.subr.mxu0 0.0
      %2969 = vmatpush1.xpose.msra.mxu0 0.0
      %2970 = vmatprep.subr.mxu0 0.0
      %2971 = vmatpush1.xpose.msra.mxu0 0.0
      %2972 = vmatprep.subr.mxu0 0.0
      %2973 = vmatpush1.xpose.msra.mxu0 0.0
      %2974 = vmatprep.subr.mxu0 0.0
      %2975 = vmatpush1.xpose.msra.mxu0 %v2942
      %2976 = vmatprep.subr.mxu0 0.0
      %2977 = vmatpush2.xpose.msra.mxu0 0.0
      %2978 = vmatprep.subr.mxu0 0.0
      %2979 = vmatpush2.xpose.msra.mxu0 0.0
      %2980 = vmatprep.subr.mxu0 0.0
      %2981 = vmatpush2.xpose.msra.mxu0 0.0
      %2982 = vmatprep.subr.mxu0 0.0
      %2983 = vmatpush2.xpose.msra.mxu0 0.0
      %2984 = vmatprep.subr.mxu0 0.0
      %2985 = vmatpush2.xpose.msra.mxu0 0.0
      %2986 = vmatprep.subr.mxu0 0.0
      %2987 = vmatpush2.xpose.msra.mxu0 0.0
      %2988 = vmatprep.subr.mxu0 0.0
      %2989 = vmatpush2.xpose.msra.mxu0 0.0
      %2990 = vmatprep.subr.mxu0 0.0
      %2991 = vmatpush2.xpose.msra.mxu0 0.0
      %2992 = vmatprep.subr.mxu0 0.0
      %2993 = vmatpush2.xpose.msra.mxu0 0.0
      %2994 = vmatprep.subr.mxu0 0.0
      %2995 = vmatpush2.xpose.msra.mxu0 0.0
      %2996 = vmatprep.subr.mxu0 0.0
      %2997 = vmatpush2.xpose.msra.mxu0 0.0
      %2998 = vmatprep.subr.mxu0 0.0
      %2999 = vmatpush2.xpose.msra.mxu0 0.0
      %3000 = vmatprep.subr.mxu0 0.0
      %3001 = vmatpush2.xpose.msra.mxu0 0.0
      %3002 = vmatprep.subr.mxu0 0.0
      %3003 = vmatpush2.xpose.msra.mxu0 0.0
      %3004 = vmatprep.subr.mxu0 0.0
      %3005 = vmatpush2.xpose.msra.mxu0 0.0
      %3006 = vmatprep.subr.mxu0 0.0
      %3007 = vmatpush2.xpose.msra.mxu0 0.0
      %3008 = vmatprep.mubr.f32.mxu0 0.0
      %3009 = vmatmul.mubr.f32.gmra.mxu0 %v2939
      %v3010 = vpop.f32.mrf.mxu0
      %v3011 = vadd.f32 0.0, %v3010
      %v3012 = vpop.f32.mrf.mxu0
      %3013 = vdwg.mxu0
      %v3014 = vmul.f32 %v3011, 0.35355338
      %v3015 = vadd.f32 %v3014, %v509
      %v3016 = vsel %vm762, %v3015, -inf
      %3017 = vmax.xlane.f32.xlu0 %v3016
      %v3018 = vpop.xlane.xlu0 %3017
      %v3019 = vsub.f32 %v3015, %v3018
      %v3020 = vmul.f32 %v3019, 1.442695
      %v3021 = vpow.pop %v3020
      %v3022 = vsel %vm762, %v3021, 0.0
      %3023 = vadd.xlane.f32.xlu0 %v3022
      %v3024 = vpop.xlane.xlu0 %3023
      %v3025 = vrcp.pop %v3024
      %v3026 = vmul.f32 %v3021, %v3025
      %v3028 = vsel %vm762, %v3026, 0
      %3030 = vmatprep.subr.mxu0 0.0
      %3031 = vmatpush1.msra.mxu0 0.0
      %3032 = vmatprep.subr.mxu0 0.0
      %3033 = vmatpush1.msra.mxu0 0.0
      %3034 = vmatprep.subr.mxu0 0.0
      %3035 = vmatpush1.msra.mxu0 0.0
      %3036 = vmatprep.subr.mxu0 0.0
      %3037 = vmatpush1.msra.mxu0 0.0
      %3038 = vmatprep.subr.mxu0 0.0
      %3039 = vmatpush1.msra.mxu0 0.0
      %3040 = vmatprep.subr.mxu0 0.0
      %3041 = vmatpush1.msra.mxu0 0.0
      %3042 = vmatprep.subr.mxu0 0.0
      %3043 = vmatpush1.msra.mxu0 0.0
      %3044 = vmatprep.subr.mxu0 0.0
      %3045 = vmatpush1.msra.mxu0 0.0
      %3046 = vmatprep.subr.mxu0 0.0
      %3047 = vmatpush1.msra.mxu0 0.0
      %3048 = vmatprep.subr.mxu0 0.0
      %3049 = vmatpush1.msra.mxu0 0.0
      %3050 = vmatprep.subr.mxu0 0.0
      %3051 = vmatpush1.msra.mxu0 0.0
      %3052 = vmatprep.subr.mxu0 0.0
      %3053 = vmatpush1.msra.mxu0 0.0
      %3054 = vmatprep.subr.mxu0 0.0
      %3055 = vmatpush1.msra.mxu0 0.0
      %3056 = vmatprep.subr.mxu0 0.0
      %3057 = vmatpush1.msra.mxu0 0.0
      %3058 = vmatprep.subr.mxu0 0.0
      %3059 = vmatpush1.msra.mxu0 0.0
      %3060 = vmatprep.subr.mxu0 0.0
      %3061 = vmatpush1.msra.mxu0 %v2935
      %3062 = vmatprep.subr.mxu0 0.0
      %3063 = vmatpush2.msra.mxu0 0.0
      %3064 = vmatprep.subr.mxu0 0.0
      %3065 = vmatpush2.msra.mxu0 0.0
      %3066 = vmatprep.subr.mxu0 0.0
      %3067 = vmatpush2.msra.mxu0 0.0
      %3068 = vmatprep.subr.mxu0 0.0
      %3069 = vmatpush2.msra.mxu0 0.0
      %3070 = vmatprep.subr.mxu0 0.0
      %3071 = vmatpush2.msra.mxu0 0.0
      %3072 = vmatprep.subr.mxu0 0.0
      %3073 = vmatpush2.msra.mxu0 0.0
      %3074 = vmatprep.subr.mxu0 0.0
      %3075 = vmatpush2.msra.mxu0 0.0
      %3076 = vmatprep.subr.mxu0 0.0
      %3077 = vmatpush2.msra.mxu0 0.0
      %3078 = vmatprep.subr.mxu0 0.0
      %3079 = vmatpush2.msra.mxu0 0.0
      %3080 = vmatprep.subr.mxu0 0.0
      %3081 = vmatpush2.msra.mxu0 0.0
      %3082 = vmatprep.subr.mxu0 0.0
      %3083 = vmatpush2.msra.mxu0 0.0
      %3084 = vmatprep.subr.mxu0 0.0
      %3085 = vmatpush2.msra.mxu0 0.0
      %3086 = vmatprep.subr.mxu0 0.0
      %3087 = vmatpush2.msra.mxu0 0.0
      %3088 = vmatprep.subr.mxu0 0.0
      %3089 = vmatpush2.msra.mxu0 0.0
      %3090 = vmatprep.subr.mxu0 0.0
      %3091 = vmatpush2.msra.mxu0 0.0
      %3092 = vmatprep.subr.mxu0 0.0
      %3093 = vmatpush2.msra.mxu0 0.0
      %3094 = vmatprep.mubr.f32.mxu0 0.0
      %3095 = vmatmul.mubr.f32.gmra.mxu0 %v3028
      %v3096 = vpop.f32.mrf.mxu0
      %v3097 = vadd.f32 0.0, %v3096
      %v3098 = vpop.f32.mrf.mxu0
      %3099 = vdwg.mxu0
      %s3100 = scalar_lea.vmem %s4, 32
      %v3101 = vld [vmem:[%s3100] sm:$0xff]
      %s3102 = scalar_lea.vmem %s2, 416
      %v3103 = vld [vmem:[%s3102] sm:$0xff]
      %v3104 = vld [vmem:[%s3102 + $0x8] sm:$0xff]
      %v3105 = vld [vmem:[%s3102 + $0x10] sm:$0xff]
      %v3106 = vld [vmem:[%s3102 + $0x18] sm:$0xff]
      %s3107 = scalar_lea.vmem %s3, 13
      %v3108 = vld [vmem:[%s3107] sm:$0x1]
      %v3110 = vlaneseq
      %v3111 = vshrl.u32 %v3110, 7
      %v3112 = vsub.s32 0, %v3111
      %v3113 = vrot.slane %v3108, %v3112
      %3115 = vmatprep.subr.mxu0 0.0
      %3116 = vmatpush1.msra.mxu0 0.0
      %3117 = vmatprep.subr.mxu0 0.0
      %3118 = vmatpush1.msra.mxu0 0.0
      %3119 = vmatprep.subr.mxu0 0.0
      %3120 = vmatpush1.msra.mxu0 0.0
      %3121 = vmatprep.subr.mxu0 0.0
      %3122 = vmatpush1.msra.mxu0 0.0
      %3123 = vmatprep.subr.mxu0 0.0
      %3124 = vmatpush1.msra.mxu0 0.0
      %3125 = vmatprep.subr.mxu0 0.0
      %3126 = vmatpush1.msra.mxu0 0.0
      %3127 = vmatprep.subr.mxu0 0.0
      %3128 = vmatpush1.msra.mxu0 0.0
      %3129 = vmatprep.subr.mxu0 0.0
      %3130 = vmatpush1.msra.mxu0 0.0
      %3131 = vmatprep.subr.mxu0 0.0
      %3132 = vmatpush1.msra.mxu0 0.0
      %3133 = vmatprep.subr.mxu0 0.0
      %3134 = vmatpush1.msra.mxu0 0.0
      %3135 = vmatprep.subr.mxu0 0.0
      %3136 = vmatpush1.msra.mxu0 0.0
      %3137 = vmatprep.subr.mxu0 0.0
      %3138 = vmatpush1.msra.mxu0 0.0
      %3139 = vmatprep.subr.mxu0 0.0
      %3140 = vmatpush1.msra.mxu0 %v3106
      %3141 = vmatprep.subr.mxu0 0.0
      %3142 = vmatpush1.msra.mxu0 %v3105
      %3143 = vmatprep.subr.mxu0 0.0
      %3144 = vmatpush1.msra.mxu0 %v3104
      %3145 = vmatprep.subr.mxu0 0.0
      %3146 = vmatpush1.msra.mxu0 %v3103
      %3147 = vmatprep.subr.mxu0 0.0
      %3148 = vmatpush2.msra.mxu0 0.0
      %3149 = vmatprep.subr.mxu0 0.0
      %3150 = vmatpush2.msra.mxu0 0.0
      %3151 = vmatprep.subr.mxu0 0.0
      %3152 = vmatpush2.msra.mxu0 0.0
      %3153 = vmatprep.subr.mxu0 0.0
      %3154 = vmatpush2.msra.mxu0 0.0
      %3155 = vmatprep.subr.mxu0 0.0
      %3156 = vmatpush2.msra.mxu0 0.0
      %3157 = vmatprep.subr.mxu0 0.0
      %3158 = vmatpush2.msra.mxu0 0.0
      %3159 = vmatprep.subr.mxu0 0.0
      %3160 = vmatpush2.msra.mxu0 0.0
      %3161 = vmatprep.subr.mxu0 0.0
      %3162 = vmatpush2.msra.mxu0 0.0
      %3163 = vmatprep.subr.mxu0 0.0
      %3164 = vmatpush2.msra.mxu0 0.0
      %3165 = vmatprep.subr.mxu0 0.0
      %3166 = vmatpush2.msra.mxu0 0.0
      %3167 = vmatprep.subr.mxu0 0.0
      %3168 = vmatpush2.msra.mxu0 0.0
      %3169 = vmatprep.subr.mxu0 0.0
      %3170 = vmatpush2.msra.mxu0 0.0
      %3171 = vmatprep.subr.mxu0 0.0
      %3172 = vmatpush2.msra.mxu0 0.0
      %3173 = vmatprep.subr.mxu0 0.0
      %3174 = vmatpush2.msra.mxu0 0.0
      %3175 = vmatprep.subr.mxu0 0.0
      %3176 = vmatpush2.msra.mxu0 0.0
      %3177 = vmatprep.subr.mxu0 0.0
      %3178 = vmatpush2.msra.mxu0 0.0
      %3179 = vmatprep.mubr.f32.mxu0 0.0
      %3180 = vmatmul.mubr.f32.gmra.mxu0 %v2700
      %v3181 = vpop.f32.mrf.mxu0
      %v3182 = vadd.f32 %v3113, %v3181
      %v3183 = vpop.f32.mrf.mxu0
      %3184 = vdwg.mxu0
      %s3185 = scalar_lea.vmem %s2, 544
      %v3186 = vld [vmem:[%s3185] sm:$0xff]
      %v3187 = vld [vmem:[%s3185 + $0x8] sm:$0xff]
      %v3188 = vld [vmem:[%s3185 + $0x10] sm:$0xff]
      %v3189 = vld [vmem:[%s3185 + $0x18] sm:$0xff]
      %s3190 = scalar_lea.vmem %s3, 17
      %v3191 = vld [vmem:[%s3190] sm:$0x1]
      %v3193 = vlaneseq
      %v3194 = vshrl.u32 %v3193, 7
      %v3195 = vsub.s32 0, %v3194
      %v3196 = vrot.slane %v3191, %v3195
      %3198 = vmatprep.subr.mxu0 0.0
      %3199 = vmatpush1.msra.mxu0 0.0
      %3200 = vmatprep.subr.mxu0 0.0
      %3201 = vmatpush1.msra.mxu0 0.0
      %3202 = vmatprep.subr.mxu0 0.0
      %3203 = vmatpush1.msra.mxu0 0.0
      %3204 = vmatprep.subr.mxu0 0.0
      %3205 = vmatpush1.msra.mxu0 0.0
      %3206 = vmatprep.subr.mxu0 0.0
      %3207 = vmatpush1.msra.mxu0 0.0
      %3208 = vmatprep.subr.mxu0 0.0
      %3209 = vmatpush1.msra.mxu0 0.0
      %3210 = vmatprep.subr.mxu0 0.0
      %3211 = vmatpush1.msra.mxu0 0.0
      %3212 = vmatprep.subr.mxu0 0.0
      %3213 = vmatpush1.msra.mxu0 0.0
      %3214 = vmatprep.subr.mxu0 0.0
      %3215 = vmatpush1.msra.mxu0 0.0
      %3216 = vmatprep.subr.mxu0 0.0
      %3217 = vmatpush1.msra.mxu0 0.0
      %3218 = vmatprep.subr.mxu0 0.0
      %3219 = vmatpush1.msra.mxu0 0.0
      %3220 = vmatprep.subr.mxu0 0.0
      %3221 = vmatpush1.msra.mxu0 0.0
      %3222 = vmatprep.subr.mxu0 0.0
      %3223 = vmatpush1.msra.mxu0 %v3189
      %3224 = vmatprep.subr.mxu0 0.0
      %3225 = vmatpush1.msra.mxu0 %v3188
      %3226 = vmatprep.subr.mxu0 0.0
      %3227 = vmatpush1.msra.mxu0 %v3187
      %3228 = vmatprep.subr.mxu0 0.0
      %3229 = vmatpush1.msra.mxu0 %v3186
      %3230 = vmatprep.subr.mxu0 0.0
      %3231 = vmatpush2.msra.mxu0 0.0
      %3232 = vmatprep.subr.mxu0 0.0
      %3233 = vmatpush2.msra.mxu0 0.0
      %3234 = vmatprep.subr.mxu0 0.0
      %3235 = vmatpush2.msra.mxu0 0.0
      %3236 = vmatprep.subr.mxu0 0.0
      %3237 = vmatpush2.msra.mxu0 0.0
      %3238 = vmatprep.subr.mxu0 0.0
      %3239 = vmatpush2.msra.mxu0 0.0
      %3240 = vmatprep.subr.mxu0 0.0
      %3241 = vmatpush2.msra.mxu0 0.0
      %3242 = vmatprep.subr.mxu0 0.0
      %3243 = vmatpush2.msra.mxu0 0.0
      %3244 = vmatprep.subr.mxu0 0.0
      %3245 = vmatpush2.msra.mxu0 0.0
      %3246 = vmatprep.subr.mxu0 0.0
      %3247 = vmatpush2.msra.mxu0 0.0
      %3248 = vmatprep.subr.mxu0 0.0
      %3249 = vmatpush2.msra.mxu0 0.0
      %3250 = vmatprep.subr.mxu0 0.0
      %3251 = vmatpush2.msra.mxu0 0.0
      %3252 = vmatprep.subr.mxu0 0.0
      %3253 = vmatpush2.msra.mxu0 0.0
      %3254 = vmatprep.subr.mxu0 0.0
      %3255 = vmatpush2.msra.mxu0 0.0
      %3256 = vmatprep.subr.mxu0 0.0
      %3257 = vmatpush2.msra.mxu0 0.0
      %3258 = vmatprep.subr.mxu0 0.0
      %3259 = vmatpush2.msra.mxu0 0.0
      %3260 = vmatprep.subr.mxu0 0.0
      %3261 = vmatpush2.msra.mxu0 0.0
      %3262 = vmatprep.mubr.f32.mxu0 0.0
      %3263 = vmatmul.mubr.f32.gmra.mxu0 %v2700
      %v3264 = vpop.f32.mrf.mxu0
      %v3265 = vadd.f32 %v3196, %v3264
      %v3266 = vpop.f32.mrf.mxu0
      %3267 = vdwg.mxu0
      %s3268 = scalar_lea.vmem %s2, 672
      %v3269 = vld [vmem:[%s3268] sm:$0xff]
      %v3270 = vld [vmem:[%s3268 + $0x8] sm:$0xff]
      %v3271 = vld [vmem:[%s3268 + $0x10] sm:$0xff]
      %v3272 = vld [vmem:[%s3268 + $0x18] sm:$0xff]
      %s3273 = scalar_lea.vmem %s3, 21
      %v3274 = vld [vmem:[%s3273] sm:$0x1]
      %v3276 = vlaneseq
      %v3277 = vshrl.u32 %v3276, 7
      %v3278 = vsub.s32 0, %v3277
      %v3279 = vrot.slane %v3274, %v3278
      %3281 = vmatprep.subr.mxu0 0.0
      %3282 = vmatpush1.msra.mxu0 0.0
      %3283 = vmatprep.subr.mxu0 0.0
      %3284 = vmatpush1.msra.mxu0 0.0
      %3285 = vmatprep.subr.mxu0 0.0
      %3286 = vmatpush1.msra.mxu0 0.0
      %3287 = vmatprep.subr.mxu0 0.0
      %3288 = vmatpush1.msra.mxu0 0.0
      %3289 = vmatprep.subr.mxu0 0.0
      %3290 = vmatpush1.msra.mxu0 0.0
      %3291 = vmatprep.subr.mxu0 0.0
      %3292 = vmatpush1.msra.mxu0 0.0
      %3293 = vmatprep.subr.mxu0 0.0
      %3294 = vmatpush1.msra.mxu0 0.0
      %3295 = vmatprep.subr.mxu0 0.0
      %3296 = vmatpush1.msra.mxu0 0.0
      %3297 = vmatprep.subr.mxu0 0.0
      %3298 = vmatpush1.msra.mxu0 0.0
      %3299 = vmatprep.subr.mxu0 0.0
      %3300 = vmatpush1.msra.mxu0 0.0
      %3301 = vmatprep.subr.mxu0 0.0
      %3302 = vmatpush1.msra.mxu0 0.0
      %3303 = vmatprep.subr.mxu0 0.0
      %3304 = vmatpush1.msra.mxu0 0.0
      %3305 = vmatprep.subr.mxu0 0.0
      %3306 = vmatpush1.msra.mxu0 %v3272
      %3307 = vmatprep.subr.mxu0 0.0
      %3308 = vmatpush1.msra.mxu0 %v3271
      %3309 = vmatprep.subr.mxu0 0.0
      %3310 = vmatpush1.msra.mxu0 %v3270
      %3311 = vmatprep.subr.mxu0 0.0
      %3312 = vmatpush1.msra.mxu0 %v3269
      %3313 = vmatprep.subr.mxu0 0.0
      %3314 = vmatpush2.msra.mxu0 0.0
      %3315 = vmatprep.subr.mxu0 0.0
      %3316 = vmatpush2.msra.mxu0 0.0
      %3317 = vmatprep.subr.mxu0 0.0
      %3318 = vmatpush2.msra.mxu0 0.0
      %3319 = vmatprep.subr.mxu0 0.0
      %3320 = vmatpush2.msra.mxu0 0.0
      %3321 = vmatprep.subr.mxu0 0.0
      %3322 = vmatpush2.msra.mxu0 0.0
      %3323 = vmatprep.subr.mxu0 0.0
      %3324 = vmatpush2.msra.mxu0 0.0
      %3325 = vmatprep.subr.mxu0 0.0
      %3326 = vmatpush2.msra.mxu0 0.0
      %3327 = vmatprep.subr.mxu0 0.0
      %3328 = vmatpush2.msra.mxu0 0.0
      %3329 = vmatprep.subr.mxu0 0.0
      %3330 = vmatpush2.msra.mxu0 0.0
      %3331 = vmatprep.subr.mxu0 0.0
      %3332 = vmatpush2.msra.mxu0 0.0
      %3333 = vmatprep.subr.mxu0 0.0
      %3334 = vmatpush2.msra.mxu0 0.0
      %3335 = vmatprep.subr.mxu0 0.0
      %3336 = vmatpush2.msra.mxu0 0.0
      %3337 = vmatprep.subr.mxu0 0.0
      %3338 = vmatpush2.msra.mxu0 0.0
      %3339 = vmatprep.subr.mxu0 0.0
      %3340 = vmatpush2.msra.mxu0 0.0
      %3341 = vmatprep.subr.mxu0 0.0
      %3342 = vmatpush2.msra.mxu0 0.0
      %3343 = vmatprep.subr.mxu0 0.0
      %3344 = vmatpush2.msra.mxu0 0.0
      %3345 = vmatprep.mubr.f32.mxu0 0.0
      %3346 = vmatmul.mubr.f32.gmra.mxu0 %v2700
      %v3347 = vpop.f32.mrf.mxu0
      %v3348 = vadd.f32 %v3279, %v3347
      %v3349 = vpop.f32.mrf.mxu0
      %3350 = vdwg.mxu0
      %v3352 = vsel %vm762, %v3182, 0
      %v3355 = vsel %vm762, %v3265, 0
      %3357 = vmatprep.subr.mxu0 0.0
      %3358 = vmatpush1.xpose.msra.mxu0 0.0
      %3359 = vmatprep.subr.mxu0 0.0
      %3360 = vmatpush1.xpose.msra.mxu0 0.0
      %3361 = vmatprep.subr.mxu0 0.0
      %3362 = vmatpush1.xpose.msra.mxu0 0.0
      %3363 = vmatprep.subr.mxu0 0.0
      %3364 = vmatpush1.xpose.msra.mxu0 0.0
      %3365 = vmatprep.subr.mxu0 0.0
      %3366 = vmatpush1.xpose.msra.mxu0 0.0
      %3367 = vmatprep.subr.mxu0 0.0
      %3368 = vmatpush1.xpose.msra.mxu0 0.0
      %3369 = vmatprep.subr.mxu0 0.0
      %3370 = vmatpush1.xpose.msra.mxu0 0.0
      %3371 = vmatprep.subr.mxu0 0.0
      %3372 = vmatpush1.xpose.msra.mxu0 0.0
      %3373 = vmatprep.subr.mxu0 0.0
      %3374 = vmatpush1.xpose.msra.mxu0 0.0
      %3375 = vmatprep.subr.mxu0 0.0
      %3376 = vmatpush1.xpose.msra.mxu0 0.0
      %3377 = vmatprep.subr.mxu0 0.0
      %3378 = vmatpush1.xpose.msra.mxu0 0.0
      %3379 = vmatprep.subr.mxu0 0.0
      %3380 = vmatpush1.xpose.msra.mxu0 0.0
      %3381 = vmatprep.subr.mxu0 0.0
      %3382 = vmatpush1.xpose.msra.mxu0 0.0
      %3383 = vmatprep.subr.mxu0 0.0
      %3384 = vmatpush1.xpose.msra.mxu0 0.0
      %3385 = vmatprep.subr.mxu0 0.0
      %3386 = vmatpush1.xpose.msra.mxu0 0.0
      %3387 = vmatprep.subr.mxu0 0.0
      %3388 = vmatpush1.xpose.msra.mxu0 %v3355
      %3389 = vmatprep.subr.mxu0 0.0
      %3390 = vmatpush2.xpose.msra.mxu0 0.0
      %3391 = vmatprep.subr.mxu0 0.0
      %3392 = vmatpush2.xpose.msra.mxu0 0.0
      %3393 = vmatprep.subr.mxu0 0.0
      %3394 = vmatpush2.xpose.msra.mxu0 0.0
      %3395 = vmatprep.subr.mxu0 0.0
      %3396 = vmatpush2.xpose.msra.mxu0 0.0
      %3397 = vmatprep.subr.mxu0 0.0
      %3398 = vmatpush2.xpose.msra.mxu0 0.0
      %3399 = vmatprep.subr.mxu0 0.0
      %3400 = vmatpush2.xpose.msra.mxu0 0.0
      %3401 = vmatprep.subr.mxu0 0.0
      %3402 = vmatpush2.xpose.msra.mxu0 0.0
      %3403 = vmatprep.subr.mxu0 0.0
      %3404 = vmatpush2.xpose.msra.mxu0 0.0
      %3405 = vmatprep.subr.mxu0 0.0
      %3406 = vmatpush2.xpose.msra.mxu0 0.0
      %3407 = vmatprep.subr.mxu0 0.0
      %3408 = vmatpush2.xpose.msra.mxu0 0.0
      %3409 = vmatprep.subr.mxu0 0.0
      %3410 = vmatpush2.xpose.msra.mxu0 0.0
      %3411 = vmatprep.subr.mxu0 0.0
      %3412 = vmatpush2.xpose.msra.mxu0 0.0
      %3413 = vmatprep.subr.mxu0 0.0
      %3414 = vmatpush2.xpose.msra.mxu0 0.0
      %3415 = vmatprep.subr.mxu0 0.0
      %3416 = vmatpush2.xpose.msra.mxu0 0.0
      %3417 = vmatprep.subr.mxu0 0.0
      %3418 = vmatpush2.xpose.msra.mxu0 0.0
      %3419 = vmatprep.subr.mxu0 0.0
      %3420 = vmatpush2.xpose.msra.mxu0 0.0
      %3421 = vmatprep.mubr.f32.mxu0 0.0
      %3422 = vmatmul.mubr.f32.gmra.mxu0 %v3352
      %v3423 = vpop.f32.mrf.mxu0
      %v3424 = vadd.f32 0.0, %v3423
      %v3425 = vpop.f32.mrf.mxu0
      %3426 = vdwg.mxu0
      %v3427 = vmul.f32 %v3424, 0.35355338
      %v3428 = vadd.f32 %v3427, %v509
      %v3429 = vsel %vm762, %v3428, -inf
      %3430 = vmax.xlane.f32.xlu0 %v3429
      %v3431 = vpop.xlane.xlu0 %3430
      %v3432 = vsub.f32 %v3428, %v3431
      %v3433 = vmul.f32 %v3432, 1.442695
      %v3434 = vpow.pop %v3433
      %v3435 = vsel %vm762, %v3434, 0.0
      %3436 = vadd.xlane.f32.xlu0 %v3435
      %v3437 = vpop.xlane.xlu0 %3436
      %v3438 = vrcp.pop %v3437
      %v3439 = vmul.f32 %v3434, %v3438
      %v3441 = vsel %vm762, %v3439, 0
      %3443 = vmatprep.subr.mxu0 0.0
      %3444 = vmatpush1.msra.mxu0 0.0
      %3445 = vmatprep.subr.mxu0 0.0
      %3446 = vmatpush1.msra.mxu0 0.0
      %3447 = vmatprep.subr.mxu0 0.0
      %3448 = vmatpush1.msra.mxu0 0.0
      %3449 = vmatprep.subr.mxu0 0.0
      %3450 = vmatpush1.msra.mxu0 0.0
      %3451 = vmatprep.subr.mxu0 0.0
      %3452 = vmatpush1.msra.mxu0 0.0
      %3453 = vmatprep.subr.mxu0 0.0
      %3454 = vmatpush1.msra.mxu0 0.0
      %3455 = vmatprep.subr.mxu0 0.0
      %3456 = vmatpush1.msra.mxu0 0.0
      %3457 = vmatprep.subr.mxu0 0.0
      %3458 = vmatpush1.msra.mxu0 0.0
      %3459 = vmatprep.subr.mxu0 0.0
      %3460 = vmatpush1.msra.mxu0 0.0
      %3461 = vmatprep.subr.mxu0 0.0
      %3462 = vmatpush1.msra.mxu0 0.0
      %3463 = vmatprep.subr.mxu0 0.0
      %3464 = vmatpush1.msra.mxu0 0.0
      %3465 = vmatprep.subr.mxu0 0.0
      %3466 = vmatpush1.msra.mxu0 0.0
      %3467 = vmatprep.subr.mxu0 0.0
      %3468 = vmatpush1.msra.mxu0 0.0
      %3469 = vmatprep.subr.mxu0 0.0
      %3470 = vmatpush1.msra.mxu0 0.0
      %3471 = vmatprep.subr.mxu0 0.0
      %3472 = vmatpush1.msra.mxu0 0.0
      %3473 = vmatprep.subr.mxu0 0.0
      %3474 = vmatpush1.msra.mxu0 %v3348
      %3475 = vmatprep.subr.mxu0 0.0
      %3476 = vmatpush2.msra.mxu0 0.0
      %3477 = vmatprep.subr.mxu0 0.0
      %3478 = vmatpush2.msra.mxu0 0.0
      %3479 = vmatprep.subr.mxu0 0.0
      %3480 = vmatpush2.msra.mxu0 0.0
      %3481 = vmatprep.subr.mxu0 0.0
      %3482 = vmatpush2.msra.mxu0 0.0
      %3483 = vmatprep.subr.mxu0 0.0
      %3484 = vmatpush2.msra.mxu0 0.0
      %3485 = vmatprep.subr.mxu0 0.0
      %3486 = vmatpush2.msra.mxu0 0.0
      %3487 = vmatprep.subr.mxu0 0.0
      %3488 = vmatpush2.msra.mxu0 0.0
      %3489 = vmatprep.subr.mxu0 0.0
      %3490 = vmatpush2.msra.mxu0 0.0
      %3491 = vmatprep.subr.mxu0 0.0
      %3492 = vmatpush2.msra.mxu0 0.0
      %3493 = vmatprep.subr.mxu0 0.0
      %3494 = vmatpush2.msra.mxu0 0.0
      %3495 = vmatprep.subr.mxu0 0.0
      %3496 = vmatpush2.msra.mxu0 0.0
      %3497 = vmatprep.subr.mxu0 0.0
      %3498 = vmatpush2.msra.mxu0 0.0
      %3499 = vmatprep.subr.mxu0 0.0
      %3500 = vmatpush2.msra.mxu0 0.0
      %3501 = vmatprep.subr.mxu0 0.0
      %3502 = vmatpush2.msra.mxu0 0.0
      %3503 = vmatprep.subr.mxu0 0.0
      %3504 = vmatpush2.msra.mxu0 0.0
      %3505 = vmatprep.subr.mxu0 0.0
      %3506 = vmatpush2.msra.mxu0 0.0
      %3507 = vmatprep.mubr.f32.mxu0 0.0
      %3508 = vmatmul.mubr.f32.gmra.mxu0 %v3441
      %v3509 = vpop.f32.mrf.mxu0
      %v3510 = vadd.f32 0.0, %v3509
      %v3511 = vpop.f32.mrf.mxu0
      %3512 = vdwg.mxu0
      %s3513 = scalar_lea.vmem %s4, 40
      %v3514 = vld [vmem:[%s3513] sm:$0xff]
      %v3516 = vsel %vm762, %v3510, 0
      %3518 = vmatprep.subr.mxu0 0.0
      %3519 = vmatpush1.msra.mxu0 0.0
      %3520 = vmatprep.subr.mxu0 0.0
      %3521 = vmatpush1.msra.mxu0 0.0
      %3522 = vmatprep.subr.mxu0 0.0
      %3523 = vmatpush1.msra.mxu0 0.0
      %3524 = vmatprep.subr.mxu0 0.0
      %3525 = vmatpush1.msra.mxu0 0.0
      %3526 = vmatprep.subr.mxu0 0.0
      %3527 = vmatpush1.msra.mxu0 0.0
      %3528 = vmatprep.subr.mxu0 0.0
      %3529 = vmatpush1.msra.mxu0 0.0
      %3530 = vmatprep.subr.mxu0 0.0
      %3531 = vmatpush1.msra.mxu0 0.0
      %3532 = vmatprep.subr.mxu0 0.0
      %3533 = vmatpush1.msra.mxu0 0.0
      %3534 = vmatprep.subr.mxu0 0.0
      %3535 = vmatpush1.msra.mxu0 0.0
      %3536 = vmatprep.subr.mxu0 0.0
      %3537 = vmatpush1.msra.mxu0 0.0
      %3538 = vmatprep.subr.mxu0 0.0
      %3539 = vmatpush1.msra.mxu0 0.0
      %3540 = vmatprep.subr.mxu0 0.0
      %3541 = vmatpush1.msra.mxu0 0.0
      %3542 = vmatprep.subr.mxu0 0.0
      %3543 = vmatpush1.msra.mxu0 0.0
      %3544 = vmatprep.subr.mxu0 0.0
      %3545 = vmatpush1.msra.mxu0 0.0
      %3546 = vmatprep.subr.mxu0 0.0
      %3547 = vmatpush1.msra.mxu0 0.0
      %3548 = vmatprep.subr.mxu0 0.0
      %3549 = vmatpush1.msra.mxu0 %v3514
      %3550 = vmatprep.subr.mxu0 0.0
      %3551 = vmatpush2.msra.mxu0 0.0
      %3552 = vmatprep.subr.mxu0 0.0
      %3553 = vmatpush2.msra.mxu0 0.0
      %3554 = vmatprep.subr.mxu0 0.0
      %3555 = vmatpush2.msra.mxu0 0.0
      %3556 = vmatprep.subr.mxu0 0.0
      %3557 = vmatpush2.msra.mxu0 0.0
      %3558 = vmatprep.subr.mxu0 0.0
      %3559 = vmatpush2.msra.mxu0 0.0
      %3560 = vmatprep.subr.mxu0 0.0
      %3561 = vmatpush2.msra.mxu0 0.0
      %3562 = vmatprep.subr.mxu0 0.0
      %3563 = vmatpush2.msra.mxu0 0.0
      %3564 = vmatprep.subr.mxu0 0.0
      %3565 = vmatpush2.msra.mxu0 0.0
      %3566 = vmatprep.subr.mxu0 0.0
      %3567 = vmatpush2.msra.mxu0 0.0
      %3568 = vmatprep.subr.mxu0 0.0
      %3569 = vmatpush2.msra.mxu0 0.0
      %3570 = vmatprep.subr.mxu0 0.0
      %3571 = vmatpush2.msra.mxu0 0.0
      %3572 = vmatprep.subr.mxu0 0.0
      %3573 = vmatpush2.msra.mxu0 0.0
      %3574 = vmatprep.subr.mxu0 0.0
      %3575 = vmatpush2.msra.mxu0 0.0
      %3576 = vmatprep.subr.mxu0 0.0
      %3577 = vmatpush2.msra.mxu0 0.0
      %3578 = vmatprep.subr.mxu0 0.0
      %3579 = vmatpush2.msra.mxu0 0.0
      %3580 = vmatprep.subr.mxu0 0.0
      %3581 = vmatpush2.msra.mxu0 0.0
      %3582 = vmatprep.mubr.f32.mxu0 0.0
      %3583 = vmatmul.mubr.f32.gmra.mxu0 %v3516
      %v3584 = vpop.f32.mrf.mxu0
      %v3585 = vadd.f32 0.0, %v3584
      %v3586 = vpop.f32.mrf.mxu0
      %3587 = vdwg.mxu0
      %v3589 = vsel %vm762, %v3097, 0
      %3591 = vmatprep.subr.mxu0 0.0
      %3592 = vmatpush1.msra.mxu0 0.0
      %3593 = vmatprep.subr.mxu0 0.0
      %3594 = vmatpush1.msra.mxu0 0.0
      %3595 = vmatprep.subr.mxu0 0.0
      %3596 = vmatpush1.msra.mxu0 0.0
      %3597 = vmatprep.subr.mxu0 0.0
      %3598 = vmatpush1.msra.mxu0 0.0
      %3599 = vmatprep.subr.mxu0 0.0
      %3600 = vmatpush1.msra.mxu0 0.0
      %3601 = vmatprep.subr.mxu0 0.0
      %3602 = vmatpush1.msra.mxu0 0.0
      %3603 = vmatprep.subr.mxu0 0.0
      %3604 = vmatpush1.msra.mxu0 0.0
      %3605 = vmatprep.subr.mxu0 0.0
      %3606 = vmatpush1.msra.mxu0 0.0
      %3607 = vmatprep.subr.mxu0 0.0
      %3608 = vmatpush1.msra.mxu0 0.0
      %3609 = vmatprep.subr.mxu0 0.0
      %3610 = vmatpush1.msra.mxu0 0.0
      %3611 = vmatprep.subr.mxu0 0.0
      %3612 = vmatpush1.msra.mxu0 0.0
      %3613 = vmatprep.subr.mxu0 0.0
      %3614 = vmatpush1.msra.mxu0 0.0
      %3615 = vmatprep.subr.mxu0 0.0
      %3616 = vmatpush1.msra.mxu0 0.0
      %3617 = vmatprep.subr.mxu0 0.0
      %3618 = vmatpush1.msra.mxu0 0.0
      %3619 = vmatprep.subr.mxu0 0.0
      %3620 = vmatpush1.msra.mxu0 0.0
      %3621 = vmatprep.subr.mxu0 0.0
      %3622 = vmatpush1.msra.mxu0 %v3101
      %3623 = vmatprep.subr.mxu0 0.0
      %3624 = vmatpush2.msra.mxu0 0.0
      %3625 = vmatprep.subr.mxu0 0.0
      %3626 = vmatpush2.msra.mxu0 0.0
      %3627 = vmatprep.subr.mxu0 0.0
      %3628 = vmatpush2.msra.mxu0 0.0
      %3629 = vmatprep.subr.mxu0 0.0
      %3630 = vmatpush2.msra.mxu0 0.0
      %3631 = vmatprep.subr.mxu0 0.0
      %3632 = vmatpush2.msra.mxu0 0.0
      %3633 = vmatprep.subr.mxu0 0.0
      %3634 = vmatpush2.msra.mxu0 0.0
      %3635 = vmatprep.subr.mxu0 0.0
      %3636 = vmatpush2.msra.mxu0 0.0
      %3637 = vmatprep.subr.mxu0 0.0
      %3638 = vmatpush2.msra.mxu0 0.0
      %3639 = vmatprep.subr.mxu0 0.0
      %3640 = vmatpush2.msra.mxu0 0.0
      %3641 = vmatprep.subr.mxu0 0.0
      %3642 = vmatpush2.msra.mxu0 0.0
      %3643 = vmatprep.subr.mxu0 0.0
      %3644 = vmatpush2.msra.mxu0 0.0
      %3645 = vmatprep.subr.mxu0 0.0
      %3646 = vmatpush2.msra.mxu0 0.0
      %3647 = vmatprep.subr.mxu0 0.0
      %3648 = vmatpush2.msra.mxu0 0.0
      %3649 = vmatprep.subr.mxu0 0.0
      %3650 = vmatpush2.msra.mxu0 0.0
      %3651 = vmatprep.subr.mxu0 0.0
      %3652 = vmatpush2.msra.mxu0 0.0
      %3653 = vmatprep.subr.mxu0 0.0
      %3654 = vmatpush2.msra.mxu0 0.0
      %3655 = vmatprep.mubr.f32.mxu0 0.0
      %3656 = vmatmul.mubr.f32.gmra.mxu0 %v3589
      %v3657 = vpop.f32.mrf.mxu0
      %v3658 = vadd.f32 %v3585, %v3657
      %v3659 = vpop.f32.mrf.mxu0
      %3660 = vdwg.mxu0
      %s3661 = scalar_lea.vmem %s2, 448
      %v3662 = vld [vmem:[%s3661] sm:$0xff]
      %v3663 = vld [vmem:[%s3661 + $0x8] sm:$0xff]
      %v3664 = vld [vmem:[%s3661 + $0x10] sm:$0xff]
      %v3665 = vld [vmem:[%s3661 + $0x18] sm:$0xff]
      %s3666 = scalar_lea.vmem %s3, 14
      %v3667 = vld [vmem:[%s3666] sm:$0x1]
      %v3669 = vlaneseq
      %v3670 = vshrl.u32 %v3669, 7
      %v3671 = vsub.s32 0, %v3670
      %v3672 = vrot.slane %v3667, %v3671
      %3674 = vmatprep.subr.mxu0 0.0
      %3675 = vmatpush1.msra.mxu0 0.0
      %3676 = vmatprep.subr.mxu0 0.0
      %3677 = vmatpush1.msra.mxu0 0.0
      %3678 = vmatprep.subr.mxu0 0.0
      %3679 = vmatpush1.msra.mxu0 0.0
      %3680 = vmatprep.subr.mxu0 0.0
      %3681 = vmatpush1.msra.mxu0 0.0
      %3682 = vmatprep.subr.mxu0 0.0
      %3683 = vmatpush1.msra.mxu0 0.0
      %3684 = vmatprep.subr.mxu0 0.0
      %3685 = vmatpush1.msra.mxu0 0.0
      %3686 = vmatprep.subr.mxu0 0.0
      %3687 = vmatpush1.msra.mxu0 0.0
      %3688 = vmatprep.subr.mxu0 0.0
      %3689 = vmatpush1.msra.mxu0 0.0
      %3690 = vmatprep.subr.mxu0 0.0
      %3691 = vmatpush1.msra.mxu0 0.0
      %3692 = vmatprep.subr.mxu0 0.0
      %3693 = vmatpush1.msra.mxu0 0.0
      %3694 = vmatprep.subr.mxu0 0.0
      %3695 = vmatpush1.msra.mxu0 0.0
      %3696 = vmatprep.subr.mxu0 0.0
      %3697 = vmatpush1.msra.mxu0 0.0
      %3698 = vmatprep.subr.mxu0 0.0
      %3699 = vmatpush1.msra.mxu0 %v3665
      %3700 = vmatprep.subr.mxu0 0.0
      %3701 = vmatpush1.msra.mxu0 %v3664
      %3702 = vmatprep.subr.mxu0 0.0
      %3703 = vmatpush1.msra.mxu0 %v3663
      %3704 = vmatprep.subr.mxu0 0.0
      %3705 = vmatpush1.msra.mxu0 %v3662
      %3706 = vmatprep.subr.mxu0 0.0
      %3707 = vmatpush2.msra.mxu0 0.0
      %3708 = vmatprep.subr.mxu0 0.0
      %3709 = vmatpush2.msra.mxu0 0.0
      %3710 = vmatprep.subr.mxu0 0.0
      %3711 = vmatpush2.msra.mxu0 0.0
      %3712 = vmatprep.subr.mxu0 0.0
      %3713 = vmatpush2.msra.mxu0 0.0
      %3714 = vmatprep.subr.mxu0 0.0
      %3715 = vmatpush2.msra.mxu0 0.0
      %3716 = vmatprep.subr.mxu0 0.0
      %3717 = vmatpush2.msra.mxu0 0.0
      %3718 = vmatprep.subr.mxu0 0.0
      %3719 = vmatpush2.msra.mxu0 0.0
      %3720 = vmatprep.subr.mxu0 0.0
      %3721 = vmatpush2.msra.mxu0 0.0
      %3722 = vmatprep.subr.mxu0 0.0
      %3723 = vmatpush2.msra.mxu0 0.0
      %3724 = vmatprep.subr.mxu0 0.0
      %3725 = vmatpush2.msra.mxu0 0.0
      %3726 = vmatprep.subr.mxu0 0.0
      %3727 = vmatpush2.msra.mxu0 0.0
      %3728 = vmatprep.subr.mxu0 0.0
      %3729 = vmatpush2.msra.mxu0 0.0
      %3730 = vmatprep.subr.mxu0 0.0
      %3731 = vmatpush2.msra.mxu0 0.0
      %3732 = vmatprep.subr.mxu0 0.0
      %3733 = vmatpush2.msra.mxu0 0.0
      %3734 = vmatprep.subr.mxu0 0.0
      %3735 = vmatpush2.msra.mxu0 0.0
      %3736 = vmatprep.subr.mxu0 0.0
      %3737 = vmatpush2.msra.mxu0 0.0
      %3738 = vmatprep.mubr.f32.mxu0 0.0
      %3739 = vmatmul.mubr.f32.gmra.mxu0 %v2700
      %v3740 = vpop.f32.mrf.mxu0
      %v3741 = vadd.f32 %v3672, %v3740
      %v3742 = vpop.f32.mrf.mxu0
      %3743 = vdwg.mxu0
      %s3744 = scalar_lea.vmem %s2, 576
      %v3745 = vld [vmem:[%s3744] sm:$0xff]
      %v3746 = vld [vmem:[%s3744 + $0x8] sm:$0xff]
      %v3747 = vld [vmem:[%s3744 + $0x10] sm:$0xff]
      %v3748 = vld [vmem:[%s3744 + $0x18] sm:$0xff]
      %s3749 = scalar_lea.vmem %s3, 18
      %v3750 = vld [vmem:[%s3749] sm:$0x1]
      %v3752 = vlaneseq
      %v3753 = vshrl.u32 %v3752, 7
      %v3754 = vsub.s32 0, %v3753
      %v3755 = vrot.slane %v3750, %v3754
      %3757 = vmatprep.subr.mxu0 0.0
      %3758 = vmatpush1.msra.mxu0 0.0
      %3759 = vmatprep.subr.mxu0 0.0
      %3760 = vmatpush1.msra.mxu0 0.0
      %3761 = vmatprep.subr.mxu0 0.0
      %3762 = vmatpush1.msra.mxu0 0.0
      %3763 = vmatprep.subr.mxu0 0.0
      %3764 = vmatpush1.msra.mxu0 0.0
      %3765 = vmatprep.subr.mxu0 0.0
      %3766 = vmatpush1.msra.mxu0 0.0
      %3767 = vmatprep.subr.mxu0 0.0
      %3768 = vmatpush1.msra.mxu0 0.0
      %3769 = vmatprep.subr.mxu0 0.0
      %3770 = vmatpush1.msra.mxu0 0.0
      %3771 = vmatprep.subr.mxu0 0.0
      %3772 = vmatpush1.msra.mxu0 0.0
      %3773 = vmatprep.subr.mxu0 0.0
      %3774 = vmatpush1.msra.mxu0 0.0
      %3775 = vmatprep.subr.mxu0 0.0
      %3776 = vmatpush1.msra.mxu0 0.0
      %3777 = vmatprep.subr.mxu0 0.0
      %3778 = vmatpush1.msra.mxu0 0.0
      %3779 = vmatprep.subr.mxu0 0.0
      %3780 = vmatpush1.msra.mxu0 0.0
      %3781 = vmatprep.subr.mxu0 0.0
      %3782 = vmatpush1.msra.mxu0 %v3748
      %3783 = vmatprep.subr.mxu0 0.0
      %3784 = vmatpush1.msra.mxu0 %v3747
      %3785 = vmatprep.subr.mxu0 0.0
      %3786 = vmatpush1.msra.mxu0 %v3746
      %3787 = vmatprep.subr.mxu0 0.0
      %3788 = vmatpush1.msra.mxu0 %v3745
      %3789 = vmatprep.subr.mxu0 0.0
      %3790 = vmatpush2.msra.mxu0 0.0
      %3791 = vmatprep.subr.mxu0 0.0
      %3792 = vmatpush2.msra.mxu0 0.0
      %3793 = vmatprep.subr.mxu0 0.0
      %3794 = vmatpush2.msra.mxu0 0.0
      %3795 = vmatprep.subr.mxu0 0.0
      %3796 = vmatpush2.msra.mxu0 0.0
      %3797 = vmatprep.subr.mxu0 0.0
      %3798 = vmatpush2.msra.mxu0 0.0
      %3799 = vmatprep.subr.mxu0 0.0
      %3800 = vmatpush2.msra.mxu0 0.0
      %3801 = vmatprep.subr.mxu0 0.0
      %3802 = vmatpush2.msra.mxu0 0.0
      %3803 = vmatprep.subr.mxu0 0.0
      %3804 = vmatpush2.msra.mxu0 0.0
      %3805 = vmatprep.subr.mxu0 0.0
      %3806 = vmatpush2.msra.mxu0 0.0
      %3807 = vmatprep.subr.mxu0 0.0
      %3808 = vmatpush2.msra.mxu0 0.0
      %3809 = vmatprep.subr.mxu0 0.0
      %3810 = vmatpush2.msra.mxu0 0.0
      %3811 = vmatprep.subr.mxu0 0.0
      %3812 = vmatpush2.msra.mxu0 0.0
      %3813 = vmatprep.subr.mxu0 0.0
      %3814 = vmatpush2.msra.mxu0 0.0
      %3815 = vmatprep.subr.mxu0 0.0
      %3816 = vmatpush2.msra.mxu0 0.0
      %3817 = vmatprep.subr.mxu0 0.0
      %3818 = vmatpush2.msra.mxu0 0.0
      %3819 = vmatprep.subr.mxu0 0.0
      %3820 = vmatpush2.msra.mxu0 0.0
      %3821 = vmatprep.mubr.f32.mxu0 0.0
      %3822 = vmatmul.mubr.f32.gmra.mxu0 %v2700
      %v3823 = vpop.f32.mrf.mxu0
      %v3824 = vadd.f32 %v3755, %v3823
      %v3825 = vpop.f32.mrf.mxu0
      %3826 = vdwg.mxu0
      %s3827 = scalar_lea.vmem %s2, 704
      %v3828 = vld [vmem:[%s3827] sm:$0xff]
      %v3829 = vld [vmem:[%s3827 + $0x8] sm:$0xff]
      %v3830 = vld [vmem:[%s3827 + $0x10] sm:$0xff]
      %v3831 = vld [vmem:[%s3827 + $0x18] sm:$0xff]
      %s3832 = scalar_lea.vmem %s3, 22
      %v3833 = vld [vmem:[%s3832] sm:$0x1]
      %v3835 = vlaneseq
      %v3836 = vshrl.u32 %v3835, 7
      %v3837 = vsub.s32 0, %v3836
      %v3838 = vrot.slane %v3833, %v3837
      %3840 = vmatprep.subr.mxu0 0.0
      %3841 = vmatpush1.msra.mxu0 0.0
      %3842 = vmatprep.subr.mxu0 0.0
      %3843 = vmatpush1.msra.mxu0 0.0
      %3844 = vmatprep.subr.mxu0 0.0
      %3845 = vmatpush1.msra.mxu0 0.0
      %3846 = vmatprep.subr.mxu0 0.0
      %3847 = vmatpush1.msra.mxu0 0.0
      %3848 = vmatprep.subr.mxu0 0.0
      %3849 = vmatpush1.msra.mxu0 0.0
      %3850 = vmatprep.subr.mxu0 0.0
      %3851 = vmatpush1.msra.mxu0 0.0
      %3852 = vmatprep.subr.mxu0 0.0
      %3853 = vmatpush1.msra.mxu0 0.0
      %3854 = vmatprep.subr.mxu0 0.0
      %3855 = vmatpush1.msra.mxu0 0.0
      %3856 = vmatprep.subr.mxu0 0.0
      %3857 = vmatpush1.msra.mxu0 0.0
      %3858 = vmatprep.subr.mxu0 0.0
      %3859 = vmatpush1.msra.mxu0 0.0
      %3860 = vmatprep.subr.mxu0 0.0
      %3861 = vmatpush1.msra.mxu0 0.0
      %3862 = vmatprep.subr.mxu0 0.0
      %3863 = vmatpush1.msra.mxu0 0.0
      %3864 = vmatprep.subr.mxu0 0.0
      %3865 = vmatpush1.msra.mxu0 %v3831
      %3866 = vmatprep.subr.mxu0 0.0
      %3867 = vmatpush1.msra.mxu0 %v3830
      %3868 = vmatprep.subr.mxu0 0.0
      %3869 = vmatpush1.msra.mxu0 %v3829
      %3870 = vmatprep.subr.mxu0 0.0
      %3871 = vmatpush1.msra.mxu0 %v3828
      %3872 = vmatprep.subr.mxu0 0.0
      %3873 = vmatpush2.msra.mxu0 0.0
      %3874 = vmatprep.subr.mxu0 0.0
      %3875 = vmatpush2.msra.mxu0 0.0
      %3876 = vmatprep.subr.mxu0 0.0
      %3877 = vmatpush2.msra.mxu0 0.0
      %3878 = vmatprep.subr.mxu0 0.0
      %3879 = vmatpush2.msra.mxu0 0.0
      %3880 = vmatprep.subr.mxu0 0.0
      %3881 = vmatpush2.msra.mxu0 0.0
      %3882 = vmatprep.subr.mxu0 0.0
      %3883 = vmatpush2.msra.mxu0 0.0
      %3884 = vmatprep.subr.mxu0 0.0
      %3885 = vmatpush2.msra.mxu0 0.0
      %3886 = vmatprep.subr.mxu0 0.0
      %3887 = vmatpush2.msra.mxu0 0.0
      %3888 = vmatprep.subr.mxu0 0.0
      %3889 = vmatpush2.msra.mxu0 0.0
      %3890 = vmatprep.subr.mxu0 0.0
      %3891 = vmatpush2.msra.mxu0 0.0
      %3892 = vmatprep.subr.mxu0 0.0
      %3893 = vmatpush2.msra.mxu0 0.0
      %3894 = vmatprep.subr.mxu0 0.0
      %3895 = vmatpush2.msra.mxu0 0.0
      %3896 = vmatprep.subr.mxu0 0.0
      %3897 = vmatpush2.msra.mxu0 0.0
      %3898 = vmatprep.subr.mxu0 0.0
      %3899 = vmatpush2.msra.mxu0 0.0
      %3900 = vmatprep.subr.mxu0 0.0
      %3901 = vmatpush2.msra.mxu0 0.0
      %3902 = vmatprep.subr.mxu0 0.0
      %3903 = vmatpush2.msra.mxu0 0.0
      %3904 = vmatprep.mubr.f32.mxu0 0.0
      %3905 = vmatmul.mubr.f32.gmra.mxu0 %v2700
      %v3906 = vpop.f32.mrf.mxu0
      %v3907 = vadd.f32 %v3838, %v3906
      %v3908 = vpop.f32.mrf.mxu0
      %3909 = vdwg.mxu0
      %v3911 = vsel %vm762, %v3741, 0
      %v3914 = vsel %vm762, %v3824, 0
      %3916 = vmatprep.subr.mxu0 0.0
      %3917 = vmatpush1.xpose.msra.mxu0 0.0
      %3918 = vmatprep.subr.mxu0 0.0
      %3919 = vmatpush1.xpose.msra.mxu0 0.0
      %3920 = vmatprep.subr.mxu0 0.0
      %3921 = vmatpush1.xpose.msra.mxu0 0.0
      %3922 = vmatprep.subr.mxu0 0.0
      %3923 = vmatpush1.xpose.msra.mxu0 0.0
      %3924 = vmatprep.subr.mxu0 0.0
      %3925 = vmatpush1.xpose.msra.mxu0 0.0
      %3926 = vmatprep.subr.mxu0 0.0
      %3927 = vmatpush1.xpose.msra.mxu0 0.0
      %3928 = vmatprep.subr.mxu0 0.0
      %3929 = vmatpush1.xpose.msra.mxu0 0.0
      %3930 = vmatprep.subr.mxu0 0.0
      %3931 = vmatpush1.xpose.msra.mxu0 0.0
      %3932 = vmatprep.subr.mxu0 0.0
      %3933 = vmatpush1.xpose.msra.mxu0 0.0
      %3934 = vmatprep.subr.mxu0 0.0
      %3935 = vmatpush1.xpose.msra.mxu0 0.0
      %3936 = vmatprep.subr.mxu0 0.0
      %3937 = vmatpush1.xpose.msra.mxu0 0.0
      %3938 = vmatprep.subr.mxu0 0.0
      %3939 = vmatpush1.xpose.msra.mxu0 0.0
      %3940 = vmatprep.subr.mxu0 0.0
      %3941 = vmatpush1.xpose.msra.mxu0 0.0
      %3942 = vmatprep.subr.mxu0 0.0
      %3943 = vmatpush1.xpose.msra.mxu0 0.0
      %3944 = vmatprep.subr.mxu0 0.0
      %3945 = vmatpush1.xpose.msra.mxu0 0.0
      %3946 = vmatprep.subr.mxu0 0.0
      %3947 = vmatpush1.xpose.msra.mxu0 %v3914
      %3948 = vmatprep.subr.mxu0 0.0
      %3949 = vmatpush2.xpose.msra.mxu0 0.0
      %3950 = vmatprep.subr.mxu0 0.0
      %3951 = vmatpush2.xpose.msra.mxu0 0.0
      %3952 = vmatprep.subr.mxu0 0.0
      %3953 = vmatpush2.xpose.msra.mxu0 0.0
      %3954 = vmatprep.subr.mxu0 0.0
      %3955 = vmatpush2.xpose.msra.mxu0 0.0
      %3956 = vmatprep.subr.mxu0 0.0
      %3957 = vmatpush2.xpose.msra.mxu0 0.0
      %3958 = vmatprep.subr.mxu0 0.0
      %3959 = vmatpush2.xpose.msra.mxu0 0.0
      %3960 = vmatprep.subr.mxu0 0.0
      %3961 = vmatpush2.xpose.msra.mxu0 0.0
      %3962 = vmatprep.subr.mxu0 0.0
      %3963 = vmatpush2.xpose.msra.mxu0 0.0
      %3964 = vmatprep.subr.mxu0 0.0
      %3965 = vmatpush2.xpose.msra.mxu0 0.0
      %3966 = vmatprep.subr.mxu0 0.0
      %3967 = vmatpush2.xpose.msra.mxu0 0.0
      %3968 = vmatprep.subr.mxu0 0.0
      %3969 = vmatpush2.xpose.msra.mxu0 0.0
      %3970 = vmatprep.subr.mxu0 0.0
      %3971 = vmatpush2.xpose.msra.mxu0 0.0
      %3972 = vmatprep.subr.mxu0 0.0
      %3973 = vmatpush2.xpose.msra.mxu0 0.0
      %3974 = vmatprep.subr.mxu0 0.0
      %3975 = vmatpush2.xpose.msra.mxu0 0.0
      %3976 = vmatprep.subr.mxu0 0.0
      %3977 = vmatpush2.xpose.msra.mxu0 0.0
      %3978 = vmatprep.subr.mxu0 0.0
      %3979 = vmatpush2.xpose.msra.mxu0 0.0
      %3980 = vmatprep.mubr.f32.mxu0 0.0
      %3981 = vmatmul.mubr.f32.gmra.mxu0 %v3911
      %v3982 = vpop.f32.mrf.mxu0
      %v3983 = vadd.f32 0.0, %v3982
      %v3984 = vpop.f32.mrf.mxu0
      %3985 = vdwg.mxu0
      %v3986 = vmul.f32 %v3983, 0.35355338
      %v3987 = vadd.f32 %v3986, %v509
      %v3988 = vsel %vm762, %v3987, -inf
      %3989 = vmax.xlane.f32.xlu0 %v3988
      %v3990 = vpop.xlane.xlu0 %3989
      %v3991 = vsub.f32 %v3987, %v3990
      %v3992 = vmul.f32 %v3991, 1.442695
      %v3993 = vpow.pop %v3992
      %v3994 = vsel %vm762, %v3993, 0.0
      %3995 = vadd.xlane.f32.xlu0 %v3994
      %v3996 = vpop.xlane.xlu0 %3995
      %v3997 = vrcp.pop %v3996
      %v3998 = vmul.f32 %v3993, %v3997
      %v4000 = vsel %vm762, %v3998, 0
      %4002 = vmatprep.subr.mxu0 0.0
      %4003 = vmatpush1.msra.mxu0 0.0
      %4004 = vmatprep.subr.mxu0 0.0
      %4005 = vmatpush1.msra.mxu0 0.0
      %4006 = vmatprep.subr.mxu0 0.0
      %4007 = vmatpush1.msra.mxu0 0.0
      %4008 = vmatprep.subr.mxu0 0.0
      %4009 = vmatpush1.msra.mxu0 0.0
      %4010 = vmatprep.subr.mxu0 0.0
      %4011 = vmatpush1.msra.mxu0 0.0
      %4012 = vmatprep.subr.mxu0 0.0
      %4013 = vmatpush1.msra.mxu0 0.0
      %4014 = vmatprep.subr.mxu0 0.0
      %4015 = vmatpush1.msra.mxu0 0.0
      %4016 = vmatprep.subr.mxu0 0.0
      %4017 = vmatpush1.msra.mxu0 0.0
      %4018 = vmatprep.subr.mxu0 0.0
      %4019 = vmatpush1.msra.mxu0 0.0
      %4020 = vmatprep.subr.mxu0 0.0
      %4021 = vmatpush1.msra.mxu0 0.0
      %4022 = vmatprep.subr.mxu0 0.0
      %4023 = vmatpush1.msra.mxu0 0.0
      %4024 = vmatprep.subr.mxu0 0.0
      %4025 = vmatpush1.msra.mxu0 0.0
      %4026 = vmatprep.subr.mxu0 0.0
      %4027 = vmatpush1.msra.mxu0 0.0
      %4028 = vmatprep.subr.mxu0 0.0
      %4029 = vmatpush1.msra.mxu0 0.0
      %4030 = vmatprep.subr.mxu0 0.0
      %4031 = vmatpush1.msra.mxu0 0.0
      %4032 = vmatprep.subr.mxu0 0.0
      %4033 = vmatpush1.msra.mxu0 %v3907
      %4034 = vmatprep.subr.mxu0 0.0
      %4035 = vmatpush2.msra.mxu0 0.0
      %4036 = vmatprep.subr.mxu0 0.0
      %4037 = vmatpush2.msra.mxu0 0.0
      %4038 = vmatprep.subr.mxu0 0.0
      %4039 = vmatpush2.msra.mxu0 0.0
      %4040 = vmatprep.subr.mxu0 0.0
      %4041 = vmatpush2.msra.mxu0 0.0
      %4042 = vmatprep.subr.mxu0 0.0
      %4043 = vmatpush2.msra.mxu0 0.0
      %4044 = vmatprep.subr.mxu0 0.0
      %4045 = vmatpush2.msra.mxu0 0.0
      %4046 = vmatprep.subr.mxu0 0.0
      %4047 = vmatpush2.msra.mxu0 0.0
      %4048 = vmatprep.subr.mxu0 0.0
      %4049 = vmatpush2.msra.mxu0 0.0
      %4050 = vmatprep.subr.mxu0 0.0
      %4051 = vmatpush2.msra.mxu0 0.0
      %4052 = vmatprep.subr.mxu0 0.0
      %4053 = vmatpush2.msra.mxu0 0.0
      %4054 = vmatprep.subr.mxu0 0.0
      %4055 = vmatpush2.msra.mxu0 0.0
      %4056 = vmatprep.subr.mxu0 0.0
      %4057 = vmatpush2.msra.mxu0 0.0
      %4058 = vmatprep.subr.mxu0 0.0
      %4059 = vmatpush2.msra.mxu0 0.0
      %4060 = vmatprep.subr.mxu0 0.0
      %4061 = vmatpush2.msra.mxu0 0.0
      %4062 = vmatprep.subr.mxu0 0.0
      %4063 = vmatpush2.msra.mxu0 0.0
      %4064 = vmatprep.subr.mxu0 0.0
      %4065 = vmatpush2.msra.mxu0 0.0
      %4066 = vmatprep.mubr.f32.mxu0 0.0
      %4067 = vmatmul.mubr.f32.gmra.mxu0 %v4000
      %v4068 = vpop.f32.mrf.mxu0
      %v4069 = vadd.f32 0.0, %v4068
      %v4070 = vpop.f32.mrf.mxu0
      %4071 = vdwg.mxu0
      %s4072 = scalar_lea.vmem %s4, 48
      %v4073 = vld [vmem:[%s4072] sm:$0xff]
      %v4075 = vsel %vm762, %v4069, 0
      %4077 = vmatprep.subr.mxu0 0.0
      %4078 = vmatpush1.msra.mxu0 0.0
      %4079 = vmatprep.subr.mxu0 0.0
      %4080 = vmatpush1.msra.mxu0 0.0
      %4081 = vmatprep.subr.mxu0 0.0
      %4082 = vmatpush1.msra.mxu0 0.0
      %4083 = vmatprep.subr.mxu0 0.0
      %4084 = vmatpush1.msra.mxu0 0.0
      %4085 = vmatprep.subr.mxu0 0.0
      %4086 = vmatpush1.msra.mxu0 0.0
      %4087 = vmatprep.subr.mxu0 0.0
      %4088 = vmatpush1.msra.mxu0 0.0
      %4089 = vmatprep.subr.mxu0 0.0
      %4090 = vmatpush1.msra.mxu0 0.0
      %4091 = vmatprep.subr.mxu0 0.0
      %4092 = vmatpush1.msra.mxu0 0.0
      %4093 = vmatprep.subr.mxu0 0.0
      %4094 = vmatpush1.msra.mxu0 0.0
      %4095 = vmatprep.subr.mxu0 0.0
      %4096 = vmatpush1.msra.mxu0 0.0
      %4097 = vmatprep.subr.mxu0 0.0
      %4098 = vmatpush1.msra.mxu0 0.0
      %4099 = vmatprep.subr.mxu0 0.0
      %4100 = vmatpush1.msra.mxu0 0.0
      %4101 = vmatprep.subr.mxu0 0.0
      %4102 = vmatpush1.msra.mxu0 0.0
      %4103 = vmatprep.subr.mxu0 0.0
      %4104 = vmatpush1.msra.mxu0 0.0
      %4105 = vmatprep.subr.mxu0 0.0
      %4106 = vmatpush1.msra.mxu0 0.0
      %4107 = vmatprep.subr.mxu0 0.0
      %4108 = vmatpush1.msra.mxu0 %v4073
      %4109 = vmatprep.subr.mxu0 0.0
      %4110 = vmatpush2.msra.mxu0 0.0
      %4111 = vmatprep.subr.mxu0 0.0
      %4112 = vmatpush2.msra.mxu0 0.0
      %4113 = vmatprep.subr.mxu0 0.0
      %4114 = vmatpush2.msra.mxu0 0.0
      %4115 = vmatprep.subr.mxu0 0.0
      %4116 = vmatpush2.msra.mxu0 0.0
      %4117 = vmatprep.subr.mxu0 0.0
      %4118 = vmatpush2.msra.mxu0 0.0
      %4119 = vmatprep.subr.mxu0 0.0
      %4120 = vmatpush2.msra.mxu0 0.0
      %4121 = vmatprep.subr.mxu0 0.0
      %4122 = vmatpush2.msra.mxu0 0.0
      %4123 = vmatprep.subr.mxu0 0.0
      %4124 = vmatpush2.msra.mxu0 0.0
      %4125 = vmatprep.subr.mxu0 0.0
      %4126 = vmatpush2.msra.mxu0 0.0
      %4127 = vmatprep.subr.mxu0 0.0
      %4128 = vmatpush2.msra.mxu0 0.0
      %4129 = vmatprep.subr.mxu0 0.0
      %4130 = vmatpush2.msra.mxu0 0.0
      %4131 = vmatprep.subr.mxu0 0.0
      %4132 = vmatpush2.msra.mxu0 0.0
      %4133 = vmatprep.subr.mxu0 0.0
      %4134 = vmatpush2.msra.mxu0 0.0
      %4135 = vmatprep.subr.mxu0 0.0
      %4136 = vmatpush2.msra.mxu0 0.0
      %4137 = vmatprep.subr.mxu0 0.0
      %4138 = vmatpush2.msra.mxu0 0.0
      %4139 = vmatprep.subr.mxu0 0.0
      %4140 = vmatpush2.msra.mxu0 0.0
      %4141 = vmatprep.mubr.f32.mxu0 0.0
      %4142 = vmatmul.mubr.f32.gmra.mxu0 %v4075
      %v4143 = vpop.f32.mrf.mxu0
      %v4144 = vadd.f32 0.0, %v4143
      %v4145 = vpop.f32.mrf.mxu0
      %4146 = vdwg.mxu0
      %v4147 = vadd.f32 %v3658, %v4144
      %s4148 = scalar_lea.vmem %s2, 480
      %v4149 = vld [vmem:[%s4148] sm:$0xff]
      %v4150 = vld [vmem:[%s4148 + $0x8] sm:$0xff]
      %v4151 = vld [vmem:[%s4148 + $0x10] sm:$0xff]
      %v4152 = vld [vmem:[%s4148 + $0x18] sm:$0xff]
      %s4153 = scalar_lea.vmem %s3, 15
      %v4154 = vld [vmem:[%s4153] sm:$0x1]
      %v4156 = vlaneseq
      %v4157 = vshrl.u32 %v4156, 7
      %v4158 = vsub.s32 0, %v4157
      %v4159 = vrot.slane %v4154, %v4158
      %4161 = vmatprep.subr.mxu0 0.0
      %4162 = vmatpush1.msra.mxu0 0.0
      %4163 = vmatprep.subr.mxu0 0.0
      %4164 = vmatpush1.msra.mxu0 0.0
      %4165 = vmatprep.subr.mxu0 0.0
      %4166 = vmatpush1.msra.mxu0 0.0
      %4167 = vmatprep.subr.mxu0 0.0
      %4168 = vmatpush1.msra.mxu0 0.0
      %4169 = vmatprep.subr.mxu0 0.0
      %4170 = vmatpush1.msra.mxu0 0.0
      %4171 = vmatprep.subr.mxu0 0.0
      %4172 = vmatpush1.msra.mxu0 0.0
      %4173 = vmatprep.subr.mxu0 0.0
      %4174 = vmatpush1.msra.mxu0 0.0
      %4175 = vmatprep.subr.mxu0 0.0
      %4176 = vmatpush1.msra.mxu0 0.0
      %4177 = vmatprep.subr.mxu0 0.0
      %4178 = vmatpush1.msra.mxu0 0.0
      %4179 = vmatprep.subr.mxu0 0.0
      %4180 = vmatpush1.msra.mxu0 0.0
      %4181 = vmatprep.subr.mxu0 0.0
      %4182 = vmatpush1.msra.mxu0 0.0
      %4183 = vmatprep.subr.mxu0 0.0
      %4184 = vmatpush1.msra.mxu0 0.0
      %4185 = vmatprep.subr.mxu0 0.0
      %4186 = vmatpush1.msra.mxu0 %v4152
      %4187 = vmatprep.subr.mxu0 0.0
      %4188 = vmatpush1.msra.mxu0 %v4151
      %4189 = vmatprep.subr.mxu0 0.0
      %4190 = vmatpush1.msra.mxu0 %v4150
      %4191 = vmatprep.subr.mxu0 0.0
      %4192 = vmatpush1.msra.mxu0 %v4149
      %4193 = vmatprep.subr.mxu0 0.0
      %4194 = vmatpush2.msra.mxu0 0.0
      %4195 = vmatprep.subr.mxu0 0.0
      %4196 = vmatpush2.msra.mxu0 0.0
      %4197 = vmatprep.subr.mxu0 0.0
      %4198 = vmatpush2.msra.mxu0 0.0
      %4199 = vmatprep.subr.mxu0 0.0
      %4200 = vmatpush2.msra.mxu0 0.0
      %4201 = vmatprep.subr.mxu0 0.0
      %4202 = vmatpush2.msra.mxu0 0.0
      %4203 = vmatprep.subr.mxu0 0.0
      %4204 = vmatpush2.msra.mxu0 0.0
      %4205 = vmatprep.subr.mxu0 0.0
      %4206 = vmatpush2.msra.mxu0 0.0
      %4207 = vmatprep.subr.mxu0 0.0
      %4208 = vmatpush2.msra.mxu0 0.0
      %4209 = vmatprep.subr.mxu0 0.0
      %4210 = vmatpush2.msra.mxu0 0.0
      %4211 = vmatprep.subr.mxu0 0.0
      %4212 = vmatpush2.msra.mxu0 0.0
      %4213 = vmatprep.subr.mxu0 0.0
      %4214 = vmatpush2.msra.mxu0 0.0
      %4215 = vmatprep.subr.mxu0 0.0
      %4216 = vmatpush2.msra.mxu0 0.0
      %4217 = vmatprep.subr.mxu0 0.0
      %4218 = vmatpush2.msra.mxu0 0.0
      %4219 = vmatprep.subr.mxu0 0.0
      %4220 = vmatpush2.msra.mxu0 0.0
      %4221 = vmatprep.subr.mxu0 0.0
      %4222 = vmatpush2.msra.mxu0 0.0
      %4223 = vmatprep.subr.mxu0 0.0
      %4224 = vmatpush2.msra.mxu0 0.0
      %4225 = vmatprep.mubr.f32.mxu0 0.0
      %4226 = vmatmul.mubr.f32.gmra.mxu0 %v2700
      %v4227 = vpop.f32.mrf.mxu0
      %v4228 = vadd.f32 %v4159, %v4227
      %v4229 = vpop.f32.mrf.mxu0
      %4230 = vdwg.mxu0
      %s4231 = scalar_lea.vmem %s2, 608
      %v4232 = vld [vmem:[%s4231] sm:$0xff]
      %v4233 = vld [vmem:[%s4231 + $0x8] sm:$0xff]
      %v4234 = vld [vmem:[%s4231 + $0x10] sm:$0xff]
      %v4235 = vld [vmem:[%s4231 + $0x18] sm:$0xff]
      %s4236 = scalar_lea.vmem %s3, 19
      %v4237 = vld [vmem:[%s4236] sm:$0x1]
      %v4239 = vlaneseq
      %v4240 = vshrl.u32 %v4239, 7
      %v4241 = vsub.s32 0, %v4240
      %v4242 = vrot.slane %v4237, %v4241
      %4244 = vmatprep.subr.mxu0 0.0
      %4245 = vmatpush1.msra.mxu0 0.0
      %4246 = vmatprep.subr.mxu0 0.0
      %4247 = vmatpush1.msra.mxu0 0.0
      %4248 = vmatprep.subr.mxu0 0.0
      %4249 = vmatpush1.msra.mxu0 0.0
      %4250 = vmatprep.subr.mxu0 0.0
      %4251 = vmatpush1.msra.mxu0 0.0
      %4252 = vmatprep.subr.mxu0 0.0
      %4253 = vmatpush1.msra.mxu0 0.0
      %4254 = vmatprep.subr.mxu0 0.0
      %4255 = vmatpush1.msra.mxu0 0.0
      %4256 = vmatprep.subr.mxu0 0.0
      %4257 = vmatpush1.msra.mxu0 0.0
      %4258 = vmatprep.subr.mxu0 0.0
      %4259 = vmatpush1.msra.mxu0 0.0
      %4260 = vmatprep.subr.mxu0 0.0
      %4261 = vmatpush1.msra.mxu0 0.0
      %4262 = vmatprep.subr.mxu0 0.0
      %4263 = vmatpush1.msra.mxu0 0.0
      %4264 = vmatprep.subr.mxu0 0.0
      %4265 = vmatpush1.msra.mxu0 0.0
      %4266 = vmatprep.subr.mxu0 0.0
      %4267 = vmatpush1.msra.mxu0 0.0
      %4268 = vmatprep.subr.mxu0 0.0
      %4269 = vmatpush1.msra.mxu0 %v4235
      %4270 = vmatprep.subr.mxu0 0.0
      %4271 = vmatpush1.msra.mxu0 %v4234
      %4272 = vmatprep.subr.mxu0 0.0
      %4273 = vmatpush1.msra.mxu0 %v4233
      %4274 = vmatprep.subr.mxu0 0.0
      %4275 = vmatpush1.msra.mxu0 %v4232
      %4276 = vmatprep.subr.mxu0 0.0
      %4277 = vmatpush2.msra.mxu0 0.0
      %4278 = vmatprep.subr.mxu0 0.0
      %4279 = vmatpush2.msra.mxu0 0.0
      %4280 = vmatprep.subr.mxu0 0.0
      %4281 = vmatpush2.msra.mxu0 0.0
      %4282 = vmatprep.subr.mxu0 0.0
      %4283 = vmatpush2.msra.mxu0 0.0
      %4284 = vmatprep.subr.mxu0 0.0
      %4285 = vmatpush2.msra.mxu0 0.0
      %4286 = vmatprep.subr.mxu0 0.0
      %4287 = vmatpush2.msra.mxu0 0.0
      %4288 = vmatprep.subr.mxu0 0.0
      %4289 = vmatpush2.msra.mxu0 0.0
      %4290 = vmatprep.subr.mxu0 0.0
      %4291 = vmatpush2.msra.mxu0 0.0
      %4292 = vmatprep.subr.mxu0 0.0
      %4293 = vmatpush2.msra.mxu0 0.0
      %4294 = vmatprep.subr.mxu0 0.0
      %4295 = vmatpush2.msra.mxu0 0.0
      %4296 = vmatprep.subr.mxu0 0.0
      %4297 = vmatpush2.msra.mxu0 0.0
      %4298 = vmatprep.subr.mxu0 0.0
      %4299 = vmatpush2.msra.mxu0 0.0
      %4300 = vmatprep.subr.mxu0 0.0
      %4301 = vmatpush2.msra.mxu0 0.0
      %4302 = vmatprep.subr.mxu0 0.0
      %4303 = vmatpush2.msra.mxu0 0.0
      %4304 = vmatprep.subr.mxu0 0.0
      %4305 = vmatpush2.msra.mxu0 0.0
      %4306 = vmatprep.subr.mxu0 0.0
      %4307 = vmatpush2.msra.mxu0 0.0
      %4308 = vmatprep.mubr.f32.mxu0 0.0
      %4309 = vmatmul.mubr.f32.gmra.mxu0 %v2700
      %v4310 = vpop.f32.mrf.mxu0
      %v4311 = vadd.f32 %v4242, %v4310
      %v4312 = vpop.f32.mrf.mxu0
      %4313 = vdwg.mxu0
      %s4314 = scalar_lea.vmem %s2, 736
      %v4315 = vld [vmem:[%s4314] sm:$0xff]
      %v4316 = vld [vmem:[%s4314 + $0x8] sm:$0xff]
      %v4317 = vld [vmem:[%s4314 + $0x10] sm:$0xff]
      %v4318 = vld [vmem:[%s4314 + $0x18] sm:$0xff]
      %s4319 = scalar_lea.vmem %s3, 23
      %v4320 = vld [vmem:[%s4319] sm:$0x1]
      %v4322 = vlaneseq
      %v4323 = vshrl.u32 %v4322, 7
      %v4324 = vsub.s32 0, %v4323
      %v4325 = vrot.slane %v4320, %v4324
      %4327 = vmatprep.subr.mxu0 0.0
      %4328 = vmatpush1.msra.mxu0 0.0
      %4329 = vmatprep.subr.mxu0 0.0
      %4330 = vmatpush1.msra.mxu0 0.0
      %4331 = vmatprep.subr.mxu0 0.0
      %4332 = vmatpush1.msra.mxu0 0.0
      %4333 = vmatprep.subr.mxu0 0.0
      %4334 = vmatpush1.msra.mxu0 0.0
      %4335 = vmatprep.subr.mxu0 0.0
      %4336 = vmatpush1.msra.mxu0 0.0
      %4337 = vmatprep.subr.mxu0 0.0
      %4338 = vmatpush1.msra.mxu0 0.0
      %4339 = vmatprep.subr.mxu0 0.0
      %4340 = vmatpush1.msra.mxu0 0.0
      %4341 = vmatprep.subr.mxu0 0.0
      %4342 = vmatpush1.msra.mxu0 0.0
      %4343 = vmatprep.subr.mxu0 0.0
      %4344 = vmatpush1.msra.mxu0 0.0
      %4345 = vmatprep.subr.mxu0 0.0
      %4346 = vmatpush1.msra.mxu0 0.0
      %4347 = vmatprep.subr.mxu0 0.0
      %4348 = vmatpush1.msra.mxu0 0.0
      %4349 = vmatprep.subr.mxu0 0.0
      %4350 = vmatpush1.msra.mxu0 0.0
      %4351 = vmatprep.subr.mxu0 0.0
      %4352 = vmatpush1.msra.mxu0 %v4318
      %4353 = vmatprep.subr.mxu0 0.0
      %4354 = vmatpush1.msra.mxu0 %v4317
      %4355 = vmatprep.subr.mxu0 0.0
      %4356 = vmatpush1.msra.mxu0 %v4316
      %4357 = vmatprep.subr.mxu0 0.0
      %4358 = vmatpush1.msra.mxu0 %v4315
      %4359 = vmatprep.subr.mxu0 0.0
      %4360 = vmatpush2.msra.mxu0 0.0
      %4361 = vmatprep.subr.mxu0 0.0
      %4362 = vmatpush2.msra.mxu0 0.0
      %4363 = vmatprep.subr.mxu0 0.0
      %4364 = vmatpush2.msra.mxu0 0.0
      %4365 = vmatprep.subr.mxu0 0.0
      %4366 = vmatpush2.msra.mxu0 0.0
      %4367 = vmatprep.subr.mxu0 0.0
      %4368 = vmatpush2.msra.mxu0 0.0
      %4369 = vmatprep.subr.mxu0 0.0
      %4370 = vmatpush2.msra.mxu0 0.0
      %4371 = vmatprep.subr.mxu0 0.0
      %4372 = vmatpush2.msra.mxu0 0.0
      %4373 = vmatprep.subr.mxu0 0.0
      %4374 = vmatpush2.msra.mxu0 0.0
      %4375 = vmatprep.subr.mxu0 0.0
      %4376 = vmatpush2.msra.mxu0 0.0
      %4377 = vmatprep.subr.mxu0 0.0
      %4378 = vmatpush2.msra.mxu0 0.0
      %4379 = vmatprep.subr.mxu0 0.0
      %4380 = vmatpush2.msra.mxu0 0.0
      %4381 = vmatprep.subr.mxu0 0.0
      %4382 = vmatpush2.msra.mxu0 0.0
      %4383 = vmatprep.subr.mxu0 0.0
      %4384 = vmatpush2.msra.mxu0 0.0
      %4385 = vmatprep.subr.mxu0 0.0
      %4386 = vmatpush2.msra.mxu0 0.0
      %4387 = vmatprep.subr.mxu0 0.0
      %4388 = vmatpush2.msra.mxu0 0.0
      %4389 = vmatprep.subr.mxu0 0.0
      %4390 = vmatpush2.msra.mxu0 0.0
      %4391 = vmatprep.mubr.f32.mxu0 0.0
      %4392 = vmatmul.mubr.f32.gmra.mxu0 %v2700
      %v4393 = vpop.f32.mrf.mxu0
      %v4394 = vadd.f32 %v4325, %v4393
      %v4395 = vpop.f32.mrf.mxu0
      %4396 = vdwg.mxu0
      %v4398 = vsel %vm762, %v4228, 0
      %v4401 = vsel %vm762, %v4311, 0
      %4403 = vmatprep.subr.mxu0 0.0
      %4404 = vmatpush1.xpose.msra.mxu0 0.0
      %4405 = vmatprep.subr.mxu0 0.0
      %4406 = vmatpush1.xpose.msra.mxu0 0.0
      %4407 = vmatprep.subr.mxu0 0.0
      %4408 = vmatpush1.xpose.msra.mxu0 0.0
      %4409 = vmatprep.subr.mxu0 0.0
      %4410 = vmatpush1.xpose.msra.mxu0 0.0
      %4411 = vmatprep.subr.mxu0 0.0
      %4412 = vmatpush1.xpose.msra.mxu0 0.0
      %4413 = vmatprep.subr.mxu0 0.0
      %4414 = vmatpush1.xpose.msra.mxu0 0.0
      %4415 = vmatprep.subr.mxu0 0.0
      %4416 = vmatpush1.xpose.msra.mxu0 0.0
      %4417 = vmatprep.subr.mxu0 0.0
      %4418 = vmatpush1.xpose.msra.mxu0 0.0
      %4419 = vmatprep.subr.mxu0 0.0
      %4420 = vmatpush1.xpose.msra.mxu0 0.0
      %4421 = vmatprep.subr.mxu0 0.0
      %4422 = vmatpush1.xpose.msra.mxu0 0.0
      %4423 = vmatprep.subr.mxu0 0.0
      %4424 = vmatpush1.xpose.msra.mxu0 0.0
      %4425 = vmatprep.subr.mxu0 0.0
      %4426 = vmatpush1.xpose.msra.mxu0 0.0
      %4427 = vmatprep.subr.mxu0 0.0
      %4428 = vmatpush1.xpose.msra.mxu0 0.0
      %4429 = vmatprep.subr.mxu0 0.0
      %4430 = vmatpush1.xpose.msra.mxu0 0.0
      %4431 = vmatprep.subr.mxu0 0.0
      %4432 = vmatpush1.xpose.msra.mxu0 0.0
      %4433 = vmatprep.subr.mxu0 0.0
      %4434 = vmatpush1.xpose.msra.mxu0 %v4401
      %4435 = vmatprep.subr.mxu0 0.0
      %4436 = vmatpush2.xpose.msra.mxu0 0.0
      %4437 = vmatprep.subr.mxu0 0.0
      %4438 = vmatpush2.xpose.msra.mxu0 0.0
      %4439 = vmatprep.subr.mxu0 0.0
      %4440 = vmatpush2.xpose.msra.mxu0 0.0
      %4441 = vmatprep.subr.mxu0 0.0
      %4442 = vmatpush2.xpose.msra.mxu0 0.0
      %4443 = vmatprep.subr.mxu0 0.0
      %4444 = vmatpush2.xpose.msra.mxu0 0.0
      %4445 = vmatprep.subr.mxu0 0.0
      %4446 = vmatpush2.xpose.msra.mxu0 0.0
      %4447 = vmatprep.subr.mxu0 0.0
      %4448 = vmatpush2.xpose.msra.mxu0 0.0
      %4449 = vmatprep.subr.mxu0 0.0
      %4450 = vmatpush2.xpose.msra.mxu0 0.0
      %4451 = vmatprep.subr.mxu0 0.0
      %4452 = vmatpush2.xpose.msra.mxu0 0.0
      %4453 = vmatprep.subr.mxu0 0.0
      %4454 = vmatpush2.xpose.msra.mxu0 0.0
      %4455 = vmatprep.subr.mxu0 0.0
      %4456 = vmatpush2.xpose.msra.mxu0 0.0
      %4457 = vmatprep.subr.mxu0 0.0
      %4458 = vmatpush2.xpose.msra.mxu0 0.0
      %4459 = vmatprep.subr.mxu0 0.0
      %4460 = vmatpush2.xpose.msra.mxu0 0.0
      %4461 = vmatprep.subr.mxu0 0.0
      %4462 = vmatpush2.xpose.msra.mxu0 0.0
      %4463 = vmatprep.subr.mxu0 0.0
      %4464 = vmatpush2.xpose.msra.mxu0 0.0
      %4465 = vmatprep.subr.mxu0 0.0
      %4466 = vmatpush2.xpose.msra.mxu0 0.0
      %4467 = vmatprep.mubr.f32.mxu0 0.0
      %4468 = vmatmul.mubr.f32.gmra.mxu0 %v4398
      %v4469 = vpop.f32.mrf.mxu0
      %v4470 = vadd.f32 0.0, %v4469
      %v4471 = vpop.f32.mrf.mxu0
      %4472 = vdwg.mxu0
      %v4473 = vmul.f32 %v4470, 0.35355338
      %v4474 = vadd.f32 %v4473, %v509
      %v4475 = vsel %vm762, %v4474, -inf
      %4476 = vmax.xlane.f32.xlu0 %v4475
      %v4477 = vpop.xlane.xlu0 %4476
      %v4478 = vsub.f32 %v4474, %v4477
      %v4479 = vmul.f32 %v4478, 1.442695
      %v4480 = vpow.pop %v4479
      %v4481 = vsel %vm762, %v4480, 0.0
      %4482 = vadd.xlane.f32.xlu0 %v4481
      %v4483 = vpop.xlane.xlu0 %4482
      %v4484 = vrcp.pop %v4483
      %v4485 = vmul.f32 %v4480, %v4484
      %v4487 = vsel %vm762, %v4485, 0
      %4489 = vmatprep.subr.mxu0 0.0
      %4490 = vmatpush1.msra.mxu0 0.0
      %4491 = vmatprep.subr.mxu0 0.0
      %4492 = vmatpush1.msra.mxu0 0.0
      %4493 = vmatprep.subr.mxu0 0.0
      %4494 = vmatpush1.msra.mxu0 0.0
      %4495 = vmatprep.subr.mxu0 0.0
      %4496 = vmatpush1.msra.mxu0 0.0
      %4497 = vmatprep.subr.mxu0 0.0
      %4498 = vmatpush1.msra.mxu0 0.0
      %4499 = vmatprep.subr.mxu0 0.0
      %4500 = vmatpush1.msra.mxu0 0.0
      %4501 = vmatprep.subr.mxu0 0.0
      %4502 = vmatpush1.msra.mxu0 0.0
      %4503 = vmatprep.subr.mxu0 0.0
      %4504 = vmatpush1.msra.mxu0 0.0
      %4505 = vmatprep.subr.mxu0 0.0
      %4506 = vmatpush1.msra.mxu0 0.0
      %4507 = vmatprep.subr.mxu0 0.0
      %4508 = vmatpush1.msra.mxu0 0.0
      %4509 = vmatprep.subr.mxu0 0.0
      %4510 = vmatpush1.msra.mxu0 0.0
      %4511 = vmatprep.subr.mxu0 0.0
      %4512 = vmatpush1.msra.mxu0 0.0
      %4513 = vmatprep.subr.mxu0 0.0
      %4514 = vmatpush1.msra.mxu0 0.0
      %4515 = vmatprep.subr.mxu0 0.0
      %4516 = vmatpush1.msra.mxu0 0.0
      %4517 = vmatprep.subr.mxu0 0.0
      %4518 = vmatpush1.msra.mxu0 0.0
      %4519 = vmatprep.subr.mxu0 0.0
      %4520 = vmatpush1.msra.mxu0 %v4394
      %4521 = vmatprep.subr.mxu0 0.0
      %4522 = vmatpush2.msra.mxu0 0.0
      %4523 = vmatprep.subr.mxu0 0.0
      %4524 = vmatpush2.msra.mxu0 0.0
      %4525 = vmatprep.subr.mxu0 0.0
      %4526 = vmatpush2.msra.mxu0 0.0
      %4527 = vmatprep.subr.mxu0 0.0
      %4528 = vmatpush2.msra.mxu0 0.0
      %4529 = vmatprep.subr.mxu0 0.0
      %4530 = vmatpush2.msra.mxu0 0.0
      %4531 = vmatprep.subr.mxu0 0.0
      %4532 = vmatpush2.msra.mxu0 0.0
      %4533 = vmatprep.subr.mxu0 0.0
      %4534 = vmatpush2.msra.mxu0 0.0
      %4535 = vmatprep.subr.mxu0 0.0
      %4536 = vmatpush2.msra.mxu0 0.0
      %4537 = vmatprep.subr.mxu0 0.0
      %4538 = vmatpush2.msra.mxu0 0.0
      %4539 = vmatprep.subr.mxu0 0.0
      %4540 = vmatpush2.msra.mxu0 0.0
      %4541 = vmatprep.subr.mxu0 0.0
      %4542 = vmatpush2.msra.mxu0 0.0
      %4543 = vmatprep.subr.mxu0 0.0
      %4544 = vmatpush2.msra.mxu0 0.0
      %4545 = vmatprep.subr.mxu0 0.0
      %4546 = vmatpush2.msra.mxu0 0.0
      %4547 = vmatprep.subr.mxu0 0.0
      %4548 = vmatpush2.msra.mxu0 0.0
      %4549 = vmatprep.subr.mxu0 0.0
      %4550 = vmatpush2.msra.mxu0 0.0
      %4551 = vmatprep.subr.mxu0 0.0
      %4552 = vmatpush2.msra.mxu0 0.0
      %4553 = vmatprep.mubr.f32.mxu0 0.0
      %4554 = vmatmul.mubr.f32.gmra.mxu0 %v4487
      %v4555 = vpop.f32.mrf.mxu0
      %v4556 = vadd.f32 0.0, %v4555
      %v4557 = vpop.f32.mrf.mxu0
      %4558 = vdwg.mxu0
      %s4559 = scalar_lea.vmem %s4, 56
      %v4560 = vld [vmem:[%s4559] sm:$0xff]
      %v4562 = vsel %vm762, %v4556, 0
      %4564 = vmatprep.subr.mxu0 0.0
      %4565 = vmatpush1.msra.mxu0 0.0
      %4566 = vmatprep.subr.mxu0 0.0
      %4567 = vmatpush1.msra.mxu0 0.0
      %4568 = vmatprep.subr.mxu0 0.0
      %4569 = vmatpush1.msra.mxu0 0.0
      %4570 = vmatprep.subr.mxu0 0.0
      %4571 = vmatpush1.msra.mxu0 0.0
      %4572 = vmatprep.subr.mxu0 0.0
      %4573 = vmatpush1.msra.mxu0 0.0
      %4574 = vmatprep.subr.mxu0 0.0
      %4575 = vmatpush1.msra.mxu0 0.0
      %4576 = vmatprep.subr.mxu0 0.0
      %4577 = vmatpush1.msra.mxu0 0.0
      %4578 = vmatprep.subr.mxu0 0.0
      %4579 = vmatpush1.msra.mxu0 0.0
      %4580 = vmatprep.subr.mxu0 0.0
      %4581 = vmatpush1.msra.mxu0 0.0
      %4582 = vmatprep.subr.mxu0 0.0
      %4583 = vmatpush1.msra.mxu0 0.0
      %4584 = vmatprep.subr.mxu0 0.0
      %4585 = vmatpush1.msra.mxu0 0.0
      %4586 = vmatprep.subr.mxu0 0.0
      %4587 = vmatpush1.msra.mxu0 0.0
      %4588 = vmatprep.subr.mxu0 0.0
      %4589 = vmatpush1.msra.mxu0 0.0
      %4590 = vmatprep.subr.mxu0 0.0
      %4591 = vmatpush1.msra.mxu0 0.0
      %4592 = vmatprep.subr.mxu0 0.0
      %4593 = vmatpush1.msra.mxu0 0.0
      %4594 = vmatprep.subr.mxu0 0.0
      %4595 = vmatpush1.msra.mxu0 %v4560
      %4596 = vmatprep.subr.mxu0 0.0
      %4597 = vmatpush2.msra.mxu0 0.0
      %4598 = vmatprep.subr.mxu0 0.0
      %4599 = vmatpush2.msra.mxu0 0.0
      %4600 = vmatprep.subr.mxu0 0.0
      %4601 = vmatpush2.msra.mxu0 0.0
      %4602 = vmatprep.subr.mxu0 0.0
      %4603 = vmatpush2.msra.mxu0 0.0
      %4604 = vmatprep.subr.mxu0 0.0
      %4605 = vmatpush2.msra.mxu0 0.0
      %4606 = vmatprep.subr.mxu0 0.0
      %4607 = vmatpush2.msra.mxu0 0.0
      %4608 = vmatprep.subr.mxu0 0.0
      %4609 = vmatpush2.msra.mxu0 0.0
      %4610 = vmatprep.subr.mxu0 0.0
      %4611 = vmatpush2.msra.mxu0 0.0
      %4612 = vmatprep.subr.mxu0 0.0
      %4613 = vmatpush2.msra.mxu0 0.0
      %4614 = vmatprep.subr.mxu0 0.0
      %4615 = vmatpush2.msra.mxu0 0.0
      %4616 = vmatprep.subr.mxu0 0.0
      %4617 = vmatpush2.msra.mxu0 0.0
      %4618 = vmatprep.subr.mxu0 0.0
      %4619 = vmatpush2.msra.mxu0 0.0
      %4620 = vmatprep.subr.mxu0 0.0
      %4621 = vmatpush2.msra.mxu0 0.0
      %4622 = vmatprep.subr.mxu0 0.0
      %4623 = vmatpush2.msra.mxu0 0.0
      %4624 = vmatprep.subr.mxu0 0.0
      %4625 = vmatpush2.msra.mxu0 0.0
      %4626 = vmatprep.subr.mxu0 0.0
      %4627 = vmatpush2.msra.mxu0 0.0
      %4628 = vmatprep.mubr.f32.mxu0 0.0
      %4629 = vmatmul.mubr.f32.gmra.mxu0 %v4562
      %v4630 = vpop.f32.mrf.mxu0
      %v4631 = vadd.f32 0.0, %v4630
      %v4632 = vpop.f32.mrf.mxu0
      %4633 = vdwg.mxu0
      %v4634 = vadd.f32 %v4147, %v4631
      %v4635 = vlaneseq
      %v4636 = vshrl.u32 %v4635, 7
      %v4637 = vsub.s32 0, %v4636
      %v4638 = vrot.slane %v2685, %v4637
      %v4639 = vadd.f32 %v4634, %v4638
      %v4640 = vadd.f32 %v4639, %v2683
      %v4641 = vsel %vm479, %v4640, 0.0
      %4642 = vadd.xlane.f32.xlu0 %v4641
      %v4643 = vpop.xlane.xlu0 %4642
      %v4644 = vmul.f32 %v4643, %v483
      %v4645 = vsub.f32 %v4640, %v4644
      %v4646 = vmul.f32 %v4645, %v4645
      %v4647 = vsel %vm479, %v4646, 0.0
      %4648 = vadd.xlane.f32.xlu0 %v4647
      %v4649 = vpop.xlane.xlu0 %4648
      %v4650 = vmul.f32 %v4649, %v483
      %v4651 = vadd.f32 %v4650, 1e-12
      %v4652 = vrsqrt.pop %v4651
      %v4653 = vmul.f32 %v4645, %v4652
      %v4654 = vlaneseq
      %v4655 = vshrl.u32 %v4654, 7
      %v4656 = vsub.s32 1, %v4655
      %v4657 = vrot.slane %v2685, %v4656
      %v4658 = vmul.f32 %v4653, %v4657
      %v4659 = vlaneseq
      %v4660 = vshrl.u32 %v4659, 7
      %v4661 = vsub.s32 2, %v4660
      %v4662 = vrot.slane %v2685, %v4661
      %v4663 = vadd.f32 %v4658, %v4662
      %s4664 = scalar_lea.vmem %s5, 32
      %v4665 = vld [vmem:[%s4664] sm:$0xff]
      %v4666 = vld [vmem:[%s4664 + $0x8] sm:$0xff]
      %v4667 = vld [vmem:[%s4664 + $0x10] sm:$0xff]
      %v4668 = vld [vmem:[%s4664 + $0x18] sm:$0xff]
      %v4669 = vlaneseq
      %v4670 = vshrl.u32 %v4669, 7
      %v4671 = vsub.s32 3, %v4670
      %v4672 = vrot.slane %v2685, %v4671
      %v4674 = vsel %vm479, %v4663, 0
      %4676 = vmatprep.subr.mxu0 0.0
      %4677 = vmatpush1.msra.mxu0 0.0
      %4678 = vmatprep.subr.mxu0 0.0
      %4679 = vmatpush1.msra.mxu0 0.0
      %4680 = vmatprep.subr.mxu0 0.0
      %4681 = vmatpush1.msra.mxu0 0.0
      %4682 = vmatprep.subr.mxu0 0.0
      %4683 = vmatpush1.msra.mxu0 0.0
      %4684 = vmatprep.subr.mxu0 0.0
      %4685 = vmatpush1.msra.mxu0 0.0
      %4686 = vmatprep.subr.mxu0 0.0
      %4687 = vmatpush1.msra.mxu0 0.0
      %4688 = vmatprep.subr.mxu0 0.0
      %4689 = vmatpush1.msra.mxu0 0.0
      %4690 = vmatprep.subr.mxu0 0.0
      %4691 = vmatpush1.msra.mxu0 0.0
      %4692 = vmatprep.subr.mxu0 0.0
      %4693 = vmatpush1.msra.mxu0 0.0
      %4694 = vmatprep.subr.mxu0 0.0
      %4695 = vmatpush1.msra.mxu0 0.0
      %4696 = vmatprep.subr.mxu0 0.0
      %4697 = vmatpush1.msra.mxu0 0.0
      %4698 = vmatprep.subr.mxu0 0.0
      %4699 = vmatpush1.msra.mxu0 0.0
      %4700 = vmatprep.subr.mxu0 0.0
      %4701 = vmatpush1.msra.mxu0 %v4668
      %4702 = vmatprep.subr.mxu0 0.0
      %4703 = vmatpush1.msra.mxu0 %v4667
      %4704 = vmatprep.subr.mxu0 0.0
      %4705 = vmatpush1.msra.mxu0 %v4666
      %4706 = vmatprep.subr.mxu0 0.0
      %4707 = vmatpush1.msra.mxu0 %v4665
      %4708 = vmatprep.subr.mxu0 0.0
      %4709 = vmatpush2.msra.mxu0 0.0
      %4710 = vmatprep.subr.mxu0 0.0
      %4711 = vmatpush2.msra.mxu0 0.0
      %4712 = vmatprep.subr.mxu0 0.0
      %4713 = vmatpush2.msra.mxu0 0.0
      %4714 = vmatprep.subr.mxu0 0.0
      %4715 = vmatpush2.msra.mxu0 0.0
      %4716 = vmatprep.subr.mxu0 0.0
      %4717 = vmatpush2.msra.mxu0 0.0
      %4718 = vmatprep.subr.mxu0 0.0
      %4719 = vmatpush2.msra.mxu0 0.0
      %4720 = vmatprep.subr.mxu0 0.0
      %4721 = vmatpush2.msra.mxu0 0.0
      %4722 = vmatprep.subr.mxu0 0.0
      %4723 = vmatpush2.msra.mxu0 0.0
      %4724 = vmatprep.subr.mxu0 0.0
      %4725 = vmatpush2.msra.mxu0 0.0
      %4726 = vmatprep.subr.mxu0 0.0
      %4727 = vmatpush2.msra.mxu0 0.0
      %4728 = vmatprep.subr.mxu0 0.0
      %4729 = vmatpush2.msra.mxu0 0.0
      %4730 = vmatprep.subr.mxu0 0.0
      %4731 = vmatpush2.msra.mxu0 0.0
      %4732 = vmatprep.subr.mxu0 0.0
      %4733 = vmatpush2.msra.mxu0 0.0
      %4734 = vmatprep.subr.mxu0 0.0
      %4735 = vmatpush2.msra.mxu0 0.0
      %4736 = vmatprep.subr.mxu0 0.0
      %4737 = vmatpush2.msra.mxu0 0.0
      %4738 = vmatprep.subr.mxu0 0.0
      %4739 = vmatpush2.msra.mxu0 0.0
      %4740 = vmatprep.mubr.f32.mxu0 0.0
      %4741 = vmatmul.mubr.f32.gmra.mxu0 %v4674
      %v4742 = vpop.f32.mrf.mxu0
      %v4743 = vadd.f32 %v4672, %v4742
      %v4744 = vpop.f32.mrf.mxu0
      %4745 = vdwg.mxu0
      %v4746 = vmul.f32 %v4743, 0.5
      %v4747 = vmul.f32 %v4743, 0.70710677
      %v4748 = verf.f32.pop %v4747
      %v4749 = vadd.f32 %v4748, 1.0
      %v4750 = vmul.f32 %v4746, %v4749
      %s4751 = scalar_lea.vmem %s6, 64
      %v4752 = vld [vmem:[%s4751] sm:$0xff]
      %v4753 = vld [vmem:[%s4751 + $0x8] sm:$0xff]
      %v4754 = vld [vmem:[%s4751 + $0x10] sm:$0xff]
      %v4755 = vld [vmem:[%s4751 + $0x18] sm:$0xff]
      %v4756 = vld [vmem:[%s4751 + $0x20] sm:$0xff]
      %v4757 = vld [vmem:[%s4751 + $0x28] sm:$0xff]
      %v4758 = vld [vmem:[%s4751 + $0x30] sm:$0xff]
      %v4759 = vld [vmem:[%s4751 + $0x38] sm:$0xff]
      %v4760 = vlaneseq
      %v4761 = vshrl.u32 %v4760, 7
      %v4762 = vsub.s32 4, %v4761
      %v4763 = vrot.slane %v2685, %v4762
      %v4765 = vsel %vm2586, %v4750, 0
      %4767 = vmatprep.subr.mxu0 0.0
      %4768 = vmatpush1.msra.mxu0 0.0
      %4769 = vmatprep.subr.mxu0 0.0
      %4770 = vmatpush1.msra.mxu0 0.0
      %4771 = vmatprep.subr.mxu0 0.0
      %4772 = vmatpush1.msra.mxu0 0.0
      %4773 = vmatprep.subr.mxu0 0.0
      %4774 = vmatpush1.msra.mxu0 0.0
      %4775 = vmatprep.subr.mxu0 0.0
      %4776 = vmatpush1.msra.mxu0 0.0
      %4777 = vmatprep.subr.mxu0 0.0
      %4778 = vmatpush1.msra.mxu0 0.0
      %4779 = vmatprep.subr.mxu0 0.0
      %4780 = vmatpush1.msra.mxu0 0.0
      %4781 = vmatprep.subr.mxu0 0.0
      %4782 = vmatpush1.msra.mxu0 0.0
      %4783 = vmatprep.subr.mxu0 0.0
      %4784 = vmatpush1.msra.mxu0 %v4759
      %4785 = vmatprep.subr.mxu0 0.0
      %4786 = vmatpush1.msra.mxu0 %v4758
      %4787 = vmatprep.subr.mxu0 0.0
      %4788 = vmatpush1.msra.mxu0 %v4757
      %4789 = vmatprep.subr.mxu0 0.0
      %4790 = vmatpush1.msra.mxu0 %v4756
      %4791 = vmatprep.subr.mxu0 0.0
      %4792 = vmatpush1.msra.mxu0 %v4755
      %4793 = vmatprep.subr.mxu0 0.0
      %4794 = vmatpush1.msra.mxu0 %v4754
      %4795 = vmatprep.subr.mxu0 0.0
      %4796 = vmatpush1.msra.mxu0 %v4753
      %4797 = vmatprep.subr.mxu0 0.0
      %4798 = vmatpush1.msra.mxu0 %v4752
      %4799 = vmatprep.subr.mxu0 0.0
      %4800 = vmatpush2.msra.mxu0 0.0
      %4801 = vmatprep.subr.mxu0 0.0
      %4802 = vmatpush2.msra.mxu0 0.0
      %4803 = vmatprep.subr.mxu0 0.0
      %4804 = vmatpush2.msra.mxu0 0.0
      %4805 = vmatprep.subr.mxu0 0.0
      %4806 = vmatpush2.msra.mxu0 0.0
      %4807 = vmatprep.subr.mxu0 0.0
      %4808 = vmatpush2.msra.mxu0 0.0
      %4809 = vmatprep.subr.mxu0 0.0
      %4810 = vmatpush2.msra.mxu0 0.0
      %4811 = vmatprep.subr.mxu0 0.0
      %4812 = vmatpush2.msra.mxu0 0.0
      %4813 = vmatprep.subr.mxu0 0.0
      %4814 = vmatpush2.msra.mxu0 0.0
      %4815 = vmatprep.subr.mxu0 0.0
      %4816 = vmatpush2.msra.mxu0 0.0
      %4817 = vmatprep.subr.mxu0 0.0
      %4818 = vmatpush2.msra.mxu0 0.0
      %4819 = vmatprep.subr.mxu0 0.0
      %4820 = vmatpush2.msra.mxu0 0.0
      %4821 = vmatprep.subr.mxu0 0.0
      %4822 = vmatpush2.msra.mxu0 0.0
      %4823 = vmatprep.subr.mxu0 0.0
      %4824 = vmatpush2.msra.mxu0 0.0
      %4825 = vmatprep.subr.mxu0 0.0
      %4826 = vmatpush2.msra.mxu0 0.0
      %4827 = vmatprep.subr.mxu0 0.0
      %4828 = vmatpush2.msra.mxu0 0.0
      %4829 = vmatprep.subr.mxu0 0.0
      %4830 = vmatpush2.msra.mxu0 0.0
      %4831 = vmatprep.mubr.f32.mxu0 0.0
      %4832 = vmatmul.mubr.f32.gmra.mxu0 %v4765
      %v4833 = vpop.f32.mrf.mxu0
      %v4834 = vadd.f32 %v4763, %v4833
      %v4835 = vpop.f32.mrf.mxu0
      %4836 = vdwg.mxu0
      %v4837 = vadd.f32 %v4834, %v4663
      %v4838 = vsel %vm479, %v4837, 0.0
      %4839 = vadd.xlane.f32.xlu0 %v4838
      %v4840 = vpop.xlane.xlu0 %4839
      %v4841 = vmul.f32 %v4840, %v483
      %v4842 = vsub.f32 %v4837, %v4841
      %v4843 = vmul.f32 %v4842, %v4842
      %v4844 = vsel %vm479, %v4843, 0.0
      %4845 = vadd.xlane.f32.xlu0 %v4844
      %v4846 = vpop.xlane.xlu0 %4845
      %v4847 = vmul.f32 %v4846, %v483
      %v4848 = vadd.f32 %v4847, 1e-12
      %v4849 = vrsqrt.pop %v4848
      %v4850 = vmul.f32 %v4842, %v4849
      %v4851 = vlaneseq
      %v4852 = vshrl.u32 %v4851, 7
      %v4853 = vsub.s32 5, %v4852
      %v4854 = vrot.slane %v2685, %v4853
      %v4855 = vmul.f32 %v4850, %v4854
      %v4856 = vlaneseq
      %v4857 = vshrl.u32 %v4856, 7
      %v4858 = vsub.s32 6, %v4857
      %v4859 = vrot.slane %v2685, %v4858
      %v4860 = vadd.f32 %v4855, %v4859
      %v4861 = vld [vmem:[%s8] sm:$0xff]
      %v4862 = vld [vmem:[%s8 + $0x8] sm:$0xff]
      %v4863 = vld [vmem:[%s8 + $0x10] sm:$0xff]
      %v4864 = vld [vmem:[%s8 + $0x18] sm:$0xff]
      %v4865 = vlaneseq
      %v4866 = vshrl.u32 %v4865, 7
      %v4867 = vsub.s32 2, %v4866
      %v4868 = vrot.slane %v477, %v4867
      %v4870 = vsel %vm479, %v4860, 0
      %4872 = vmatprep.subr.mxu0 0.0
      %4873 = vmatpush1.msra.mxu0 0.0
      %4874 = vmatprep.subr.mxu0 0.0
      %4875 = vmatpush1.msra.mxu0 0.0
      %4876 = vmatprep.subr.mxu0 0.0
      %4877 = vmatpush1.msra.mxu0 0.0
      %4878 = vmatprep.subr.mxu0 0.0
      %4879 = vmatpush1.msra.mxu0 0.0
      %4880 = vmatprep.subr.mxu0 0.0
      %4881 = vmatpush1.msra.mxu0 0.0
      %4882 = vmatprep.subr.mxu0 0.0
      %4883 = vmatpush1.msra.mxu0 0.0
      %4884 = vmatprep.subr.mxu0 0.0
      %4885 = vmatpush1.msra.mxu0 0.0
      %4886 = vmatprep.subr.mxu0 0.0
      %4887 = vmatpush1.msra.mxu0 0.0
      %4888 = vmatprep.subr.mxu0 0.0
      %4889 = vmatpush1.msra.mxu0 0.0
      %4890 = vmatprep.subr.mxu0 0.0
      %4891 = vmatpush1.msra.mxu0 0.0
      %4892 = vmatprep.subr.mxu0 0.0
      %4893 = vmatpush1.msra.mxu0 0.0
      %4894 = vmatprep.subr.mxu0 0.0
      %4895 = vmatpush1.msra.mxu0 0.0
      %4896 = vmatprep.subr.mxu0 0.0
      %4897 = vmatpush1.msra.mxu0 %v4864
      %4898 = vmatprep.subr.mxu0 0.0
      %4899 = vmatpush1.msra.mxu0 %v4863
      %4900 = vmatprep.subr.mxu0 0.0
      %4901 = vmatpush1.msra.mxu0 %v4862
      %4902 = vmatprep.subr.mxu0 0.0
      %4903 = vmatpush1.msra.mxu0 %v4861
      %4904 = vmatprep.subr.mxu0 0.0
      %4905 = vmatpush2.msra.mxu0 0.0
      %4906 = vmatprep.subr.mxu0 0.0
      %4907 = vmatpush2.msra.mxu0 0.0
      %4908 = vmatprep.subr.mxu0 0.0
      %4909 = vmatpush2.msra.mxu0 0.0
      %4910 = vmatprep.subr.mxu0 0.0
      %4911 = vmatpush2.msra.mxu0 0.0
      %4912 = vmatprep.subr.mxu0 0.0
      %4913 = vmatpush2.msra.mxu0 0.0
      %4914 = vmatprep.subr.mxu0 0.0
      %4915 = vmatpush2.msra.mxu0 0.0
      %4916 = vmatprep.subr.mxu0 0.0
      %4917 = vmatpush2.msra.mxu0 0.0
      %4918 = vmatprep.subr.mxu0 0.0
      %4919 = vmatpush2.msra.mxu0 0.0
      %4920 = vmatprep.subr.mxu0 0.0
      %4921 = vmatpush2.msra.mxu0 0.0
      %4922 = vmatprep.subr.mxu0 0.0
      %4923 = vmatpush2.msra.mxu0 0.0
      %4924 = vmatprep.subr.mxu0 0.0
      %4925 = vmatpush2.msra.mxu0 0.0
      %4926 = vmatprep.subr.mxu0 0.0
      %4927 = vmatpush2.msra.mxu0 0.0
      %4928 = vmatprep.subr.mxu0 0.0
      %4929 = vmatpush2.msra.mxu0 0.0
      %4930 = vmatprep.subr.mxu0 0.0
      %4931 = vmatpush2.msra.mxu0 0.0
      %4932 = vmatprep.subr.mxu0 0.0
      %4933 = vmatpush2.msra.mxu0 0.0
      %4934 = vmatprep.subr.mxu0 0.0
      %4935 = vmatpush2.msra.mxu0 0.0
      %4936 = vmatprep.mubr.f32.mxu0 0.0
      %4937 = vmatmul.mubr.f32.gmra.mxu0 %v4870
      %v4938 = vpop.f32.mrf.mxu0
      %v4939 = vadd.f32 %v4868, %v4938
      %v4940 = vpop.f32.mrf.mxu0
      %4941 = vdwg.mxu0
      %v4942 = vtanh.pop %v4939
      %v4943 = vld [vmem:[%s9] sm:$0xff]
      %v4944 = vld [vmem:[%s9 + $0x8] sm:$0xff]
      %v4945 = vld [vmem:[%s9 + $0x10] sm:$0xff]
      %v4946 = vld [vmem:[%s9 + $0x18] sm:$0xff]
      %v4947 = vlaneseq
      %v4948 = vshrl.u32 %v4947, 7
      %v4949 = vsub.s32 3, %v4948
      %v4950 = vrot.slane %v477, %v4949
      %v4952 = vsel %vm479, %v4942, 0
      %4954 = vmatprep.subr.mxu0 0.0
      %4955 = vmatpush1.msra.mxu0 0.0
      %4956 = vmatprep.subr.mxu0 0.0
      %4957 = vmatpush1.msra.mxu0 0.0
      %4958 = vmatprep.subr.mxu0 0.0
      %4959 = vmatpush1.msra.mxu0 0.0
      %4960 = vmatprep.subr.mxu0 0.0
      %4961 = vmatpush1.msra.mxu0 0.0
      %4962 = vmatprep.subr.mxu0 0.0
      %4963 = vmatpush1.msra.mxu0 0.0
      %4964 = vmatprep.subr.mxu0 0.0
      %4965 = vmatpush1.msra.mxu0 0.0
      %4966 = vmatprep.subr.mxu0 0.0
      %4967 = vmatpush1.msra.mxu0 0.0
      %4968 = vmatprep.subr.mxu0 0.0
      %4969 = vmatpush1.msra.mxu0 0.0
      %4970 = vmatprep.subr.mxu0 0.0
      %4971 = vmatpush1.msra.mxu0 0.0
      %4972 = vmatprep.subr.mxu0 0.0
      %4973 = vmatpush1.msra.mxu0 0.0
      %4974 = vmatprep.subr.mxu0 0.0
      %4975 = vmatpush1.msra.mxu0 0.0
      %4976 = vmatprep.subr.mxu0 0.0
      %4977 = vmatpush1.msra.mxu0 0.0
      %4978 = vmatprep.subr.mxu0 0.0
      %4979 = vmatpush1.msra.mxu0 %v4946
      %4980 = vmatprep.subr.mxu0 0.0
      %4981 = vmatpush1.msra.mxu0 %v4945
      %4982 = vmatprep.subr.mxu0 0.0
      %4983 = vmatpush1.msra.mxu0 %v4944
      %4984 = vmatprep.subr.mxu0 0.0
      %4985 = vmatpush1.msra.mxu0 %v4943
      %4986 = vmatprep.subr.mxu0 0.0
      %4987 = vmatpush2.msra.mxu0 0.0
      %4988 = vmatprep.subr.mxu0 0.0
      %4989 = vmatpush2.msra.mxu0 0.0
      %4990 = vmatprep.subr.mxu0 0.0
      %4991 = vmatpush2.msra.mxu0 0.0
      %4992 = vmatprep.subr.mxu0 0.0
      %4993 = vmatpush2.msra.mxu0 0.0
      %4994 = vmatprep.subr.mxu0 0.0
      %4995 = vmatpush2.msra.mxu0 0.0
      %4996 = vmatprep.subr.mxu0 0.0
      %4997 = vmatpush2.msra.mxu0 0.0
      %4998 = vmatprep.subr.mxu0 0.0
      %4999 = vmatpush2.msra.mxu0 0.0
      %5000 = vmatprep.subr.mxu0 0.0
      %5001 = vmatpush2.msra.mxu0 0.0
      %5002 = vmatprep.subr.mxu0 0.0
      %5003 = vmatpush2.msra.mxu0 0.0
      %5004 = vmatprep.subr.mxu0 0.0
      %5005 = vmatpush2.msra.mxu0 0.0
      %5006 = vmatprep.subr.mxu0 0.0
      %5007 = vmatpush2.msra.mxu0 0.0
      %5008 = vmatprep.subr.mxu0 0.0
      %5009 = vmatpush2.msra.mxu0 0.0
      %5010 = vmatprep.subr.mxu0 0.0
      %5011 = vmatpush2.msra.mxu0 0.0
      %5012 = vmatprep.subr.mxu0 0.0
      %5013 = vmatpush2.msra.mxu0 0.0
      %5014 = vmatprep.subr.mxu0 0.0
      %5015 = vmatpush2.msra.mxu0 0.0
      %5016 = vmatprep.subr.mxu0 0.0
      %5017 = vmatpush2.msra.mxu0 0.0
      %5018 = vmatprep.mubr.f32.mxu0 0.0
      %5019 = vmatmul.mubr.f32.gmra.mxu0 %v4952
      %v5020 = vpop.f32.mrf.mxu0
      %v5021 = vadd.f32 %v4950, %v5020
      %v5022 = vpop.f32.mrf.mxu0
      %5023 = vdwg.mxu0
      %v5024 = vmul.f32 %v5021, 0.5
      %v5025 = vmul.f32 %v5021, 0.70710677
      %v5026 = verf.f32.pop %v5025
      %v5027 = vadd.f32 %v5026, 1.0
      %v5028 = vmul.f32 %v5024, %v5027
      %v5029 = vld [vmem:[%s10] sm:$0xff]
      %v5030 = vld [vmem:[%s10 + $0x8] sm:$0xff]
      %v5031 = vld [vmem:[%s10 + $0x10] sm:$0xff]
      %v5032 = vld [vmem:[%s10 + $0x18] sm:$0xff]
      %v5033 = vld [vmem:[%s10 + $0x20] sm:$0xff]
      %v5034 = vld [vmem:[%s10 + $0x28] sm:$0xff]
      %v5035 = vld [vmem:[%s10 + $0x30] sm:$0xff]
      %v5036 = vld [vmem:[%s10 + $0x38] sm:$0xff]
      %v5037 = vld [vmem:[%s10 + $0x40] sm:$0xff]
      %v5038 = vld [vmem:[%s10 + $0x48] sm:$0xff]
      %v5039 = vld [vmem:[%s10 + $0x50] sm:$0xff]
      %v5040 = vld [vmem:[%s10 + $0x58] sm:$0xff]
      %v5041 = vld [vmem:[%s10 + $0x60] sm:$0xff]
      %v5042 = vld [vmem:[%s10 + $0x68] sm:$0xff]
      %v5043 = vld [vmem:[%s10 + $0x70] sm:$0xff]
      %v5044 = vld [vmem:[%s10 + $0x78] sm:$0xff]
      %v5045 = vlaneseq
      %v5046 = vshrl.u32 %v5045, 7
      %v5047 = vsub.s32 4, %v5046
      %v5048 = vrot.slane %v477, %v5047
      %5049 = vmatprep.subr.mxu0 0.0
      %5050 = vmatpush1.msra.mxu0 %v5044
      %5051 = vmatprep.subr.mxu0 0.0
      %5052 = vmatpush1.msra.mxu0 %v5043
      %5053 = vmatprep.subr.mxu0 0.0
      %5054 = vmatpush1.msra.mxu0 %v5042
      %5055 = vmatprep.subr.mxu0 0.0
      %5056 = vmatpush1.msra.mxu0 %v5041
      %5057 = vmatprep.subr.mxu0 0.0
      %5058 = vmatpush1.msra.mxu0 %v5040
      %5059 = vmatprep.subr.mxu0 0.0
      %5060 = vmatpush1.msra.mxu0 %v5039
      %5061 = vmatprep.subr.mxu0 0.0
      %5062 = vmatpush1.msra.mxu0 %v5038
      %5063 = vmatprep.subr.mxu0 0.0
      %5064 = vmatpush1.msra.mxu0 %v5037
      %5065 = vmatprep.subr.mxu0 0.0
      %5066 = vmatpush1.msra.mxu0 %v5036
      %5067 = vmatprep.subr.mxu0 0.0
      %5068 = vmatpush1.msra.mxu0 %v5035
      %5069 = vmatprep.subr.mxu0 0.0
      %5070 = vmatpush1.msra.mxu0 %v5034
      %5071 = vmatprep.subr.mxu0 0.0
      %5072 = vmatpush1.msra.mxu0 %v5033
      %5073 = vmatprep.subr.mxu0 0.0
      %5074 = vmatpush1.msra.mxu0 %v5032
      %5075 = vmatprep.subr.mxu0 0.0
      %5076 = vmatpush1.msra.mxu0 %v5031
      %5077 = vmatprep.subr.mxu0 0.0
      %5078 = vmatpush1.msra.mxu0 %v5030
      %5079 = vmatprep.subr.mxu0 0.0
      %5080 = vmatpush1.msra.mxu0 %v5029
      %5081 = vmatprep.subr.mxu0 0.0
      %5082 = vmatpush2.msra.mxu0 0.0
      %5083 = vmatprep.subr.mxu0 0.0
      %5084 = vmatpush2.msra.mxu0 0.0
      %5085 = vmatprep.subr.mxu0 0.0
      %5086 = vmatpush2.msra.mxu0 0.0
      %5087 = vmatprep.subr.mxu0 0.0
      %5088 = vmatpush2.msra.mxu0 0.0
      %5089 = vmatprep.subr.mxu0 0.0
      %5090 = vmatpush2.msra.mxu0 0.0
      %5091 = vmatprep.subr.mxu0 0.0
      %5092 = vmatpush2.msra.mxu0 0.0
      %5093 = vmatprep.subr.mxu0 0.0
      %5094 = vmatpush2.msra.mxu0 0.0
      %5095 = vmatprep.subr.mxu0 0.0
      %5096 = vmatpush2.msra.mxu0 0.0
      %5097 = vmatprep.subr.mxu0 0.0
      %5098 = vmatpush2.msra.mxu0 0.0
      %5099 = vmatprep.subr.mxu0 0.0
      %5100 = vmatpush2.msra.mxu0 0.0
      %5101 = vmatprep.subr.mxu0 0.0
      %5102 = vmatpush2.msra.mxu0 0.0
      %5103 = vmatprep.subr.mxu0 0.0
      %5104 = vmatpush2.msra.mxu0 0.0
      %5105 = vmatprep.subr.mxu0 0.0
      %5106 = vmatpush2.msra.mxu0 0.0
      %5107 = vmatprep.subr.mxu0 0.0
      %5108 = vmatpush2.msra.mxu0 0.0
      %5109 = vmatprep.subr.mxu0 0.0
      %5110 = vmatpush2.msra.mxu0 0.0
      %5111 = vmatprep.subr.mxu0 0.0
      %5112 = vmatpush2.msra.mxu0 0.0
      %5113 = vmatprep.mubr.f32.mxu0 0.0
      %5114 = vmatmul.mubr.f32.gmra.mxu0 %v5028
      %v5115 = vpop.f32.mrf.mxu0
      %v5116 = vadd.f32 %v5048, %v5115
      %v5117 = vpop.f32.mrf.mxu0
      %5118 = vdwg.mxu0
      %v5119 = vmul.f32 %v5116, 0.5
      %v5120 = vmul.f32 %v5116, 0.70710677
      %v5121 = verf.f32.pop %v5120
      %v5122 = vadd.f32 %v5121, 1.0
      %v5123 = vmul.f32 %v5119, %v5122
      %v5124 = vld [vmem:[%s11] sm:$0xff]
      %v5125 = vld [vmem:[%s11 + $0x8] sm:$0xff]
      %v5126 = vld [vmem:[%s11 + $0x10] sm:$0xff]
      %v5127 = vld [vmem:[%s11 + $0x18] sm:$0xff]
      %v5128 = vld [vmem:[%s11 + $0x20] sm:$0xff]
      %v5129 = vld [vmem:[%s11 + $0x28] sm:$0xff]
      %v5130 = vld [vmem:[%s11 + $0x30] sm:$0xff]
      %v5131 = vld [vmem:[%s11 + $0x38] sm:$0xff]
      %v5132 = vlaneseq
      %v5133 = vshrl.u32 %v5132, 7
      %v5134 = vsub.s32 5, %v5133
      %v5135 = vrot.slane %v477, %v5134
      %v5137 = vsel %vm2586, %v5123, 0
      %5139 = vmatprep.subr.mxu0 0.0
      %5140 = vmatpush1.msra.mxu0 0.0
      %5141 = vmatprep.subr.mxu0 0.0
      %5142 = vmatpush1.msra.mxu0 0.0
      %5143 = vmatprep.subr.mxu0 0.0
      %5144 = vmatpush1.msra.mxu0 0.0
      %5145 = vmatprep.subr.mxu0 0.0
      %5146 = vmatpush1.msra.mxu0 0.0
      %5147 = vmatprep.subr.mxu0 0.0
      %5148 = vmatpush1.msra.mxu0 0.0
      %5149 = vmatprep.subr.mxu0 0.0
      %5150 = vmatpush1.msra.mxu0 0.0
      %5151 = vmatprep.subr.mxu0 0.0
      %5152 = vmatpush1.msra.mxu0 0.0
      %5153 = vmatprep.subr.mxu0 0.0
      %5154 = vmatpush1.msra.mxu0 0.0
      %5155 = vmatprep.subr.mxu0 0.0
      %5156 = vmatpush1.msra.mxu0 %v5131
      %5157 = vmatprep.subr.mxu0 0.0
      %5158 = vmatpush1.msra.mxu0 %v5130
      %5159 = vmatprep.subr.mxu0 0.0
      %5160 = vmatpush1.msra.mxu0 %v5129
      %5161 = vmatprep.subr.mxu0 0.0
      %5162 = vmatpush1.msra.mxu0 %v5128
      %5163 = vmatprep.subr.mxu0 0.0
      %5164 = vmatpush1.msra.mxu0 %v5127
      %5165 = vmatprep.subr.mxu0 0.0
      %5166 = vmatpush1.msra.mxu0 %v5126
      %5167 = vmatprep.subr.mxu0 0.0
      %5168 = vmatpush1.msra.mxu0 %v5125
      %5169 = vmatprep.subr.mxu0 0.0
      %5170 = vmatpush1.msra.mxu0 %v5124
      %5171 = vmatprep.subr.mxu0 0.0
      %5172 = vmatpush2.msra.mxu0 0.0
      %5173 = vmatprep.subr.mxu0 0.0
      %5174 = vmatpush2.msra.mxu0 0.0
      %5175 = vmatprep.subr.mxu0 0.0
      %5176 = vmatpush2.msra.mxu0 0.0
      %5177 = vmatprep.subr.mxu0 0.0
      %5178 = vmatpush2.msra.mxu0 0.0
      %5179 = vmatprep.subr.mxu0 0.0
      %5180 = vmatpush2.msra.mxu0 0.0
      %5181 = vmatprep.subr.mxu0 0.0
      %5182 = vmatpush2.msra.mxu0 0.0
      %5183 = vmatprep.subr.mxu0 0.0
      %5184 = vmatpush2.msra.mxu0 0.0
      %5185 = vmatprep.subr.mxu0 0.0
      %5186 = vmatpush2.msra.mxu0 0.0
      %5187 = vmatprep.subr.mxu0 0.0
      %5188 = vmatpush2.msra.mxu0 0.0
      %5189 = vmatprep.subr.mxu0 0.0
      %5190 = vmatpush2.msra.mxu0 0.0
      %5191 = vmatprep.subr.mxu0 0.0
      %5192 = vmatpush2.msra.mxu0 0.0
      %5193 = vmatprep.subr.mxu0 0.0
      %5194 = vmatpush2.msra.mxu0 0.0
      %5195 = vmatprep.subr.mxu0 0.0
      %5196 = vmatpush2.msra.mxu0 0.0
      %5197 = vmatprep.subr.mxu0 0.0
      %5198 = vmatpush2.msra.mxu0 0.0
      %5199 = vmatprep.subr.mxu0 0.0
      %5200 = vmatpush2.msra.mxu0 0.0
      %5201 = vmatprep.subr.mxu0 0.0
      %5202 = vmatpush2.msra.mxu0 0.0
      %5203 = vmatprep.mubr.f32.mxu0 0.0
      %5204 = vmatmul.mubr.f32.gmra.mxu0 %v5137
      %v5205 = vpop.f32.mrf.mxu0
      %v5206 = vadd.f32 %v5135, %v5205
      %v5207 = vpop.f32.mrf.mxu0
      %5208 = vdwg.mxu0
      %v5209 = vmul.f32 %v5206, 0.5
      %v5210 = vmul.f32 %v5206, 0.70710677
      %v5211 = verf.f32.pop %v5210
      %v5212 = vadd.f32 %v5211, 1.0
      %v5213 = vmul.f32 %v5209, %v5212
      %v5214 = vld [vmem:[%s12] sm:$0xff]
      %v5215 = vld [vmem:[%s12 + $0x8] sm:$0xff]
      %v5216 = vlaneseq
      %v5217 = vshrl.u32 %v5216, 7
      %v5218 = vsub.s32 6, %v5217
      %v5219 = vrot.slane %v477, %v5218
      %vm5220 = vcmask 130048
      %v5222 = vsel %vm5220, %v5213, 0
      %5224 = vmatprep.subr.mxu0 0.0
      %5225 = vmatpush1.msra.mxu0 0.0
      %5226 = vmatprep.subr.mxu0 0.0
      %5227 = vmatpush1.msra.mxu0 0.0
      %5228 = vmatprep.subr.mxu0 0.0
      %5229 = vmatpush1.msra.mxu0 0.0
      %5230 = vmatprep.subr.mxu0 0.0
      %5231 = vmatpush1.msra.mxu0 0.0
      %5232 = vmatprep.subr.mxu0 0.0
      %5233 = vmatpush1.msra.mxu0 0.0
      %5234 = vmatprep.subr.mxu0 0.0
      %5235 = vmatpush1.msra.mxu0 0.0
      %5236 = vmatprep.subr.mxu0 0.0
      %5237 = vmatpush1.msra.mxu0 0.0
      %5238 = vmatprep.subr.mxu0 0.0
      %5239 = vmatpush1.msra.mxu0 0.0
      %5240 = vmatprep.subr.mxu0 0.0
      %5241 = vmatpush1.msra.mxu0 0.0
      %5242 = vmatprep.subr.mxu0 0.0
      %5243 = vmatpush1.msra.mxu0 0.0
      %5244 = vmatprep.subr.mxu0 0.0
      %5245 = vmatpush1.msra.mxu0 0.0
      %5246 = vmatprep.subr.mxu0 0.0
      %5247 = vmatpush1.msra.mxu0 0.0
      %5248 = vmatprep.subr.mxu0 0.0
      %5249 = vmatpush1.msra.mxu0 0.0
      %5250 = vmatprep.subr.mxu0 0.0
      %5251 = vmatpush1.msra.mxu0 0.0
      %5252 = vmatprep.subr.mxu0 0.0
      %5253 = vmatpush1.msra.mxu0 %v5215
      %5254 = vmatprep.subr.mxu0 0.0
      %5255 = vmatpush1.msra.mxu0 %v5214
      %5256 = vmatprep.subr.mxu0 0.0
      %5257 = vmatpush2.msra.mxu0 0.0
      %5258 = vmatprep.subr.mxu0 0.0
      %5259 = vmatpush2.msra.mxu0 0.0
      %5260 = vmatprep.subr.mxu0 0.0
      %5261 = vmatpush2.msra.mxu0 0.0
      %5262 = vmatprep.subr.mxu0 0.0
      %5263 = vmatpush2.msra.mxu0 0.0
      %5264 = vmatprep.subr.mxu0 0.0
      %5265 = vmatpush2.msra.mxu0 0.0
      %5266 = vmatprep.subr.mxu0 0.0
      %5267 = vmatpush2.msra.mxu0 0.0
      %5268 = vmatprep.subr.mxu0 0.0
      %5269 = vmatpush2.msra.mxu0 0.0
      %5270 = vmatprep.subr.mxu0 0.0
      %5271 = vmatpush2.msra.mxu0 0.0
      %5272 = vmatprep.subr.mxu0 0.0
      %5273 = vmatpush2.msra.mxu0 0.0
      %5274 = vmatprep.subr.mxu0 0.0
      %5275 = vmatpush2.msra.mxu0 0.0
      %5276 = vmatprep.subr.mxu0 0.0
      %5277 = vmatpush2.msra.mxu0 0.0
      %5278 = vmatprep.subr.mxu0 0.0
      %5279 = vmatpush2.msra.mxu0 0.0
      %5280 = vmatprep.subr.mxu0 0.0
      %5281 = vmatpush2.msra.mxu0 0.0
      %5282 = vmatprep.subr.mxu0 0.0
      %5283 = vmatpush2.msra.mxu0 0.0
      %5284 = vmatprep.subr.mxu0 0.0
      %5285 = vmatpush2.msra.mxu0 0.0
      %5286 = vmatprep.subr.mxu0 0.0
      %5287 = vmatpush2.msra.mxu0 0.0
      %5288 = vmatprep.mubr.f32.mxu0 0.0
      %5289 = vmatmul.mubr.f32.gmra.mxu0 %v5222
      %v5290 = vpop.f32.mrf.mxu0
      %v5291 = vadd.f32 %v5219, %v5290
      %v5292 = vpop.f32.mrf.mxu0
      %5293 = vdwg.mxu0
      %5294 = vst [vmem:[%s476] sm:$0xff] %v5291
      %p5295 = scmp.lt.s32.totalorder %s25, 1
      %s5296 = scalar_select %p5295, %s25, 1
      %s5297 = smul.addr %s5296, 8
      %s5298 = scalar_lea.vmem %s14, %s5297
      // Predicated region
      $region77: #{forward.1} parent=75 // pred_check
        %p5299 = pneg %p347
      $region78: #{forward.1} parent=75 // pred_check_branch
        %5301 = sbr.rel (%p5299) target = $region80
      $region79: #{forward.1} parent=75 // pred_region
        _
      $region80: #{forward.1} parent=75 // pred_fallthru
        _
    $region76: #{forward.1} parent=5 // pred_fallthru
      _
    %p5302 = scmp.le.s32.totalorder 2, %s20
    // Predicated region
    $region81: #{forward.1} parent=5 // pred_check
      %p5303 = pneg %p5302
    $region82: #{forward.1} parent=5 // pred_check_branch
      %5305 = sbr.rel (%p5303) target = $region84
    $region83: #{forward.1} parent=5 // pred_region
      %s5306 = ssub.s32 %s20, 2
      // Predicated region
      $region85: #{forward.1} parent=83 // pred_check
        %p5307 = pneg %p353
      $region86: #{forward.1} parent=83 // pred_check_branch
        %5309 = sbr.rel (%p5307) target = $region88
      $region87: #{forward.1} parent=83 // pred_region
        %p5310 = scmp.lt.s32.totalorder %s26, 1
        %s5311 = scalar_select %p5310, %s26, 1
        %s5312 = smul.addr %s5311, 8
        %s5313 = scalar_lea.vmem %s14, %s5312
      $region88: #{forward.1} parent=83 // pred_fallthru
        _
    $region84: #{forward.1} parent=5 // pred_fallthru
      _
  $region6: #{forward.1} parent=0 // loop_footer
    %s24 = sadd.s32 1, %s20
  $region7: #{forward.1} parent=0 // loop_footer_branch
    %19 = sbr.rel target = $region3
  $region8: #{forward.1} parent=0 // loop_exit
    _

</llo_original>
